<compile_context>
chip_gen: v7x
topology: tpu7x:2x2x1
jax: 0.10.0
libtpu: 0.0.40
codegen_flags: <defaults>
</compile_context>

<pallas_src>
import numpy as np
import jax
import jax.numpy as jnp
from jax.experimental import pallas as pl
from jax.experimental.pallas import tpu as pltpu

KH = KW = 7
PAD = 3
C = 16  # fixed by the module: Conv2d(16, 16, 7)


def _model_kernel(xcat_ref, x1_ref, xadd_ref, m1_ref, m3_ref, m4_ref, b_ref,
                  out_ref, pad32_ref, pad16_ref):
    H, WC = x1_ref.shape           # WC = W * C  (lane-dense activations)

    # Zero the padded scratches once. Each conv fully rewrites the interior,
    # so the 3-wide zero border remains valid for every stage.
    pad32_ref[...] = jnp.zeros_like(pad32_ref)
    pad16_ref[...] = jnp.zeros_like(pad16_ref)

    bias = b_ref[...]              # (3, WC), load once

    def conv(pad_ref, lane0, x, m_ref, b_row):
        # Write the interior of the padded buffer (border already zero).
        pad_ref[pl.ds(PAD, H), pl.ds(lane0, x.shape[1])] = x
        acc = jnp.zeros((H, WC), jnp.float32)
        for kh in range(KH):       # 7 matmuls, K = (W+6)*Cin (kw + Cin packed into K)
            acc = acc + jnp.dot(pad_ref[pl.ds(kh, H), :], m_ref[kh],
                                preferred_element_type=jnp.float32)
        return acc + b_row

    xcat = xcat_ref[...]           # (H, W*2C) = concat(x1, x2) channels-fastest
    x1 = x1_ref[...]

    # stage 1: conv1(x1) + conv2(x2) fused as a single Cin=32 conv, then relu
    v4 = jnp.maximum(conv(pad32_ref, PAD * (2 * C), xcat, m1_ref, bias[0:1, :]), 0.0)
    # stage 2: conv3, residual with x1, relu
    v5 = conv(pad16_ref, PAD * C, v4, m3_ref, bias[1:2, :])
    v7 = jnp.maximum(v5 + x1, 0.0)
    # stage 3: conv4, relu, residual with (x1_2 + x2_2)
    v8 = conv(pad16_ref, PAD * C, v7, m4_ref, bias[2:3, :])
    out_ref[...] = jnp.maximum(v8, 0.0) + xadd_ref[...]


def _expand_weight(w, W_sp):
    """(Co, Ci, 7, 7) -> (7, (W_sp+6)*Ci, W_sp*Co) block-Toeplitz matrices (per kh).

    M_kh[(w+kw)*Ci + ci, w*Co + co] = w[co, ci, kh, kw]; the per-kh conv then is
    pad[kh:kh+H, :] @ M_kh. Sized for small spatial extents (scales ~W^2).
    """
    w = np.asarray(w, np.float32)
    Co, Ci, _, _ = w.shape
    Wp = W_sp + 2 * PAD
    m = np.zeros((KH, Wp * Ci, W_sp * Co), np.float32)
    for kh in range(KH):
        for kw in range(KW):
            blk = w[:, :, kh, kw].T                      # (Ci, Co)
            for ww in range(W_sp):
                r0 = (ww + kw) * Ci
                c0 = ww * Co
                m[kh, r0:r0 + Ci, c0:c0 + Co] = blk
    return m


def prepare_params(weights, biases, W_sp):
    """Done once, outside the jitted forward (weights are call-invariant)."""
    w1, w2, w3, w4 = [np.asarray(w, np.float32) for w in weights]
    b1, b2, b3, b4 = [np.asarray(b, np.float32) for b in biases]
    wcat = np.concatenate([w1, w2], axis=1)              # fused conv1+conv2 (Cin=32)
    m1 = jnp.asarray(_expand_weight(wcat, W_sp))         # (7, (W+6)*2C, W*C)
    m3 = jnp.asarray(_expand_weight(w3, W_sp))           # (7, (W+6)*C,  W*C)
    m4 = jnp.asarray(_expand_weight(w4, W_sp))
    brow = jnp.asarray(np.stack([np.tile(b1 + b2, W_sp),
                                 np.tile(b3, W_sp),
                                 np.tile(b4, W_sp)]).astype(np.float32))  # (3, W*C)
    return m1, m3, m4, brow


def model_forward(x1, x1_2, x2, x2_2, m1, m3, m4, brow):
    """x*: NCHW (1, C, H, W) f32; m*/brow from prepare_params."""
    _, Cc, H, W = x1.shape

    def to_rows(x):                                      # (1,C,H,W) -> (H,W,C)
        return jnp.transpose(x[0], (1, 2, 0)).astype(jnp.float32)

    x1h, x2h = to_rows(x1), to_rows(x2)
    xcat = jnp.concatenate([x1h, x2h], axis=-1).reshape(H, W * 2 * Cc)
    x1f = x1h.reshape(H, W * Cc)
    xaddf = to_rows(x1_2 + x2_2).reshape(H, W * Cc)      # single residual operand

    vmem = pl.BlockSpec(memory_space=pltpu.MemorySpace.VMEM)
    out_flat = pl.pallas_call(
        _model_kernel,
        out_shape=jax.ShapeDtypeStruct((H, W * Cc), jnp.float32),
        in_specs=[vmem] * 7,
        out_specs=vmem,
        scratch_shapes=[
            pltpu.VMEM((H + 2 * PAD, (W + 2 * PAD) * 2 * Cc), jnp.float32),  # pad32
            pltpu.VMEM((H + 2 * PAD, (W + 2 * PAD) * Cc), jnp.float32),      # pad16
        ],
        compiler_params=pltpu.CompilerParams(vmem_limit_bytes=48 * 1024 * 1024),
    )(xcat, x1f, xaddf, m1, m3, m4, brow)

    return jnp.transpose(out_flat.reshape(H, W, Cc), (2, 0, 1))[None]  # back to NCHW


def _ref_forward(x1, x1_2, x2, x2_2, weights, biases):
    def conv(x, w, b):
        y = jax.lax.conv_general_dilated(
            x, w, window_strides=(1, 1), padding=((PAD, PAD), (PAD, PAD)),
            dimension_numbers=("NCHW", "OIHW", "NCHW"))
        return y + b.reshape(1, -1, 1, 1)

    v1 = conv(x1, weights[0], biases[0])
    v2 = conv(x2, weights[1], biases[1])
    v4 = jax.nn.relu(v1 + v2)
    v5 = conv(v4, weights[2], biases[2])
    v7 = jax.nn.relu(v5 + x1)
    v8 = conv(v7, weights[3], biases[3])
    return jax.nn.relu(v8) + x1_2 + x2_2


if __name__ == "__main__":
    key = jax.random.PRNGKey(0)
    B, H, W = 1, 16, 16  # small spatial (module uses 64x64); channels fixed at 16

    keys = jax.random.split(key, 12)
    x1 = jax.random.normal(keys[0], (B, C, H, W), jnp.float32)
    x1_2 = jax.random.normal(keys[1], (B, C, H, W), jnp.float32)
    x2 = jax.random.normal(keys[2], (B, C, H, W), jnp.float32)
    x2_2 = jax.random.normal(keys[3], (B, C, H, W), jnp.float32)

    # deterministic Conv2d param init (PyTorch-style uniform bound)
    fan_in = C * KH * KW
    bound = 1.0 / (fan_in ** 0.5)
    weights = [jax.random.uniform(keys[4 + i], (C, C, KH, KW), jnp.float32,
                                  minval=-bound, maxval=bound) for i in range(4)]
    biases = [jax.random.uniform(keys[8 + i], (C,), jnp.float32,
                                 minval=-bound, maxval=bound) for i in range(4)]

    m1, m3, m4, brow = prepare_params(weights, biases, W)  # once, outside jit

    fwd = jax.jit(model_forward)
    out = jax.block_until_ready(fwd(x1, x1_2, x2, x2_2, m1, m3, m4, brow))

    ref = _ref_forward(x1, x1_2, x2, x2_2, weights, biases)
    assert out.shape == (B, C, H, W)
    err = float(jnp.max(jnp.abs(out - ref)))
    assert jnp.allclose(out, ref, atol=2e-3, rtol=2e-3), err
    print("KERNEL_OK")
</pallas_src>

<mosaic_0001>
module attributes {stable_mosaic.version = 11 : i64} {
  func.func @_model_kernel(%arg0: memref<16x512xf32, #tpu.memory_space<vmem>>, %arg1: memref<16x256xf32, #tpu.memory_space<vmem>>, %arg2: memref<16x256xf32, #tpu.memory_space<vmem>>, %arg3: memref<7x704x256xf32, #tpu.memory_space<vmem>>, %arg4: memref<7x352x256xf32, #tpu.memory_space<vmem>>, %arg5: memref<7x352x256xf32, #tpu.memory_space<vmem>>, %arg6: memref<3x256xf32, #tpu.memory_space<vmem>>, %arg7: memref<16x256xf32, #tpu.memory_space<vmem>>, %arg8: memref<22x704xf32, #tpu.memory_space<vmem>>, %arg9: memref<22x352xf32, #tpu.memory_space<vmem>>) attributes {dimension_semantics = [], scalar_prefetch = 0 : i64, scratch_operands = 2 : i64, tpu.core_type = #tpu.core_type<tc>} {
    %cst = arith.constant 0.000000e+00 : f32
    %0 = vector.broadcast %cst : f32 to vector<22x704xf32>
    %c0 = arith.constant 0 : index
    %c0_0 = arith.constant 0 : index
    %1 = vector.load %arg8[%c0, %c0_0] : memref<22x704xf32, #tpu.memory_space<vmem>>, vector<22x704xf32>
    tpu.vector_store %arg8[%c0, %c0_0], %0 {strides = array<i32>} : memref<22x704xf32, #tpu.memory_space<vmem>>, vector<22x704xf32>,
    %cst_1 = arith.constant 0.000000e+00 : f32
    %2 = vector.broadcast %cst_1 : f32 to vector<22x352xf32>
    %c0_2 = arith.constant 0 : index
    %c0_3 = arith.constant 0 : index
    %3 = vector.load %arg9[%c0_2, %c0_3] : memref<22x352xf32, #tpu.memory_space<vmem>>, vector<22x352xf32>
    tpu.vector_store %arg9[%c0_2, %c0_3], %2 {strides = array<i32>} : memref<22x352xf32, #tpu.memory_space<vmem>>, vector<22x352xf32>,
    %c0_4 = arith.constant 0 : index
    %c0_5 = arith.constant 0 : index
    %4 = vector.load %arg6[%c0_4, %c0_5] : memref<3x256xf32, #tpu.memory_space<vmem>>, vector<3x256xf32>
    %c0_6 = arith.constant 0 : index
    %c0_7 = arith.constant 0 : index
    %5 = vector.load %arg0[%c0_6, %c0_7] : memref<16x512xf32, #tpu.memory_space<vmem>>, vector<16x512xf32>
    %c0_8 = arith.constant 0 : index
    %c0_9 = arith.constant 0 : index
    %6 = vector.load %arg1[%c0_8, %c0_9] : memref<16x256xf32, #tpu.memory_space<vmem>>, vector<16x256xf32>
    %7 = vector.extract_strided_slice %4 {offsets = [0, 0], sizes = [1, 256], strides = [1, 1]} : vector<3x256xf32> to vector<1x256xf32>
    %c3 = arith.constant 3 : index
    %c96 = arith.constant 96 : index
    %8 = vector.load %arg8[%c3, %c96] : memref<22x704xf32, #tpu.memory_space<vmem>>, vector<16x512xf32>
    tpu.vector_store %arg8[%c3, %c96], %5 {strides = array<i32>} : memref<22x704xf32, #tpu.memory_space<vmem>>, vector<16x512xf32>,
    %cst_10 = arith.constant 0.000000e+00 : f32
    %9 = vector.broadcast %cst_10 : f32 to vector<16x256xf32>
    %c0_11 = arith.constant 0 : index
    %c0_12 = arith.constant 0 : index
    %10 = vector.load %arg8[%c0_11, %c0_12] : memref<22x704xf32, #tpu.memory_space<vmem>>, vector<16x704xf32>
    %c0_13 = arith.constant 0 : index
    %c0_14 = arith.constant 0 : index
    %c0_15 = arith.constant 0 : index
    %11 = vector.load %arg3[%c0_13, %c0_14, %c0_15] : memref<7x704x256xf32, #tpu.memory_space<vmem>>, vector<1x704x256xf32>
    %12 = vector.shape_cast %11 : vector<1x704x256xf32> to vector<704x256xf32>
    %cst_16 = arith.constant dense<0.000000e+00> : vector<16x256xf32>
    %13 = tpu.matmul %10, %12, %cst_16 {dimension_numbers = #tpu.dot_dimension_numbers<[1], [0], [0], [1], [0, 0, 1, 1], [], []>} : vector<16x704xf32>, vector<704x256xf32>, vector<16x256xf32> -> vector<16x256xf32>
    %14 = arith.addf %9, %13 : vector<16x256xf32>
    %c1 = arith.constant 1 : index
    %c0_17 = arith.constant 0 : index
    %15 = vector.load %arg8[%c1, %c0_17] : memref<22x704xf32, #tpu.memory_space<vmem>>, vector<16x704xf32>
    %c1_18 = arith.constant 1 : index
    %c0_19 = arith.constant 0 : index
    %c0_20 = arith.constant 0 : index
    %16 = vector.load %arg3[%c1_18, %c0_19, %c0_20] : memref<7x704x256xf32, #tpu.memory_space<vmem>>, vector<1x704x256xf32>
    %17 = vector.shape_cast %16 : vector<1x704x256xf32> to vector<704x256xf32>
    %cst_21 = arith.constant dense<0.000000e+00> : vector<16x256xf32>
    %18 = tpu.matmul %15, %17, %cst_21 {dimension_numbers = #tpu.dot_dimension_numbers<[1], [0], [0], [1], [0, 0, 1, 1], [], []>} : vector<16x704xf32>, vector<704x256xf32>, vector<16x256xf32> -> vector<16x256xf32>
    %19 = arith.addf %14, %18 : vector<16x256xf32>
    %c2 = arith.constant 2 : index
    %c0_22 = arith.constant 0 : index
    %20 = vector.load %arg8[%c2, %c0_22] : memref<22x704xf32, #tpu.memory_space<vmem>>, vector<16x704xf32>
    %c2_23 = arith.constant 2 : index
    %c0_24 = arith.constant 0 : index
    %c0_25 = arith.constant 0 : index
    %21 = vector.load %arg3[%c2_23, %c0_24, %c0_25] : memref<7x704x256xf32, #tpu.memory_space<vmem>>, vector<1x704x256xf32>
    %22 = vector.shape_cast %21 : vector<1x704x256xf32> to vector<704x256xf32>
    %cst_26 = arith.constant dense<0.000000e+00> : vector<16x256xf32>
    %23 = tpu.matmul %20, %22, %cst_26 {dimension_numbers = #tpu.dot_dimension_numbers<[1], [0], [0], [1], [0, 0, 1, 1], [], []>} : vector<16x704xf32>, vector<704x256xf32>, vector<16x256xf32> -> vector<16x256xf32>
    %24 = arith.addf %19, %23 : vector<16x256xf32>
    %c3_27 = arith.constant 3 : index
    %c0_28 = arith.constant 0 : index
    %25 = vector.load %arg8[%c3_27, %c0_28] : memref<22x704xf32, #tpu.memory_space<vmem>>, vector<16x704xf32>
    %c3_29 = arith.constant 3 : index
    %c0_30 = arith.constant 0 : index
    %c0_31 = arith.constant 0 : index
    %26 = vector.load %arg3[%c3_29, %c0_30, %c0_31] : memref<7x704x256xf32, #tpu.memory_space<vmem>>, vector<1x704x256xf32>
    %27 = vector.shape_cast %26 : vector<1x704x256xf32> to vector<704x256xf32>
    %cst_32 = arith.constant dense<0.000000e+00> : vector<16x256xf32>
    %28 = tpu.matmul %25, %27, %cst_32 {dimension_numbers = #tpu.dot_dimension_numbers<[1], [0], [0], [1], [0, 0, 1, 1], [], []>} : vector<16x704xf32>, vector<704x256xf32>, vector<16x256xf32> -> vector<16x256xf32>
    %29 = arith.addf %24, %28 : vector<16x256xf32>
    %c4 = arith.constant 4 : index
    %c0_33 = arith.constant 0 : index
    %30 = vector.load %arg8[%c4, %c0_33] : memref<22x704xf32, #tpu.memory_space<vmem>>, vector<16x704xf32>
    %c4_34 = arith.constant 4 : index
    %c0_35 = arith.constant 0 : index
    %c0_36 = arith.constant 0 : index
    %31 = vector.load %arg3[%c4_34, %c0_35, %c0_36] : memref<7x704x256xf32, #tpu.memory_space<vmem>>, vector<1x704x256xf32>
    %32 = vector.shape_cast %31 : vector<1x704x256xf32> to vector<704x256xf32>
    %cst_37 = arith.constant dense<0.000000e+00> : vector<16x256xf32>
    %33 = tpu.matmul %30, %32, %cst_37 {dimension_numbers = #tpu.dot_dimension_numbers<[1], [0], [0], [1], [0, 0, 1, 1], [], []>} : vector<16x704xf32>, vector<704x256xf32>, vector<16x256xf32> -> vector<16x256xf32>
    %34 = arith.addf %29, %33 : vector<16x256xf32>
    %c5 = arith.constant 5 : index
    %c0_38 = arith.constant 0 : index
    %35 = vector.load %arg8[%c5, %c0_38] : memref<22x704xf32, #tpu.memory_space<vmem>>, vector<16x704xf32>
    %c5_39 = arith.constant 5 : index
    %c0_40 = arith.constant 0 : index
    %c0_41 = arith.constant 0 : index
    %36 = vector.load %arg3[%c5_39, %c0_40, %c0_41] : memref<7x704x256xf32, #tpu.memory_space<vmem>>, vector<1x704x256xf32>
    %37 = vector.shape_cast %36 : vector<1x704x256xf32> to vector<704x256xf32>
    %cst_42 = arith.constant dense<0.000000e+00> : vector<16x256xf32>
    %38 = tpu.matmul %35, %37, %cst_42 {dimension_numbers = #tpu.dot_dimension_numbers<[1], [0], [0], [1], [0, 0, 1, 1], [], []>} : vector<16x704xf32>, vector<704x256xf32>, vector<16x256xf32> -> vector<16x256xf32>
    %39 = arith.addf %34, %38 : vector<16x256xf32>
    %c6 = arith.constant 6 : index
    %c0_43 = arith.constant 0 : index
    %40 = vector.load %arg8[%c6, %c0_43] : memref<22x704xf32, #tpu.memory_space<vmem>>, vector<16x704xf32>
    %c6_44 = arith.constant 6 : index
    %c0_45 = arith.constant 0 : index
    %c0_46 = arith.constant 0 : index
    %41 = vector.load %arg3[%c6_44, %c0_45, %c0_46] : memref<7x704x256xf32, #tpu.memory_space<vmem>>, vector<1x704x256xf32>
    %42 = vector.shape_cast %41 : vector<1x704x256xf32> to vector<704x256xf32>
    %cst_47 = arith.constant dense<0.000000e+00> : vector<16x256xf32>
    %43 = tpu.matmul %40, %42, %cst_47 {dimension_numbers = #tpu.dot_dimension_numbers<[1], [0], [0], [1], [0, 0, 1, 1], [], []>} : vector<16x704xf32>, vector<704x256xf32>, vector<16x256xf32> -> vector<16x256xf32>
    %44 = arith.addf %39, %43 : vector<16x256xf32>
    %45 = vector.broadcast %7 : vector<1x256xf32> to vector<16x256xf32>
    %46 = arith.addf %44, %45 : vector<16x256xf32>
    %cst_48 = arith.constant 0.000000e+00 : f32
    %47 = vector.broadcast %cst_48 : f32 to vector<16x256xf32>
    %48 = arith.maximumf %46, %47 : vector<16x256xf32>
    %49 = vector.extract_strided_slice %4 {offsets = [1, 0], sizes = [1, 256], strides = [1, 1]} : vector<3x256xf32> to vector<1x256xf32>
    %c3_49 = arith.constant 3 : index
    %c48 = arith.constant 48 : index
    %50 = vector.load %arg9[%c3_49, %c48] : memref<22x352xf32, #tpu.memory_space<vmem>>, vector<16x256xf32>
    tpu.vector_store %arg9[%c3_49, %c48], %48 {strides = array<i32>} : memref<22x352xf32, #tpu.memory_space<vmem>>, vector<16x256xf32>,
    %cst_50 = arith.constant 0.000000e+00 : f32
    %51 = vector.broadcast %cst_50 : f32 to vector<16x256xf32>
    %c0_51 = arith.constant 0 : index
    %c0_52 = arith.constant 0 : index
    %52 = vector.load %arg9[%c0_51, %c0_52] : memref<22x352xf32, #tpu.memory_space<vmem>>, vector<16x352xf32>
    %c0_53 = arith.constant 0 : index
    %c0_54 = arith.constant 0 : index
    %c0_55 = arith.constant 0 : index
    %53 = vector.load %arg4[%c0_53, %c0_54, %c0_55] : memref<7x352x256xf32, #tpu.memory_space<vmem>>, vector<1x352x256xf32>
    %54 = vector.shape_cast %53 : vector<1x352x256xf32> to vector<352x256xf32>
    %cst_56 = arith.constant dense<0.000000e+00> : vector<16x256xf32>
    %55 = tpu.matmul %52, %54, %cst_56 {dimension_numbers = #tpu.dot_dimension_numbers<[1], [0], [0], [1], [0, 0, 1, 1], [], []>} : vector<16x352xf32>, vector<352x256xf32>, vector<16x256xf32> -> vector<16x256xf32>
    %56 = arith.addf %51, %55 : vector<16x256xf32>
    %c1_57 = arith.constant 1 : index
    %c0_58 = arith.constant 0 : index
    %57 = vector.load %arg9[%c1_57, %c0_58] : memref<22x352xf32, #tpu.memory_space<vmem>>, vector<16x352xf32>
    %c1_59 = arith.constant 1 : index
    %c0_60 = arith.constant 0 : index
    %c0_61 = arith.constant 0 : index
    %58 = vector.load %arg4[%c1_59, %c0_60, %c0_61] : memref<7x352x256xf32, #tpu.memory_space<vmem>>, vector<1x352x256xf32>
    %59 = vector.shape_cast %58 : vector<1x352x256xf32> to vector<352x256xf32>
    %cst_62 = arith.constant dense<0.000000e+00> : vector<16x256xf32>
    %60 = tpu.matmul %57, %59, %cst_62 {dimension_numbers = #tpu.dot_dimension_numbers<[1], [0], [0], [1], [0, 0, 1, 1], [], []>} : vector<16x352xf32>, vector<352x256xf32>, vector<16x256xf32> -> vector<16x256xf32>
    %61 = arith.addf %56, %60 : vector<16x256xf32>
    %c2_63 = arith.constant 2 : index
    %c0_64 = arith.constant 0 : index
    %62 = vector.load %arg9[%c2_63, %c0_64] : memref<22x352xf32, #tpu.memory_space<vmem>>, vector<16x352xf32>
    %c2_65 = arith.constant 2 : index
    %c0_66 = arith.constant 0 : index
    %c0_67 = arith.constant 0 : index
    %63 = vector.load %arg4[%c2_65, %c0_66, %c0_67] : memref<7x352x256xf32, #tpu.memory_space<vmem>>, vector<1x352x256xf32>
    %64 = vector.shape_cast %63 : vector<1x352x256xf32> to vector<352x256xf32>
    %cst_68 = arith.constant dense<0.000000e+00> : vector<16x256xf32>
    %65 = tpu.matmul %62, %64, %cst_68 {dimension_numbers = #tpu.dot_dimension_numbers<[1], [0], [0], [1], [0, 0, 1, 1], [], []>} : vector<16x352xf32>, vector<352x256xf32>, vector<16x256xf32> -> vector<16x256xf32>
    %66 = arith.addf %61, %65 : vector<16x256xf32>
    %c3_69 = arith.constant 3 : index
    %c0_70 = arith.constant 0 : index
    %67 = vector.load %arg9[%c3_69, %c0_70] : memref<22x352xf32, #tpu.memory_space<vmem>>, vector<16x352xf32>
    %c3_71 = arith.constant 3 : index
    %c0_72 = arith.constant 0 : index
    %c0_73 = arith.constant 0 : index
    %68 = vector.load %arg4[%c3_71, %c0_72, %c0_73] : memref<7x352x256xf32, #tpu.memory_space<vmem>>, vector<1x352x256xf32>
    %69 = vector.shape_cast %68 : vector<1x352x256xf32> to vector<352x256xf32>
    %cst_74 = arith.constant dense<0.000000e+00> : vector<16x256xf32>
    %70 = tpu.matmul %67, %69, %cst_74 {dimension_numbers = #tpu.dot_dimension_numbers<[1], [0], [0], [1], [0, 0, 1, 1], [], []>} : vector<16x352xf32>, vector<352x256xf32>, vector<16x256xf32> -> vector<16x256xf32>
    %71 = arith.addf %66, %70 : vector<16x256xf32>
    %c4_75 = arith.constant 4 : index
    %c0_76 = arith.constant 0 : index
    %72 = vector.load %arg9[%c4_75, %c0_76] : memref<22x352xf32, #tpu.memory_space<vmem>>, vector<16x352xf32>
    %c4_77 = arith.constant 4 : index
    %c0_78 = arith.constant 0 : index
    %c0_79 = arith.constant 0 : index
    %73 = vector.load %arg4[%c4_77, %c0_78, %c0_79] : memref<7x352x256xf32, #tpu.memory_space<vmem>>, vector<1x352x256xf32>
    %74 = vector.shape_cast %73 : vector<1x352x256xf32> to vector<352x256xf32>
    %cst_80 = arith.constant dense<0.000000e+00> : vector<16x256xf32>
    %75 = tpu.matmul %72, %74, %cst_80 {dimension_numbers = #tpu.dot_dimension_numbers<[1], [0], [0], [1], [0, 0, 1, 1], [], []>} : vector<16x352xf32>, vector<352x256xf32>, vector<16x256xf32> -> vector<16x256xf32>
    %76 = arith.addf %71, %75 : vector<16x256xf32>
    %c5_81 = arith.constant 5 : index
    %c0_82 = arith.constant 0 : index
    %77 = vector.load %arg9[%c5_81, %c0_82] : memref<22x352xf32, #tpu.memory_space<vmem>>, vector<16x352xf32>
    %c5_83 = arith.constant 5 : index
    %c0_84 = arith.constant 0 : index
    %c0_85 = arith.constant 0 : index
    %78 = vector.load %arg4[%c5_83, %c0_84, %c0_85] : memref<7x352x256xf32, #tpu.memory_space<vmem>>, vector<1x352x256xf32>
    %79 = vector.shape_cast %78 : vector<1x352x256xf32> to vector<352x256xf32>
    %cst_86 = arith.constant dense<0.000000e+00> : vector<16x256xf32>
    %80 = tpu.matmul %77, %79, %cst_86 {dimension_numbers = #tpu.dot_dimension_numbers<[1], [0], [0], [1], [0, 0, 1, 1], [], []>} : vector<16x352xf32>, vector<352x256xf32>, vector<16x256xf32> -> vector<16x256xf32>
    %81 = arith.addf %76, %80 : vector<16x256xf32>
    %c6_87 = arith.constant 6 : index
    %c0_88 = arith.constant 0 : index
    %82 = vector.load %arg9[%c6_87, %c0_88] : memref<22x352xf32, #tpu.memory_space<vmem>>, vector<16x352xf32>
    %c6_89 = arith.constant 6 : index
    %c0_90 = arith.constant 0 : index
    %c0_91 = arith.constant 0 : index
    %83 = vector.load %arg4[%c6_89, %c0_90, %c0_91] : memref<7x352x256xf32, #tpu.memory_space<vmem>>, vector<1x352x256xf32>
    %84 = vector.shape_cast %83 : vector<1x352x256xf32> to vector<352x256xf32>
    %cst_92 = arith.constant dense<0.000000e+00> : vector<16x256xf32>
    %85 = tpu.matmul %82, %84, %cst_92 {dimension_numbers = #tpu.dot_dimension_numbers<[1], [0], [0], [1], [0, 0, 1, 1], [], []>} : vector<16x352xf32>, vector<352x256xf32>, vector<16x256xf32> -> vector<16x256xf32>
    %86 = arith.addf %81, %85 : vector<16x256xf32>
    %87 = vector.broadcast %49 : vector<1x256xf32> to vector<16x256xf32>
    %88 = arith.addf %86, %87 : vector<16x256xf32>
    %89 = arith.addf %88, %6 : vector<16x256xf32>
    %cst_93 = arith.constant 0.000000e+00 : f32
    %90 = vector.broadcast %cst_93 : f32 to vector<16x256xf32>
    %91 = arith.maximumf %89, %90 : vector<16x256xf32>
    %92 = vector.extract_strided_slice %4 {offsets = [2, 0], sizes = [1, 256], strides = [1, 1]} : vector<3x256xf32> to vector<1x256xf32>
    %c3_94 = arith.constant 3 : index
    %c48_95 = arith.constant 48 : index
    %93 = vector.load %arg9[%c3_94, %c48_95] : memref<22x352xf32, #tpu.memory_space<vmem>>, vector<16x256xf32>
    tpu.vector_store %arg9[%c3_94, %c48_95], %91 {strides = array<i32>} : memref<22x352xf32, #tpu.memory_space<vmem>>, vector<16x256xf32>,
    %cst_96 = arith.constant 0.000000e+00 : f32
    %94 = vector.broadcast %cst_96 : f32 to vector<16x256xf32>
    %c0_97 = arith.constant 0 : index
    %c0_98 = arith.constant 0 : index
    %95 = vector.load %arg9[%c0_97, %c0_98] : memref<22x352xf32, #tpu.memory_space<vmem>>, vector<16x352xf32>
    %c0_99 = arith.constant 0 : index
    %c0_100 = arith.constant 0 : index
    %c0_101 = arith.constant 0 : index
    %96 = vector.load %arg5[%c0_99, %c0_100, %c0_101] : memref<7x352x256xf32, #tpu.memory_space<vmem>>, vector<1x352x256xf32>
    %97 = vector.shape_cast %96 : vector<1x352x256xf32> to vector<352x256xf32>
    %cst_102 = arith.constant dense<0.000000e+00> : vector<16x256xf32>
    %98 = tpu.matmul %95, %97, %cst_102 {dimension_numbers = #tpu.dot_dimension_numbers<[1], [0], [0], [1], [0, 0, 1, 1], [], []>} : vector<16x352xf32>, vector<352x256xf32>, vector<16x256xf32> -> vector<16x256xf32>
    %99 = arith.addf %94, %98 : vector<16x256xf32>
    %c1_103 = arith.constant 1 : index
    %c0_104 = arith.constant 0 : index
    %100 = vector.load %arg9[%c1_103, %c0_104] : memref<22x352xf32, #tpu.memory_space<vmem>>, vector<16x352xf32>
    %c1_105 = arith.constant 1 : index
    %c0_106 = arith.constant 0 : index
    %c0_107 = arith.constant 0 : index
    %101 = vector.load %arg5[%c1_105, %c0_106, %c0_107] : memref<7x352x256xf32, #tpu.memory_space<vmem>>, vector<1x352x256xf32>
    %102 = vector.shape_cast %101 : vector<1x352x256xf32> to vector<352x256xf32>
    %cst_108 = arith.constant dense<0.000000e+00> : vector<16x256xf32>
    %103 = tpu.matmul %100, %102, %cst_108 {dimension_numbers = #tpu.dot_dimension_numbers<[1], [0], [0], [1], [0, 0, 1, 1], [], []>} : vector<16x352xf32>, vector<352x256xf32>, vector<16x256xf32> -> vector<16x256xf32>
    %104 = arith.addf %99, %103 : vector<16x256xf32>
    %c2_109 = arith.constant 2 : index
    %c0_110 = arith.constant 0 : index
    %105 = vector.load %arg9[%c2_109, %c0_110] : memref<22x352xf32, #tpu.memory_space<vmem>>, vector<16x352xf32>
    %c2_111 = arith.constant 2 : index
    %c0_112 = arith.constant 0 : index
    %c0_113 = arith.constant 0 : index
    %106 = vector.load %arg5[%c2_111, %c0_112, %c0_113] : memref<7x352x256xf32, #tpu.memory_space<vmem>>, vector<1x352x256xf32>
    %107 = vector.shape_cast %106 : vector<1x352x256xf32> to vector<352x256xf32>
    %cst_114 = arith.constant dense<0.000000e+00> : vector<16x256xf32>
    %108 = tpu.matmul %105, %107, %cst_114 {dimension_numbers = #tpu.dot_dimension_numbers<[1], [0], [0], [1], [0, 0, 1, 1], [], []>} : vector<16x352xf32>, vector<352x256xf32>, vector<16x256xf32> -> vector<16x256xf32>
    %109 = arith.addf %104, %108 : vector<16x256xf32>
    %c3_115 = arith.constant 3 : index
    %c0_116 = arith.constant 0 : index
    %110 = vector.load %arg9[%c3_115, %c0_116] : memref<22x352xf32, #tpu.memory_space<vmem>>, vector<16x352xf32>
    %c3_117 = arith.constant 3 : index
    %c0_118 = arith.constant 0 : index
    %c0_119 = arith.constant 0 : index
    %111 = vector.load %arg5[%c3_117, %c0_118, %c0_119] : memref<7x352x256xf32, #tpu.memory_space<vmem>>, vector<1x352x256xf32>
    %112 = vector.shape_cast %111 : vector<1x352x256xf32> to vector<352x256xf32>
    %cst_120 = arith.constant dense<0.000000e+00> : vector<16x256xf32>
    %113 = tpu.matmul %110, %112, %cst_120 {dimension_numbers = #tpu.dot_dimension_numbers<[1], [0], [0], [1], [0, 0, 1, 1], [], []>} : vector<16x352xf32>, vector<352x256xf32>, vector<16x256xf32> -> vector<16x256xf32>
    %114 = arith.addf %109, %113 : vector<16x256xf32>
    %c4_121 = arith.constant 4 : index
    %c0_122 = arith.constant 0 : index
    %115 = vector.load %arg9[%c4_121, %c0_122] : memref<22x352xf32, #tpu.memory_space<vmem>>, vector<16x352xf32>
    %c4_123 = arith.constant 4 : index
    %c0_124 = arith.constant 0 : index
    %c0_125 = arith.constant 0 : index
    %116 = vector.load %arg5[%c4_123, %c0_124, %c0_125] : memref<7x352x256xf32, #tpu.memory_space<vmem>>, vector<1x352x256xf32>
    %117 = vector.shape_cast %116 : vector<1x352x256xf32> to vector<352x256xf32>
    %cst_126 = arith.constant dense<0.000000e+00> : vector<16x256xf32>
    %118 = tpu.matmul %115, %117, %cst_126 {dimension_numbers = #tpu.dot_dimension_numbers<[1], [0], [0], [1], [0, 0, 1, 1], [], []>} : vector<16x352xf32>, vector<352x256xf32>, vector<16x256xf32> -> vector<16x256xf32>
    %119 = arith.addf %114, %118 : vector<16x256xf32>
    %c5_127 = arith.constant 5 : index
    %c0_128 = arith.constant 0 : index
    %120 = vector.load %arg9[%c5_127, %c0_128] : memref<22x352xf32, #tpu.memory_space<vmem>>, vector<16x352xf32>
    %c5_129 = arith.constant 5 : index
    %c0_130 = arith.constant 0 : index
    %c0_131 = arith.constant 0 : index
    %121 = vector.load %arg5[%c5_129, %c0_130, %c0_131] : memref<7x352x256xf32, #tpu.memory_space<vmem>>, vector<1x352x256xf32>
    %122 = vector.shape_cast %121 : vector<1x352x256xf32> to vector<352x256xf32>
    %cst_132 = arith.constant dense<0.000000e+00> : vector<16x256xf32>
    %123 = tpu.matmul %120, %122, %cst_132 {dimension_numbers = #tpu.dot_dimension_numbers<[1], [0], [0], [1], [0, 0, 1, 1], [], []>} : vector<16x352xf32>, vector<352x256xf32>, vector<16x256xf32> -> vector<16x256xf32>
    %124 = arith.addf %119, %123 : vector<16x256xf32>
    %c6_133 = arith.constant 6 : index
    %c0_134 = arith.constant 0 : index
    %125 = vector.load %arg9[%c6_133, %c0_134] : memref<22x352xf32, #tpu.memory_space<vmem>>, vector<16x352xf32>
    %c6_135 = arith.constant 6 : index
    %c0_136 = arith.constant 0 : index
    %c0_137 = arith.constant 0 : index
    %126 = vector.load %arg5[%c6_135, %c0_136, %c0_137] : memref<7x352x256xf32, #tpu.memory_space<vmem>>, vector<1x352x256xf32>
    %127 = vector.shape_cast %126 : vector<1x352x256xf32> to vector<352x256xf32>
    %cst_138 = arith.constant dense<0.000000e+00> : vector<16x256xf32>
    %128 = tpu.matmul %125, %127, %cst_138 {dimension_numbers = #tpu.dot_dimension_numbers<[1], [0], [0], [1], [0, 0, 1, 1], [], []>} : vector<16x352xf32>, vector<352x256xf32>, vector<16x256xf32> -> vector<16x256xf32>
    %129 = arith.addf %124, %128 : vector<16x256xf32>
    %130 = vector.broadcast %92 : vector<1x256xf32> to vector<16x256xf32>
    %131 = arith.addf %129, %130 : vector<16x256xf32>
    %cst_139 = arith.constant 0.000000e+00 : f32
    %132 = vector.broadcast %cst_139 : f32 to vector<16x256xf32>
    %133 = arith.maximumf %131, %132 : vector<16x256xf32>
    %c0_140 = arith.constant 0 : index
    %c0_141 = arith.constant 0 : index
    %134 = vector.load %arg2[%c0_140, %c0_141] : memref<16x256xf32, #tpu.memory_space<vmem>>, vector<16x256xf32>
    %135 = arith.addf %133, %134 : vector<16x256xf32>
    %c0_142 = arith.constant 0 : index
    %c0_143 = arith.constant 0 : index
    %136 = vector.load %arg7[%c0_142, %c0_143] : memref<16x256xf32, #tpu.memory_space<vmem>>, vector<16x256xf32>
    tpu.vector_store %arg7[%c0_142, %c0_143], %135 {strides = array<i32>} : memref<16x256xf32, #tpu.memory_space<vmem>>, vector<16x256xf32>,
    return
  }
}

</mosaic_0001>

<llo_original>
// kernel: model_forward.1
$region0: #{model_forward.1}
  #allocation0 [shape = 'u32[]', space=smem, size = 0x4, offset = 0x4, fixed_abs, tag = 'smem constant byte address 0x4 - core index']
  #allocation1 [shape = 'u32[144,128]{1,0:T(1,128)}', space=vmem, size = 0x12000, scoped, tag = 'internal scratch']
  #allocation2 [shape = 'f32[22,704]{1,0:T(8,128)}', space=vmem, size = 0x12000, scoped, tag = 'scratch operand']
  #allocation3 [shape = 'f32[22,352]{1,0:T(8,128)}', space=vmem, size = 0x9000, scoped, tag = 'scratch operand']
  %s0 = inlined_call_operand.vmem [shape: f32[16,512], index: 0, kind: input, shape index: {}]
  %s1 = inlined_call_operand.vmem [shape: f32[16,256], index: 1, kind: input, shape index: {}]
  %s2 = inlined_call_operand.vmem [shape: f32[16,256], index: 2, kind: input, shape index: {}]
  %s3 = inlined_call_operand.hbm [shape: f32[7,704,256], index: 3, kind: input, shape index: {}]
  %s4 = inlined_call_operand.hbm [shape: f32[7,352,256], index: 4, kind: input, shape index: {}]
  %s5 = inlined_call_operand.hbm [shape: f32[7,352,256], index: 5, kind: input, shape index: {}]
  %s6 = inlined_call_operand.hbm [shape: f32[3,256], index: 6, kind: input, shape index: {}]
  %s7 = inlined_call_operand.vmem [shape: f32[16,256], index: 7, kind: output, shape index: {}]
  %s8 = sld [smem:[#allocation0]]
  $region54: #{model_forward.1} parent=0
    _
  %s10 = ssub.s32 1, %s8
  %s11 = scalar_select 0, %s10, %s8
  $region1: #{model_forward.1} parent=0
    #allocation4 [shape = 'u8[5046272]{0}', space=vmem, size = 0x4d0000, scoped, tag = 'input window, operand 3, single buffered']
    #allocation5 [shape = 's32[1]{0}', space=sflag, size = 0x4, scoped, tag = 'scoped memory for model_forward.1']
    #allocation6 [shape = 'u8[2523136]{0}', space=vmem, size = 0x268000, scoped, tag = 'input window, operand 4, single buffered']
    #allocation7 [shape = 's32[1]{0}', space=sflag, size = 0x4, scoped, tag = 'scoped memory for model_forward.1']
    #allocation8 [shape = 'u8[2523136]{0}', space=vmem, size = 0x268000, scoped, tag = 'input window, operand 5, single buffered']
    #allocation9 [shape = 'u8[4096]{0}', space=vmem, size = 0x1000, scoped, tag = 'input window, operand 6, single buffered']
    #allocation10 [shape = 's32[1]{0}', space=sflag, size = 0x4, scoped, tag = 'scoped memory for model_forward.1']
    %12 = vsyncpa [#allocation5], 0
    %13 = vsyncpa [#allocation7], 0
    %14 = vsyncpa [#allocation10], 0
    // Predicated region
    $region2: #{model_forward.1} parent=1 // pred_check
      _
    $region3: #{model_forward.1} parent=1 // pred_check_branch
      %16 = sbr.rel (0) target = $region5
    $region4: #{model_forward.1} parent=1 // pred_region
      _
    $region5: #{model_forward.1} parent=1 // pred_fallthru
      _
    // Predicated region
    $region6: #{model_forward.1} parent=1 // pred_check
      _
    $region7: #{model_forward.1} parent=1 // pred_check_branch
      %18 = sbr.rel (0) target = $region9
    $region8: #{model_forward.1} parent=1 // pred_region
      _
    $region9: #{model_forward.1} parent=1 // pred_fallthru
      _
    // Predicated region
    $region10: #{model_forward.1} parent=1 // pred_check
      _
    $region11: #{model_forward.1} parent=1 // pred_check_branch
      %20 = sbr.rel (0) target = $region13
    $region12: #{model_forward.1} parent=1 // pred_region
      _
    $region13: #{model_forward.1} parent=1 // pred_fallthru
      _
    // Predicated region
    $region14: #{model_forward.1} parent=1 // pred_check
      _
    $region15: #{model_forward.1} parent=1 // pred_check_branch
      %22 = sbr.rel (0) target = $region17
    $region16: #{model_forward.1} parent=1 // pred_region
      %s24 = ssub.s32 157696, 157696
      %25 = vsyncadd [#allocation5], %s24
      %s26 = sshll.u32 [#allocation4], 4
      %s27 = int_to_ptr.vmem [resolvable:$true] %s26
      %32 = dma.hbm_to_vmem [thread:$0]  %s3, 157696, %s27, [#allocation5], 256, 256, 16
    $region17: #{model_forward.1} parent=1 // pred_fallthru
      _
    // Predicated region
    $region18: #{model_forward.1} parent=1 // pred_check
      _
    $region19: #{model_forward.1} parent=1 // pred_check_branch
      %34 = sbr.rel (0) target = $region21
    $region20: #{model_forward.1} parent=1 // pred_region
      %s36 = ssub.s32 78848, 78848
      %37 = vsyncadd [#allocation7], %s36
      %s38 = sshll.u32 [#allocation6], 4
      %s39 = int_to_ptr.vmem [resolvable:$true] %s38
      %44 = dma.hbm_to_vmem [thread:$0]  %s4, 78848, %s39, [#allocation7], 256, 256, 16
    $region21: #{model_forward.1} parent=1 // pred_fallthru
      _
    // Predicated region
    $region22: #{model_forward.1} parent=1 // pred_check
      _
    $region23: #{model_forward.1} parent=1 // pred_check_branch
      %46 = sbr.rel (0) target = $region25
    $region24: #{model_forward.1} parent=1 // pred_region
      %s48 = ssub.s32 78848, 78848
      %49 = vsyncadd [#allocation7], %s48
      %s50 = sshll.u32 [#allocation8], 4
      %s51 = int_to_ptr.vmem [resolvable:$true] %s50
      %56 = dma.hbm_to_vmem [thread:$0]  %s5, 78848, %s51, [#allocation7], 256, 256, 16
    $region25: #{model_forward.1} parent=1 // pred_fallthru
      _
    // Predicated region
    $region26: #{model_forward.1} parent=1 // pred_check
      _
    $region27: #{model_forward.1} parent=1 // pred_check_branch
      %58 = sbr.rel (0) target = $region29
    $region28: #{model_forward.1} parent=1 // pred_region
      %s60 = ssub.s32 128, 128
      %61 = vsyncadd [#allocation10], %s60
      %s63 = sshll.u32 [#allocation9], 4
      %s64 = int_to_ptr.vmem [resolvable:$true] %s63
      %66 = dma.hbm_to_vmem [thread:$0]  %s6, 128, %s64, [#allocation10]
    $region29: #{model_forward.1} parent=1 // pred_fallthru
      _
    // Predicated region
    $region30: #{model_forward.1} parent=1 // pred_check
      _
    $region31: #{model_forward.1} parent=1 // pred_check_branch
      %68 = sbr.rel (0) target = $region33
    $region32: #{model_forward.1} parent=1 // pred_region
      %69 = dma.done [#allocation5], 157696
    $region33: #{model_forward.1} parent=1 // pred_fallthru
      _
    // Predicated region
    $region34: #{model_forward.1} parent=1 // pred_check
      _
    $region35: #{model_forward.1} parent=1 // pred_check_branch
      %71 = sbr.rel (0) target = $region37
    $region36: #{model_forward.1} parent=1 // pred_region
      %72 = dma.done [#allocation7], 78848
    $region37: #{model_forward.1} parent=1 // pred_fallthru
      _
    // Predicated region
    $region38: #{model_forward.1} parent=1 // pred_check
      _
    $region39: #{model_forward.1} parent=1 // pred_check_branch
      %74 = sbr.rel (0) target = $region41
    $region40: #{model_forward.1} parent=1 // pred_region
      %75 = dma.done [#allocation7], 78848
    $region41: #{model_forward.1} parent=1 // pred_fallthru
      _
    // Predicated region
    $region42: #{model_forward.1} parent=1 // pred_check
      _
    $region43: #{model_forward.1} parent=1 // pred_check_branch
      %77 = sbr.rel (0) target = $region45
    $region44: #{model_forward.1} parent=1 // pred_region
      %78 = dma.done [#allocation10], 128
    $region45: #{model_forward.1} parent=1 // pred_fallthru
      _
    %79 = vst [vmem:[#allocation2] sm:$0xff] 0.0
    %80 = vst [vmem:[#allocation2 + $0x8] sm:$0xff] 0.0
    %81 = vst [vmem:[#allocation2 + $0x10] sm:$0xff] 0.0
    %82 = vst [vmem:[#allocation2 + $0x18] sm:$0xff] 0.0
    %83 = vst [vmem:[#allocation2 + $0x20] sm:$0xff] 0.0
    %vm84 = vcmask 523264
    %85 = vst.msk [vmem:[#allocation2 + $0x28] sm:$0xff] %vm84, 0.0
    %86 = vst [vmem:[#allocation2 + $0x30] sm:$0xff] 0.0
    %87 = vst [vmem:[#allocation2 + $0x38] sm:$0xff] 0.0
    %88 = vst [vmem:[#allocation2 + $0x40] sm:$0xff] 0.0
    %89 = vst [vmem:[#allocation2 + $0x48] sm:$0xff] 0.0
    %90 = vst [vmem:[#allocation2 + $0x50] sm:$0xff] 0.0
    %91 = vst.msk [vmem:[#allocation2 + $0x58] sm:$0xff] %vm84, 0.0
    %92 = vst [vmem:[#allocation2 + $0x60] sm:$0x3f] 0.0
    %93 = vst [vmem:[#allocation2 + $0x68] sm:$0x3f] 0.0
    %94 = vst [vmem:[#allocation2 + $0x70] sm:$0x3f] 0.0
    %95 = vst [vmem:[#allocation2 + $0x78] sm:$0x3f] 0.0
    %96 = vst [vmem:[#allocation2 + $0x80] sm:$0x3f] 0.0
    %vm97 = vcmask 521216
    %98 = vst.msk [vmem:[#allocation2 + $0x88] sm:$0x3f] %vm97, 0.0
    %99 = vst [vmem:[#allocation3] sm:$0xff] 0.0
    %100 = vst [vmem:[#allocation3 + $0x8] sm:$0xff] 0.0
    %vm101 = vcmask 785408
    %102 = vst.msk [vmem:[#allocation3 + $0x10] sm:$0xff] %vm101, 0.0
    %103 = vst [vmem:[#allocation3 + $0x18] sm:$0xff] 0.0
    %104 = vst [vmem:[#allocation3 + $0x20] sm:$0xff] 0.0
    %105 = vst.msk [vmem:[#allocation3 + $0x28] sm:$0xff] %vm101, 0.0
    %106 = vst [vmem:[#allocation3 + $0x30] sm:$0x3f] 0.0
    %107 = vst [vmem:[#allocation3 + $0x38] sm:$0x3f] 0.0
    %vm108 = vcmask 783360
    %109 = vst.msk [vmem:[#allocation3 + $0x40] sm:$0x3f] %vm108, 0.0
    %v110 = vld [vmem:[#allocation9] sm:$0x77]
    %v111 = vld [vmem:[%s0] sm:$0xff]
    %v112 = vld [vmem:[%s0 + $0x8] sm:$0xff]
    %v113 = vld [vmem:[%s0 + $0x10] sm:$0xff]
    %v114 = vld [vmem:[%s0 + $0x18] sm:$0xff]
    %v115 = vld [vmem:[%s0 + $0x20] sm:$0xff]
    %v116 = vld [vmem:[%s0 + $0x28] sm:$0xff]
    %v117 = vld [vmem:[%s0 + $0x30] sm:$0xff]
    %v118 = vld [vmem:[%s0 + $0x38] sm:$0xff]
    %v119 = vld [vmem:[%s1] sm:$0xff]
    %v120 = vld [vmem:[%s1 + $0x8] sm:$0xff]
    %v121 = vld [vmem:[%s1 + $0x10] sm:$0xff]
    %v122 = vld [vmem:[%s1 + $0x18] sm:$0xff]
    %vm131 = vcmask 1042432
    %v132 = vrot.slane %v111, 5
    %v133 = vrot.slane %v112, 5
    %v134 = vrot.slane %v113, 5
    %v135 = vrot.slane %v114, 5
    %v136 = vrot.slane %v115, 5
    %v137 = vsel %vm131, %v132, %v136
    %v138 = vrot.slane %v116, 5
    %v139 = vsel %vm131, %v133, %v138
    %v140 = vrot.slane %v117, 5
    %v141 = vsel %vm131, %v134, %v140
    %v142 = vrot.slane %v118, 5
    %v143 = vsel %vm131, %v135, %v142
    %144 = vrot.lane.b32.xlu0 %v132, 96
    %v145 = vpop.permute.xlu0 %144
    %146 = vrot.lane.b32.xlu0 %v133, 96
    %v147 = vpop.permute.xlu0 %146
    %148 = vrot.lane.b32.xlu0 %v134, 96
    %v149 = vpop.permute.xlu0 %148
    %150 = vrot.lane.b32.xlu0 %v135, 96
    %v151 = vpop.permute.xlu0 %150
    %152 = vrot.lane.b32.xlu0 %v137, 96
    %v153 = vpop.permute.xlu0 %152
    %154 = vrot.lane.b32.xlu0 %v139, 96
    %v155 = vpop.permute.xlu0 %154
    %156 = vrot.lane.b32.xlu0 %v141, 96
    %v157 = vpop.permute.xlu0 %156
    %158 = vrot.lane.b32.xlu0 %v143, 96
    %v159 = vpop.permute.xlu0 %158
    %160 = vrot.lane.b32.xlu0 %v136, 96
    %v161 = vpop.permute.xlu0 %160
    %162 = vrot.lane.b32.xlu0 %v138, 96
    %v163 = vpop.permute.xlu0 %162
    %164 = vrot.lane.b32.xlu0 %v140, 96
    %v165 = vpop.permute.xlu0 %164
    %166 = vrot.lane.b32.xlu0 %v142, 96
    %v167 = vpop.permute.xlu0 %166
    %v168 = vsel %vm101, %v145, %v147
    %v169 = vsel %vm101, %v147, %v149
    %v170 = vsel %vm101, %v149, %v151
    %v171 = vsel %vm101, %v153, %v155
    %v172 = vsel %vm101, %v155, %v157
    %v173 = vsel %vm101, %v157, %v159
    %v174 = vsel %vm101, %v161, %v163
    %v175 = vsel %vm101, %v163, %v165
    %v176 = vsel %vm101, %v165, %v167
    %vm192 = vcmask 1048323
    %193 = vst.msk [vmem:[#allocation2] sm:$0xf8] %vm192, %v145
    %194 = vst [vmem:[#allocation2 + $0x8] sm:$0xf8] %v168
    %195 = vst [vmem:[#allocation2 + $0x10] sm:$0xf8] %v169
    %196 = vst [vmem:[#allocation2 + $0x18] sm:$0xf8] %v170
    %vm197 = vcmask 785411
    %198 = vst.msk [vmem:[#allocation2 + $0x20] sm:$0xf8] %vm197, %v151
    %vm199 = vcmask 1048320
    %200 = vst.msk [vmem:[#allocation2 + $0x30] sm:$0xff] %vm199, %v153
    %201 = vst [vmem:[#allocation2 + $0x38] sm:$0xff] %v171
    %202 = vst [vmem:[#allocation2 + $0x40] sm:$0xff] %v172
    %203 = vst [vmem:[#allocation2 + $0x48] sm:$0xff] %v173
    %204 = vst.msk [vmem:[#allocation2 + $0x50] sm:$0xff] %vm101, %v159
    %vm205 = vcmask 1043200
    %206 = vst.msk [vmem:[#allocation2 + $0x60] sm:$0x7] %vm205, %v161
    %207 = vst [vmem:[#allocation2 + $0x68] sm:$0x7] %v174
    %208 = vst [vmem:[#allocation2 + $0x70] sm:$0x7] %v175
    %209 = vst [vmem:[#allocation2 + $0x78] sm:$0x7] %v176
    %vm210 = vcmask 780288
    %211 = vst.msk [vmem:[#allocation2 + $0x80] sm:$0x7] %vm210, %v167
    %v212 = vld [vmem:[#allocation2] sm:$0xff]
    %v213 = vld [vmem:[#allocation2 + $0x8] sm:$0xff]
    %v214 = vld [vmem:[#allocation2 + $0x10] sm:$0xff]
    %v215 = vld [vmem:[#allocation2 + $0x18] sm:$0xff]
    %v216 = vld [vmem:[#allocation2 + $0x20] sm:$0xff]
    %v217 = vld [vmem:[#allocation2 + $0x28] sm:$0xff]
    %v218 = vld [vmem:[#allocation2 + $0x30] sm:$0xff]
    %v219 = vld [vmem:[#allocation2 + $0x38] sm:$0xff]
    %v220 = vld [vmem:[#allocation2 + $0x40] sm:$0xff]
    %v221 = vld [vmem:[#allocation2 + $0x48] sm:$0xff]
    %v222 = vld [vmem:[#allocation2 + $0x50] sm:$0xff]
    %v223 = vld [vmem:[#allocation2 + $0x58] sm:$0xff]
    %v224 = vld [vmem:[#allocation4] sm:$0xff]
    %v225 = vld [vmem:[#allocation4 + $0x8] sm:$0xff]
    %v226 = vld [vmem:[#allocation4 + $0x10] sm:$0xff]
    %v227 = vld [vmem:[#allocation4 + $0x18] sm:$0xff]
    %v228 = vld [vmem:[#allocation4 + $0x20] sm:$0xff]
    %v229 = vld [vmem:[#allocation4 + $0x28] sm:$0xff]
    %v230 = vld [vmem:[#allocation4 + $0x30] sm:$0xff]
    %v231 = vld [vmem:[#allocation4 + $0x38] sm:$0xff]
    %v232 = vld [vmem:[#allocation4 + $0x40] sm:$0xff]
    %v233 = vld [vmem:[#allocation4 + $0x48] sm:$0xff]
    %v234 = vld [vmem:[#allocation4 + $0x50] sm:$0xff]
    %v235 = vld [vmem:[#allocation4 + $0x58] sm:$0xff]
    %v236 = vld [vmem:[#allocation4 + $0x60] sm:$0xff]
    %v237 = vld [vmem:[#allocation4 + $0x68] sm:$0xff]
    %v238 = vld [vmem:[#allocation4 + $0x70] sm:$0xff]
    %v239 = vld [vmem:[#allocation4 + $0x78] sm:$0xff]
    %v240 = vld [vmem:[#allocation4 + $0x80] sm:$0xff]
    %v241 = vld [vmem:[#allocation4 + $0x88] sm:$0xff]
    %v242 = vld [vmem:[#allocation4 + $0x90] sm:$0xff]
    %v243 = vld [vmem:[#allocation4 + $0x98] sm:$0xff]
    %v244 = vld [vmem:[#allocation4 + $0xa0] sm:$0xff]
    %v245 = vld [vmem:[#allocation4 + $0xa8] sm:$0xff]
    %v246 = vld [vmem:[#allocation4 + $0xb0] sm:$0xff]
    %v247 = vld [vmem:[#allocation4 + $0xb8] sm:$0xff]
    %v248 = vld [vmem:[#allocation4 + $0xc0] sm:$0xff]
    %v249 = vld [vmem:[#allocation4 + $0xc8] sm:$0xff]
    %v250 = vld [vmem:[#allocation4 + $0xd0] sm:$0xff]
    %v251 = vld [vmem:[#allocation4 + $0xd8] sm:$0xff]
    %v252 = vld [vmem:[#allocation4 + $0xe0] sm:$0xff]
    %v253 = vld [vmem:[#allocation4 + $0xe8] sm:$0xff]
    %v254 = vld [vmem:[#allocation4 + $0xf0] sm:$0xff]
    %v255 = vld [vmem:[#allocation4 + $0xf8] sm:$0xff]
    %v256 = vld [vmem:[#allocation4 + $0x100] sm:$0xff]
    %v257 = vld [vmem:[#allocation4 + $0x108] sm:$0xff]
    %v258 = vld [vmem:[#allocation4 + $0x110] sm:$0xff]
    %v259 = vld [vmem:[#allocation4 + $0x118] sm:$0xff]
    %v260 = vld [vmem:[#allocation4 + $0x120] sm:$0xff]
    %v261 = vld [vmem:[#allocation4 + $0x128] sm:$0xff]
    %v262 = vld [vmem:[#allocation4 + $0x130] sm:$0xff]
    %v263 = vld [vmem:[#allocation4 + $0x138] sm:$0xff]
    %v264 = vld [vmem:[#allocation4 + $0x140] sm:$0xff]
    %v265 = vld [vmem:[#allocation4 + $0x148] sm:$0xff]
    %v266 = vld [vmem:[#allocation4 + $0x150] sm:$0xff]
    %v267 = vld [vmem:[#allocation4 + $0x158] sm:$0xff]
    %v268 = vld [vmem:[#allocation4 + $0x160] sm:$0xff]
    %v269 = vld [vmem:[#allocation4 + $0x168] sm:$0xff]
    %v270 = vld [vmem:[#allocation4 + $0x170] sm:$0xff]
    %v271 = vld [vmem:[#allocation4 + $0x178] sm:$0xff]
    %v272 = vld [vmem:[#allocation4 + $0x180] sm:$0xff]
    %v273 = vld [vmem:[#allocation4 + $0x188] sm:$0xff]
    %v274 = vld [vmem:[#allocation4 + $0x190] sm:$0xff]
    %v275 = vld [vmem:[#allocation4 + $0x198] sm:$0xff]
    %v276 = vld [vmem:[#allocation4 + $0x1a0] sm:$0xff]
    %v277 = vld [vmem:[#allocation4 + $0x1a8] sm:$0xff]
    %v278 = vld [vmem:[#allocation4 + $0x1b0] sm:$0xff]
    %v279 = vld [vmem:[#allocation4 + $0x1b8] sm:$0xff]
    %v280 = vld [vmem:[#allocation4 + $0x1c0] sm:$0xff]
    %v281 = vld [vmem:[#allocation4 + $0x1c8] sm:$0xff]
    %v282 = vld [vmem:[#allocation4 + $0x1d0] sm:$0xff]
    %v283 = vld [vmem:[#allocation4 + $0x1d8] sm:$0xff]
    %v284 = vld [vmem:[#allocation4 + $0x1e0] sm:$0xff]
    %v285 = vld [vmem:[#allocation4 + $0x1e8] sm:$0xff]
    %v286 = vld [vmem:[#allocation4 + $0x1f0] sm:$0xff]
    %v287 = vld [vmem:[#allocation4 + $0x1f8] sm:$0xff]
    %v288 = vld [vmem:[#allocation4 + $0x200] sm:$0xff]
    %v289 = vld [vmem:[#allocation4 + $0x208] sm:$0xff]
    %v290 = vld [vmem:[#allocation4 + $0x210] sm:$0xff]
    %v291 = vld [vmem:[#allocation4 + $0x218] sm:$0xff]
    %v292 = vld [vmem:[#allocation4 + $0x220] sm:$0xff]
    %v293 = vld [vmem:[#allocation4 + $0x228] sm:$0xff]
    %v294 = vld [vmem:[#allocation4 + $0x230] sm:$0xff]
    %v295 = vld [vmem:[#allocation4 + $0x238] sm:$0xff]
    %v296 = vld [vmem:[#allocation4 + $0x240] sm:$0xff]
    %v297 = vld [vmem:[#allocation4 + $0x248] sm:$0xff]
    %v298 = vld [vmem:[#allocation4 + $0x250] sm:$0xff]
    %v299 = vld [vmem:[#allocation4 + $0x258] sm:$0xff]
    %v300 = vld [vmem:[#allocation4 + $0x260] sm:$0xff]
    %v301 = vld [vmem:[#allocation4 + $0x268] sm:$0xff]
    %v302 = vld [vmem:[#allocation4 + $0x270] sm:$0xff]
    %v303 = vld [vmem:[#allocation4 + $0x278] sm:$0xff]
    %v304 = vld [vmem:[#allocation4 + $0x280] sm:$0xff]
    %v305 = vld [vmem:[#allocation4 + $0x288] sm:$0xff]
    %v306 = vld [vmem:[#allocation4 + $0x290] sm:$0xff]
    %v307 = vld [vmem:[#allocation4 + $0x298] sm:$0xff]
    %v308 = vld [vmem:[#allocation4 + $0x2a0] sm:$0xff]
    %v309 = vld [vmem:[#allocation4 + $0x2a8] sm:$0xff]
    %v310 = vld [vmem:[#allocation4 + $0x2b0] sm:$0xff]
    %v311 = vld [vmem:[#allocation4 + $0x2b8] sm:$0xff]
    %v312 = vld [vmem:[#allocation4 + $0x2c0] sm:$0xff]
    %v313 = vld [vmem:[#allocation4 + $0x2c8] sm:$0xff]
    %v314 = vld [vmem:[#allocation4 + $0x2d0] sm:$0xff]
    %v315 = vld [vmem:[#allocation4 + $0x2d8] sm:$0xff]
    %v316 = vld [vmem:[#allocation4 + $0x2e0] sm:$0xff]
    %v317 = vld [vmem:[#allocation4 + $0x2e8] sm:$0xff]
    %v318 = vld [vmem:[#allocation4 + $0x2f0] sm:$0xff]
    %v319 = vld [vmem:[#allocation4 + $0x2f8] sm:$0xff]
    %v320 = vld [vmem:[#allocation4 + $0x300] sm:$0xff]
    %v321 = vld [vmem:[#allocation4 + $0x308] sm:$0xff]
    %v322 = vld [vmem:[#allocation4 + $0x310] sm:$0xff]
    %v323 = vld [vmem:[#allocation4 + $0x318] sm:$0xff]
    %v324 = vld [vmem:[#allocation4 + $0x320] sm:$0xff]
    %v325 = vld [vmem:[#allocation4 + $0x328] sm:$0xff]
    %v326 = vld [vmem:[#allocation4 + $0x330] sm:$0xff]
    %v327 = vld [vmem:[#allocation4 + $0x338] sm:$0xff]
    %v328 = vld [vmem:[#allocation4 + $0x340] sm:$0xff]
    %v329 = vld [vmem:[#allocation4 + $0x348] sm:$0xff]
    %v330 = vld [vmem:[#allocation4 + $0x350] sm:$0xff]
    %v331 = vld [vmem:[#allocation4 + $0x358] sm:$0xff]
    %v332 = vld [vmem:[#allocation4 + $0x360] sm:$0xff]
    %v333 = vld [vmem:[#allocation4 + $0x368] sm:$0xff]
    %v334 = vld [vmem:[#allocation4 + $0x370] sm:$0xff]
    %v335 = vld [vmem:[#allocation4 + $0x378] sm:$0xff]
    %v336 = vld [vmem:[#allocation4 + $0x380] sm:$0xff]
    %v337 = vld [vmem:[#allocation4 + $0x388] sm:$0xff]
    %v338 = vld [vmem:[#allocation4 + $0x390] sm:$0xff]
    %v339 = vld [vmem:[#allocation4 + $0x398] sm:$0xff]
    %v340 = vld [vmem:[#allocation4 + $0x3a0] sm:$0xff]
    %v341 = vld [vmem:[#allocation4 + $0x3a8] sm:$0xff]
    %v342 = vld [vmem:[#allocation4 + $0x3b0] sm:$0xff]
    %v343 = vld [vmem:[#allocation4 + $0x3b8] sm:$0xff]
    %v344 = vld [vmem:[#allocation4 + $0x3c0] sm:$0xff]
    %v345 = vld [vmem:[#allocation4 + $0x3c8] sm:$0xff]
    %v346 = vld [vmem:[#allocation4 + $0x3d0] sm:$0xff]
    %v347 = vld [vmem:[#allocation4 + $0x3d8] sm:$0xff]
    %v348 = vld [vmem:[#allocation4 + $0x3e0] sm:$0xff]
    %v349 = vld [vmem:[#allocation4 + $0x3e8] sm:$0xff]
    %v350 = vld [vmem:[#allocation4 + $0x3f0] sm:$0xff]
    %v351 = vld [vmem:[#allocation4 + $0x3f8] sm:$0xff]
    %v352 = vld [vmem:[#allocation4 + $0x400] sm:$0xff]
    %v353 = vld [vmem:[#allocation4 + $0x408] sm:$0xff]
    %v354 = vld [vmem:[#allocation4 + $0x410] sm:$0xff]
    %v355 = vld [vmem:[#allocation4 + $0x418] sm:$0xff]
    %v356 = vld [vmem:[#allocation4 + $0x420] sm:$0xff]
    %v357 = vld [vmem:[#allocation4 + $0x428] sm:$0xff]
    %v358 = vld [vmem:[#allocation4 + $0x430] sm:$0xff]
    %v359 = vld [vmem:[#allocation4 + $0x438] sm:$0xff]
    %v360 = vld [vmem:[#allocation4 + $0x440] sm:$0xff]
    %v361 = vld [vmem:[#allocation4 + $0x448] sm:$0xff]
    %v362 = vld [vmem:[#allocation4 + $0x450] sm:$0xff]
    %v363 = vld [vmem:[#allocation4 + $0x458] sm:$0xff]
    %v364 = vld [vmem:[#allocation4 + $0x460] sm:$0xff]
    %v365 = vld [vmem:[#allocation4 + $0x468] sm:$0xff]
    %v366 = vld [vmem:[#allocation4 + $0x470] sm:$0xff]
    %v367 = vld [vmem:[#allocation4 + $0x478] sm:$0xff]
    %v368 = vld [vmem:[#allocation4 + $0x480] sm:$0xff]
    %v369 = vld [vmem:[#allocation4 + $0x488] sm:$0xff]
    %v370 = vld [vmem:[#allocation4 + $0x490] sm:$0xff]
    %v371 = vld [vmem:[#allocation4 + $0x498] sm:$0xff]
    %v372 = vld [vmem:[#allocation4 + $0x4a0] sm:$0xff]
    %v373 = vld [vmem:[#allocation4 + $0x4a8] sm:$0xff]
    %v374 = vld [vmem:[#allocation4 + $0x4b0] sm:$0xff]
    %v375 = vld [vmem:[#allocation4 + $0x4b8] sm:$0xff]
    %v376 = vld [vmem:[#allocation4 + $0x4c0] sm:$0xff]
    %v377 = vld [vmem:[#allocation4 + $0x4c8] sm:$0xff]
    %v378 = vld [vmem:[#allocation4 + $0x4d0] sm:$0xff]
    %v379 = vld [vmem:[#allocation4 + $0x4d8] sm:$0xff]
    %v380 = vld [vmem:[#allocation4 + $0x4e0] sm:$0xff]
    %v381 = vld [vmem:[#allocation4 + $0x4e8] sm:$0xff]
    %v382 = vld [vmem:[#allocation4 + $0x4f0] sm:$0xff]
    %v383 = vld [vmem:[#allocation4 + $0x4f8] sm:$0xff]
    %v384 = vld [vmem:[#allocation4 + $0x500] sm:$0xff]
    %v385 = vld [vmem:[#allocation4 + $0x508] sm:$0xff]
    %v386 = vld [vmem:[#allocation4 + $0x510] sm:$0xff]
    %v387 = vld [vmem:[#allocation4 + $0x518] sm:$0xff]
    %v388 = vld [vmem:[#allocation4 + $0x520] sm:$0xff]
    %v389 = vld [vmem:[#allocation4 + $0x528] sm:$0xff]
    %v390 = vld [vmem:[#allocation4 + $0x530] sm:$0xff]
    %v391 = vld [vmem:[#allocation4 + $0x538] sm:$0xff]
    %v392 = vld [vmem:[#allocation4 + $0x540] sm:$0xff]
    %v393 = vld [vmem:[#allocation4 + $0x548] sm:$0xff]
    %v394 = vld [vmem:[#allocation4 + $0x550] sm:$0xff]
    %v395 = vld [vmem:[#allocation4 + $0x558] sm:$0xff]
    %v396 = vld [vmem:[#allocation4 + $0x560] sm:$0xff]
    %v397 = vld [vmem:[#allocation4 + $0x568] sm:$0xff]
    %v398 = vld [vmem:[#allocation4 + $0x570] sm:$0xff]
    %v399 = vld [vmem:[#allocation4 + $0x578] sm:$0xff]
    %v400 = vld [vmem:[#allocation2] sm:$0xfe]
    %v401 = vld [vmem:[#allocation2 + $0x8] sm:$0xfe]
    %v402 = vld [vmem:[#allocation2 + $0x10] sm:$0xfe]
    %v403 = vld [vmem:[#allocation2 + $0x18] sm:$0xfe]
    %v404 = vld [vmem:[#allocation2 + $0x20] sm:$0xfe]
    %v405 = vld [vmem:[#allocation2 + $0x28] sm:$0xfe]
    %v406 = vld [vmem:[#allocation2 + $0x60] sm:$0x1]
    %v407 = vld [vmem:[#allocation2 + $0x68] sm:$0x1]
    %v408 = vld [vmem:[#allocation2 + $0x70] sm:$0x1]
    %v409 = vld [vmem:[#allocation2 + $0x78] sm:$0x1]
    %v410 = vld [vmem:[#allocation2 + $0x80] sm:$0x1]
    %v411 = vld [vmem:[#allocation2 + $0x88] sm:$0x1]
    %s412 = scalar_lea.vmem [#allocation4], 1408
    %v413 = vld [vmem:[%s412] sm:$0xff]
    %v414 = vld [vmem:[%s412 + $0x8] sm:$0xff]
    %v415 = vld [vmem:[%s412 + $0x10] sm:$0xff]
    %v416 = vld [vmem:[%s412 + $0x18] sm:$0xff]
    %v417 = vld [vmem:[%s412 + $0x20] sm:$0xff]
    %v418 = vld [vmem:[%s412 + $0x28] sm:$0xff]
    %v419 = vld [vmem:[%s412 + $0x30] sm:$0xff]
    %v420 = vld [vmem:[%s412 + $0x38] sm:$0xff]
    %v421 = vld [vmem:[%s412 + $0x40] sm:$0xff]
    %v422 = vld [vmem:[%s412 + $0x48] sm:$0xff]
    %v423 = vld [vmem:[%s412 + $0x50] sm:$0xff]
    %v424 = vld [vmem:[%s412 + $0x58] sm:$0xff]
    %v425 = vld [vmem:[%s412 + $0x60] sm:$0xff]
    %v426 = vld [vmem:[%s412 + $0x68] sm:$0xff]
    %v427 = vld [vmem:[%s412 + $0x70] sm:$0xff]
    %v428 = vld [vmem:[%s412 + $0x78] sm:$0xff]
    %v429 = vld [vmem:[%s412 + $0x80] sm:$0xff]
    %v430 = vld [vmem:[%s412 + $0x88] sm:$0xff]
    %v431 = vld [vmem:[%s412 + $0x90] sm:$0xff]
    %v432 = vld [vmem:[%s412 + $0x98] sm:$0xff]
    %v433 = vld [vmem:[%s412 + $0xa0] sm:$0xff]
    %v434 = vld [vmem:[%s412 + $0xa8] sm:$0xff]
    %v435 = vld [vmem:[%s412 + $0xb0] sm:$0xff]
    %v436 = vld [vmem:[%s412 + $0xb8] sm:$0xff]
    %v437 = vld [vmem:[%s412 + $0xc0] sm:$0xff]
    %v438 = vld [vmem:[%s412 + $0xc8] sm:$0xff]
    %v439 = vld [vmem:[%s412 + $0xd0] sm:$0xff]
    %v440 = vld [vmem:[%s412 + $0xd8] sm:$0xff]
    %v441 = vld [vmem:[%s412 + $0xe0] sm:$0xff]
    %v442 = vld [vmem:[%s412 + $0xe8] sm:$0xff]
    %v443 = vld [vmem:[%s412 + $0xf0] sm:$0xff]
    %v444 = vld [vmem:[%s412 + $0xf8] sm:$0xff]
    %v445 = vld [vmem:[%s412 + $0x100] sm:$0xff]
    %v446 = vld [vmem:[%s412 + $0x108] sm:$0xff]
    %v447 = vld [vmem:[%s412 + $0x110] sm:$0xff]
    %v448 = vld [vmem:[%s412 + $0x118] sm:$0xff]
    %v449 = vld [vmem:[%s412 + $0x120] sm:$0xff]
    %v450 = vld [vmem:[%s412 + $0x128] sm:$0xff]
    %v451 = vld [vmem:[%s412 + $0x130] sm:$0xff]
    %v452 = vld [vmem:[%s412 + $0x138] sm:$0xff]
    %v453 = vld [vmem:[%s412 + $0x140] sm:$0xff]
    %v454 = vld [vmem:[%s412 + $0x148] sm:$0xff]
    %v455 = vld [vmem:[%s412 + $0x150] sm:$0xff]
    %v456 = vld [vmem:[%s412 + $0x158] sm:$0xff]
    %v457 = vld [vmem:[%s412 + $0x160] sm:$0xff]
    %v458 = vld [vmem:[%s412 + $0x168] sm:$0xff]
    %v459 = vld [vmem:[%s412 + $0x170] sm:$0xff]
    %v460 = vld [vmem:[%s412 + $0x178] sm:$0xff]
    %v461 = vld [vmem:[%s412 + $0x180] sm:$0xff]
    %v462 = vld [vmem:[%s412 + $0x188] sm:$0xff]
    %v463 = vld [vmem:[%s412 + $0x190] sm:$0xff]
    %v464 = vld [vmem:[%s412 + $0x198] sm:$0xff]
    %v465 = vld [vmem:[%s412 + $0x1a0] sm:$0xff]
    %v466 = vld [vmem:[%s412 + $0x1a8] sm:$0xff]
    %v467 = vld [vmem:[%s412 + $0x1b0] sm:$0xff]
    %v468 = vld [vmem:[%s412 + $0x1b8] sm:$0xff]
    %v469 = vld [vmem:[%s412 + $0x1c0] sm:$0xff]
    %v470 = vld [vmem:[%s412 + $0x1c8] sm:$0xff]
    %v471 = vld [vmem:[%s412 + $0x1d0] sm:$0xff]
    %v472 = vld [vmem:[%s412 + $0x1d8] sm:$0xff]
    %v473 = vld [vmem:[%s412 + $0x1e0] sm:$0xff]
    %v474 = vld [vmem:[%s412 + $0x1e8] sm:$0xff]
    %v475 = vld [vmem:[%s412 + $0x1f0] sm:$0xff]
    %v476 = vld [vmem:[%s412 + $0x1f8] sm:$0xff]
    %v477 = vld [vmem:[%s412 + $0x200] sm:$0xff]
    %v478 = vld [vmem:[%s412 + $0x208] sm:$0xff]
    %v479 = vld [vmem:[%s412 + $0x210] sm:$0xff]
    %v480 = vld [vmem:[%s412 + $0x218] sm:$0xff]
    %v481 = vld [vmem:[%s412 + $0x220] sm:$0xff]
    %v482 = vld [vmem:[%s412 + $0x228] sm:$0xff]
    %v483 = vld [vmem:[%s412 + $0x230] sm:$0xff]
    %v484 = vld [vmem:[%s412 + $0x238] sm:$0xff]
    %v485 = vld [vmem:[%s412 + $0x240] sm:$0xff]
    %v486 = vld [vmem:[%s412 + $0x248] sm:$0xff]
    %v487 = vld [vmem:[%s412 + $0x250] sm:$0xff]
    %v488 = vld [vmem:[%s412 + $0x258] sm:$0xff]
    %v489 = vld [vmem:[%s412 + $0x260] sm:$0xff]
    %v490 = vld [vmem:[%s412 + $0x268] sm:$0xff]
    %v491 = vld [vmem:[%s412 + $0x270] sm:$0xff]
    %v492 = vld [vmem:[%s412 + $0x278] sm:$0xff]
    %v493 = vld [vmem:[%s412 + $0x280] sm:$0xff]
    %v494 = vld [vmem:[%s412 + $0x288] sm:$0xff]
    %v495 = vld [vmem:[%s412 + $0x290] sm:$0xff]
    %v496 = vld [vmem:[%s412 + $0x298] sm:$0xff]
    %v497 = vld [vmem:[%s412 + $0x2a0] sm:$0xff]
    %v498 = vld [vmem:[%s412 + $0x2a8] sm:$0xff]
    %v499 = vld [vmem:[%s412 + $0x2b0] sm:$0xff]
    %v500 = vld [vmem:[%s412 + $0x2b8] sm:$0xff]
    %v501 = vld [vmem:[%s412 + $0x2c0] sm:$0xff]
    %v502 = vld [vmem:[%s412 + $0x2c8] sm:$0xff]
    %v503 = vld [vmem:[%s412 + $0x2d0] sm:$0xff]
    %v504 = vld [vmem:[%s412 + $0x2d8] sm:$0xff]
    %v505 = vld [vmem:[%s412 + $0x2e0] sm:$0xff]
    %v506 = vld [vmem:[%s412 + $0x2e8] sm:$0xff]
    %v507 = vld [vmem:[%s412 + $0x2f0] sm:$0xff]
    %v508 = vld [vmem:[%s412 + $0x2f8] sm:$0xff]
    %v509 = vld [vmem:[%s412 + $0x300] sm:$0xff]
    %v510 = vld [vmem:[%s412 + $0x308] sm:$0xff]
    %v511 = vld [vmem:[%s412 + $0x310] sm:$0xff]
    %v512 = vld [vmem:[%s412 + $0x318] sm:$0xff]
    %v513 = vld [vmem:[%s412 + $0x320] sm:$0xff]
    %v514 = vld [vmem:[%s412 + $0x328] sm:$0xff]
    %v515 = vld [vmem:[%s412 + $0x330] sm:$0xff]
    %v516 = vld [vmem:[%s412 + $0x338] sm:$0xff]
    %v517 = vld [vmem:[%s412 + $0x340] sm:$0xff]
    %v518 = vld [vmem:[%s412 + $0x348] sm:$0xff]
    %v519 = vld [vmem:[%s412 + $0x350] sm:$0xff]
    %v520 = vld [vmem:[%s412 + $0x358] sm:$0xff]
    %v521 = vld [vmem:[%s412 + $0x360] sm:$0xff]
    %v522 = vld [vmem:[%s412 + $0x368] sm:$0xff]
    %v523 = vld [vmem:[%s412 + $0x370] sm:$0xff]
    %v524 = vld [vmem:[%s412 + $0x378] sm:$0xff]
    %v525 = vld [vmem:[%s412 + $0x380] sm:$0xff]
    %v526 = vld [vmem:[%s412 + $0x388] sm:$0xff]
    %v527 = vld [vmem:[%s412 + $0x390] sm:$0xff]
    %v528 = vld [vmem:[%s412 + $0x398] sm:$0xff]
    %v529 = vld [vmem:[%s412 + $0x3a0] sm:$0xff]
    %v530 = vld [vmem:[%s412 + $0x3a8] sm:$0xff]
    %v531 = vld [vmem:[%s412 + $0x3b0] sm:$0xff]
    %v532 = vld [vmem:[%s412 + $0x3b8] sm:$0xff]
    %v533 = vld [vmem:[%s412 + $0x3c0] sm:$0xff]
    %v534 = vld [vmem:[%s412 + $0x3c8] sm:$0xff]
    %v535 = vld [vmem:[%s412 + $0x3d0] sm:$0xff]
    %v536 = vld [vmem:[%s412 + $0x3d8] sm:$0xff]
    %v537 = vld [vmem:[%s412 + $0x3e0] sm:$0xff]
    %v538 = vld [vmem:[%s412 + $0x3e8] sm:$0xff]
    %v539 = vld [vmem:[%s412 + $0x3f0] sm:$0xff]
    %v540 = vld [vmem:[%s412 + $0x3f8] sm:$0xff]
    %v541 = vld [vmem:[%s412 + $0x400] sm:$0xff]
    %v542 = vld [vmem:[%s412 + $0x408] sm:$0xff]
    %v543 = vld [vmem:[%s412 + $0x410] sm:$0xff]
    %v544 = vld [vmem:[%s412 + $0x418] sm:$0xff]
    %v545 = vld [vmem:[%s412 + $0x420] sm:$0xff]
    %v546 = vld [vmem:[%s412 + $0x428] sm:$0xff]
    %v547 = vld [vmem:[%s412 + $0x430] sm:$0xff]
    %v548 = vld [vmem:[%s412 + $0x438] sm:$0xff]
    %v549 = vld [vmem:[%s412 + $0x440] sm:$0xff]
    %v550 = vld [vmem:[%s412 + $0x448] sm:$0xff]
    %v551 = vld [vmem:[%s412 + $0x450] sm:$0xff]
    %v552 = vld [vmem:[%s412 + $0x458] sm:$0xff]
    %v553 = vld [vmem:[%s412 + $0x460] sm:$0xff]
    %v554 = vld [vmem:[%s412 + $0x468] sm:$0xff]
    %v555 = vld [vmem:[%s412 + $0x470] sm:$0xff]
    %v556 = vld [vmem:[%s412 + $0x478] sm:$0xff]
    %v557 = vld [vmem:[%s412 + $0x480] sm:$0xff]
    %v558 = vld [vmem:[%s412 + $0x488] sm:$0xff]
    %v559 = vld [vmem:[%s412 + $0x490] sm:$0xff]
    %v560 = vld [vmem:[%s412 + $0x498] sm:$0xff]
    %v561 = vld [vmem:[%s412 + $0x4a0] sm:$0xff]
    %v562 = vld [vmem:[%s412 + $0x4a8] sm:$0xff]
    %v563 = vld [vmem:[%s412 + $0x4b0] sm:$0xff]
    %v564 = vld [vmem:[%s412 + $0x4b8] sm:$0xff]
    %v565 = vld [vmem:[%s412 + $0x4c0] sm:$0xff]
    %v566 = vld [vmem:[%s412 + $0x4c8] sm:$0xff]
    %v567 = vld [vmem:[%s412 + $0x4d0] sm:$0xff]
    %v568 = vld [vmem:[%s412 + $0x4d8] sm:$0xff]
    %v569 = vld [vmem:[%s412 + $0x4e0] sm:$0xff]
    %v570 = vld [vmem:[%s412 + $0x4e8] sm:$0xff]
    %v571 = vld [vmem:[%s412 + $0x4f0] sm:$0xff]
    %v572 = vld [vmem:[%s412 + $0x4f8] sm:$0xff]
    %v573 = vld [vmem:[%s412 + $0x500] sm:$0xff]
    %v574 = vld [vmem:[%s412 + $0x508] sm:$0xff]
    %v575 = vld [vmem:[%s412 + $0x510] sm:$0xff]
    %v576 = vld [vmem:[%s412 + $0x518] sm:$0xff]
    %v577 = vld [vmem:[%s412 + $0x520] sm:$0xff]
    %v578 = vld [vmem:[%s412 + $0x528] sm:$0xff]
    %v579 = vld [vmem:[%s412 + $0x530] sm:$0xff]
    %v580 = vld [vmem:[%s412 + $0x538] sm:$0xff]
    %v581 = vld [vmem:[%s412 + $0x540] sm:$0xff]
    %v582 = vld [vmem:[%s412 + $0x548] sm:$0xff]
    %v583 = vld [vmem:[%s412 + $0x550] sm:$0xff]
    %v584 = vld [vmem:[%s412 + $0x558] sm:$0xff]
    %v585 = vld [vmem:[%s412 + $0x560] sm:$0xff]
    %v586 = vld [vmem:[%s412 + $0x568] sm:$0xff]
    %v587 = vld [vmem:[%s412 + $0x570] sm:$0xff]
    %v588 = vld [vmem:[%s412 + $0x578] sm:$0xff]
    %vm607 = vcmask 1046528
    %v608 = vrot.slane %v400, 1
    %v609 = vrot.slane %v218, 1
    %v610 = vsel %vm607, %v608, %v609
    %v611 = vrot.slane %v401, 1
    %v612 = vrot.slane %v219, 1
    %v613 = vsel %vm607, %v611, %v612
    %v614 = vrot.slane %v402, 1
    %v615 = vrot.slane %v220, 1
    %v616 = vsel %vm607, %v614, %v615
    %v617 = vrot.slane %v403, 1
    %v618 = vrot.slane %v221, 1
    %v619 = vsel %vm607, %v617, %v618
    %v620 = vrot.slane %v404, 1
    %v621 = vrot.slane %v222, 1
    %v622 = vsel %vm607, %v620, %v621
    %v623 = vrot.slane %v405, 1
    %v624 = vrot.slane %v223, 1
    %v625 = vsel %vm607, %v623, %v624
    %v626 = vrot.slane %v406, 1
    %v627 = vsel %vm607, %v609, %v626
    %v628 = vrot.slane %v407, 1
    %v629 = vsel %vm607, %v612, %v628
    %v630 = vrot.slane %v408, 1
    %v631 = vsel %vm607, %v615, %v630
    %v632 = vrot.slane %v409, 1
    %v633 = vsel %vm607, %v618, %v632
    %v634 = vrot.slane %v410, 1
    %v635 = vsel %vm607, %v621, %v634
    %v636 = vrot.slane %v411, 1
    %v637 = vsel %vm607, %v624, %v636
    %v648 = vsel %vm84, %v625, 0
    %v650 = vsel %vm84, %v637, 0
    %652 = vmatprep.subr.mxu0 %v414
    %653 = vmatpush1.msra.mxu0 %v413
    %654 = vmatprep.subr.mxu0 %v416
    %655 = vmatpush1.msra.mxu0 %v415
    %656 = vmatprep.subr.mxu0 %v418
    %657 = vmatpush1.msra.mxu0 %v417
    %658 = vmatprep.subr.mxu0 %v420
    %659 = vmatpush1.msra.mxu0 %v419
    %660 = vmatprep.subr.mxu0 %v422
    %661 = vmatpush1.msra.mxu0 %v421
    %662 = vmatprep.subr.mxu0 %v424
    %663 = vmatpush1.msra.mxu0 %v423
    %664 = vmatprep.subr.mxu0 %v426
    %665 = vmatpush1.msra.mxu0 %v425
    %666 = vmatprep.subr.mxu0 %v428
    %667 = vmatpush1.msra.mxu0 %v427
    %668 = vmatprep.subr.mxu0 %v430
    %669 = vmatpush1.msra.mxu0 %v429
    %670 = vmatprep.subr.mxu0 %v432
    %671 = vmatpush1.msra.mxu0 %v431
    %672 = vmatprep.subr.mxu0 %v434
    %673 = vmatpush1.msra.mxu0 %v433
    %674 = vmatprep.subr.mxu0 %v436
    %675 = vmatpush1.msra.mxu0 %v435
    %676 = vmatprep.subr.mxu0 %v438
    %677 = vmatpush1.msra.mxu0 %v437
    %678 = vmatprep.subr.mxu0 %v440
    %679 = vmatpush1.msra.mxu0 %v439
    %680 = vmatprep.subr.mxu0 %v442
    %681 = vmatpush1.msra.mxu0 %v441
    %682 = vmatprep.subr.mxu0 %v444
    %683 = vmatpush1.msra.mxu0 %v443
    %684 = vmatprep.subr.mxu0 %v446
    %685 = vmatpush1.msra.mxu0 %v445
    %686 = vmatprep.subr.mxu0 %v448
    %687 = vmatpush1.msra.mxu0 %v447
    %688 = vmatprep.subr.mxu0 %v450
    %689 = vmatpush1.msra.mxu0 %v449
    %690 = vmatprep.subr.mxu0 %v452
    %691 = vmatpush1.msra.mxu0 %v451
    %692 = vmatprep.subr.mxu0 %v454
    %693 = vmatpush1.msra.mxu0 %v453
    %694 = vmatprep.subr.mxu0 %v456
    %695 = vmatpush1.msra.mxu0 %v455
    %696 = vmatprep.subr.mxu0 %v458
    %697 = vmatpush1.msra.mxu0 %v457
    %698 = vmatprep.subr.mxu0 %v460
    %699 = vmatpush1.msra.mxu0 %v459
    %700 = vmatprep.subr.mxu0 %v462
    %701 = vmatpush1.msra.mxu0 %v461
    %702 = vmatprep.subr.mxu0 %v464
    %703 = vmatpush1.msra.mxu0 %v463
    %704 = vmatprep.subr.mxu0 %v466
    %705 = vmatpush1.msra.mxu0 %v465
    %706 = vmatprep.subr.mxu0 %v468
    %707 = vmatpush1.msra.mxu0 %v467
    %708 = vmatprep.subr.mxu0 %v470
    %709 = vmatpush1.msra.mxu0 %v469
    %710 = vmatprep.subr.mxu0 %v472
    %711 = vmatpush1.msra.mxu0 %v471
    %712 = vmatprep.subr.mxu0 %v474
    %713 = vmatpush1.msra.mxu0 %v473
    %714 = vmatprep.subr.mxu0 %v476
    %715 = vmatpush1.msra.mxu0 %v475
    %716 = vmatprep.mubr.f32.mxu0 %v613
    %717 = vmatmul.mubr.f32.gmra.mrb[0].mxu0 %v610
    %v718 = vpop.f32.mrb[0].mxu0
    %v719 = vadd.f32 0.0, %v718
    %v720 = vpop.f32.mrb[0].mxu0
    %v721 = vadd.f32 0.0, %v720
    %722 = vmatprep.mubr.f32.mxu0 %v629
    %723 = vmatmul.mubr.f32.gmra.mrb[0].mxu0 %v627
    %v724 = vpop.f32.mrb[0].mxu0
    %v725 = vadd.f32 0.0, %v724
    %v726 = vpop.f32.mrb[0].mxu0
    %v727 = vadd.f32 0.0, %v726
    %728 = vdwg.mxu0
    %729 = vmatprep.subr.mxu0 %v478
    %730 = vmatpush1.msra.mxu0 %v477
    %731 = vmatprep.subr.mxu0 %v480
    %732 = vmatpush1.msra.mxu0 %v479
    %733 = vmatprep.subr.mxu0 %v482
    %734 = vmatpush1.msra.mxu0 %v481
    %735 = vmatprep.subr.mxu0 %v484
    %736 = vmatpush1.msra.mxu0 %v483
    %737 = vmatprep.subr.mxu0 %v486
    %738 = vmatpush1.msra.mxu0 %v485
    %739 = vmatprep.subr.mxu0 %v488
    %740 = vmatpush1.msra.mxu0 %v487
    %741 = vmatprep.subr.mxu0 %v490
    %742 = vmatpush1.msra.mxu0 %v489
    %743 = vmatprep.subr.mxu0 %v492
    %744 = vmatpush1.msra.mxu0 %v491
    %745 = vmatprep.subr.mxu0 %v494
    %746 = vmatpush1.msra.mxu0 %v493
    %747 = vmatprep.subr.mxu0 %v496
    %748 = vmatpush1.msra.mxu0 %v495
    %749 = vmatprep.subr.mxu0 %v498
    %750 = vmatpush1.msra.mxu0 %v497
    %751 = vmatprep.subr.mxu0 %v500
    %752 = vmatpush1.msra.mxu0 %v499
    %753 = vmatprep.subr.mxu0 %v502
    %754 = vmatpush1.msra.mxu0 %v501
    %755 = vmatprep.subr.mxu0 %v504
    %756 = vmatpush1.msra.mxu0 %v503
    %757 = vmatprep.subr.mxu0 %v506
    %758 = vmatpush1.msra.mxu0 %v505
    %759 = vmatprep.subr.mxu0 %v508
    %760 = vmatpush1.msra.mxu0 %v507
    %761 = vmatprep.subr.mxu0 %v510
    %762 = vmatpush1.msra.mxu0 %v509
    %763 = vmatprep.subr.mxu0 %v512
    %764 = vmatpush1.msra.mxu0 %v511
    %765 = vmatprep.subr.mxu0 %v514
    %766 = vmatpush1.msra.mxu0 %v513
    %767 = vmatprep.subr.mxu0 %v516
    %768 = vmatpush1.msra.mxu0 %v515
    %769 = vmatprep.subr.mxu0 %v518
    %770 = vmatpush1.msra.mxu0 %v517
    %771 = vmatprep.subr.mxu0 %v520
    %772 = vmatpush1.msra.mxu0 %v519
    %773 = vmatprep.subr.mxu0 %v522
    %774 = vmatpush1.msra.mxu0 %v521
    %775 = vmatprep.subr.mxu0 %v524
    %776 = vmatpush1.msra.mxu0 %v523
    %777 = vmatprep.subr.mxu0 %v526
    %778 = vmatpush1.msra.mxu0 %v525
    %779 = vmatprep.subr.mxu0 %v528
    %780 = vmatpush1.msra.mxu0 %v527
    %781 = vmatprep.subr.mxu0 %v530
    %782 = vmatpush1.msra.mxu0 %v529
    %783 = vmatprep.subr.mxu0 %v532
    %784 = vmatpush1.msra.mxu0 %v531
    %785 = vmatprep.subr.mxu0 %v534
    %786 = vmatpush1.msra.mxu0 %v533
    %787 = vmatprep.subr.mxu0 %v536
    %788 = vmatpush1.msra.mxu0 %v535
    %789 = vmatprep.subr.mxu0 %v538
    %790 = vmatpush1.msra.mxu0 %v537
    %791 = vmatprep.subr.mxu0 %v540
    %792 = vmatpush1.msra.mxu0 %v539
    %793 = vmatprep.mubr.f32.mxu0 %v619
    %794 = vmatmul.mubr.f32.gmra.mrb[0].mxu0 %v616
    %v795 = vpop.f32.mrb[0].mxu0
    %v796 = vadd.f32 %v719, %v795
    %v797 = vpop.f32.mrb[0].mxu0
    %v798 = vadd.f32 %v721, %v797
    %799 = vmatprep.mubr.f32.mxu0 %v633
    %800 = vmatmul.mubr.f32.gmra.mrb[0].mxu0 %v631
    %v801 = vpop.f32.mrb[0].mxu0
    %v802 = vadd.f32 %v725, %v801
    %v803 = vpop.f32.mrb[0].mxu0
    %v804 = vadd.f32 %v727, %v803
    %805 = vdwg.mxu0
    %806 = vmatprep.subr.mxu0 %v542
    %807 = vmatpush1.msra.mxu0 %v541
    %808 = vmatprep.subr.mxu0 %v544
    %809 = vmatpush1.msra.mxu0 %v543
    %810 = vmatprep.subr.mxu0 %v546
    %811 = vmatpush1.msra.mxu0 %v545
    %812 = vmatprep.subr.mxu0 %v548
    %813 = vmatpush1.msra.mxu0 %v547
    %814 = vmatprep.subr.mxu0 %v550
    %815 = vmatpush1.msra.mxu0 %v549
    %816 = vmatprep.subr.mxu0 %v552
    %817 = vmatpush1.msra.mxu0 %v551
    %818 = vmatprep.subr.mxu0 %v554
    %819 = vmatpush1.msra.mxu0 %v553
    %820 = vmatprep.subr.mxu0 %v556
    %821 = vmatpush1.msra.mxu0 %v555
    %822 = vmatprep.subr.mxu0 %v558
    %823 = vmatpush1.msra.mxu0 %v557
    %824 = vmatprep.subr.mxu0 %v560
    %825 = vmatpush1.msra.mxu0 %v559
    %826 = vmatprep.subr.mxu0 %v562
    %827 = vmatpush1.msra.mxu0 %v561
    %828 = vmatprep.subr.mxu0 %v564
    %829 = vmatpush1.msra.mxu0 %v563
    %830 = vmatprep.subr.mxu0 %v566
    %831 = vmatpush1.msra.mxu0 %v565
    %832 = vmatprep.subr.mxu0 %v568
    %833 = vmatpush1.msra.mxu0 %v567
    %834 = vmatprep.subr.mxu0 %v570
    %835 = vmatpush1.msra.mxu0 %v569
    %836 = vmatprep.subr.mxu0 %v572
    %837 = vmatpush1.msra.mxu0 %v571
    %838 = vmatprep.subr.mxu0 %v574
    %839 = vmatpush1.msra.mxu0 %v573
    %840 = vmatprep.subr.mxu0 %v576
    %841 = vmatpush1.msra.mxu0 %v575
    %842 = vmatprep.subr.mxu0 %v578
    %843 = vmatpush1.msra.mxu0 %v577
    %844 = vmatprep.subr.mxu0 %v580
    %845 = vmatpush1.msra.mxu0 %v579
    %846 = vmatprep.subr.mxu0 %v582
    %847 = vmatpush1.msra.mxu0 %v581
    %848 = vmatprep.subr.mxu0 %v584
    %849 = vmatpush1.msra.mxu0 %v583
    %850 = vmatprep.subr.mxu0 %v586
    %851 = vmatpush1.msra.mxu0 %v585
    %852 = vmatprep.subr.mxu0 %v588
    %853 = vmatpush1.msra.mxu0 %v587
    %854 = vmatprep.subr.mxu0 0.0
    %855 = vmatpush1.msra.mxu0 0.0
    %856 = vmatprep.subr.mxu0 0.0
    %857 = vmatpush1.msra.mxu0 0.0
    %858 = vmatprep.subr.mxu0 0.0
    %859 = vmatpush1.msra.mxu0 0.0
    %860 = vmatprep.subr.mxu0 0.0
    %861 = vmatpush1.msra.mxu0 0.0
    %862 = vmatprep.subr.mxu0 0.0
    %863 = vmatpush1.msra.mxu0 0.0
    %864 = vmatprep.subr.mxu0 0.0
    %865 = vmatpush1.msra.mxu0 0.0
    %866 = vmatprep.subr.mxu0 0.0
    %867 = vmatpush1.msra.mxu0 0.0
    %868 = vmatprep.subr.mxu0 0.0
    %869 = vmatpush1.msra.mxu0 0.0
    %870 = vmatprep.mubr.f32.mxu0 %v648
    %871 = vmatmul.mubr.f32.gmra.mrb[0].mxu0 %v622
    %v872 = vpop.f32.mrb[0].mxu0
    %v873 = vadd.f32 %v796, %v872
    %v874 = vpop.f32.mrb[0].mxu0
    %v875 = vadd.f32 %v798, %v874
    %876 = vmatprep.mubr.f32.mxu0 %v650
    %877 = vmatmul.mubr.f32.gmra.mrb[0].mxu0 %v635
    %v878 = vpop.f32.mrb[0].mxu0
    %v879 = vadd.f32 %v802, %v878
    %v880 = vpop.f32.mrb[0].mxu0
    %v881 = vadd.f32 %v804, %v880
    %882 = vdwg.mxu0
    %v884 = vsel %vm84, %v217, 0
    %v886 = vsel %vm84, %v223, 0
    %888 = vmatprep.subr.mxu0 %v225
    %889 = vmatpush1.msra.mxu0 %v224
    %890 = vmatprep.subr.mxu0 %v227
    %891 = vmatpush1.msra.mxu0 %v226
    %892 = vmatprep.subr.mxu0 %v229
    %893 = vmatpush1.msra.mxu0 %v228
    %894 = vmatprep.subr.mxu0 %v231
    %895 = vmatpush1.msra.mxu0 %v230
    %896 = vmatprep.subr.mxu0 %v233
    %897 = vmatpush1.msra.mxu0 %v232
    %898 = vmatprep.subr.mxu0 %v235
    %899 = vmatpush1.msra.mxu0 %v234
    %900 = vmatprep.subr.mxu0 %v237
    %901 = vmatpush1.msra.mxu0 %v236
    %902 = vmatprep.subr.mxu0 %v239
    %903 = vmatpush1.msra.mxu0 %v238
    %904 = vmatprep.subr.mxu0 %v241
    %905 = vmatpush1.msra.mxu0 %v240
    %906 = vmatprep.subr.mxu0 %v243
    %907 = vmatpush1.msra.mxu0 %v242
    %908 = vmatprep.subr.mxu0 %v245
    %909 = vmatpush1.msra.mxu0 %v244
    %910 = vmatprep.subr.mxu0 %v247
    %911 = vmatpush1.msra.mxu0 %v246
    %912 = vmatprep.subr.mxu0 %v249
    %913 = vmatpush1.msra.mxu0 %v248
    %914 = vmatprep.subr.mxu0 %v251
    %915 = vmatpush1.msra.mxu0 %v250
    %916 = vmatprep.subr.mxu0 %v253
    %917 = vmatpush1.msra.mxu0 %v252
    %918 = vmatprep.subr.mxu0 %v255
    %919 = vmatpush1.msra.mxu0 %v254
    %920 = vmatprep.subr.mxu0 %v257
    %921 = vmatpush1.msra.mxu0 %v256
    %922 = vmatprep.subr.mxu0 %v259
    %923 = vmatpush1.msra.mxu0 %v258
    %924 = vmatprep.subr.mxu0 %v261
    %925 = vmatpush1.msra.mxu0 %v260
    %926 = vmatprep.subr.mxu0 %v263
    %927 = vmatpush1.msra.mxu0 %v262
    %928 = vmatprep.subr.mxu0 %v265
    %929 = vmatpush1.msra.mxu0 %v264
    %930 = vmatprep.subr.mxu0 %v267
    %931 = vmatpush1.msra.mxu0 %v266
    %932 = vmatprep.subr.mxu0 %v269
    %933 = vmatpush1.msra.mxu0 %v268
    %934 = vmatprep.subr.mxu0 %v271
    %935 = vmatpush1.msra.mxu0 %v270
    %936 = vmatprep.subr.mxu0 %v273
    %937 = vmatpush1.msra.mxu0 %v272
    %938 = vmatprep.subr.mxu0 %v275
    %939 = vmatpush1.msra.mxu0 %v274
    %940 = vmatprep.subr.mxu0 %v277
    %941 = vmatpush1.msra.mxu0 %v276
    %942 = vmatprep.subr.mxu0 %v279
    %943 = vmatpush1.msra.mxu0 %v278
    %944 = vmatprep.subr.mxu0 %v281
    %945 = vmatpush1.msra.mxu0 %v280
    %946 = vmatprep.subr.mxu0 %v283
    %947 = vmatpush1.msra.mxu0 %v282
    %948 = vmatprep.subr.mxu0 %v285
    %949 = vmatpush1.msra.mxu0 %v284
    %950 = vmatprep.subr.mxu0 %v287
    %951 = vmatpush1.msra.mxu0 %v286
    %952 = vmatprep.mubr.f32.mxu0 %v213
    %953 = vmatmul.mubr.f32.gmra.mrb[0].mxu0 %v212
    %v954 = vpop.f32.mrb[0].mxu0
    %v955 = vadd.f32 %v873, %v954
    %v956 = vpop.f32.mrb[0].mxu0
    %v957 = vadd.f32 %v875, %v956
    %958 = vmatprep.mubr.f32.mxu0 %v219
    %959 = vmatmul.mubr.f32.gmra.mrb[0].mxu0 %v218
    %v960 = vpop.f32.mrb[0].mxu0
    %v961 = vadd.f32 %v879, %v960
    %v962 = vpop.f32.mrb[0].mxu0
    %v963 = vadd.f32 %v881, %v962
    %964 = vdwg.mxu0
    %965 = vmatprep.subr.mxu0 %v289
    %966 = vmatpush1.msra.mxu0 %v288
    %967 = vmatprep.subr.mxu0 %v291
    %968 = vmatpush1.msra.mxu0 %v290
    %969 = vmatprep.subr.mxu0 %v293
    %970 = vmatpush1.msra.mxu0 %v292
    %971 = vmatprep.subr.mxu0 %v295
    %972 = vmatpush1.msra.mxu0 %v294
    %973 = vmatprep.subr.mxu0 %v297
    %974 = vmatpush1.msra.mxu0 %v296
    %975 = vmatprep.subr.mxu0 %v299
    %976 = vmatpush1.msra.mxu0 %v298
    %977 = vmatprep.subr.mxu0 %v301
    %978 = vmatpush1.msra.mxu0 %v300
    %979 = vmatprep.subr.mxu0 %v303
    %980 = vmatpush1.msra.mxu0 %v302
    %981 = vmatprep.subr.mxu0 %v305
    %982 = vmatpush1.msra.mxu0 %v304
    %983 = vmatprep.subr.mxu0 %v307
    %984 = vmatpush1.msra.mxu0 %v306
    %985 = vmatprep.subr.mxu0 %v309
    %986 = vmatpush1.msra.mxu0 %v308
    %987 = vmatprep.subr.mxu0 %v311
    %988 = vmatpush1.msra.mxu0 %v310
    %989 = vmatprep.subr.mxu0 %v313
    %990 = vmatpush1.msra.mxu0 %v312
    %991 = vmatprep.subr.mxu0 %v315
    %992 = vmatpush1.msra.mxu0 %v314
    %993 = vmatprep.subr.mxu0 %v317
    %994 = vmatpush1.msra.mxu0 %v316
    %995 = vmatprep.subr.mxu0 %v319
    %996 = vmatpush1.msra.mxu0 %v318
    %997 = vmatprep.subr.mxu0 %v321
    %998 = vmatpush1.msra.mxu0 %v320
    %999 = vmatprep.subr.mxu0 %v323
    %1000 = vmatpush1.msra.mxu0 %v322
    %1001 = vmatprep.subr.mxu0 %v325
    %1002 = vmatpush1.msra.mxu0 %v324
    %1003 = vmatprep.subr.mxu0 %v327
    %1004 = vmatpush1.msra.mxu0 %v326
    %1005 = vmatprep.subr.mxu0 %v329
    %1006 = vmatpush1.msra.mxu0 %v328
    %1007 = vmatprep.subr.mxu0 %v331
    %1008 = vmatpush1.msra.mxu0 %v330
    %1009 = vmatprep.subr.mxu0 %v333
    %1010 = vmatpush1.msra.mxu0 %v332
    %1011 = vmatprep.subr.mxu0 %v335
    %1012 = vmatpush1.msra.mxu0 %v334
    %1013 = vmatprep.subr.mxu0 %v337
    %1014 = vmatpush1.msra.mxu0 %v336
    %1015 = vmatprep.subr.mxu0 %v339
    %1016 = vmatpush1.msra.mxu0 %v338
    %1017 = vmatprep.subr.mxu0 %v341
    %1018 = vmatpush1.msra.mxu0 %v340
    %1019 = vmatprep.subr.mxu0 %v343
    %1020 = vmatpush1.msra.mxu0 %v342
    %1021 = vmatprep.subr.mxu0 %v345
    %1022 = vmatpush1.msra.mxu0 %v344
    %1023 = vmatprep.subr.mxu0 %v347
    %1024 = vmatpush1.msra.mxu0 %v346
    %1025 = vmatprep.subr.mxu0 %v349
    %1026 = vmatpush1.msra.mxu0 %v348
    %1027 = vmatprep.subr.mxu0 %v351
    %1028 = vmatpush1.msra.mxu0 %v350
    %1029 = vmatprep.mubr.f32.mxu0 %v215
    %1030 = vmatmul.mubr.f32.gmra.mrb[0].mxu0 %v214
    %v1031 = vpop.f32.mrb[0].mxu0
    %v1032 = vadd.f32 %v955, %v1031
    %v1033 = vpop.f32.mrb[0].mxu0
    %v1034 = vadd.f32 %v957, %v1033
    %1035 = vmatprep.mubr.f32.mxu0 %v221
    %1036 = vmatmul.mubr.f32.gmra.mrb[0].mxu0 %v220
    %v1037 = vpop.f32.mrb[0].mxu0
    %v1038 = vadd.f32 %v961, %v1037
    %v1039 = vpop.f32.mrb[0].mxu0
    %v1040 = vadd.f32 %v963, %v1039
    %1041 = vdwg.mxu0
    %1042 = vmatprep.subr.mxu0 %v353
    %1043 = vmatpush1.msra.mxu0 %v352
    %1044 = vmatprep.subr.mxu0 %v355
    %1045 = vmatpush1.msra.mxu0 %v354
    %1046 = vmatprep.subr.mxu0 %v357
    %1047 = vmatpush1.msra.mxu0 %v356
    %1048 = vmatprep.subr.mxu0 %v359
    %1049 = vmatpush1.msra.mxu0 %v358
    %1050 = vmatprep.subr.mxu0 %v361
    %1051 = vmatpush1.msra.mxu0 %v360
    %1052 = vmatprep.subr.mxu0 %v363
    %1053 = vmatpush1.msra.mxu0 %v362
    %1054 = vmatprep.subr.mxu0 %v365
    %1055 = vmatpush1.msra.mxu0 %v364
    %1056 = vmatprep.subr.mxu0 %v367
    %1057 = vmatpush1.msra.mxu0 %v366
    %1058 = vmatprep.subr.mxu0 %v369
    %1059 = vmatpush1.msra.mxu0 %v368
    %1060 = vmatprep.subr.mxu0 %v371
    %1061 = vmatpush1.msra.mxu0 %v370
    %1062 = vmatprep.subr.mxu0 %v373
    %1063 = vmatpush1.msra.mxu0 %v372
    %1064 = vmatprep.subr.mxu0 %v375
    %1065 = vmatpush1.msra.mxu0 %v374
    %1066 = vmatprep.subr.mxu0 %v377
    %1067 = vmatpush1.msra.mxu0 %v376
    %1068 = vmatprep.subr.mxu0 %v379
    %1069 = vmatpush1.msra.mxu0 %v378
    %1070 = vmatprep.subr.mxu0 %v381
    %1071 = vmatpush1.msra.mxu0 %v380
    %1072 = vmatprep.subr.mxu0 %v383
    %1073 = vmatpush1.msra.mxu0 %v382
    %1074 = vmatprep.subr.mxu0 %v385
    %1075 = vmatpush1.msra.mxu0 %v384
    %1076 = vmatprep.subr.mxu0 %v387
    %1077 = vmatpush1.msra.mxu0 %v386
    %1078 = vmatprep.subr.mxu0 %v389
    %1079 = vmatpush1.msra.mxu0 %v388
    %1080 = vmatprep.subr.mxu0 %v391
    %1081 = vmatpush1.msra.mxu0 %v390
    %1082 = vmatprep.subr.mxu0 %v393
    %1083 = vmatpush1.msra.mxu0 %v392
    %1084 = vmatprep.subr.mxu0 %v395
    %1085 = vmatpush1.msra.mxu0 %v394
    %1086 = vmatprep.subr.mxu0 %v397
    %1087 = vmatpush1.msra.mxu0 %v396
    %1088 = vmatprep.subr.mxu0 %v399
    %1089 = vmatpush1.msra.mxu0 %v398
    %1090 = vmatprep.subr.mxu0 0.0
    %1091 = vmatpush1.msra.mxu0 0.0
    %1092 = vmatprep.subr.mxu0 0.0
    %1093 = vmatpush1.msra.mxu0 0.0
    %1094 = vmatprep.subr.mxu0 0.0
    %1095 = vmatpush1.msra.mxu0 0.0
    %1096 = vmatprep.subr.mxu0 0.0
    %1097 = vmatpush1.msra.mxu0 0.0
    %1098 = vmatprep.subr.mxu0 0.0
    %1099 = vmatpush1.msra.mxu0 0.0
    %1100 = vmatprep.subr.mxu0 0.0
    %1101 = vmatpush1.msra.mxu0 0.0
    %1102 = vmatprep.subr.mxu0 0.0
    %1103 = vmatpush1.msra.mxu0 0.0
    %1104 = vmatprep.subr.mxu0 0.0
    %1105 = vmatpush1.msra.mxu0 0.0
    %1106 = vmatprep.mubr.f32.mxu0 %v884
    %1107 = vmatmul.mubr.f32.gmra.mrb[0].mxu0 %v216
    %v1108 = vpop.f32.mrb[0].mxu0
    %v1109 = vadd.f32 %v1032, %v1108
    %v1110 = vpop.f32.mrb[0].mxu0
    %v1111 = vadd.f32 %v1034, %v1110
    %1112 = vmatprep.mubr.f32.mxu0 %v886
    %1113 = vmatmul.mubr.f32.gmra.mrb[0].mxu0 %v222
    %v1114 = vpop.f32.mrb[0].mxu0
    %v1115 = vadd.f32 %v1038, %v1114
    %v1116 = vpop.f32.mrb[0].mxu0
    %v1117 = vadd.f32 %v1040, %v1116
    %1118 = vdwg.mxu0
    %v1119 = vld [vmem:[#allocation2] sm:$0xfc]
    %v1120 = vld [vmem:[#allocation2 + $0x8] sm:$0xfc]
    %v1121 = vld [vmem:[#allocation2 + $0x10] sm:$0xfc]
    %v1122 = vld [vmem:[#allocation2 + $0x18] sm:$0xfc]
    %v1123 = vld [vmem:[#allocation2 + $0x20] sm:$0xfc]
    %v1124 = vld [vmem:[#allocation2 + $0x28] sm:$0xfc]
    %v1125 = vld [vmem:[#allocation2 + $0x60] sm:$0x3]
    %v1126 = vld [vmem:[#allocation2 + $0x68] sm:$0x3]
    %v1127 = vld [vmem:[#allocation2 + $0x70] sm:$0x3]
    %v1128 = vld [vmem:[#allocation2 + $0x78] sm:$0x3]
    %v1129 = vld [vmem:[#allocation2 + $0x80] sm:$0x3]
    %v1130 = vld [vmem:[#allocation2 + $0x88] sm:$0x3]
    %s1131 = scalar_lea.vmem [#allocation4], 2816
    %v1132 = vld [vmem:[%s1131] sm:$0xff]
    %v1133 = vld [vmem:[%s1131 + $0x8] sm:$0xff]
    %v1134 = vld [vmem:[%s1131 + $0x10] sm:$0xff]
    %v1135 = vld [vmem:[%s1131 + $0x18] sm:$0xff]
    %v1136 = vld [vmem:[%s1131 + $0x20] sm:$0xff]
    %v1137 = vld [vmem:[%s1131 + $0x28] sm:$0xff]
    %v1138 = vld [vmem:[%s1131 + $0x30] sm:$0xff]
    %v1139 = vld [vmem:[%s1131 + $0x38] sm:$0xff]
    %v1140 = vld [vmem:[%s1131 + $0x40] sm:$0xff]
    %v1141 = vld [vmem:[%s1131 + $0x48] sm:$0xff]
    %v1142 = vld [vmem:[%s1131 + $0x50] sm:$0xff]
    %v1143 = vld [vmem:[%s1131 + $0x58] sm:$0xff]
    %v1144 = vld [vmem:[%s1131 + $0x60] sm:$0xff]
    %v1145 = vld [vmem:[%s1131 + $0x68] sm:$0xff]
    %v1146 = vld [vmem:[%s1131 + $0x70] sm:$0xff]
    %v1147 = vld [vmem:[%s1131 + $0x78] sm:$0xff]
    %v1148 = vld [vmem:[%s1131 + $0x80] sm:$0xff]
    %v1149 = vld [vmem:[%s1131 + $0x88] sm:$0xff]
    %v1150 = vld [vmem:[%s1131 + $0x90] sm:$0xff]
    %v1151 = vld [vmem:[%s1131 + $0x98] sm:$0xff]
    %v1152 = vld [vmem:[%s1131 + $0xa0] sm:$0xff]
    %v1153 = vld [vmem:[%s1131 + $0xa8] sm:$0xff]
    %v1154 = vld [vmem:[%s1131 + $0xb0] sm:$0xff]
    %v1155 = vld [vmem:[%s1131 + $0xb8] sm:$0xff]
    %v1156 = vld [vmem:[%s1131 + $0xc0] sm:$0xff]
    %v1157 = vld [vmem:[%s1131 + $0xc8] sm:$0xff]
    %v1158 = vld [vmem:[%s1131 + $0xd0] sm:$0xff]
    %v1159 = vld [vmem:[%s1131 + $0xd8] sm:$0xff]
    %v1160 = vld [vmem:[%s1131 + $0xe0] sm:$0xff]
    %v1161 = vld [vmem:[%s1131 + $0xe8] sm:$0xff]
    %v1162 = vld [vmem:[%s1131 + $0xf0] sm:$0xff]
    %v1163 = vld [vmem:[%s1131 + $0xf8] sm:$0xff]
    %v1164 = vld [vmem:[%s1131 + $0x100] sm:$0xff]
    %v1165 = vld [vmem:[%s1131 + $0x108] sm:$0xff]
    %v1166 = vld [vmem:[%s1131 + $0x110] sm:$0xff]
    %v1167 = vld [vmem:[%s1131 + $0x118] sm:$0xff]
    %v1168 = vld [vmem:[%s1131 + $0x120] sm:$0xff]
    %v1169 = vld [vmem:[%s1131 + $0x128] sm:$0xff]
    %v1170 = vld [vmem:[%s1131 + $0x130] sm:$0xff]
    %v1171 = vld [vmem:[%s1131 + $0x138] sm:$0xff]
    %v1172 = vld [vmem:[%s1131 + $0x140] sm:$0xff]
    %v1173 = vld [vmem:[%s1131 + $0x148] sm:$0xff]
    %v1174 = vld [vmem:[%s1131 + $0x150] sm:$0xff]
    %v1175 = vld [vmem:[%s1131 + $0x158] sm:$0xff]
    %v1176 = vld [vmem:[%s1131 + $0x160] sm:$0xff]
    %v1177 = vld [vmem:[%s1131 + $0x168] sm:$0xff]
    %v1178 = vld [vmem:[%s1131 + $0x170] sm:$0xff]
    %v1179 = vld [vmem:[%s1131 + $0x178] sm:$0xff]
    %v1180 = vld [vmem:[%s1131 + $0x180] sm:$0xff]
    %v1181 = vld [vmem:[%s1131 + $0x188] sm:$0xff]
    %v1182 = vld [vmem:[%s1131 + $0x190] sm:$0xff]
    %v1183 = vld [vmem:[%s1131 + $0x198] sm:$0xff]
    %v1184 = vld [vmem:[%s1131 + $0x1a0] sm:$0xff]
    %v1185 = vld [vmem:[%s1131 + $0x1a8] sm:$0xff]
    %v1186 = vld [vmem:[%s1131 + $0x1b0] sm:$0xff]
    %v1187 = vld [vmem:[%s1131 + $0x1b8] sm:$0xff]
    %v1188 = vld [vmem:[%s1131 + $0x1c0] sm:$0xff]
    %v1189 = vld [vmem:[%s1131 + $0x1c8] sm:$0xff]
    %v1190 = vld [vmem:[%s1131 + $0x1d0] sm:$0xff]
    %v1191 = vld [vmem:[%s1131 + $0x1d8] sm:$0xff]
    %v1192 = vld [vmem:[%s1131 + $0x1e0] sm:$0xff]
    %v1193 = vld [vmem:[%s1131 + $0x1e8] sm:$0xff]
    %v1194 = vld [vmem:[%s1131 + $0x1f0] sm:$0xff]
    %v1195 = vld [vmem:[%s1131 + $0x1f8] sm:$0xff]
    %v1196 = vld [vmem:[%s1131 + $0x200] sm:$0xff]
    %v1197 = vld [vmem:[%s1131 + $0x208] sm:$0xff]
    %v1198 = vld [vmem:[%s1131 + $0x210] sm:$0xff]
    %v1199 = vld [vmem:[%s1131 + $0x218] sm:$0xff]
    %v1200 = vld [vmem:[%s1131 + $0x220] sm:$0xff]
    %v1201 = vld [vmem:[%s1131 + $0x228] sm:$0xff]
    %v1202 = vld [vmem:[%s1131 + $0x230] sm:$0xff]
    %v1203 = vld [vmem:[%s1131 + $0x238] sm:$0xff]
    %v1204 = vld [vmem:[%s1131 + $0x240] sm:$0xff]
    %v1205 = vld [vmem:[%s1131 + $0x248] sm:$0xff]
    %v1206 = vld [vmem:[%s1131 + $0x250] sm:$0xff]
    %v1207 = vld [vmem:[%s1131 + $0x258] sm:$0xff]
    %v1208 = vld [vmem:[%s1131 + $0x260] sm:$0xff]
    %v1209 = vld [vmem:[%s1131 + $0x268] sm:$0xff]
    %v1210 = vld [vmem:[%s1131 + $0x270] sm:$0xff]
    %v1211 = vld [vmem:[%s1131 + $0x278] sm:$0xff]
    %v1212 = vld [vmem:[%s1131 + $0x280] sm:$0xff]
    %v1213 = vld [vmem:[%s1131 + $0x288] sm:$0xff]
    %v1214 = vld [vmem:[%s1131 + $0x290] sm:$0xff]
    %v1215 = vld [vmem:[%s1131 + $0x298] sm:$0xff]
    %v1216 = vld [vmem:[%s1131 + $0x2a0] sm:$0xff]
    %v1217 = vld [vmem:[%s1131 + $0x2a8] sm:$0xff]
    %v1218 = vld [vmem:[%s1131 + $0x2b0] sm:$0xff]
    %v1219 = vld [vmem:[%s1131 + $0x2b8] sm:$0xff]
    %v1220 = vld [vmem:[%s1131 + $0x2c0] sm:$0xff]
    %v1221 = vld [vmem:[%s1131 + $0x2c8] sm:$0xff]
    %v1222 = vld [vmem:[%s1131 + $0x2d0] sm:$0xff]
    %v1223 = vld [vmem:[%s1131 + $0x2d8] sm:$0xff]
    %v1224 = vld [vmem:[%s1131 + $0x2e0] sm:$0xff]
    %v1225 = vld [vmem:[%s1131 + $0x2e8] sm:$0xff]
    %v1226 = vld [vmem:[%s1131 + $0x2f0] sm:$0xff]
    %v1227 = vld [vmem:[%s1131 + $0x2f8] sm:$0xff]
    %v1228 = vld [vmem:[%s1131 + $0x300] sm:$0xff]
    %v1229 = vld [vmem:[%s1131 + $0x308] sm:$0xff]
    %v1230 = vld [vmem:[%s1131 + $0x310] sm:$0xff]
    %v1231 = vld [vmem:[%s1131 + $0x318] sm:$0xff]
    %v1232 = vld [vmem:[%s1131 + $0x320] sm:$0xff]
    %v1233 = vld [vmem:[%s1131 + $0x328] sm:$0xff]
    %v1234 = vld [vmem:[%s1131 + $0x330] sm:$0xff]
    %v1235 = vld [vmem:[%s1131 + $0x338] sm:$0xff]
    %v1236 = vld [vmem:[%s1131 + $0x340] sm:$0xff]
    %v1237 = vld [vmem:[%s1131 + $0x348] sm:$0xff]
    %v1238 = vld [vmem:[%s1131 + $0x350] sm:$0xff]
    %v1239 = vld [vmem:[%s1131 + $0x358] sm:$0xff]
    %v1240 = vld [vmem:[%s1131 + $0x360] sm:$0xff]
    %v1241 = vld [vmem:[%s1131 + $0x368] sm:$0xff]
    %v1242 = vld [vmem:[%s1131 + $0x370] sm:$0xff]
    %v1243 = vld [vmem:[%s1131 + $0x378] sm:$0xff]
    %v1244 = vld [vmem:[%s1131 + $0x380] sm:$0xff]
    %v1245 = vld [vmem:[%s1131 + $0x388] sm:$0xff]
    %v1246 = vld [vmem:[%s1131 + $0x390] sm:$0xff]
    %v1247 = vld [vmem:[%s1131 + $0x398] sm:$0xff]
    %v1248 = vld [vmem:[%s1131 + $0x3a0] sm:$0xff]
    %v1249 = vld [vmem:[%s1131 + $0x3a8] sm:$0xff]
    %v1250 = vld [vmem:[%s1131 + $0x3b0] sm:$0xff]
    %v1251 = vld [vmem:[%s1131 + $0x3b8] sm:$0xff]
    %v1252 = vld [vmem:[%s1131 + $0x3c0] sm:$0xff]
    %v1253 = vld [vmem:[%s1131 + $0x3c8] sm:$0xff]
    %v1254 = vld [vmem:[%s1131 + $0x3d0] sm:$0xff]
    %v1255 = vld [vmem:[%s1131 + $0x3d8] sm:$0xff]
    %v1256 = vld [vmem:[%s1131 + $0x3e0] sm:$0xff]
    %v1257 = vld [vmem:[%s1131 + $0x3e8] sm:$0xff]
    %v1258 = vld [vmem:[%s1131 + $0x3f0] sm:$0xff]
    %v1259 = vld [vmem:[%s1131 + $0x3f8] sm:$0xff]
    %v1260 = vld [vmem:[%s1131 + $0x400] sm:$0xff]
    %v1261 = vld [vmem:[%s1131 + $0x408] sm:$0xff]
    %v1262 = vld [vmem:[%s1131 + $0x410] sm:$0xff]
    %v1263 = vld [vmem:[%s1131 + $0x418] sm:$0xff]
    %v1264 = vld [vmem:[%s1131 + $0x420] sm:$0xff]
    %v1265 = vld [vmem:[%s1131 + $0x428] sm:$0xff]
    %v1266 = vld [vmem:[%s1131 + $0x430] sm:$0xff]
    %v1267 = vld [vmem:[%s1131 + $0x438] sm:$0xff]
    %v1268 = vld [vmem:[%s1131 + $0x440] sm:$0xff]
    %v1269 = vld [vmem:[%s1131 + $0x448] sm:$0xff]
    %v1270 = vld [vmem:[%s1131 + $0x450] sm:$0xff]
    %v1271 = vld [vmem:[%s1131 + $0x458] sm:$0xff]
    %v1272 = vld [vmem:[%s1131 + $0x460] sm:$0xff]
    %v1273 = vld [vmem:[%s1131 + $0x468] sm:$0xff]
    %v1274 = vld [vmem:[%s1131 + $0x470] sm:$0xff]
    %v1275 = vld [vmem:[%s1131 + $0x478] sm:$0xff]
    %v1276 = vld [vmem:[%s1131 + $0x480] sm:$0xff]
    %v1277 = vld [vmem:[%s1131 + $0x488] sm:$0xff]
    %v1278 = vld [vmem:[%s1131 + $0x490] sm:$0xff]
    %v1279 = vld [vmem:[%s1131 + $0x498] sm:$0xff]
    %v1280 = vld [vmem:[%s1131 + $0x4a0] sm:$0xff]
    %v1281 = vld [vmem:[%s1131 + $0x4a8] sm:$0xff]
    %v1282 = vld [vmem:[%s1131 + $0x4b0] sm:$0xff]
    %v1283 = vld [vmem:[%s1131 + $0x4b8] sm:$0xff]
    %v1284 = vld [vmem:[%s1131 + $0x4c0] sm:$0xff]
    %v1285 = vld [vmem:[%s1131 + $0x4c8] sm:$0xff]
    %v1286 = vld [vmem:[%s1131 + $0x4d0] sm:$0xff]
    %v1287 = vld [vmem:[%s1131 + $0x4d8] sm:$0xff]
    %v1288 = vld [vmem:[%s1131 + $0x4e0] sm:$0xff]
    %v1289 = vld [vmem:[%s1131 + $0x4e8] sm:$0xff]
    %v1290 = vld [vmem:[%s1131 + $0x4f0] sm:$0xff]
    %v1291 = vld [vmem:[%s1131 + $0x4f8] sm:$0xff]
    %v1292 = vld [vmem:[%s1131 + $0x500] sm:$0xff]
    %v1293 = vld [vmem:[%s1131 + $0x508] sm:$0xff]
    %v1294 = vld [vmem:[%s1131 + $0x510] sm:$0xff]
    %v1295 = vld [vmem:[%s1131 + $0x518] sm:$0xff]
    %v1296 = vld [vmem:[%s1131 + $0x520] sm:$0xff]
    %v1297 = vld [vmem:[%s1131 + $0x528] sm:$0xff]
    %v1298 = vld [vmem:[%s1131 + $0x530] sm:$0xff]
    %v1299 = vld [vmem:[%s1131 + $0x538] sm:$0xff]
    %v1300 = vld [vmem:[%s1131 + $0x540] sm:$0xff]
    %v1301 = vld [vmem:[%s1131 + $0x548] sm:$0xff]
    %v1302 = vld [vmem:[%s1131 + $0x550] sm:$0xff]
    %v1303 = vld [vmem:[%s1131 + $0x558] sm:$0xff]
    %v1304 = vld [vmem:[%s1131 + $0x560] sm:$0xff]
    %v1305 = vld [vmem:[%s1131 + $0x568] sm:$0xff]
    %v1306 = vld [vmem:[%s1131 + $0x570] sm:$0xff]
    %v1307 = vld [vmem:[%s1131 + $0x578] sm:$0xff]
    %vm1320 = vcmask 1045504
    %v1321 = vrot.slane %v1119, 2
    %v1322 = vrot.slane %v218, 2
    %v1323 = vsel %vm1320, %v1321, %v1322
    %v1324 = vrot.slane %v1120, 2
    %v1325 = vrot.slane %v219, 2
    %v1326 = vsel %vm1320, %v1324, %v1325
    %v1327 = vrot.slane %v1121, 2
    %v1328 = vrot.slane %v220, 2
    %v1329 = vsel %vm1320, %v1327, %v1328
    %v1330 = vrot.slane %v1122, 2
    %v1331 = vrot.slane %v221, 2
    %v1332 = vsel %vm1320, %v1330, %v1331
    %v1333 = vrot.slane %v1123, 2
    %v1334 = vrot.slane %v222, 2
    %v1335 = vsel %vm1320, %v1333, %v1334
    %v1336 = vrot.slane %v1124, 2
    %v1337 = vrot.slane %v223, 2
    %v1338 = vsel %vm1320, %v1336, %v1337
    %v1339 = vrot.slane %v1125, 2
    %v1340 = vsel %vm1320, %v1322, %v1339
    %v1341 = vrot.slane %v1126, 2
    %v1342 = vsel %vm1320, %v1325, %v1341
    %v1343 = vrot.slane %v1127, 2
    %v1344 = vsel %vm1320, %v1328, %v1343
    %v1345 = vrot.slane %v1128, 2
    %v1346 = vsel %vm1320, %v1331, %v1345
    %v1347 = vrot.slane %v1129, 2
    %v1348 = vsel %vm1320, %v1334, %v1347
    %v1349 = vrot.slane %v1130, 2
    %v1350 = vsel %vm1320, %v1337, %v1349
    %v1361 = vsel %vm84, %v1338, 0
    %v1363 = vsel %vm84, %v1350, 0
    %1365 = vmatprep.subr.mxu0 %v1133
    %1366 = vmatpush1.msra.mxu0 %v1132
    %1367 = vmatprep.subr.mxu0 %v1135
    %1368 = vmatpush1.msra.mxu0 %v1134
    %1369 = vmatprep.subr.mxu0 %v1137
    %1370 = vmatpush1.msra.mxu0 %v1136
    %1371 = vmatprep.subr.mxu0 %v1139
    %1372 = vmatpush1.msra.mxu0 %v1138
    %1373 = vmatprep.subr.mxu0 %v1141
    %1374 = vmatpush1.msra.mxu0 %v1140
    %1375 = vmatprep.subr.mxu0 %v1143
    %1376 = vmatpush1.msra.mxu0 %v1142
    %1377 = vmatprep.subr.mxu0 %v1145
    %1378 = vmatpush1.msra.mxu0 %v1144
    %1379 = vmatprep.subr.mxu0 %v1147
    %1380 = vmatpush1.msra.mxu0 %v1146
    %1381 = vmatprep.subr.mxu0 %v1149
    %1382 = vmatpush1.msra.mxu0 %v1148
    %1383 = vmatprep.subr.mxu0 %v1151
    %1384 = vmatpush1.msra.mxu0 %v1150
    %1385 = vmatprep.subr.mxu0 %v1153
    %1386 = vmatpush1.msra.mxu0 %v1152
    %1387 = vmatprep.subr.mxu0 %v1155
    %1388 = vmatpush1.msra.mxu0 %v1154
    %1389 = vmatprep.subr.mxu0 %v1157
    %1390 = vmatpush1.msra.mxu0 %v1156
    %1391 = vmatprep.subr.mxu0 %v1159
    %1392 = vmatpush1.msra.mxu0 %v1158
    %1393 = vmatprep.subr.mxu0 %v1161
    %1394 = vmatpush1.msra.mxu0 %v1160
    %1395 = vmatprep.subr.mxu0 %v1163
    %1396 = vmatpush1.msra.mxu0 %v1162
    %1397 = vmatprep.subr.mxu0 %v1165
    %1398 = vmatpush1.msra.mxu0 %v1164
    %1399 = vmatprep.subr.mxu0 %v1167
    %1400 = vmatpush1.msra.mxu0 %v1166
    %1401 = vmatprep.subr.mxu0 %v1169
    %1402 = vmatpush1.msra.mxu0 %v1168
    %1403 = vmatprep.subr.mxu0 %v1171
    %1404 = vmatpush1.msra.mxu0 %v1170
    %1405 = vmatprep.subr.mxu0 %v1173
    %1406 = vmatpush1.msra.mxu0 %v1172
    %1407 = vmatprep.subr.mxu0 %v1175
    %1408 = vmatpush1.msra.mxu0 %v1174
    %1409 = vmatprep.subr.mxu0 %v1177
    %1410 = vmatpush1.msra.mxu0 %v1176
    %1411 = vmatprep.subr.mxu0 %v1179
    %1412 = vmatpush1.msra.mxu0 %v1178
    %1413 = vmatprep.subr.mxu0 %v1181
    %1414 = vmatpush1.msra.mxu0 %v1180
    %1415 = vmatprep.subr.mxu0 %v1183
    %1416 = vmatpush1.msra.mxu0 %v1182
    %1417 = vmatprep.subr.mxu0 %v1185
    %1418 = vmatpush1.msra.mxu0 %v1184
    %1419 = vmatprep.subr.mxu0 %v1187
    %1420 = vmatpush1.msra.mxu0 %v1186
    %1421 = vmatprep.subr.mxu0 %v1189
    %1422 = vmatpush1.msra.mxu0 %v1188
    %1423 = vmatprep.subr.mxu0 %v1191
    %1424 = vmatpush1.msra.mxu0 %v1190
    %1425 = vmatprep.subr.mxu0 %v1193
    %1426 = vmatpush1.msra.mxu0 %v1192
    %1427 = vmatprep.subr.mxu0 %v1195
    %1428 = vmatpush1.msra.mxu0 %v1194
    %1429 = vmatprep.mubr.f32.mxu0 %v1326
    %1430 = vmatmul.mubr.f32.gmra.mrb[0].mxu0 %v1323
    %v1431 = vpop.f32.mrb[0].mxu0
    %v1432 = vadd.f32 0.0, %v1431
    %v1433 = vpop.f32.mrb[0].mxu0
    %v1434 = vadd.f32 0.0, %v1433
    %1435 = vmatprep.mubr.f32.mxu0 %v1342
    %1436 = vmatmul.mubr.f32.gmra.mrb[0].mxu0 %v1340
    %v1437 = vpop.f32.mrb[0].mxu0
    %v1438 = vadd.f32 0.0, %v1437
    %v1439 = vpop.f32.mrb[0].mxu0
    %v1440 = vadd.f32 0.0, %v1439
    %1441 = vdwg.mxu0
    %1442 = vmatprep.subr.mxu0 %v1197
    %1443 = vmatpush1.msra.mxu0 %v1196
    %1444 = vmatprep.subr.mxu0 %v1199
    %1445 = vmatpush1.msra.mxu0 %v1198
    %1446 = vmatprep.subr.mxu0 %v1201
    %1447 = vmatpush1.msra.mxu0 %v1200
    %1448 = vmatprep.subr.mxu0 %v1203
    %1449 = vmatpush1.msra.mxu0 %v1202
    %1450 = vmatprep.subr.mxu0 %v1205
    %1451 = vmatpush1.msra.mxu0 %v1204
    %1452 = vmatprep.subr.mxu0 %v1207
    %1453 = vmatpush1.msra.mxu0 %v1206
    %1454 = vmatprep.subr.mxu0 %v1209
    %1455 = vmatpush1.msra.mxu0 %v1208
    %1456 = vmatprep.subr.mxu0 %v1211
    %1457 = vmatpush1.msra.mxu0 %v1210
    %1458 = vmatprep.subr.mxu0 %v1213
    %1459 = vmatpush1.msra.mxu0 %v1212
    %1460 = vmatprep.subr.mxu0 %v1215
    %1461 = vmatpush1.msra.mxu0 %v1214
    %1462 = vmatprep.subr.mxu0 %v1217
    %1463 = vmatpush1.msra.mxu0 %v1216
    %1464 = vmatprep.subr.mxu0 %v1219
    %1465 = vmatpush1.msra.mxu0 %v1218
    %1466 = vmatprep.subr.mxu0 %v1221
    %1467 = vmatpush1.msra.mxu0 %v1220
    %1468 = vmatprep.subr.mxu0 %v1223
    %1469 = vmatpush1.msra.mxu0 %v1222
    %1470 = vmatprep.subr.mxu0 %v1225
    %1471 = vmatpush1.msra.mxu0 %v1224
    %1472 = vmatprep.subr.mxu0 %v1227
    %1473 = vmatpush1.msra.mxu0 %v1226
    %1474 = vmatprep.subr.mxu0 %v1229
    %1475 = vmatpush1.msra.mxu0 %v1228
    %1476 = vmatprep.subr.mxu0 %v1231
    %1477 = vmatpush1.msra.mxu0 %v1230
    %1478 = vmatprep.subr.mxu0 %v1233
    %1479 = vmatpush1.msra.mxu0 %v1232
    %1480 = vmatprep.subr.mxu0 %v1235
    %1481 = vmatpush1.msra.mxu0 %v1234
    %1482 = vmatprep.subr.mxu0 %v1237
    %1483 = vmatpush1.msra.mxu0 %v1236
    %1484 = vmatprep.subr.mxu0 %v1239
    %1485 = vmatpush1.msra.mxu0 %v1238
    %1486 = vmatprep.subr.mxu0 %v1241
    %1487 = vmatpush1.msra.mxu0 %v1240
    %1488 = vmatprep.subr.mxu0 %v1243
    %1489 = vmatpush1.msra.mxu0 %v1242
    %1490 = vmatprep.subr.mxu0 %v1245
    %1491 = vmatpush1.msra.mxu0 %v1244
    %1492 = vmatprep.subr.mxu0 %v1247
    %1493 = vmatpush1.msra.mxu0 %v1246
    %1494 = vmatprep.subr.mxu0 %v1249
    %1495 = vmatpush1.msra.mxu0 %v1248
    %1496 = vmatprep.subr.mxu0 %v1251
    %1497 = vmatpush1.msra.mxu0 %v1250
    %1498 = vmatprep.subr.mxu0 %v1253
    %1499 = vmatpush1.msra.mxu0 %v1252
    %1500 = vmatprep.subr.mxu0 %v1255
    %1501 = vmatpush1.msra.mxu0 %v1254
    %1502 = vmatprep.subr.mxu0 %v1257
    %1503 = vmatpush1.msra.mxu0 %v1256
    %1504 = vmatprep.subr.mxu0 %v1259
    %1505 = vmatpush1.msra.mxu0 %v1258
    %1506 = vmatprep.mubr.f32.mxu0 %v1332
    %1507 = vmatmul.mubr.f32.gmra.mrb[0].mxu0 %v1329
    %v1508 = vpop.f32.mrb[0].mxu0
    %v1509 = vadd.f32 %v1432, %v1508
    %v1510 = vpop.f32.mrb[0].mxu0
    %v1511 = vadd.f32 %v1434, %v1510
    %1512 = vmatprep.mubr.f32.mxu0 %v1346
    %1513 = vmatmul.mubr.f32.gmra.mrb[0].mxu0 %v1344
    %v1514 = vpop.f32.mrb[0].mxu0
    %v1515 = vadd.f32 %v1438, %v1514
    %v1516 = vpop.f32.mrb[0].mxu0
    %v1517 = vadd.f32 %v1440, %v1516
    %1518 = vdwg.mxu0
    %1519 = vmatprep.subr.mxu0 %v1261
    %1520 = vmatpush1.msra.mxu0 %v1260
    %1521 = vmatprep.subr.mxu0 %v1263
    %1522 = vmatpush1.msra.mxu0 %v1262
    %1523 = vmatprep.subr.mxu0 %v1265
    %1524 = vmatpush1.msra.mxu0 %v1264
    %1525 = vmatprep.subr.mxu0 %v1267
    %1526 = vmatpush1.msra.mxu0 %v1266
    %1527 = vmatprep.subr.mxu0 %v1269
    %1528 = vmatpush1.msra.mxu0 %v1268
    %1529 = vmatprep.subr.mxu0 %v1271
    %1530 = vmatpush1.msra.mxu0 %v1270
    %1531 = vmatprep.subr.mxu0 %v1273
    %1532 = vmatpush1.msra.mxu0 %v1272
    %1533 = vmatprep.subr.mxu0 %v1275
    %1534 = vmatpush1.msra.mxu0 %v1274
    %1535 = vmatprep.subr.mxu0 %v1277
    %1536 = vmatpush1.msra.mxu0 %v1276
    %1537 = vmatprep.subr.mxu0 %v1279
    %1538 = vmatpush1.msra.mxu0 %v1278
    %1539 = vmatprep.subr.mxu0 %v1281
    %1540 = vmatpush1.msra.mxu0 %v1280
    %1541 = vmatprep.subr.mxu0 %v1283
    %1542 = vmatpush1.msra.mxu0 %v1282
    %1543 = vmatprep.subr.mxu0 %v1285
    %1544 = vmatpush1.msra.mxu0 %v1284
    %1545 = vmatprep.subr.mxu0 %v1287
    %1546 = vmatpush1.msra.mxu0 %v1286
    %1547 = vmatprep.subr.mxu0 %v1289
    %1548 = vmatpush1.msra.mxu0 %v1288
    %1549 = vmatprep.subr.mxu0 %v1291
    %1550 = vmatpush1.msra.mxu0 %v1290
    %1551 = vmatprep.subr.mxu0 %v1293
    %1552 = vmatpush1.msra.mxu0 %v1292
    %1553 = vmatprep.subr.mxu0 %v1295
    %1554 = vmatpush1.msra.mxu0 %v1294
    %1555 = vmatprep.subr.mxu0 %v1297
    %1556 = vmatpush1.msra.mxu0 %v1296
    %1557 = vmatprep.subr.mxu0 %v1299
    %1558 = vmatpush1.msra.mxu0 %v1298
    %1559 = vmatprep.subr.mxu0 %v1301
    %1560 = vmatpush1.msra.mxu0 %v1300
    %1561 = vmatprep.subr.mxu0 %v1303
    %1562 = vmatpush1.msra.mxu0 %v1302
    %1563 = vmatprep.subr.mxu0 %v1305
    %1564 = vmatpush1.msra.mxu0 %v1304
    %1565 = vmatprep.subr.mxu0 %v1307
    %1566 = vmatpush1.msra.mxu0 %v1306
    %1567 = vmatprep.subr.mxu0 0.0
    %1568 = vmatpush1.msra.mxu0 0.0
    %1569 = vmatprep.subr.mxu0 0.0
    %1570 = vmatpush1.msra.mxu0 0.0
    %1571 = vmatprep.subr.mxu0 0.0
    %1572 = vmatpush1.msra.mxu0 0.0
    %1573 = vmatprep.subr.mxu0 0.0
    %1574 = vmatpush1.msra.mxu0 0.0
    %1575 = vmatprep.subr.mxu0 0.0
    %1576 = vmatpush1.msra.mxu0 0.0
    %1577 = vmatprep.subr.mxu0 0.0
    %1578 = vmatpush1.msra.mxu0 0.0
    %1579 = vmatprep.subr.mxu0 0.0
    %1580 = vmatpush1.msra.mxu0 0.0
    %1581 = vmatprep.subr.mxu0 0.0
    %1582 = vmatpush1.msra.mxu0 0.0
    %1583 = vmatprep.mubr.f32.mxu0 %v1361
    %1584 = vmatmul.mubr.f32.gmra.mrb[0].mxu0 %v1335
    %v1585 = vpop.f32.mrb[0].mxu0
    %v1586 = vadd.f32 %v1509, %v1585
    %v1587 = vpop.f32.mrb[0].mxu0
    %v1588 = vadd.f32 %v1511, %v1587
    %1589 = vmatprep.mubr.f32.mxu0 %v1363
    %1590 = vmatmul.mubr.f32.gmra.mrb[0].mxu0 %v1348
    %v1591 = vpop.f32.mrb[0].mxu0
    %v1592 = vadd.f32 %v1515, %v1591
    %v1593 = vpop.f32.mrb[0].mxu0
    %v1594 = vadd.f32 %v1517, %v1593
    %1595 = vdwg.mxu0
    %v1596 = vadd.f32 %v1109, %v1586
    %v1597 = vadd.f32 %v1111, %v1588
    %v1598 = vadd.f32 %v1115, %v1592
    %v1599 = vadd.f32 %v1117, %v1594
    %v1600 = vld [vmem:[#allocation2] sm:$0xf8]
    %v1601 = vld [vmem:[#allocation2 + $0x8] sm:$0xf8]
    %v1602 = vld [vmem:[#allocation2 + $0x10] sm:$0xf8]
    %v1603 = vld [vmem:[#allocation2 + $0x18] sm:$0xf8]
    %v1604 = vld [vmem:[#allocation2 + $0x20] sm:$0xf8]
    %v1605 = vld [vmem:[#allocation2 + $0x28] sm:$0xf8]
    %v1606 = vld [vmem:[#allocation2 + $0x60] sm:$0x7]
    %v1607 = vld [vmem:[#allocation2 + $0x68] sm:$0x7]
    %v1608 = vld [vmem:[#allocation2 + $0x70] sm:$0x7]
    %v1609 = vld [vmem:[#allocation2 + $0x78] sm:$0x7]
    %v1610 = vld [vmem:[#allocation2 + $0x80] sm:$0x7]
    %v1611 = vld [vmem:[#allocation2 + $0x88] sm:$0x7]
    %s1612 = scalar_lea.vmem [#allocation4], 4224
    %v1613 = vld [vmem:[%s1612] sm:$0xff]
    %v1614 = vld [vmem:[%s1612 + $0x8] sm:$0xff]
    %v1615 = vld [vmem:[%s1612 + $0x10] sm:$0xff]
    %v1616 = vld [vmem:[%s1612 + $0x18] sm:$0xff]
    %v1617 = vld [vmem:[%s1612 + $0x20] sm:$0xff]
    %v1618 = vld [vmem:[%s1612 + $0x28] sm:$0xff]
    %v1619 = vld [vmem:[%s1612 + $0x30] sm:$0xff]
    %v1620 = vld [vmem:[%s1612 + $0x38] sm:$0xff]
    %v1621 = vld [vmem:[%s1612 + $0x40] sm:$0xff]
    %v1622 = vld [vmem:[%s1612 + $0x48] sm:$0xff]
    %v1623 = vld [vmem:[%s1612 + $0x50] sm:$0xff]
    %v1624 = vld [vmem:[%s1612 + $0x58] sm:$0xff]
    %v1625 = vld [vmem:[%s1612 + $0x60] sm:$0xff]
    %v1626 = vld [vmem:[%s1612 + $0x68] sm:$0xff]
    %v1627 = vld [vmem:[%s1612 + $0x70] sm:$0xff]
    %v1628 = vld [vmem:[%s1612 + $0x78] sm:$0xff]
    %v1629 = vld [vmem:[%s1612 + $0x80] sm:$0xff]
    %v1630 = vld [vmem:[%s1612 + $0x88] sm:$0xff]
    %v1631 = vld [vmem:[%s1612 + $0x90] sm:$0xff]
    %v1632 = vld [vmem:[%s1612 + $0x98] sm:$0xff]
    %v1633 = vld [vmem:[%s1612 + $0xa0] sm:$0xff]
    %v1634 = vld [vmem:[%s1612 + $0xa8] sm:$0xff]
    %v1635 = vld [vmem:[%s1612 + $0xb0] sm:$0xff]
    %v1636 = vld [vmem:[%s1612 + $0xb8] sm:$0xff]
    %v1637 = vld [vmem:[%s1612 + $0xc0] sm:$0xff]
    %v1638 = vld [vmem:[%s1612 + $0xc8] sm:$0xff]
    %v1639 = vld [vmem:[%s1612 + $0xd0] sm:$0xff]
    %v1640 = vld [vmem:[%s1612 + $0xd8] sm:$0xff]
    %v1641 = vld [vmem:[%s1612 + $0xe0] sm:$0xff]
    %v1642 = vld [vmem:[%s1612 + $0xe8] sm:$0xff]
    %v1643 = vld [vmem:[%s1612 + $0xf0] sm:$0xff]
    %v1644 = vld [vmem:[%s1612 + $0xf8] sm:$0xff]
    %v1645 = vld [vmem:[%s1612 + $0x100] sm:$0xff]
    %v1646 = vld [vmem:[%s1612 + $0x108] sm:$0xff]
    %v1647 = vld [vmem:[%s1612 + $0x110] sm:$0xff]
    %v1648 = vld [vmem:[%s1612 + $0x118] sm:$0xff]
    %v1649 = vld [vmem:[%s1612 + $0x120] sm:$0xff]
    %v1650 = vld [vmem:[%s1612 + $0x128] sm:$0xff]
    %v1651 = vld [vmem:[%s1612 + $0x130] sm:$0xff]
    %v1652 = vld [vmem:[%s1612 + $0x138] sm:$0xff]
    %v1653 = vld [vmem:[%s1612 + $0x140] sm:$0xff]
    %v1654 = vld [vmem:[%s1612 + $0x148] sm:$0xff]
    %v1655 = vld [vmem:[%s1612 + $0x150] sm:$0xff]
    %v1656 = vld [vmem:[%s1612 + $0x158] sm:$0xff]
    %v1657 = vld [vmem:[%s1612 + $0x160] sm:$0xff]
    %v1658 = vld [vmem:[%s1612 + $0x168] sm:$0xff]
    %v1659 = vld [vmem:[%s1612 + $0x170] sm:$0xff]
    %v1660 = vld [vmem:[%s1612 + $0x178] sm:$0xff]
    %v1661 = vld [vmem:[%s1612 + $0x180] sm:$0xff]
    %v1662 = vld [vmem:[%s1612 + $0x188] sm:$0xff]
    %v1663 = vld [vmem:[%s1612 + $0x190] sm:$0xff]
    %v1664 = vld [vmem:[%s1612 + $0x198] sm:$0xff]
    %v1665 = vld [vmem:[%s1612 + $0x1a0] sm:$0xff]
    %v1666 = vld [vmem:[%s1612 + $0x1a8] sm:$0xff]
    %v1667 = vld [vmem:[%s1612 + $0x1b0] sm:$0xff]
    %v1668 = vld [vmem:[%s1612 + $0x1b8] sm:$0xff]
    %v1669 = vld [vmem:[%s1612 + $0x1c0] sm:$0xff]
    %v1670 = vld [vmem:[%s1612 + $0x1c8] sm:$0xff]
    %v1671 = vld [vmem:[%s1612 + $0x1d0] sm:$0xff]
    %v1672 = vld [vmem:[%s1612 + $0x1d8] sm:$0xff]
    %v1673 = vld [vmem:[%s1612 + $0x1e0] sm:$0xff]
    %v1674 = vld [vmem:[%s1612 + $0x1e8] sm:$0xff]
    %v1675 = vld [vmem:[%s1612 + $0x1f0] sm:$0xff]
    %v1676 = vld [vmem:[%s1612 + $0x1f8] sm:$0xff]
    %v1677 = vld [vmem:[%s1612 + $0x200] sm:$0xff]
    %v1678 = vld [vmem:[%s1612 + $0x208] sm:$0xff]
    %v1679 = vld [vmem:[%s1612 + $0x210] sm:$0xff]
    %v1680 = vld [vmem:[%s1612 + $0x218] sm:$0xff]
    %v1681 = vld [vmem:[%s1612 + $0x220] sm:$0xff]
    %v1682 = vld [vmem:[%s1612 + $0x228] sm:$0xff]
    %v1683 = vld [vmem:[%s1612 + $0x230] sm:$0xff]
    %v1684 = vld [vmem:[%s1612 + $0x238] sm:$0xff]
    %v1685 = vld [vmem:[%s1612 + $0x240] sm:$0xff]
    %v1686 = vld [vmem:[%s1612 + $0x248] sm:$0xff]
    %v1687 = vld [vmem:[%s1612 + $0x250] sm:$0xff]
    %v1688 = vld [vmem:[%s1612 + $0x258] sm:$0xff]
    %v1689 = vld [vmem:[%s1612 + $0x260] sm:$0xff]
    %v1690 = vld [vmem:[%s1612 + $0x268] sm:$0xff]
    %v1691 = vld [vmem:[%s1612 + $0x270] sm:$0xff]
    %v1692 = vld [vmem:[%s1612 + $0x278] sm:$0xff]
    %v1693 = vld [vmem:[%s1612 + $0x280] sm:$0xff]
    %v1694 = vld [vmem:[%s1612 + $0x288] sm:$0xff]
    %v1695 = vld [vmem:[%s1612 + $0x290] sm:$0xff]
    %v1696 = vld [vmem:[%s1612 + $0x298] sm:$0xff]
    %v1697 = vld [vmem:[%s1612 + $0x2a0] sm:$0xff]
    %v1698 = vld [vmem:[%s1612 + $0x2a8] sm:$0xff]
    %v1699 = vld [vmem:[%s1612 + $0x2b0] sm:$0xff]
    %v1700 = vld [vmem:[%s1612 + $0x2b8] sm:$0xff]
    %v1701 = vld [vmem:[%s1612 + $0x2c0] sm:$0xff]
    %v1702 = vld [vmem:[%s1612 + $0x2c8] sm:$0xff]
    %v1703 = vld [vmem:[%s1612 + $0x2d0] sm:$0xff]
    %v1704 = vld [vmem:[%s1612 + $0x2d8] sm:$0xff]
    %v1705 = vld [vmem:[%s1612 + $0x2e0] sm:$0xff]
    %v1706 = vld [vmem:[%s1612 + $0x2e8] sm:$0xff]
    %v1707 = vld [vmem:[%s1612 + $0x2f0] sm:$0xff]
    %v1708 = vld [vmem:[%s1612 + $0x2f8] sm:$0xff]
    %v1709 = vld [vmem:[%s1612 + $0x300] sm:$0xff]
    %v1710 = vld [vmem:[%s1612 + $0x308] sm:$0xff]
    %v1711 = vld [vmem:[%s1612 + $0x310] sm:$0xff]
    %v1712 = vld [vmem:[%s1612 + $0x318] sm:$0xff]
    %v1713 = vld [vmem:[%s1612 + $0x320] sm:$0xff]
    %v1714 = vld [vmem:[%s1612 + $0x328] sm:$0xff]
    %v1715 = vld [vmem:[%s1612 + $0x330] sm:$0xff]
    %v1716 = vld [vmem:[%s1612 + $0x338] sm:$0xff]
    %v1717 = vld [vmem:[%s1612 + $0x340] sm:$0xff]
    %v1718 = vld [vmem:[%s1612 + $0x348] sm:$0xff]
    %v1719 = vld [vmem:[%s1612 + $0x350] sm:$0xff]
    %v1720 = vld [vmem:[%s1612 + $0x358] sm:$0xff]
    %v1721 = vld [vmem:[%s1612 + $0x360] sm:$0xff]
    %v1722 = vld [vmem:[%s1612 + $0x368] sm:$0xff]
    %v1723 = vld [vmem:[%s1612 + $0x370] sm:$0xff]
    %v1724 = vld [vmem:[%s1612 + $0x378] sm:$0xff]
    %v1725 = vld [vmem:[%s1612 + $0x380] sm:$0xff]
    %v1726 = vld [vmem:[%s1612 + $0x388] sm:$0xff]
    %v1727 = vld [vmem:[%s1612 + $0x390] sm:$0xff]
    %v1728 = vld [vmem:[%s1612 + $0x398] sm:$0xff]
    %v1729 = vld [vmem:[%s1612 + $0x3a0] sm:$0xff]
    %v1730 = vld [vmem:[%s1612 + $0x3a8] sm:$0xff]
    %v1731 = vld [vmem:[%s1612 + $0x3b0] sm:$0xff]
    %v1732 = vld [vmem:[%s1612 + $0x3b8] sm:$0xff]
    %v1733 = vld [vmem:[%s1612 + $0x3c0] sm:$0xff]
    %v1734 = vld [vmem:[%s1612 + $0x3c8] sm:$0xff]
    %v1735 = vld [vmem:[%s1612 + $0x3d0] sm:$0xff]
    %v1736 = vld [vmem:[%s1612 + $0x3d8] sm:$0xff]
    %v1737 = vld [vmem:[%s1612 + $0x3e0] sm:$0xff]
    %v1738 = vld [vmem:[%s1612 + $0x3e8] sm:$0xff]
    %v1739 = vld [vmem:[%s1612 + $0x3f0] sm:$0xff]
    %v1740 = vld [vmem:[%s1612 + $0x3f8] sm:$0xff]
    %v1741 = vld [vmem:[%s1612 + $0x400] sm:$0xff]
    %v1742 = vld [vmem:[%s1612 + $0x408] sm:$0xff]
    %v1743 = vld [vmem:[%s1612 + $0x410] sm:$0xff]
    %v1744 = vld [vmem:[%s1612 + $0x418] sm:$0xff]
    %v1745 = vld [vmem:[%s1612 + $0x420] sm:$0xff]
    %v1746 = vld [vmem:[%s1612 + $0x428] sm:$0xff]
    %v1747 = vld [vmem:[%s1612 + $0x430] sm:$0xff]
    %v1748 = vld [vmem:[%s1612 + $0x438] sm:$0xff]
    %v1749 = vld [vmem:[%s1612 + $0x440] sm:$0xff]
    %v1750 = vld [vmem:[%s1612 + $0x448] sm:$0xff]
    %v1751 = vld [vmem:[%s1612 + $0x450] sm:$0xff]
    %v1752 = vld [vmem:[%s1612 + $0x458] sm:$0xff]
    %v1753 = vld [vmem:[%s1612 + $0x460] sm:$0xff]
    %v1754 = vld [vmem:[%s1612 + $0x468] sm:$0xff]
    %v1755 = vld [vmem:[%s1612 + $0x470] sm:$0xff]
    %v1756 = vld [vmem:[%s1612 + $0x478] sm:$0xff]
    %v1757 = vld [vmem:[%s1612 + $0x480] sm:$0xff]
    %v1758 = vld [vmem:[%s1612 + $0x488] sm:$0xff]
    %v1759 = vld [vmem:[%s1612 + $0x490] sm:$0xff]
    %v1760 = vld [vmem:[%s1612 + $0x498] sm:$0xff]
    %v1761 = vld [vmem:[%s1612 + $0x4a0] sm:$0xff]
    %v1762 = vld [vmem:[%s1612 + $0x4a8] sm:$0xff]
    %v1763 = vld [vmem:[%s1612 + $0x4b0] sm:$0xff]
    %v1764 = vld [vmem:[%s1612 + $0x4b8] sm:$0xff]
    %v1765 = vld [vmem:[%s1612 + $0x4c0] sm:$0xff]
    %v1766 = vld [vmem:[%s1612 + $0x4c8] sm:$0xff]
    %v1767 = vld [vmem:[%s1612 + $0x4d0] sm:$0xff]
    %v1768 = vld [vmem:[%s1612 + $0x4d8] sm:$0xff]
    %v1769 = vld [vmem:[%s1612 + $0x4e0] sm:$0xff]
    %v1770 = vld [vmem:[%s1612 + $0x4e8] sm:$0xff]
    %v1771 = vld [vmem:[%s1612 + $0x4f0] sm:$0xff]
    %v1772 = vld [vmem:[%s1612 + $0x4f8] sm:$0xff]
    %v1773 = vld [vmem:[%s1612 + $0x500] sm:$0xff]
    %v1774 = vld [vmem:[%s1612 + $0x508] sm:$0xff]
    %v1775 = vld [vmem:[%s1612 + $0x510] sm:$0xff]
    %v1776 = vld [vmem:[%s1612 + $0x518] sm:$0xff]
    %v1777 = vld [vmem:[%s1612 + $0x520] sm:$0xff]
    %v1778 = vld [vmem:[%s1612 + $0x528] sm:$0xff]
    %v1779 = vld [vmem:[%s1612 + $0x530] sm:$0xff]
    %v1780 = vld [vmem:[%s1612 + $0x538] sm:$0xff]
    %v1781 = vld [vmem:[%s1612 + $0x540] sm:$0xff]
    %v1782 = vld [vmem:[%s1612 + $0x548] sm:$0xff]
    %v1783 = vld [vmem:[%s1612 + $0x550] sm:$0xff]
    %v1784 = vld [vmem:[%s1612 + $0x558] sm:$0xff]
    %v1785 = vld [vmem:[%s1612 + $0x560] sm:$0xff]
    %v1786 = vld [vmem:[%s1612 + $0x568] sm:$0xff]
    %v1787 = vld [vmem:[%s1612 + $0x570] sm:$0xff]
    %v1788 = vld [vmem:[%s1612 + $0x578] sm:$0xff]
    %vm1801 = vcmask 1044480
    %v1802 = vrot.slane %v1600, 3
    %v1803 = vrot.slane %v218, 3
    %v1804 = vsel %vm1801, %v1802, %v1803
    %v1805 = vrot.slane %v1601, 3
    %v1806 = vrot.slane %v219, 3
    %v1807 = vsel %vm1801, %v1805, %v1806
    %v1808 = vrot.slane %v1602, 3
    %v1809 = vrot.slane %v220, 3
    %v1810 = vsel %vm1801, %v1808, %v1809
    %v1811 = vrot.slane %v1603, 3
    %v1812 = vrot.slane %v221, 3
    %v1813 = vsel %vm1801, %v1811, %v1812
    %v1814 = vrot.slane %v1604, 3
    %v1815 = vrot.slane %v222, 3
    %v1816 = vsel %vm1801, %v1814, %v1815
    %v1817 = vrot.slane %v1605, 3
    %v1818 = vrot.slane %v223, 3
    %v1819 = vsel %vm1801, %v1817, %v1818
    %v1820 = vrot.slane %v1606, 3
    %v1821 = vsel %vm1801, %v1803, %v1820
    %v1822 = vrot.slane %v1607, 3
    %v1823 = vsel %vm1801, %v1806, %v1822
    %v1824 = vrot.slane %v1608, 3
    %v1825 = vsel %vm1801, %v1809, %v1824
    %v1826 = vrot.slane %v1609, 3
    %v1827 = vsel %vm1801, %v1812, %v1826
    %v1828 = vrot.slane %v1610, 3
    %v1829 = vsel %vm1801, %v1815, %v1828
    %v1830 = vrot.slane %v1611, 3
    %v1831 = vsel %vm1801, %v1818, %v1830
    %v1842 = vsel %vm84, %v1819, 0
    %v1844 = vsel %vm84, %v1831, 0
    %1846 = vmatprep.subr.mxu0 %v1614
    %1847 = vmatpush1.msra.mxu0 %v1613
    %1848 = vmatprep.subr.mxu0 %v1616
    %1849 = vmatpush1.msra.mxu0 %v1615
    %1850 = vmatprep.subr.mxu0 %v1618
    %1851 = vmatpush1.msra.mxu0 %v1617
    %1852 = vmatprep.subr.mxu0 %v1620
    %1853 = vmatpush1.msra.mxu0 %v1619
    %1854 = vmatprep.subr.mxu0 %v1622
    %1855 = vmatpush1.msra.mxu0 %v1621
    %1856 = vmatprep.subr.mxu0 %v1624
    %1857 = vmatpush1.msra.mxu0 %v1623
    %1858 = vmatprep.subr.mxu0 %v1626
    %1859 = vmatpush1.msra.mxu0 %v1625
    %1860 = vmatprep.subr.mxu0 %v1628
    %1861 = vmatpush1.msra.mxu0 %v1627
    %1862 = vmatprep.subr.mxu0 %v1630
    %1863 = vmatpush1.msra.mxu0 %v1629
    %1864 = vmatprep.subr.mxu0 %v1632
    %1865 = vmatpush1.msra.mxu0 %v1631
    %1866 = vmatprep.subr.mxu0 %v1634
    %1867 = vmatpush1.msra.mxu0 %v1633
    %1868 = vmatprep.subr.mxu0 %v1636
    %1869 = vmatpush1.msra.mxu0 %v1635
    %1870 = vmatprep.subr.mxu0 %v1638
    %1871 = vmatpush1.msra.mxu0 %v1637
    %1872 = vmatprep.subr.mxu0 %v1640
    %1873 = vmatpush1.msra.mxu0 %v1639
    %1874 = vmatprep.subr.mxu0 %v1642
    %1875 = vmatpush1.msra.mxu0 %v1641
    %1876 = vmatprep.subr.mxu0 %v1644
    %1877 = vmatpush1.msra.mxu0 %v1643
    %1878 = vmatprep.subr.mxu0 %v1646
    %1879 = vmatpush1.msra.mxu0 %v1645
    %1880 = vmatprep.subr.mxu0 %v1648
    %1881 = vmatpush1.msra.mxu0 %v1647
    %1882 = vmatprep.subr.mxu0 %v1650
    %1883 = vmatpush1.msra.mxu0 %v1649
    %1884 = vmatprep.subr.mxu0 %v1652
    %1885 = vmatpush1.msra.mxu0 %v1651
    %1886 = vmatprep.subr.mxu0 %v1654
    %1887 = vmatpush1.msra.mxu0 %v1653
    %1888 = vmatprep.subr.mxu0 %v1656
    %1889 = vmatpush1.msra.mxu0 %v1655
    %1890 = vmatprep.subr.mxu0 %v1658
    %1891 = vmatpush1.msra.mxu0 %v1657
    %1892 = vmatprep.subr.mxu0 %v1660
    %1893 = vmatpush1.msra.mxu0 %v1659
    %1894 = vmatprep.subr.mxu0 %v1662
    %1895 = vmatpush1.msra.mxu0 %v1661
    %1896 = vmatprep.subr.mxu0 %v1664
    %1897 = vmatpush1.msra.mxu0 %v1663
    %1898 = vmatprep.subr.mxu0 %v1666
    %1899 = vmatpush1.msra.mxu0 %v1665
    %1900 = vmatprep.subr.mxu0 %v1668
    %1901 = vmatpush1.msra.mxu0 %v1667
    %1902 = vmatprep.subr.mxu0 %v1670
    %1903 = vmatpush1.msra.mxu0 %v1669
    %1904 = vmatprep.subr.mxu0 %v1672
    %1905 = vmatpush1.msra.mxu0 %v1671
    %1906 = vmatprep.subr.mxu0 %v1674
    %1907 = vmatpush1.msra.mxu0 %v1673
    %1908 = vmatprep.subr.mxu0 %v1676
    %1909 = vmatpush1.msra.mxu0 %v1675
    %1910 = vmatprep.mubr.f32.mxu0 %v1807
    %1911 = vmatmul.mubr.f32.gmra.mrb[0].mxu0 %v1804
    %v1912 = vpop.f32.mrb[0].mxu0
    %v1913 = vadd.f32 0.0, %v1912
    %v1914 = vpop.f32.mrb[0].mxu0
    %v1915 = vadd.f32 0.0, %v1914
    %1916 = vmatprep.mubr.f32.mxu0 %v1823
    %1917 = vmatmul.mubr.f32.gmra.mrb[0].mxu0 %v1821
    %v1918 = vpop.f32.mrb[0].mxu0
    %v1919 = vadd.f32 0.0, %v1918
    %v1920 = vpop.f32.mrb[0].mxu0
    %v1921 = vadd.f32 0.0, %v1920
    %1922 = vdwg.mxu0
    %1923 = vmatprep.subr.mxu0 %v1678
    %1924 = vmatpush1.msra.mxu0 %v1677
    %1925 = vmatprep.subr.mxu0 %v1680
    %1926 = vmatpush1.msra.mxu0 %v1679
    %1927 = vmatprep.subr.mxu0 %v1682
    %1928 = vmatpush1.msra.mxu0 %v1681
    %1929 = vmatprep.subr.mxu0 %v1684
    %1930 = vmatpush1.msra.mxu0 %v1683
    %1931 = vmatprep.subr.mxu0 %v1686
    %1932 = vmatpush1.msra.mxu0 %v1685
    %1933 = vmatprep.subr.mxu0 %v1688
    %1934 = vmatpush1.msra.mxu0 %v1687
    %1935 = vmatprep.subr.mxu0 %v1690
    %1936 = vmatpush1.msra.mxu0 %v1689
    %1937 = vmatprep.subr.mxu0 %v1692
    %1938 = vmatpush1.msra.mxu0 %v1691
    %1939 = vmatprep.subr.mxu0 %v1694
    %1940 = vmatpush1.msra.mxu0 %v1693
    %1941 = vmatprep.subr.mxu0 %v1696
    %1942 = vmatpush1.msra.mxu0 %v1695
    %1943 = vmatprep.subr.mxu0 %v1698
    %1944 = vmatpush1.msra.mxu0 %v1697
    %1945 = vmatprep.subr.mxu0 %v1700
    %1946 = vmatpush1.msra.mxu0 %v1699
    %1947 = vmatprep.subr.mxu0 %v1702
    %1948 = vmatpush1.msra.mxu0 %v1701
    %1949 = vmatprep.subr.mxu0 %v1704
    %1950 = vmatpush1.msra.mxu0 %v1703
    %1951 = vmatprep.subr.mxu0 %v1706
    %1952 = vmatpush1.msra.mxu0 %v1705
    %1953 = vmatprep.subr.mxu0 %v1708
    %1954 = vmatpush1.msra.mxu0 %v1707
    %1955 = vmatprep.subr.mxu0 %v1710
    %1956 = vmatpush1.msra.mxu0 %v1709
    %1957 = vmatprep.subr.mxu0 %v1712
    %1958 = vmatpush1.msra.mxu0 %v1711
    %1959 = vmatprep.subr.mxu0 %v1714
    %1960 = vmatpush1.msra.mxu0 %v1713
    %1961 = vmatprep.subr.mxu0 %v1716
    %1962 = vmatpush1.msra.mxu0 %v1715
    %1963 = vmatprep.subr.mxu0 %v1718
    %1964 = vmatpush1.msra.mxu0 %v1717
    %1965 = vmatprep.subr.mxu0 %v1720
    %1966 = vmatpush1.msra.mxu0 %v1719
    %1967 = vmatprep.subr.mxu0 %v1722
    %1968 = vmatpush1.msra.mxu0 %v1721
    %1969 = vmatprep.subr.mxu0 %v1724
    %1970 = vmatpush1.msra.mxu0 %v1723
    %1971 = vmatprep.subr.mxu0 %v1726
    %1972 = vmatpush1.msra.mxu0 %v1725
    %1973 = vmatprep.subr.mxu0 %v1728
    %1974 = vmatpush1.msra.mxu0 %v1727
    %1975 = vmatprep.subr.mxu0 %v1730
    %1976 = vmatpush1.msra.mxu0 %v1729
    %1977 = vmatprep.subr.mxu0 %v1732
    %1978 = vmatpush1.msra.mxu0 %v1731
    %1979 = vmatprep.subr.mxu0 %v1734
    %1980 = vmatpush1.msra.mxu0 %v1733
    %1981 = vmatprep.subr.mxu0 %v1736
    %1982 = vmatpush1.msra.mxu0 %v1735
    %1983 = vmatprep.subr.mxu0 %v1738
    %1984 = vmatpush1.msra.mxu0 %v1737
    %1985 = vmatprep.subr.mxu0 %v1740
    %1986 = vmatpush1.msra.mxu0 %v1739
    %1987 = vmatprep.mubr.f32.mxu0 %v1813
    %1988 = vmatmul.mubr.f32.gmra.mrb[0].mxu0 %v1810
    %v1989 = vpop.f32.mrb[0].mxu0
    %v1990 = vadd.f32 %v1913, %v1989
    %v1991 = vpop.f32.mrb[0].mxu0
    %v1992 = vadd.f32 %v1915, %v1991
    %1993 = vmatprep.mubr.f32.mxu0 %v1827
    %1994 = vmatmul.mubr.f32.gmra.mrb[0].mxu0 %v1825
    %v1995 = vpop.f32.mrb[0].mxu0
    %v1996 = vadd.f32 %v1919, %v1995
    %v1997 = vpop.f32.mrb[0].mxu0
    %v1998 = vadd.f32 %v1921, %v1997
    %1999 = vdwg.mxu0
    %2000 = vmatprep.subr.mxu0 %v1742
    %2001 = vmatpush1.msra.mxu0 %v1741
    %2002 = vmatprep.subr.mxu0 %v1744
    %2003 = vmatpush1.msra.mxu0 %v1743
    %2004 = vmatprep.subr.mxu0 %v1746
    %2005 = vmatpush1.msra.mxu0 %v1745
    %2006 = vmatprep.subr.mxu0 %v1748
    %2007 = vmatpush1.msra.mxu0 %v1747
    %2008 = vmatprep.subr.mxu0 %v1750
    %2009 = vmatpush1.msra.mxu0 %v1749
    %2010 = vmatprep.subr.mxu0 %v1752
    %2011 = vmatpush1.msra.mxu0 %v1751
    %2012 = vmatprep.subr.mxu0 %v1754
    %2013 = vmatpush1.msra.mxu0 %v1753
    %2014 = vmatprep.subr.mxu0 %v1756
    %2015 = vmatpush1.msra.mxu0 %v1755
    %2016 = vmatprep.subr.mxu0 %v1758
    %2017 = vmatpush1.msra.mxu0 %v1757
    %2018 = vmatprep.subr.mxu0 %v1760
    %2019 = vmatpush1.msra.mxu0 %v1759
    %2020 = vmatprep.subr.mxu0 %v1762
    %2021 = vmatpush1.msra.mxu0 %v1761
    %2022 = vmatprep.subr.mxu0 %v1764
    %2023 = vmatpush1.msra.mxu0 %v1763
    %2024 = vmatprep.subr.mxu0 %v1766
    %2025 = vmatpush1.msra.mxu0 %v1765
    %2026 = vmatprep.subr.mxu0 %v1768
    %2027 = vmatpush1.msra.mxu0 %v1767
    %2028 = vmatprep.subr.mxu0 %v1770
    %2029 = vmatpush1.msra.mxu0 %v1769
    %2030 = vmatprep.subr.mxu0 %v1772
    %2031 = vmatpush1.msra.mxu0 %v1771
    %2032 = vmatprep.subr.mxu0 %v1774
    %2033 = vmatpush1.msra.mxu0 %v1773
    %2034 = vmatprep.subr.mxu0 %v1776
    %2035 = vmatpush1.msra.mxu0 %v1775
    %2036 = vmatprep.subr.mxu0 %v1778
    %2037 = vmatpush1.msra.mxu0 %v1777
    %2038 = vmatprep.subr.mxu0 %v1780
    %2039 = vmatpush1.msra.mxu0 %v1779
    %2040 = vmatprep.subr.mxu0 %v1782
    %2041 = vmatpush1.msra.mxu0 %v1781
    %2042 = vmatprep.subr.mxu0 %v1784
    %2043 = vmatpush1.msra.mxu0 %v1783
    %2044 = vmatprep.subr.mxu0 %v1786
    %2045 = vmatpush1.msra.mxu0 %v1785
    %2046 = vmatprep.subr.mxu0 %v1788
    %2047 = vmatpush1.msra.mxu0 %v1787
    %2048 = vmatprep.subr.mxu0 0.0
    %2049 = vmatpush1.msra.mxu0 0.0
    %2050 = vmatprep.subr.mxu0 0.0
    %2051 = vmatpush1.msra.mxu0 0.0
    %2052 = vmatprep.subr.mxu0 0.0
    %2053 = vmatpush1.msra.mxu0 0.0
    %2054 = vmatprep.subr.mxu0 0.0
    %2055 = vmatpush1.msra.mxu0 0.0
    %2056 = vmatprep.subr.mxu0 0.0
    %2057 = vmatpush1.msra.mxu0 0.0
    %2058 = vmatprep.subr.mxu0 0.0
    %2059 = vmatpush1.msra.mxu0 0.0
    %2060 = vmatprep.subr.mxu0 0.0
    %2061 = vmatpush1.msra.mxu0 0.0
    %2062 = vmatprep.subr.mxu0 0.0
    %2063 = vmatpush1.msra.mxu0 0.0
    %2064 = vmatprep.mubr.f32.mxu0 %v1842
    %2065 = vmatmul.mubr.f32.gmra.mrb[0].mxu0 %v1816
    %v2066 = vpop.f32.mrb[0].mxu0
    %v2067 = vadd.f32 %v1990, %v2066
    %v2068 = vpop.f32.mrb[0].mxu0
    %v2069 = vadd.f32 %v1992, %v2068
    %2070 = vmatprep.mubr.f32.mxu0 %v1844
    %2071 = vmatmul.mubr.f32.gmra.mrb[0].mxu0 %v1829
    %v2072 = vpop.f32.mrb[0].mxu0
    %v2073 = vadd.f32 %v1996, %v2072
    %v2074 = vpop.f32.mrb[0].mxu0
    %v2075 = vadd.f32 %v1998, %v2074
    %2076 = vdwg.mxu0
    %v2077 = vadd.f32 %v1596, %v2067
    %v2078 = vadd.f32 %v1597, %v2069
    %v2079 = vadd.f32 %v1598, %v2073
    %v2080 = vadd.f32 %v1599, %v2075
    %v2081 = vld [vmem:[#allocation2] sm:$0xf0]
    %v2082 = vld [vmem:[#allocation2 + $0x8] sm:$0xf0]
    %v2083 = vld [vmem:[#allocation2 + $0x10] sm:$0xf0]
    %v2084 = vld [vmem:[#allocation2 + $0x18] sm:$0xf0]
    %v2085 = vld [vmem:[#allocation2 + $0x20] sm:$0xf0]
    %v2086 = vld [vmem:[#allocation2 + $0x28] sm:$0xf0]
    %v2087 = vld [vmem:[#allocation2 + $0x60] sm:$0xf]
    %v2088 = vld [vmem:[#allocation2 + $0x68] sm:$0xf]
    %v2089 = vld [vmem:[#allocation2 + $0x70] sm:$0xf]
    %v2090 = vld [vmem:[#allocation2 + $0x78] sm:$0xf]
    %v2091 = vld [vmem:[#allocation2 + $0x80] sm:$0xf]
    %v2092 = vld [vmem:[#allocation2 + $0x88] sm:$0xf]
    %s2093 = scalar_lea.vmem [#allocation4], 5632
    %v2094 = vld [vmem:[%s2093] sm:$0xff]
    %v2095 = vld [vmem:[%s2093 + $0x8] sm:$0xff]
    %v2096 = vld [vmem:[%s2093 + $0x10] sm:$0xff]
    %v2097 = vld [vmem:[%s2093 + $0x18] sm:$0xff]
    %v2098 = vld [vmem:[%s2093 + $0x20] sm:$0xff]
    %v2099 = vld [vmem:[%s2093 + $0x28] sm:$0xff]
    %v2100 = vld [vmem:[%s2093 + $0x30] sm:$0xff]
    %v2101 = vld [vmem:[%s2093 + $0x38] sm:$0xff]
    %v2102 = vld [vmem:[%s2093 + $0x40] sm:$0xff]
    %v2103 = vld [vmem:[%s2093 + $0x48] sm:$0xff]
    %v2104 = vld [vmem:[%s2093 + $0x50] sm:$0xff]
    %v2105 = vld [vmem:[%s2093 + $0x58] sm:$0xff]
    %v2106 = vld [vmem:[%s2093 + $0x60] sm:$0xff]
    %v2107 = vld [vmem:[%s2093 + $0x68] sm:$0xff]
    %v2108 = vld [vmem:[%s2093 + $0x70] sm:$0xff]
    %v2109 = vld [vmem:[%s2093 + $0x78] sm:$0xff]
    %v2110 = vld [vmem:[%s2093 + $0x80] sm:$0xff]
    %v2111 = vld [vmem:[%s2093 + $0x88] sm:$0xff]
    %v2112 = vld [vmem:[%s2093 + $0x90] sm:$0xff]
    %v2113 = vld [vmem:[%s2093 + $0x98] sm:$0xff]
    %v2114 = vld [vmem:[%s2093 + $0xa0] sm:$0xff]
    %v2115 = vld [vmem:[%s2093 + $0xa8] sm:$0xff]
    %v2116 = vld [vmem:[%s2093 + $0xb0] sm:$0xff]
    %v2117 = vld [vmem:[%s2093 + $0xb8] sm:$0xff]
    %v2118 = vld [vmem:[%s2093 + $0xc0] sm:$0xff]
    %v2119 = vld [vmem:[%s2093 + $0xc8] sm:$0xff]
    %v2120 = vld [vmem:[%s2093 + $0xd0] sm:$0xff]
    %v2121 = vld [vmem:[%s2093 + $0xd8] sm:$0xff]
    %v2122 = vld [vmem:[%s2093 + $0xe0] sm:$0xff]
    %v2123 = vld [vmem:[%s2093 + $0xe8] sm:$0xff]
    %v2124 = vld [vmem:[%s2093 + $0xf0] sm:$0xff]
    %v2125 = vld [vmem:[%s2093 + $0xf8] sm:$0xff]
    %v2126 = vld [vmem:[%s2093 + $0x100] sm:$0xff]
    %v2127 = vld [vmem:[%s2093 + $0x108] sm:$0xff]
    %v2128 = vld [vmem:[%s2093 + $0x110] sm:$0xff]
    %v2129 = vld [vmem:[%s2093 + $0x118] sm:$0xff]
    %v2130 = vld [vmem:[%s2093 + $0x120] sm:$0xff]
    %v2131 = vld [vmem:[%s2093 + $0x128] sm:$0xff]
    %v2132 = vld [vmem:[%s2093 + $0x130] sm:$0xff]
    %v2133 = vld [vmem:[%s2093 + $0x138] sm:$0xff]
    %v2134 = vld [vmem:[%s2093 + $0x140] sm:$0xff]
    %v2135 = vld [vmem:[%s2093 + $0x148] sm:$0xff]
    %v2136 = vld [vmem:[%s2093 + $0x150] sm:$0xff]
    %v2137 = vld [vmem:[%s2093 + $0x158] sm:$0xff]
    %v2138 = vld [vmem:[%s2093 + $0x160] sm:$0xff]
    %v2139 = vld [vmem:[%s2093 + $0x168] sm:$0xff]
    %v2140 = vld [vmem:[%s2093 + $0x170] sm:$0xff]
    %v2141 = vld [vmem:[%s2093 + $0x178] sm:$0xff]
    %v2142 = vld [vmem:[%s2093 + $0x180] sm:$0xff]
    %v2143 = vld [vmem:[%s2093 + $0x188] sm:$0xff]
    %v2144 = vld [vmem:[%s2093 + $0x190] sm:$0xff]
    %v2145 = vld [vmem:[%s2093 + $0x198] sm:$0xff]
    %v2146 = vld [vmem:[%s2093 + $0x1a0] sm:$0xff]
    %v2147 = vld [vmem:[%s2093 + $0x1a8] sm:$0xff]
    %v2148 = vld [vmem:[%s2093 + $0x1b0] sm:$0xff]
    %v2149 = vld [vmem:[%s2093 + $0x1b8] sm:$0xff]
    %v2150 = vld [vmem:[%s2093 + $0x1c0] sm:$0xff]
    %v2151 = vld [vmem:[%s2093 + $0x1c8] sm:$0xff]
    %v2152 = vld [vmem:[%s2093 + $0x1d0] sm:$0xff]
    %v2153 = vld [vmem:[%s2093 + $0x1d8] sm:$0xff]
    %v2154 = vld [vmem:[%s2093 + $0x1e0] sm:$0xff]
    %v2155 = vld [vmem:[%s2093 + $0x1e8] sm:$0xff]
    %v2156 = vld [vmem:[%s2093 + $0x1f0] sm:$0xff]
    %v2157 = vld [vmem:[%s2093 + $0x1f8] sm:$0xff]
    %v2158 = vld [vmem:[%s2093 + $0x200] sm:$0xff]
    %v2159 = vld [vmem:[%s2093 + $0x208] sm:$0xff]
    %v2160 = vld [vmem:[%s2093 + $0x210] sm:$0xff]
    %v2161 = vld [vmem:[%s2093 + $0x218] sm:$0xff]
    %v2162 = vld [vmem:[%s2093 + $0x220] sm:$0xff]
    %v2163 = vld [vmem:[%s2093 + $0x228] sm:$0xff]
    %v2164 = vld [vmem:[%s2093 + $0x230] sm:$0xff]
    %v2165 = vld [vmem:[%s2093 + $0x238] sm:$0xff]
    %v2166 = vld [vmem:[%s2093 + $0x240] sm:$0xff]
    %v2167 = vld [vmem:[%s2093 + $0x248] sm:$0xff]
    %v2168 = vld [vmem:[%s2093 + $0x250] sm:$0xff]
    %v2169 = vld [vmem:[%s2093 + $0x258] sm:$0xff]
    %v2170 = vld [vmem:[%s2093 + $0x260] sm:$0xff]
    %v2171 = vld [vmem:[%s2093 + $0x268] sm:$0xff]
    %v2172 = vld [vmem:[%s2093 + $0x270] sm:$0xff]
    %v2173 = vld [vmem:[%s2093 + $0x278] sm:$0xff]
    %v2174 = vld [vmem:[%s2093 + $0x280] sm:$0xff]
    %v2175 = vld [vmem:[%s2093 + $0x288] sm:$0xff]
    %v2176 = vld [vmem:[%s2093 + $0x290] sm:$0xff]
    %v2177 = vld [vmem:[%s2093 + $0x298] sm:$0xff]
    %v2178 = vld [vmem:[%s2093 + $0x2a0] sm:$0xff]
    %v2179 = vld [vmem:[%s2093 + $0x2a8] sm:$0xff]
    %v2180 = vld [vmem:[%s2093 + $0x2b0] sm:$0xff]
    %v2181 = vld [vmem:[%s2093 + $0x2b8] sm:$0xff]
    %v2182 = vld [vmem:[%s2093 + $0x2c0] sm:$0xff]
    %v2183 = vld [vmem:[%s2093 + $0x2c8] sm:$0xff]
    %v2184 = vld [vmem:[%s2093 + $0x2d0] sm:$0xff]
    %v2185 = vld [vmem:[%s2093 + $0x2d8] sm:$0xff]
    %v2186 = vld [vmem:[%s2093 + $0x2e0] sm:$0xff]
    %v2187 = vld [vmem:[%s2093 + $0x2e8] sm:$0xff]
    %v2188 = vld [vmem:[%s2093 + $0x2f0] sm:$0xff]
    %v2189 = vld [vmem:[%s2093 + $0x2f8] sm:$0xff]
    %v2190 = vld [vmem:[%s2093 + $0x300] sm:$0xff]
    %v2191 = vld [vmem:[%s2093 + $0x308] sm:$0xff]
    %v2192 = vld [vmem:[%s2093 + $0x310] sm:$0xff]
    %v2193 = vld [vmem:[%s2093 + $0x318] sm:$0xff]
    %v2194 = vld [vmem:[%s2093 + $0x320] sm:$0xff]
    %v2195 = vld [vmem:[%s2093 + $0x328] sm:$0xff]
    %v2196 = vld [vmem:[%s2093 + $0x330] sm:$0xff]
    %v2197 = vld [vmem:[%s2093 + $0x338] sm:$0xff]
    %v2198 = vld [vmem:[%s2093 + $0x340] sm:$0xff]
    %v2199 = vld [vmem:[%s2093 + $0x348] sm:$0xff]
    %v2200 = vld [vmem:[%s2093 + $0x350] sm:$0xff]
    %v2201 = vld [vmem:[%s2093 + $0x358] sm:$0xff]
    %v2202 = vld [vmem:[%s2093 + $0x360] sm:$0xff]
    %v2203 = vld [vmem:[%s2093 + $0x368] sm:$0xff]
    %v2204 = vld [vmem:[%s2093 + $0x370] sm:$0xff]
    %v2205 = vld [vmem:[%s2093 + $0x378] sm:$0xff]
    %v2206 = vld [vmem:[%s2093 + $0x380] sm:$0xff]
    %v2207 = vld [vmem:[%s2093 + $0x388] sm:$0xff]
    %v2208 = vld [vmem:[%s2093 + $0x390] sm:$0xff]
    %v2209 = vld [vmem:[%s2093 + $0x398] sm:$0xff]
    %v2210 = vld [vmem:[%s2093 + $0x3a0] sm:$0xff]
    %v2211 = vld [vmem:[%s2093 + $0x3a8] sm:$0xff]
    %v2212 = vld [vmem:[%s2093 + $0x3b0] sm:$0xff]
    %v2213 = vld [vmem:[%s2093 + $0x3b8] sm:$0xff]
    %v2214 = vld [vmem:[%s2093 + $0x3c0] sm:$0xff]
    %v2215 = vld [vmem:[%s2093 + $0x3c8] sm:$0xff]
    %v2216 = vld [vmem:[%s2093 + $0x3d0] sm:$0xff]
    %v2217 = vld [vmem:[%s2093 + $0x3d8] sm:$0xff]
    %v2218 = vld [vmem:[%s2093 + $0x3e0] sm:$0xff]
    %v2219 = vld [vmem:[%s2093 + $0x3e8] sm:$0xff]
    %v2220 = vld [vmem:[%s2093 + $0x3f0] sm:$0xff]
    %v2221 = vld [vmem:[%s2093 + $0x3f8] sm:$0xff]
    %v2222 = vld [vmem:[%s2093 + $0x400] sm:$0xff]
    %v2223 = vld [vmem:[%s2093 + $0x408] sm:$0xff]
    %v2224 = vld [vmem:[%s2093 + $0x410] sm:$0xff]
    %v2225 = vld [vmem:[%s2093 + $0x418] sm:$0xff]
    %v2226 = vld [vmem:[%s2093 + $0x420] sm:$0xff]
    %v2227 = vld [vmem:[%s2093 + $0x428] sm:$0xff]
    %v2228 = vld [vmem:[%s2093 + $0x430] sm:$0xff]
    %v2229 = vld [vmem:[%s2093 + $0x438] sm:$0xff]
    %v2230 = vld [vmem:[%s2093 + $0x440] sm:$0xff]
    %v2231 = vld [vmem:[%s2093 + $0x448] sm:$0xff]
    %v2232 = vld [vmem:[%s2093 + $0x450] sm:$0xff]
    %v2233 = vld [vmem:[%s2093 + $0x458] sm:$0xff]
    %v2234 = vld [vmem:[%s2093 + $0x460] sm:$0xff]
    %v2235 = vld [vmem:[%s2093 + $0x468] sm:$0xff]
    %v2236 = vld [vmem:[%s2093 + $0x470] sm:$0xff]
    %v2237 = vld [vmem:[%s2093 + $0x478] sm:$0xff]
    %v2238 = vld [vmem:[%s2093 + $0x480] sm:$0xff]
    %v2239 = vld [vmem:[%s2093 + $0x488] sm:$0xff]
    %v2240 = vld [vmem:[%s2093 + $0x490] sm:$0xff]
    %v2241 = vld [vmem:[%s2093 + $0x498] sm:$0xff]
    %v2242 = vld [vmem:[%s2093 + $0x4a0] sm:$0xff]
    %v2243 = vld [vmem:[%s2093 + $0x4a8] sm:$0xff]
    %v2244 = vld [vmem:[%s2093 + $0x4b0] sm:$0xff]
    %v2245 = vld [vmem:[%s2093 + $0x4b8] sm:$0xff]
    %v2246 = vld [vmem:[%s2093 + $0x4c0] sm:$0xff]
    %v2247 = vld [vmem:[%s2093 + $0x4c8] sm:$0xff]
    %v2248 = vld [vmem:[%s2093 + $0x4d0] sm:$0xff]
    %v2249 = vld [vmem:[%s2093 + $0x4d8] sm:$0xff]
    %v2250 = vld [vmem:[%s2093 + $0x4e0] sm:$0xff]
    %v2251 = vld [vmem:[%s2093 + $0x4e8] sm:$0xff]
    %v2252 = vld [vmem:[%s2093 + $0x4f0] sm:$0xff]
    %v2253 = vld [vmem:[%s2093 + $0x4f8] sm:$0xff]
    %v2254 = vld [vmem:[%s2093 + $0x500] sm:$0xff]
    %v2255 = vld [vmem:[%s2093 + $0x508] sm:$0xff]
    %v2256 = vld [vmem:[%s2093 + $0x510] sm:$0xff]
    %v2257 = vld [vmem:[%s2093 + $0x518] sm:$0xff]
    %v2258 = vld [vmem:[%s2093 + $0x520] sm:$0xff]
    %v2259 = vld [vmem:[%s2093 + $0x528] sm:$0xff]
    %v2260 = vld [vmem:[%s2093 + $0x530] sm:$0xff]
    %v2261 = vld [vmem:[%s2093 + $0x538] sm:$0xff]
    %v2262 = vld [vmem:[%s2093 + $0x540] sm:$0xff]
    %v2263 = vld [vmem:[%s2093 + $0x548] sm:$0xff]
    %v2264 = vld [vmem:[%s2093 + $0x550] sm:$0xff]
    %v2265 = vld [vmem:[%s2093 + $0x558] sm:$0xff]
    %v2266 = vld [vmem:[%s2093 + $0x560] sm:$0xff]
    %v2267 = vld [vmem:[%s2093 + $0x568] sm:$0xff]
    %v2268 = vld [vmem:[%s2093 + $0x570] sm:$0xff]
    %v2269 = vld [vmem:[%s2093 + $0x578] sm:$0xff]
    %vm2282 = vcmask 1043456
    %v2283 = vrot.slane %v2081, 4
    %v2284 = vrot.slane %v218, 4
    %v2285 = vsel %vm2282, %v2283, %v2284
    %v2286 = vrot.slane %v2082, 4
    %v2287 = vrot.slane %v219, 4
    %v2288 = vsel %vm2282, %v2286, %v2287
    %v2289 = vrot.slane %v2083, 4
    %v2290 = vrot.slane %v220, 4
    %v2291 = vsel %vm2282, %v2289, %v2290
    %v2292 = vrot.slane %v2084, 4
    %v2293 = vrot.slane %v221, 4
    %v2294 = vsel %vm2282, %v2292, %v2293
    %v2295 = vrot.slane %v2085, 4
    %v2296 = vrot.slane %v222, 4
    %v2297 = vsel %vm2282, %v2295, %v2296
    %v2298 = vrot.slane %v2086, 4
    %v2299 = vrot.slane %v223, 4
    %v2300 = vsel %vm2282, %v2298, %v2299
    %v2301 = vrot.slane %v2087, 4
    %v2302 = vsel %vm2282, %v2284, %v2301
    %v2303 = vrot.slane %v2088, 4
    %v2304 = vsel %vm2282, %v2287, %v2303
    %v2305 = vrot.slane %v2089, 4
    %v2306 = vsel %vm2282, %v2290, %v2305
    %v2307 = vrot.slane %v2090, 4
    %v2308 = vsel %vm2282, %v2293, %v2307
    %v2309 = vrot.slane %v2091, 4
    %v2310 = vsel %vm2282, %v2296, %v2309
    %v2311 = vrot.slane %v2092, 4
    %v2312 = vsel %vm2282, %v2299, %v2311
    %v2323 = vsel %vm84, %v2300, 0
    %v2325 = vsel %vm84, %v2312, 0
    %2327 = vmatprep.subr.mxu0 %v2095
    %2328 = vmatpush1.msra.mxu0 %v2094
    %2329 = vmatprep.subr.mxu0 %v2097
    %2330 = vmatpush1.msra.mxu0 %v2096
    %2331 = vmatprep.subr.mxu0 %v2099
    %2332 = vmatpush1.msra.mxu0 %v2098
    %2333 = vmatprep.subr.mxu0 %v2101
    %2334 = vmatpush1.msra.mxu0 %v2100
    %2335 = vmatprep.subr.mxu0 %v2103
    %2336 = vmatpush1.msra.mxu0 %v2102
    %2337 = vmatprep.subr.mxu0 %v2105
    %2338 = vmatpush1.msra.mxu0 %v2104
    %2339 = vmatprep.subr.mxu0 %v2107
    %2340 = vmatpush1.msra.mxu0 %v2106
    %2341 = vmatprep.subr.mxu0 %v2109
    %2342 = vmatpush1.msra.mxu0 %v2108
    %2343 = vmatprep.subr.mxu0 %v2111
    %2344 = vmatpush1.msra.mxu0 %v2110
    %2345 = vmatprep.subr.mxu0 %v2113
    %2346 = vmatpush1.msra.mxu0 %v2112
    %2347 = vmatprep.subr.mxu0 %v2115
    %2348 = vmatpush1.msra.mxu0 %v2114
    %2349 = vmatprep.subr.mxu0 %v2117
    %2350 = vmatpush1.msra.mxu0 %v2116
    %2351 = vmatprep.subr.mxu0 %v2119
    %2352 = vmatpush1.msra.mxu0 %v2118
    %2353 = vmatprep.subr.mxu0 %v2121
    %2354 = vmatpush1.msra.mxu0 %v2120
    %2355 = vmatprep.subr.mxu0 %v2123
    %2356 = vmatpush1.msra.mxu0 %v2122
    %2357 = vmatprep.subr.mxu0 %v2125
    %2358 = vmatpush1.msra.mxu0 %v2124
    %2359 = vmatprep.subr.mxu0 %v2127
    %2360 = vmatpush1.msra.mxu0 %v2126
    %2361 = vmatprep.subr.mxu0 %v2129
    %2362 = vmatpush1.msra.mxu0 %v2128
    %2363 = vmatprep.subr.mxu0 %v2131
    %2364 = vmatpush1.msra.mxu0 %v2130
    %2365 = vmatprep.subr.mxu0 %v2133
    %2366 = vmatpush1.msra.mxu0 %v2132
    %2367 = vmatprep.subr.mxu0 %v2135
    %2368 = vmatpush1.msra.mxu0 %v2134
    %2369 = vmatprep.subr.mxu0 %v2137
    %2370 = vmatpush1.msra.mxu0 %v2136
    %2371 = vmatprep.subr.mxu0 %v2139
    %2372 = vmatpush1.msra.mxu0 %v2138
    %2373 = vmatprep.subr.mxu0 %v2141
    %2374 = vmatpush1.msra.mxu0 %v2140
    %2375 = vmatprep.subr.mxu0 %v2143
    %2376 = vmatpush1.msra.mxu0 %v2142
    %2377 = vmatprep.subr.mxu0 %v2145
    %2378 = vmatpush1.msra.mxu0 %v2144
    %2379 = vmatprep.subr.mxu0 %v2147
    %2380 = vmatpush1.msra.mxu0 %v2146
    %2381 = vmatprep.subr.mxu0 %v2149
    %2382 = vmatpush1.msra.mxu0 %v2148
    %2383 = vmatprep.subr.mxu0 %v2151
    %2384 = vmatpush1.msra.mxu0 %v2150
    %2385 = vmatprep.subr.mxu0 %v2153
    %2386 = vmatpush1.msra.mxu0 %v2152
    %2387 = vmatprep.subr.mxu0 %v2155
    %2388 = vmatpush1.msra.mxu0 %v2154
    %2389 = vmatprep.subr.mxu0 %v2157
    %2390 = vmatpush1.msra.mxu0 %v2156
    %2391 = vmatprep.mubr.f32.mxu0 %v2288
    %2392 = vmatmul.mubr.f32.gmra.mrb[0].mxu0 %v2285
    %v2393 = vpop.f32.mrb[0].mxu0
    %v2394 = vadd.f32 0.0, %v2393
    %v2395 = vpop.f32.mrb[0].mxu0
    %v2396 = vadd.f32 0.0, %v2395
    %2397 = vmatprep.mubr.f32.mxu0 %v2304
    %2398 = vmatmul.mubr.f32.gmra.mrb[0].mxu0 %v2302
    %v2399 = vpop.f32.mrb[0].mxu0
    %v2400 = vadd.f32 0.0, %v2399
    %v2401 = vpop.f32.mrb[0].mxu0
    %v2402 = vadd.f32 0.0, %v2401
    %2403 = vdwg.mxu0
    %2404 = vmatprep.subr.mxu0 %v2159
    %2405 = vmatpush1.msra.mxu0 %v2158
    %2406 = vmatprep.subr.mxu0 %v2161
    %2407 = vmatpush1.msra.mxu0 %v2160
    %2408 = vmatprep.subr.mxu0 %v2163
    %2409 = vmatpush1.msra.mxu0 %v2162
    %2410 = vmatprep.subr.mxu0 %v2165
    %2411 = vmatpush1.msra.mxu0 %v2164
    %2412 = vmatprep.subr.mxu0 %v2167
    %2413 = vmatpush1.msra.mxu0 %v2166
    %2414 = vmatprep.subr.mxu0 %v2169
    %2415 = vmatpush1.msra.mxu0 %v2168
    %2416 = vmatprep.subr.mxu0 %v2171
    %2417 = vmatpush1.msra.mxu0 %v2170
    %2418 = vmatprep.subr.mxu0 %v2173
    %2419 = vmatpush1.msra.mxu0 %v2172
    %2420 = vmatprep.subr.mxu0 %v2175
    %2421 = vmatpush1.msra.mxu0 %v2174
    %2422 = vmatprep.subr.mxu0 %v2177
    %2423 = vmatpush1.msra.mxu0 %v2176
    %2424 = vmatprep.subr.mxu0 %v2179
    %2425 = vmatpush1.msra.mxu0 %v2178
    %2426 = vmatprep.subr.mxu0 %v2181
    %2427 = vmatpush1.msra.mxu0 %v2180
    %2428 = vmatprep.subr.mxu0 %v2183
    %2429 = vmatpush1.msra.mxu0 %v2182
    %2430 = vmatprep.subr.mxu0 %v2185
    %2431 = vmatpush1.msra.mxu0 %v2184
    %2432 = vmatprep.subr.mxu0 %v2187
    %2433 = vmatpush1.msra.mxu0 %v2186
    %2434 = vmatprep.subr.mxu0 %v2189
    %2435 = vmatpush1.msra.mxu0 %v2188
    %2436 = vmatprep.subr.mxu0 %v2191
    %2437 = vmatpush1.msra.mxu0 %v2190
    %2438 = vmatprep.subr.mxu0 %v2193
    %2439 = vmatpush1.msra.mxu0 %v2192
    %2440 = vmatprep.subr.mxu0 %v2195
    %2441 = vmatpush1.msra.mxu0 %v2194
    %2442 = vmatprep.subr.mxu0 %v2197
    %2443 = vmatpush1.msra.mxu0 %v2196
    %2444 = vmatprep.subr.mxu0 %v2199
    %2445 = vmatpush1.msra.mxu0 %v2198
    %2446 = vmatprep.subr.mxu0 %v2201
    %2447 = vmatpush1.msra.mxu0 %v2200
    %2448 = vmatprep.subr.mxu0 %v2203
    %2449 = vmatpush1.msra.mxu0 %v2202
    %2450 = vmatprep.subr.mxu0 %v2205
    %2451 = vmatpush1.msra.mxu0 %v2204
    %2452 = vmatprep.subr.mxu0 %v2207
    %2453 = vmatpush1.msra.mxu0 %v2206
    %2454 = vmatprep.subr.mxu0 %v2209
    %2455 = vmatpush1.msra.mxu0 %v2208
    %2456 = vmatprep.subr.mxu0 %v2211
    %2457 = vmatpush1.msra.mxu0 %v2210
    %2458 = vmatprep.subr.mxu0 %v2213
    %2459 = vmatpush1.msra.mxu0 %v2212
    %2460 = vmatprep.subr.mxu0 %v2215
    %2461 = vmatpush1.msra.mxu0 %v2214
    %2462 = vmatprep.subr.mxu0 %v2217
    %2463 = vmatpush1.msra.mxu0 %v2216
    %2464 = vmatprep.subr.mxu0 %v2219
    %2465 = vmatpush1.msra.mxu0 %v2218
    %2466 = vmatprep.subr.mxu0 %v2221
    %2467 = vmatpush1.msra.mxu0 %v2220
    %2468 = vmatprep.mubr.f32.mxu0 %v2294
    %2469 = vmatmul.mubr.f32.gmra.mrb[0].mxu0 %v2291
    %v2470 = vpop.f32.mrb[0].mxu0
    %v2471 = vadd.f32 %v2394, %v2470
    %v2472 = vpop.f32.mrb[0].mxu0
    %v2473 = vadd.f32 %v2396, %v2472
    %2474 = vmatprep.mubr.f32.mxu0 %v2308
    %2475 = vmatmul.mubr.f32.gmra.mrb[0].mxu0 %v2306
    %v2476 = vpop.f32.mrb[0].mxu0
    %v2477 = vadd.f32 %v2400, %v2476
    %v2478 = vpop.f32.mrb[0].mxu0
    %v2479 = vadd.f32 %v2402, %v2478
    %2480 = vdwg.mxu0
    %2481 = vmatprep.subr.mxu0 %v2223
    %2482 = vmatpush1.msra.mxu0 %v2222
    %2483 = vmatprep.subr.mxu0 %v2225
    %2484 = vmatpush1.msra.mxu0 %v2224
    %2485 = vmatprep.subr.mxu0 %v2227
    %2486 = vmatpush1.msra.mxu0 %v2226
    %2487 = vmatprep.subr.mxu0 %v2229
    %2488 = vmatpush1.msra.mxu0 %v2228
    %2489 = vmatprep.subr.mxu0 %v2231
    %2490 = vmatpush1.msra.mxu0 %v2230
    %2491 = vmatprep.subr.mxu0 %v2233
    %2492 = vmatpush1.msra.mxu0 %v2232
    %2493 = vmatprep.subr.mxu0 %v2235
    %2494 = vmatpush1.msra.mxu0 %v2234
    %2495 = vmatprep.subr.mxu0 %v2237
    %2496 = vmatpush1.msra.mxu0 %v2236
    %2497 = vmatprep.subr.mxu0 %v2239
    %2498 = vmatpush1.msra.mxu0 %v2238
    %2499 = vmatprep.subr.mxu0 %v2241
    %2500 = vmatpush1.msra.mxu0 %v2240
    %2501 = vmatprep.subr.mxu0 %v2243
    %2502 = vmatpush1.msra.mxu0 %v2242
    %2503 = vmatprep.subr.mxu0 %v2245
    %2504 = vmatpush1.msra.mxu0 %v2244
    %2505 = vmatprep.subr.mxu0 %v2247
    %2506 = vmatpush1.msra.mxu0 %v2246
    %2507 = vmatprep.subr.mxu0 %v2249
    %2508 = vmatpush1.msra.mxu0 %v2248
    %2509 = vmatprep.subr.mxu0 %v2251
    %2510 = vmatpush1.msra.mxu0 %v2250
    %2511 = vmatprep.subr.mxu0 %v2253
    %2512 = vmatpush1.msra.mxu0 %v2252
    %2513 = vmatprep.subr.mxu0 %v2255
    %2514 = vmatpush1.msra.mxu0 %v2254
    %2515 = vmatprep.subr.mxu0 %v2257
    %2516 = vmatpush1.msra.mxu0 %v2256
    %2517 = vmatprep.subr.mxu0 %v2259
    %2518 = vmatpush1.msra.mxu0 %v2258
    %2519 = vmatprep.subr.mxu0 %v2261
    %2520 = vmatpush1.msra.mxu0 %v2260
    %2521 = vmatprep.subr.mxu0 %v2263
    %2522 = vmatpush1.msra.mxu0 %v2262
    %2523 = vmatprep.subr.mxu0 %v2265
    %2524 = vmatpush1.msra.mxu0 %v2264
    %2525 = vmatprep.subr.mxu0 %v2267
    %2526 = vmatpush1.msra.mxu0 %v2266
    %2527 = vmatprep.subr.mxu0 %v2269
    %2528 = vmatpush1.msra.mxu0 %v2268
    %2529 = vmatprep.subr.mxu0 0.0
    %2530 = vmatpush1.msra.mxu0 0.0
    %2531 = vmatprep.subr.mxu0 0.0
    %2532 = vmatpush1.msra.mxu0 0.0
    %2533 = vmatprep.subr.mxu0 0.0
    %2534 = vmatpush1.msra.mxu0 0.0
    %2535 = vmatprep.subr.mxu0 0.0
    %2536 = vmatpush1.msra.mxu0 0.0
    %2537 = vmatprep.subr.mxu0 0.0
    %2538 = vmatpush1.msra.mxu0 0.0
    %2539 = vmatprep.subr.mxu0 0.0
    %2540 = vmatpush1.msra.mxu0 0.0
    %2541 = vmatprep.subr.mxu0 0.0
    %2542 = vmatpush1.msra.mxu0 0.0
    %2543 = vmatprep.subr.mxu0 0.0
    %2544 = vmatpush1.msra.mxu0 0.0
    %2545 = vmatprep.mubr.f32.mxu0 %v2323
    %2546 = vmatmul.mubr.f32.gmra.mrb[0].mxu0 %v2297
    %v2547 = vpop.f32.mrb[0].mxu0
    %v2548 = vadd.f32 %v2471, %v2547
    %v2549 = vpop.f32.mrb[0].mxu0
    %v2550 = vadd.f32 %v2473, %v2549
    %2551 = vmatprep.mubr.f32.mxu0 %v2325
    %2552 = vmatmul.mubr.f32.gmra.mrb[0].mxu0 %v2310
    %v2553 = vpop.f32.mrb[0].mxu0
    %v2554 = vadd.f32 %v2477, %v2553
    %v2555 = vpop.f32.mrb[0].mxu0
    %v2556 = vadd.f32 %v2479, %v2555
    %2557 = vdwg.mxu0
    %v2558 = vadd.f32 %v2077, %v2548
    %v2559 = vadd.f32 %v2078, %v2550
    %v2560 = vadd.f32 %v2079, %v2554
    %v2561 = vadd.f32 %v2080, %v2556
    %v2562 = vld [vmem:[#allocation2] sm:$0xe0]
    %v2563 = vld [vmem:[#allocation2 + $0x8] sm:$0xe0]
    %v2564 = vld [vmem:[#allocation2 + $0x10] sm:$0xe0]
    %v2565 = vld [vmem:[#allocation2 + $0x18] sm:$0xe0]
    %v2566 = vld [vmem:[#allocation2 + $0x20] sm:$0xe0]
    %v2567 = vld [vmem:[#allocation2 + $0x28] sm:$0xe0]
    %v2568 = vld [vmem:[#allocation2 + $0x60] sm:$0x1f]
    %v2569 = vld [vmem:[#allocation2 + $0x68] sm:$0x1f]
    %v2570 = vld [vmem:[#allocation2 + $0x70] sm:$0x1f]
    %v2571 = vld [vmem:[#allocation2 + $0x78] sm:$0x1f]
    %v2572 = vld [vmem:[#allocation2 + $0x80] sm:$0x1f]
    %v2573 = vld [vmem:[#allocation2 + $0x88] sm:$0x1f]
    %s2574 = scalar_lea.vmem [#allocation4], 7040
    %v2575 = vld [vmem:[%s2574] sm:$0xff]
    %v2576 = vld [vmem:[%s2574 + $0x8] sm:$0xff]
    %v2577 = vld [vmem:[%s2574 + $0x10] sm:$0xff]
    %v2578 = vld [vmem:[%s2574 + $0x18] sm:$0xff]
    %v2579 = vld [vmem:[%s2574 + $0x20] sm:$0xff]
    %v2580 = vld [vmem:[%s2574 + $0x28] sm:$0xff]
    %v2581 = vld [vmem:[%s2574 + $0x30] sm:$0xff]
    %v2582 = vld [vmem:[%s2574 + $0x38] sm:$0xff]
    %v2583 = vld [vmem:[%s2574 + $0x40] sm:$0xff]
    %v2584 = vld [vmem:[%s2574 + $0x48] sm:$0xff]
    %v2585 = vld [vmem:[%s2574 + $0x50] sm:$0xff]
    %v2586 = vld [vmem:[%s2574 + $0x58] sm:$0xff]
    %v2587 = vld [vmem:[%s2574 + $0x60] sm:$0xff]
    %v2588 = vld [vmem:[%s2574 + $0x68] sm:$0xff]
    %v2589 = vld [vmem:[%s2574 + $0x70] sm:$0xff]
    %v2590 = vld [vmem:[%s2574 + $0x78] sm:$0xff]
    %v2591 = vld [vmem:[%s2574 + $0x80] sm:$0xff]
    %v2592 = vld [vmem:[%s2574 + $0x88] sm:$0xff]
    %v2593 = vld [vmem:[%s2574 + $0x90] sm:$0xff]
    %v2594 = vld [vmem:[%s2574 + $0x98] sm:$0xff]
    %v2595 = vld [vmem:[%s2574 + $0xa0] sm:$0xff]
    %v2596 = vld [vmem:[%s2574 + $0xa8] sm:$0xff]
    %v2597 = vld [vmem:[%s2574 + $0xb0] sm:$0xff]
    %v2598 = vld [vmem:[%s2574 + $0xb8] sm:$0xff]
    %v2599 = vld [vmem:[%s2574 + $0xc0] sm:$0xff]
    %v2600 = vld [vmem:[%s2574 + $0xc8] sm:$0xff]
    %v2601 = vld [vmem:[%s2574 + $0xd0] sm:$0xff]
    %v2602 = vld [vmem:[%s2574 + $0xd8] sm:$0xff]
    %v2603 = vld [vmem:[%s2574 + $0xe0] sm:$0xff]
    %v2604 = vld [vmem:[%s2574 + $0xe8] sm:$0xff]
    %v2605 = vld [vmem:[%s2574 + $0xf0] sm:$0xff]
    %v2606 = vld [vmem:[%s2574 + $0xf8] sm:$0xff]
    %v2607 = vld [vmem:[%s2574 + $0x100] sm:$0xff]
    %v2608 = vld [vmem:[%s2574 + $0x108] sm:$0xff]
    %v2609 = vld [vmem:[%s2574 + $0x110] sm:$0xff]
    %v2610 = vld [vmem:[%s2574 + $0x118] sm:$0xff]
    %v2611 = vld [vmem:[%s2574 + $0x120] sm:$0xff]
    %v2612 = vld [vmem:[%s2574 + $0x128] sm:$0xff]
    %v2613 = vld [vmem:[%s2574 + $0x130] sm:$0xff]
    %v2614 = vld [vmem:[%s2574 + $0x138] sm:$0xff]
    %v2615 = vld [vmem:[%s2574 + $0x140] sm:$0xff]
    %v2616 = vld [vmem:[%s2574 + $0x148] sm:$0xff]
    %v2617 = vld [vmem:[%s2574 + $0x150] sm:$0xff]
    %v2618 = vld [vmem:[%s2574 + $0x158] sm:$0xff]
    %v2619 = vld [vmem:[%s2574 + $0x160] sm:$0xff]
    %v2620 = vld [vmem:[%s2574 + $0x168] sm:$0xff]
    %v2621 = vld [vmem:[%s2574 + $0x170] sm:$0xff]
    %v2622 = vld [vmem:[%s2574 + $0x178] sm:$0xff]
    %v2623 = vld [vmem:[%s2574 + $0x180] sm:$0xff]
    %v2624 = vld [vmem:[%s2574 + $0x188] sm:$0xff]
    %v2625 = vld [vmem:[%s2574 + $0x190] sm:$0xff]
    %v2626 = vld [vmem:[%s2574 + $0x198] sm:$0xff]
    %v2627 = vld [vmem:[%s2574 + $0x1a0] sm:$0xff]
    %v2628 = vld [vmem:[%s2574 + $0x1a8] sm:$0xff]
    %v2629 = vld [vmem:[%s2574 + $0x1b0] sm:$0xff]
    %v2630 = vld [vmem:[%s2574 + $0x1b8] sm:$0xff]
    %v2631 = vld [vmem:[%s2574 + $0x1c0] sm:$0xff]
    %v2632 = vld [vmem:[%s2574 + $0x1c8] sm:$0xff]
    %v2633 = vld [vmem:[%s2574 + $0x1d0] sm:$0xff]
    %v2634 = vld [vmem:[%s2574 + $0x1d8] sm:$0xff]
    %v2635 = vld [vmem:[%s2574 + $0x1e0] sm:$0xff]
    %v2636 = vld [vmem:[%s2574 + $0x1e8] sm:$0xff]
    %v2637 = vld [vmem:[%s2574 + $0x1f0] sm:$0xff]
    %v2638 = vld [vmem:[%s2574 + $0x1f8] sm:$0xff]
    %v2639 = vld [vmem:[%s2574 + $0x200] sm:$0xff]
    %v2640 = vld [vmem:[%s2574 + $0x208] sm:$0xff]
    %v2641 = vld [vmem:[%s2574 + $0x210] sm:$0xff]
    %v2642 = vld [vmem:[%s2574 + $0x218] sm:$0xff]
    %v2643 = vld [vmem:[%s2574 + $0x220] sm:$0xff]
    %v2644 = vld [vmem:[%s2574 + $0x228] sm:$0xff]
    %v2645 = vld [vmem:[%s2574 + $0x230] sm:$0xff]
    %v2646 = vld [vmem:[%s2574 + $0x238] sm:$0xff]
    %v2647 = vld [vmem:[%s2574 + $0x240] sm:$0xff]
    %v2648 = vld [vmem:[%s2574 + $0x248] sm:$0xff]
    %v2649 = vld [vmem:[%s2574 + $0x250] sm:$0xff]
    %v2650 = vld [vmem:[%s2574 + $0x258] sm:$0xff]
    %v2651 = vld [vmem:[%s2574 + $0x260] sm:$0xff]
    %v2652 = vld [vmem:[%s2574 + $0x268] sm:$0xff]
    %v2653 = vld [vmem:[%s2574 + $0x270] sm:$0xff]
    %v2654 = vld [vmem:[%s2574 + $0x278] sm:$0xff]
    %v2655 = vld [vmem:[%s2574 + $0x280] sm:$0xff]
    %v2656 = vld [vmem:[%s2574 + $0x288] sm:$0xff]
    %v2657 = vld [vmem:[%s2574 + $0x290] sm:$0xff]
    %v2658 = vld [vmem:[%s2574 + $0x298] sm:$0xff]
    %v2659 = vld [vmem:[%s2574 + $0x2a0] sm:$0xff]
    %v2660 = vld [vmem:[%s2574 + $0x2a8] sm:$0xff]
    %v2661 = vld [vmem:[%s2574 + $0x2b0] sm:$0xff]
    %v2662 = vld [vmem:[%s2574 + $0x2b8] sm:$0xff]
    %v2663 = vld [vmem:[%s2574 + $0x2c0] sm:$0xff]
    %v2664 = vld [vmem:[%s2574 + $0x2c8] sm:$0xff]
    %v2665 = vld [vmem:[%s2574 + $0x2d0] sm:$0xff]
    %v2666 = vld [vmem:[%s2574 + $0x2d8] sm:$0xff]
    %v2667 = vld [vmem:[%s2574 + $0x2e0] sm:$0xff]
    %v2668 = vld [vmem:[%s2574 + $0x2e8] sm:$0xff]
    %v2669 = vld [vmem:[%s2574 + $0x2f0] sm:$0xff]
    %v2670 = vld [vmem:[%s2574 + $0x2f8] sm:$0xff]
    %v2671 = vld [vmem:[%s2574 + $0x300] sm:$0xff]
    %v2672 = vld [vmem:[%s2574 + $0x308] sm:$0xff]
    %v2673 = vld [vmem:[%s2574 + $0x310] sm:$0xff]
    %v2674 = vld [vmem:[%s2574 + $0x318] sm:$0xff]
    %v2675 = vld [vmem:[%s2574 + $0x320] sm:$0xff]
    %v2676 = vld [vmem:[%s2574 + $0x328] sm:$0xff]
    %v2677 = vld [vmem:[%s2574 + $0x330] sm:$0xff]
    %v2678 = vld [vmem:[%s2574 + $0x338] sm:$0xff]
    %v2679 = vld [vmem:[%s2574 + $0x340] sm:$0xff]
    %v2680 = vld [vmem:[%s2574 + $0x348] sm:$0xff]
    %v2681 = vld [vmem:[%s2574 + $0x350] sm:$0xff]
    %v2682 = vld [vmem:[%s2574 + $0x358] sm:$0xff]
    %v2683 = vld [vmem:[%s2574 + $0x360] sm:$0xff]
    %v2684 = vld [vmem:[%s2574 + $0x368] sm:$0xff]
    %v2685 = vld [vmem:[%s2574 + $0x370] sm:$0xff]
    %v2686 = vld [vmem:[%s2574 + $0x378] sm:$0xff]
    %v2687 = vld [vmem:[%s2574 + $0x380] sm:$0xff]
    %v2688 = vld [vmem:[%s2574 + $0x388] sm:$0xff]
    %v2689 = vld [vmem:[%s2574 + $0x390] sm:$0xff]
    %v2690 = vld [vmem:[%s2574 + $0x398] sm:$0xff]
    %v2691 = vld [vmem:[%s2574 + $0x3a0] sm:$0xff]
    %v2692 = vld [vmem:[%s2574 + $0x3a8] sm:$0xff]
    %v2693 = vld [vmem:[%s2574 + $0x3b0] sm:$0xff]
    %v2694 = vld [vmem:[%s2574 + $0x3b8] sm:$0xff]
    %v2695 = vld [vmem:[%s2574 + $0x3c0] sm:$0xff]
    %v2696 = vld [vmem:[%s2574 + $0x3c8] sm:$0xff]
    %v2697 = vld [vmem:[%s2574 + $0x3d0] sm:$0xff]
    %v2698 = vld [vmem:[%s2574 + $0x3d8] sm:$0xff]
    %v2699 = vld [vmem:[%s2574 + $0x3e0] sm:$0xff]
    %v2700 = vld [vmem:[%s2574 + $0x3e8] sm:$0xff]
    %v2701 = vld [vmem:[%s2574 + $0x3f0] sm:$0xff]
    %v2702 = vld [vmem:[%s2574 + $0x3f8] sm:$0xff]
    %v2703 = vld [vmem:[%s2574 + $0x400] sm:$0xff]
    %v2704 = vld [vmem:[%s2574 + $0x408] sm:$0xff]
    %v2705 = vld [vmem:[%s2574 + $0x410] sm:$0xff]
    %v2706 = vld [vmem:[%s2574 + $0x418] sm:$0xff]
    %v2707 = vld [vmem:[%s2574 + $0x420] sm:$0xff]
    %v2708 = vld [vmem:[%s2574 + $0x428] sm:$0xff]
    %v2709 = vld [vmem:[%s2574 + $0x430] sm:$0xff]
    %v2710 = vld [vmem:[%s2574 + $0x438] sm:$0xff]
    %v2711 = vld [vmem:[%s2574 + $0x440] sm:$0xff]
    %v2712 = vld [vmem:[%s2574 + $0x448] sm:$0xff]
    %v2713 = vld [vmem:[%s2574 + $0x450] sm:$0xff]
    %v2714 = vld [vmem:[%s2574 + $0x458] sm:$0xff]
    %v2715 = vld [vmem:[%s2574 + $0x460] sm:$0xff]
    %v2716 = vld [vmem:[%s2574 + $0x468] sm:$0xff]
    %v2717 = vld [vmem:[%s2574 + $0x470] sm:$0xff]
    %v2718 = vld [vmem:[%s2574 + $0x478] sm:$0xff]
    %v2719 = vld [vmem:[%s2574 + $0x480] sm:$0xff]
    %v2720 = vld [vmem:[%s2574 + $0x488] sm:$0xff]
    %v2721 = vld [vmem:[%s2574 + $0x490] sm:$0xff]
    %v2722 = vld [vmem:[%s2574 + $0x498] sm:$0xff]
    %v2723 = vld [vmem:[%s2574 + $0x4a0] sm:$0xff]
    %v2724 = vld [vmem:[%s2574 + $0x4a8] sm:$0xff]
    %v2725 = vld [vmem:[%s2574 + $0x4b0] sm:$0xff]
    %v2726 = vld [vmem:[%s2574 + $0x4b8] sm:$0xff]
    %v2727 = vld [vmem:[%s2574 + $0x4c0] sm:$0xff]
    %v2728 = vld [vmem:[%s2574 + $0x4c8] sm:$0xff]
    %v2729 = vld [vmem:[%s2574 + $0x4d0] sm:$0xff]
    %v2730 = vld [vmem:[%s2574 + $0x4d8] sm:$0xff]
    %v2731 = vld [vmem:[%s2574 + $0x4e0] sm:$0xff]
    %v2732 = vld [vmem:[%s2574 + $0x4e8] sm:$0xff]
    %v2733 = vld [vmem:[%s2574 + $0x4f0] sm:$0xff]
    %v2734 = vld [vmem:[%s2574 + $0x4f8] sm:$0xff]
    %v2735 = vld [vmem:[%s2574 + $0x500] sm:$0xff]
    %v2736 = vld [vmem:[%s2574 + $0x508] sm:$0xff]
    %v2737 = vld [vmem:[%s2574 + $0x510] sm:$0xff]
    %v2738 = vld [vmem:[%s2574 + $0x518] sm:$0xff]
    %v2739 = vld [vmem:[%s2574 + $0x520] sm:$0xff]
    %v2740 = vld [vmem:[%s2574 + $0x528] sm:$0xff]
    %v2741 = vld [vmem:[%s2574 + $0x530] sm:$0xff]
    %v2742 = vld [vmem:[%s2574 + $0x538] sm:$0xff]
    %v2743 = vld [vmem:[%s2574 + $0x540] sm:$0xff]
    %v2744 = vld [vmem:[%s2574 + $0x548] sm:$0xff]
    %v2745 = vld [vmem:[%s2574 + $0x550] sm:$0xff]
    %v2746 = vld [vmem:[%s2574 + $0x558] sm:$0xff]
    %v2747 = vld [vmem:[%s2574 + $0x560] sm:$0xff]
    %v2748 = vld [vmem:[%s2574 + $0x568] sm:$0xff]
    %v2749 = vld [vmem:[%s2574 + $0x570] sm:$0xff]
    %v2750 = vld [vmem:[%s2574 + $0x578] sm:$0xff]
    %v2763 = vrot.slane %v2562, 5
    %v2764 = vrot.slane %v218, 5
    %v2765 = vsel %vm131, %v2763, %v2764
    %v2766 = vrot.slane %v2563, 5
    %v2767 = vrot.slane %v219, 5
    %v2768 = vsel %vm131, %v2766, %v2767
    %v2769 = vrot.slane %v2564, 5
    %v2770 = vrot.slane %v220, 5
    %v2771 = vsel %vm131, %v2769, %v2770
    %v2772 = vrot.slane %v2565, 5
    %v2773 = vrot.slane %v221, 5
    %v2774 = vsel %vm131, %v2772, %v2773
    %v2775 = vrot.slane %v2566, 5
    %v2776 = vrot.slane %v222, 5
    %v2777 = vsel %vm131, %v2775, %v2776
    %v2778 = vrot.slane %v2567, 5
    %v2779 = vrot.slane %v223, 5
    %v2780 = vsel %vm131, %v2778, %v2779
    %v2781 = vrot.slane %v2568, 5
    %v2782 = vsel %vm131, %v2764, %v2781
    %v2783 = vrot.slane %v2569, 5
    %v2784 = vsel %vm131, %v2767, %v2783
    %v2785 = vrot.slane %v2570, 5
    %v2786 = vsel %vm131, %v2770, %v2785
    %v2787 = vrot.slane %v2571, 5
    %v2788 = vsel %vm131, %v2773, %v2787
    %v2789 = vrot.slane %v2572, 5
    %v2790 = vsel %vm131, %v2776, %v2789
    %v2791 = vrot.slane %v2573, 5
    %v2792 = vsel %vm131, %v2779, %v2791
    %v2803 = vsel %vm84, %v2780, 0
    %v2805 = vsel %vm84, %v2792, 0
    %2807 = vmatprep.subr.mxu0 %v2576
    %2808 = vmatpush1.msra.mxu0 %v2575
    %2809 = vmatprep.subr.mxu0 %v2578
    %2810 = vmatpush1.msra.mxu0 %v2577
    %2811 = vmatprep.subr.mxu0 %v2580
    %2812 = vmatpush1.msra.mxu0 %v2579
    %2813 = vmatprep.subr.mxu0 %v2582
    %2814 = vmatpush1.msra.mxu0 %v2581
    %2815 = vmatprep.subr.mxu0 %v2584
    %2816 = vmatpush1.msra.mxu0 %v2583
    %2817 = vmatprep.subr.mxu0 %v2586
    %2818 = vmatpush1.msra.mxu0 %v2585
    %2819 = vmatprep.subr.mxu0 %v2588
    %2820 = vmatpush1.msra.mxu0 %v2587
    %2821 = vmatprep.subr.mxu0 %v2590
    %2822 = vmatpush1.msra.mxu0 %v2589
    %2823 = vmatprep.subr.mxu0 %v2592
    %2824 = vmatpush1.msra.mxu0 %v2591
    %2825 = vmatprep.subr.mxu0 %v2594
    %2826 = vmatpush1.msra.mxu0 %v2593
    %2827 = vmatprep.subr.mxu0 %v2596
    %2828 = vmatpush1.msra.mxu0 %v2595
    %2829 = vmatprep.subr.mxu0 %v2598
    %2830 = vmatpush1.msra.mxu0 %v2597
    %2831 = vmatprep.subr.mxu0 %v2600
    %2832 = vmatpush1.msra.mxu0 %v2599
    %2833 = vmatprep.subr.mxu0 %v2602
    %2834 = vmatpush1.msra.mxu0 %v2601
    %2835 = vmatprep.subr.mxu0 %v2604
    %2836 = vmatpush1.msra.mxu0 %v2603
    %2837 = vmatprep.subr.mxu0 %v2606
    %2838 = vmatpush1.msra.mxu0 %v2605
    %2839 = vmatprep.subr.mxu0 %v2608
    %2840 = vmatpush1.msra.mxu0 %v2607
    %2841 = vmatprep.subr.mxu0 %v2610
    %2842 = vmatpush1.msra.mxu0 %v2609
    %2843 = vmatprep.subr.mxu0 %v2612
    %2844 = vmatpush1.msra.mxu0 %v2611
    %2845 = vmatprep.subr.mxu0 %v2614
    %2846 = vmatpush1.msra.mxu0 %v2613
    %2847 = vmatprep.subr.mxu0 %v2616
    %2848 = vmatpush1.msra.mxu0 %v2615
    %2849 = vmatprep.subr.mxu0 %v2618
    %2850 = vmatpush1.msra.mxu0 %v2617
    %2851 = vmatprep.subr.mxu0 %v2620
    %2852 = vmatpush1.msra.mxu0 %v2619
    %2853 = vmatprep.subr.mxu0 %v2622
    %2854 = vmatpush1.msra.mxu0 %v2621
    %2855 = vmatprep.subr.mxu0 %v2624
    %2856 = vmatpush1.msra.mxu0 %v2623
    %2857 = vmatprep.subr.mxu0 %v2626
    %2858 = vmatpush1.msra.mxu0 %v2625
    %2859 = vmatprep.subr.mxu0 %v2628
    %2860 = vmatpush1.msra.mxu0 %v2627
    %2861 = vmatprep.subr.mxu0 %v2630
    %2862 = vmatpush1.msra.mxu0 %v2629
    %2863 = vmatprep.subr.mxu0 %v2632
    %2864 = vmatpush1.msra.mxu0 %v2631
    %2865 = vmatprep.subr.mxu0 %v2634
    %2866 = vmatpush1.msra.mxu0 %v2633
    %2867 = vmatprep.subr.mxu0 %v2636
    %2868 = vmatpush1.msra.mxu0 %v2635
    %2869 = vmatprep.subr.mxu0 %v2638
    %2870 = vmatpush1.msra.mxu0 %v2637
    %2871 = vmatprep.mubr.f32.mxu0 %v2768
    %2872 = vmatmul.mubr.f32.gmra.mrb[0].mxu0 %v2765
    %v2873 = vpop.f32.mrb[0].mxu0
    %v2874 = vadd.f32 0.0, %v2873
    %v2875 = vpop.f32.mrb[0].mxu0
    %v2876 = vadd.f32 0.0, %v2875
    %2877 = vmatprep.mubr.f32.mxu0 %v2784
    %2878 = vmatmul.mubr.f32.gmra.mrb[0].mxu0 %v2782
    %v2879 = vpop.f32.mrb[0].mxu0
    %v2880 = vadd.f32 0.0, %v2879
    %v2881 = vpop.f32.mrb[0].mxu0
    %v2882 = vadd.f32 0.0, %v2881
    %2883 = vdwg.mxu0
    %2884 = vmatprep.subr.mxu0 %v2640
    %2885 = vmatpush1.msra.mxu0 %v2639
    %2886 = vmatprep.subr.mxu0 %v2642
    %2887 = vmatpush1.msra.mxu0 %v2641
    %2888 = vmatprep.subr.mxu0 %v2644
    %2889 = vmatpush1.msra.mxu0 %v2643
    %2890 = vmatprep.subr.mxu0 %v2646
    %2891 = vmatpush1.msra.mxu0 %v2645
    %2892 = vmatprep.subr.mxu0 %v2648
    %2893 = vmatpush1.msra.mxu0 %v2647
    %2894 = vmatprep.subr.mxu0 %v2650
    %2895 = vmatpush1.msra.mxu0 %v2649
    %2896 = vmatprep.subr.mxu0 %v2652
    %2897 = vmatpush1.msra.mxu0 %v2651
    %2898 = vmatprep.subr.mxu0 %v2654
    %2899 = vmatpush1.msra.mxu0 %v2653
    %2900 = vmatprep.subr.mxu0 %v2656
    %2901 = vmatpush1.msra.mxu0 %v2655
    %2902 = vmatprep.subr.mxu0 %v2658
    %2903 = vmatpush1.msra.mxu0 %v2657
    %2904 = vmatprep.subr.mxu0 %v2660
    %2905 = vmatpush1.msra.mxu0 %v2659
    %2906 = vmatprep.subr.mxu0 %v2662
    %2907 = vmatpush1.msra.mxu0 %v2661
    %2908 = vmatprep.subr.mxu0 %v2664
    %2909 = vmatpush1.msra.mxu0 %v2663
    %2910 = vmatprep.subr.mxu0 %v2666
    %2911 = vmatpush1.msra.mxu0 %v2665
    %2912 = vmatprep.subr.mxu0 %v2668
    %2913 = vmatpush1.msra.mxu0 %v2667
    %2914 = vmatprep.subr.mxu0 %v2670
    %2915 = vmatpush1.msra.mxu0 %v2669
    %2916 = vmatprep.subr.mxu0 %v2672
    %2917 = vmatpush1.msra.mxu0 %v2671
    %2918 = vmatprep.subr.mxu0 %v2674
    %2919 = vmatpush1.msra.mxu0 %v2673
    %2920 = vmatprep.subr.mxu0 %v2676
    %2921 = vmatpush1.msra.mxu0 %v2675
    %2922 = vmatprep.subr.mxu0 %v2678
    %2923 = vmatpush1.msra.mxu0 %v2677
    %2924 = vmatprep.subr.mxu0 %v2680
    %2925 = vmatpush1.msra.mxu0 %v2679
    %2926 = vmatprep.subr.mxu0 %v2682
    %2927 = vmatpush1.msra.mxu0 %v2681
    %2928 = vmatprep.subr.mxu0 %v2684
    %2929 = vmatpush1.msra.mxu0 %v2683
    %2930 = vmatprep.subr.mxu0 %v2686
    %2931 = vmatpush1.msra.mxu0 %v2685
    %2932 = vmatprep.subr.mxu0 %v2688
    %2933 = vmatpush1.msra.mxu0 %v2687
    %2934 = vmatprep.subr.mxu0 %v2690
    %2935 = vmatpush1.msra.mxu0 %v2689
    %2936 = vmatprep.subr.mxu0 %v2692
    %2937 = vmatpush1.msra.mxu0 %v2691
    %2938 = vmatprep.subr.mxu0 %v2694
    %2939 = vmatpush1.msra.mxu0 %v2693
    %2940 = vmatprep.subr.mxu0 %v2696
    %2941 = vmatpush1.msra.mxu0 %v2695
    %2942 = vmatprep.subr.mxu0 %v2698
    %2943 = vmatpush1.msra.mxu0 %v2697
    %2944 = vmatprep.subr.mxu0 %v2700
    %2945 = vmatpush1.msra.mxu0 %v2699
    %2946 = vmatprep.subr.mxu0 %v2702
    %2947 = vmatpush1.msra.mxu0 %v2701
    %2948 = vmatprep.mubr.f32.mxu0 %v2774
    %2949 = vmatmul.mubr.f32.gmra.mrb[0].mxu0 %v2771
    %v2950 = vpop.f32.mrb[0].mxu0
    %v2951 = vadd.f32 %v2874, %v2950
    %v2952 = vpop.f32.mrb[0].mxu0
    %v2953 = vadd.f32 %v2876, %v2952
    %2954 = vmatprep.mubr.f32.mxu0 %v2788
    %2955 = vmatmul.mubr.f32.gmra.mrb[0].mxu0 %v2786
    %v2956 = vpop.f32.mrb[0].mxu0
    %v2957 = vadd.f32 %v2880, %v2956
    %v2958 = vpop.f32.mrb[0].mxu0
    %v2959 = vadd.f32 %v2882, %v2958
    %2960 = vdwg.mxu0
    %2961 = vmatprep.subr.mxu0 %v2704
    %2962 = vmatpush1.msra.mxu0 %v2703
    %2963 = vmatprep.subr.mxu0 %v2706
    %2964 = vmatpush1.msra.mxu0 %v2705
    %2965 = vmatprep.subr.mxu0 %v2708
    %2966 = vmatpush1.msra.mxu0 %v2707
    %2967 = vmatprep.subr.mxu0 %v2710
    %2968 = vmatpush1.msra.mxu0 %v2709
    %2969 = vmatprep.subr.mxu0 %v2712
    %2970 = vmatpush1.msra.mxu0 %v2711
    %2971 = vmatprep.subr.mxu0 %v2714
    %2972 = vmatpush1.msra.mxu0 %v2713
    %2973 = vmatprep.subr.mxu0 %v2716
    %2974 = vmatpush1.msra.mxu0 %v2715
    %2975 = vmatprep.subr.mxu0 %v2718
    %2976 = vmatpush1.msra.mxu0 %v2717
    %2977 = vmatprep.subr.mxu0 %v2720
    %2978 = vmatpush1.msra.mxu0 %v2719
    %2979 = vmatprep.subr.mxu0 %v2722
    %2980 = vmatpush1.msra.mxu0 %v2721
    %2981 = vmatprep.subr.mxu0 %v2724
    %2982 = vmatpush1.msra.mxu0 %v2723
    %2983 = vmatprep.subr.mxu0 %v2726
    %2984 = vmatpush1.msra.mxu0 %v2725
    %2985 = vmatprep.subr.mxu0 %v2728
    %2986 = vmatpush1.msra.mxu0 %v2727
    %2987 = vmatprep.subr.mxu0 %v2730
    %2988 = vmatpush1.msra.mxu0 %v2729
    %2989 = vmatprep.subr.mxu0 %v2732
    %2990 = vmatpush1.msra.mxu0 %v2731
    %2991 = vmatprep.subr.mxu0 %v2734
    %2992 = vmatpush1.msra.mxu0 %v2733
    %2993 = vmatprep.subr.mxu0 %v2736
    %2994 = vmatpush1.msra.mxu0 %v2735
    %2995 = vmatprep.subr.mxu0 %v2738
    %2996 = vmatpush1.msra.mxu0 %v2737
    %2997 = vmatprep.subr.mxu0 %v2740
    %2998 = vmatpush1.msra.mxu0 %v2739
    %2999 = vmatprep.subr.mxu0 %v2742
    %3000 = vmatpush1.msra.mxu0 %v2741
    %3001 = vmatprep.subr.mxu0 %v2744
    %3002 = vmatpush1.msra.mxu0 %v2743
    %3003 = vmatprep.subr.mxu0 %v2746
    %3004 = vmatpush1.msra.mxu0 %v2745
    %3005 = vmatprep.subr.mxu0 %v2748
    %3006 = vmatpush1.msra.mxu0 %v2747
    %3007 = vmatprep.subr.mxu0 %v2750
    %3008 = vmatpush1.msra.mxu0 %v2749
    %3009 = vmatprep.subr.mxu0 0.0
    %3010 = vmatpush1.msra.mxu0 0.0
    %3011 = vmatprep.subr.mxu0 0.0
    %3012 = vmatpush1.msra.mxu0 0.0
    %3013 = vmatprep.subr.mxu0 0.0
    %3014 = vmatpush1.msra.mxu0 0.0
    %3015 = vmatprep.subr.mxu0 0.0
    %3016 = vmatpush1.msra.mxu0 0.0
    %3017 = vmatprep.subr.mxu0 0.0
    %3018 = vmatpush1.msra.mxu0 0.0
    %3019 = vmatprep.subr.mxu0 0.0
    %3020 = vmatpush1.msra.mxu0 0.0
    %3021 = vmatprep.subr.mxu0 0.0
    %3022 = vmatpush1.msra.mxu0 0.0
    %3023 = vmatprep.subr.mxu0 0.0
    %3024 = vmatpush1.msra.mxu0 0.0
    %3025 = vmatprep.mubr.f32.mxu0 %v2803
    %3026 = vmatmul.mubr.f32.gmra.mrb[0].mxu0 %v2777
    %v3027 = vpop.f32.mrb[0].mxu0
    %v3028 = vadd.f32 %v2951, %v3027
    %v3029 = vpop.f32.mrb[0].mxu0
    %v3030 = vadd.f32 %v2953, %v3029
    %3031 = vmatprep.mubr.f32.mxu0 %v2805
    %3032 = vmatmul.mubr.f32.gmra.mrb[0].mxu0 %v2790
    %v3033 = vpop.f32.mrb[0].mxu0
    %v3034 = vadd.f32 %v2957, %v3033
    %v3035 = vpop.f32.mrb[0].mxu0
    %v3036 = vadd.f32 %v2959, %v3035
    %3037 = vdwg.mxu0
    %v3038 = vadd.f32 %v2558, %v3028
    %v3039 = vadd.f32 %v2559, %v3030
    %v3040 = vadd.f32 %v2560, %v3034
    %v3041 = vadd.f32 %v2561, %v3036
    %v3042 = vld [vmem:[#allocation2] sm:$0xc0]
    %v3043 = vld [vmem:[#allocation2 + $0x8] sm:$0xc0]
    %v3044 = vld [vmem:[#allocation2 + $0x10] sm:$0xc0]
    %v3045 = vld [vmem:[#allocation2 + $0x18] sm:$0xc0]
    %v3046 = vld [vmem:[#allocation2 + $0x20] sm:$0xc0]
    %v3047 = vld [vmem:[#allocation2 + $0x28] sm:$0xc0]
    %v3048 = vld [vmem:[#allocation2 + $0x60] sm:$0x3f]
    %v3049 = vld [vmem:[#allocation2 + $0x68] sm:$0x3f]
    %v3050 = vld [vmem:[#allocation2 + $0x70] sm:$0x3f]
    %v3051 = vld [vmem:[#allocation2 + $0x78] sm:$0x3f]
    %v3052 = vld [vmem:[#allocation2 + $0x80] sm:$0x3f]
    %v3053 = vld [vmem:[#allocation2 + $0x88] sm:$0x3f]
    %s3054 = scalar_lea.vmem [#allocation4], 8448
    %v3055 = vld [vmem:[%s3054] sm:$0xff]
    %v3056 = vld [vmem:[%s3054 + $0x8] sm:$0xff]
    %v3057 = vld [vmem:[%s3054 + $0x10] sm:$0xff]
    %v3058 = vld [vmem:[%s3054 + $0x18] sm:$0xff]
    %v3059 = vld [vmem:[%s3054 + $0x20] sm:$0xff]
    %v3060 = vld [vmem:[%s3054 + $0x28] sm:$0xff]
    %v3061 = vld [vmem:[%s3054 + $0x30] sm:$0xff]
    %v3062 = vld [vmem:[%s3054 + $0x38] sm:$0xff]
    %v3063 = vld [vmem:[%s3054 + $0x40] sm:$0xff]
    %v3064 = vld [vmem:[%s3054 + $0x48] sm:$0xff]
    %v3065 = vld [vmem:[%s3054 + $0x50] sm:$0xff]
    %v3066 = vld [vmem:[%s3054 + $0x58] sm:$0xff]
    %v3067 = vld [vmem:[%s3054 + $0x60] sm:$0xff]
    %v3068 = vld [vmem:[%s3054 + $0x68] sm:$0xff]
    %v3069 = vld [vmem:[%s3054 + $0x70] sm:$0xff]
    %v3070 = vld [vmem:[%s3054 + $0x78] sm:$0xff]
    %v3071 = vld [vmem:[%s3054 + $0x80] sm:$0xff]
    %v3072 = vld [vmem:[%s3054 + $0x88] sm:$0xff]
    %v3073 = vld [vmem:[%s3054 + $0x90] sm:$0xff]
    %v3074 = vld [vmem:[%s3054 + $0x98] sm:$0xff]
    %v3075 = vld [vmem:[%s3054 + $0xa0] sm:$0xff]
    %v3076 = vld [vmem:[%s3054 + $0xa8] sm:$0xff]
    %v3077 = vld [vmem:[%s3054 + $0xb0] sm:$0xff]
    %v3078 = vld [vmem:[%s3054 + $0xb8] sm:$0xff]
    %v3079 = vld [vmem:[%s3054 + $0xc0] sm:$0xff]
    %v3080 = vld [vmem:[%s3054 + $0xc8] sm:$0xff]
    %v3081 = vld [vmem:[%s3054 + $0xd0] sm:$0xff]
    %v3082 = vld [vmem:[%s3054 + $0xd8] sm:$0xff]
    %v3083 = vld [vmem:[%s3054 + $0xe0] sm:$0xff]
    %v3084 = vld [vmem:[%s3054 + $0xe8] sm:$0xff]
    %v3085 = vld [vmem:[%s3054 + $0xf0] sm:$0xff]
    %v3086 = vld [vmem:[%s3054 + $0xf8] sm:$0xff]
    %v3087 = vld [vmem:[%s3054 + $0x100] sm:$0xff]
    %v3088 = vld [vmem:[%s3054 + $0x108] sm:$0xff]
    %v3089 = vld [vmem:[%s3054 + $0x110] sm:$0xff]
    %v3090 = vld [vmem:[%s3054 + $0x118] sm:$0xff]
    %v3091 = vld [vmem:[%s3054 + $0x120] sm:$0xff]
    %v3092 = vld [vmem:[%s3054 + $0x128] sm:$0xff]
    %v3093 = vld [vmem:[%s3054 + $0x130] sm:$0xff]
    %v3094 = vld [vmem:[%s3054 + $0x138] sm:$0xff]
    %v3095 = vld [vmem:[%s3054 + $0x140] sm:$0xff]
    %v3096 = vld [vmem:[%s3054 + $0x148] sm:$0xff]
    %v3097 = vld [vmem:[%s3054 + $0x150] sm:$0xff]
    %v3098 = vld [vmem:[%s3054 + $0x158] sm:$0xff]
    %v3099 = vld [vmem:[%s3054 + $0x160] sm:$0xff]
    %v3100 = vld [vmem:[%s3054 + $0x168] sm:$0xff]
    %v3101 = vld [vmem:[%s3054 + $0x170] sm:$0xff]
    %v3102 = vld [vmem:[%s3054 + $0x178] sm:$0xff]
    %v3103 = vld [vmem:[%s3054 + $0x180] sm:$0xff]
    %v3104 = vld [vmem:[%s3054 + $0x188] sm:$0xff]
    %v3105 = vld [vmem:[%s3054 + $0x190] sm:$0xff]
    %v3106 = vld [vmem:[%s3054 + $0x198] sm:$0xff]
    %v3107 = vld [vmem:[%s3054 + $0x1a0] sm:$0xff]
    %v3108 = vld [vmem:[%s3054 + $0x1a8] sm:$0xff]
    %v3109 = vld [vmem:[%s3054 + $0x1b0] sm:$0xff]
    %v3110 = vld [vmem:[%s3054 + $0x1b8] sm:$0xff]
    %v3111 = vld [vmem:[%s3054 + $0x1c0] sm:$0xff]
    %v3112 = vld [vmem:[%s3054 + $0x1c8] sm:$0xff]
    %v3113 = vld [vmem:[%s3054 + $0x1d0] sm:$0xff]
    %v3114 = vld [vmem:[%s3054 + $0x1d8] sm:$0xff]
    %v3115 = vld [vmem:[%s3054 + $0x1e0] sm:$0xff]
    %v3116 = vld [vmem:[%s3054 + $0x1e8] sm:$0xff]
    %v3117 = vld [vmem:[%s3054 + $0x1f0] sm:$0xff]
    %v3118 = vld [vmem:[%s3054 + $0x1f8] sm:$0xff]
    %v3119 = vld [vmem:[%s3054 + $0x200] sm:$0xff]
    %v3120 = vld [vmem:[%s3054 + $0x208] sm:$0xff]
    %v3121 = vld [vmem:[%s3054 + $0x210] sm:$0xff]
    %v3122 = vld [vmem:[%s3054 + $0x218] sm:$0xff]
    %v3123 = vld [vmem:[%s3054 + $0x220] sm:$0xff]
    %v3124 = vld [vmem:[%s3054 + $0x228] sm:$0xff]
    %v3125 = vld [vmem:[%s3054 + $0x230] sm:$0xff]
    %v3126 = vld [vmem:[%s3054 + $0x238] sm:$0xff]
    %v3127 = vld [vmem:[%s3054 + $0x240] sm:$0xff]
    %v3128 = vld [vmem:[%s3054 + $0x248] sm:$0xff]
    %v3129 = vld [vmem:[%s3054 + $0x250] sm:$0xff]
    %v3130 = vld [vmem:[%s3054 + $0x258] sm:$0xff]
    %v3131 = vld [vmem:[%s3054 + $0x260] sm:$0xff]
    %v3132 = vld [vmem:[%s3054 + $0x268] sm:$0xff]
    %v3133 = vld [vmem:[%s3054 + $0x270] sm:$0xff]
    %v3134 = vld [vmem:[%s3054 + $0x278] sm:$0xff]
    %v3135 = vld [vmem:[%s3054 + $0x280] sm:$0xff]
    %v3136 = vld [vmem:[%s3054 + $0x288] sm:$0xff]
    %v3137 = vld [vmem:[%s3054 + $0x290] sm:$0xff]
    %v3138 = vld [vmem:[%s3054 + $0x298] sm:$0xff]
    %v3139 = vld [vmem:[%s3054 + $0x2a0] sm:$0xff]
    %v3140 = vld [vmem:[%s3054 + $0x2a8] sm:$0xff]
    %v3141 = vld [vmem:[%s3054 + $0x2b0] sm:$0xff]
    %v3142 = vld [vmem:[%s3054 + $0x2b8] sm:$0xff]
    %v3143 = vld [vmem:[%s3054 + $0x2c0] sm:$0xff]
    %v3144 = vld [vmem:[%s3054 + $0x2c8] sm:$0xff]
    %v3145 = vld [vmem:[%s3054 + $0x2d0] sm:$0xff]
    %v3146 = vld [vmem:[%s3054 + $0x2d8] sm:$0xff]
    %v3147 = vld [vmem:[%s3054 + $0x2e0] sm:$0xff]
    %v3148 = vld [vmem:[%s3054 + $0x2e8] sm:$0xff]
    %v3149 = vld [vmem:[%s3054 + $0x2f0] sm:$0xff]
    %v3150 = vld [vmem:[%s3054 + $0x2f8] sm:$0xff]
    %v3151 = vld [vmem:[%s3054 + $0x300] sm:$0xff]
    %v3152 = vld [vmem:[%s3054 + $0x308] sm:$0xff]
    %v3153 = vld [vmem:[%s3054 + $0x310] sm:$0xff]
    %v3154 = vld [vmem:[%s3054 + $0x318] sm:$0xff]
    %v3155 = vld [vmem:[%s3054 + $0x320] sm:$0xff]
    %v3156 = vld [vmem:[%s3054 + $0x328] sm:$0xff]
    %v3157 = vld [vmem:[%s3054 + $0x330] sm:$0xff]
    %v3158 = vld [vmem:[%s3054 + $0x338] sm:$0xff]
    %v3159 = vld [vmem:[%s3054 + $0x340] sm:$0xff]
    %v3160 = vld [vmem:[%s3054 + $0x348] sm:$0xff]
    %v3161 = vld [vmem:[%s3054 + $0x350] sm:$0xff]
    %v3162 = vld [vmem:[%s3054 + $0x358] sm:$0xff]
    %v3163 = vld [vmem:[%s3054 + $0x360] sm:$0xff]
    %v3164 = vld [vmem:[%s3054 + $0x368] sm:$0xff]
    %v3165 = vld [vmem:[%s3054 + $0x370] sm:$0xff]
    %v3166 = vld [vmem:[%s3054 + $0x378] sm:$0xff]
    %v3167 = vld [vmem:[%s3054 + $0x380] sm:$0xff]
    %v3168 = vld [vmem:[%s3054 + $0x388] sm:$0xff]
    %v3169 = vld [vmem:[%s3054 + $0x390] sm:$0xff]
    %v3170 = vld [vmem:[%s3054 + $0x398] sm:$0xff]
    %v3171 = vld [vmem:[%s3054 + $0x3a0] sm:$0xff]
    %v3172 = vld [vmem:[%s3054 + $0x3a8] sm:$0xff]
    %v3173 = vld [vmem:[%s3054 + $0x3b0] sm:$0xff]
    %v3174 = vld [vmem:[%s3054 + $0x3b8] sm:$0xff]
    %v3175 = vld [vmem:[%s3054 + $0x3c0] sm:$0xff]
    %v3176 = vld [vmem:[%s3054 + $0x3c8] sm:$0xff]
    %v3177 = vld [vmem:[%s3054 + $0x3d0] sm:$0xff]
    %v3178 = vld [vmem:[%s3054 + $0x3d8] sm:$0xff]
    %v3179 = vld [vmem:[%s3054 + $0x3e0] sm:$0xff]
    %v3180 = vld [vmem:[%s3054 + $0x3e8] sm:$0xff]
    %v3181 = vld [vmem:[%s3054 + $0x3f0] sm:$0xff]
    %v3182 = vld [vmem:[%s3054 + $0x3f8] sm:$0xff]
    %v3183 = vld [vmem:[%s3054 + $0x400] sm:$0xff]
    %v3184 = vld [vmem:[%s3054 + $0x408] sm:$0xff]
    %v3185 = vld [vmem:[%s3054 + $0x410] sm:$0xff]
    %v3186 = vld [vmem:[%s3054 + $0x418] sm:$0xff]
    %v3187 = vld [vmem:[%s3054 + $0x420] sm:$0xff]
    %v3188 = vld [vmem:[%s3054 + $0x428] sm:$0xff]
    %v3189 = vld [vmem:[%s3054 + $0x430] sm:$0xff]
    %v3190 = vld [vmem:[%s3054 + $0x438] sm:$0xff]
    %v3191 = vld [vmem:[%s3054 + $0x440] sm:$0xff]
    %v3192 = vld [vmem:[%s3054 + $0x448] sm:$0xff]
    %v3193 = vld [vmem:[%s3054 + $0x450] sm:$0xff]
    %v3194 = vld [vmem:[%s3054 + $0x458] sm:$0xff]
    %v3195 = vld [vmem:[%s3054 + $0x460] sm:$0xff]
    %v3196 = vld [vmem:[%s3054 + $0x468] sm:$0xff]
    %v3197 = vld [vmem:[%s3054 + $0x470] sm:$0xff]
    %v3198 = vld [vmem:[%s3054 + $0x478] sm:$0xff]
    %v3199 = vld [vmem:[%s3054 + $0x480] sm:$0xff]
    %v3200 = vld [vmem:[%s3054 + $0x488] sm:$0xff]
    %v3201 = vld [vmem:[%s3054 + $0x490] sm:$0xff]
    %v3202 = vld [vmem:[%s3054 + $0x498] sm:$0xff]
    %v3203 = vld [vmem:[%s3054 + $0x4a0] sm:$0xff]
    %v3204 = vld [vmem:[%s3054 + $0x4a8] sm:$0xff]
    %v3205 = vld [vmem:[%s3054 + $0x4b0] sm:$0xff]
    %v3206 = vld [vmem:[%s3054 + $0x4b8] sm:$0xff]
    %v3207 = vld [vmem:[%s3054 + $0x4c0] sm:$0xff]
    %v3208 = vld [vmem:[%s3054 + $0x4c8] sm:$0xff]
    %v3209 = vld [vmem:[%s3054 + $0x4d0] sm:$0xff]
    %v3210 = vld [vmem:[%s3054 + $0x4d8] sm:$0xff]
    %v3211 = vld [vmem:[%s3054 + $0x4e0] sm:$0xff]
    %v3212 = vld [vmem:[%s3054 + $0x4e8] sm:$0xff]
    %v3213 = vld [vmem:[%s3054 + $0x4f0] sm:$0xff]
    %v3214 = vld [vmem:[%s3054 + $0x4f8] sm:$0xff]
    %v3215 = vld [vmem:[%s3054 + $0x500] sm:$0xff]
    %v3216 = vld [vmem:[%s3054 + $0x508] sm:$0xff]
    %v3217 = vld [vmem:[%s3054 + $0x510] sm:$0xff]
    %v3218 = vld [vmem:[%s3054 + $0x518] sm:$0xff]
    %v3219 = vld [vmem:[%s3054 + $0x520] sm:$0xff]
    %v3220 = vld [vmem:[%s3054 + $0x528] sm:$0xff]
    %v3221 = vld [vmem:[%s3054 + $0x530] sm:$0xff]
    %v3222 = vld [vmem:[%s3054 + $0x538] sm:$0xff]
    %v3223 = vld [vmem:[%s3054 + $0x540] sm:$0xff]
    %v3224 = vld [vmem:[%s3054 + $0x548] sm:$0xff]
    %v3225 = vld [vmem:[%s3054 + $0x550] sm:$0xff]
    %v3226 = vld [vmem:[%s3054 + $0x558] sm:$0xff]
    %v3227 = vld [vmem:[%s3054 + $0x560] sm:$0xff]
    %v3228 = vld [vmem:[%s3054 + $0x568] sm:$0xff]
    %v3229 = vld [vmem:[%s3054 + $0x570] sm:$0xff]
    %v3230 = vld [vmem:[%s3054 + $0x578] sm:$0xff]
    %vm3243 = vcmask 1041408
    %v3244 = vrot.slane %v3042, 6
    %v3245 = vrot.slane %v218, 6
    %v3246 = vsel %vm3243, %v3244, %v3245
    %v3247 = vrot.slane %v3043, 6
    %v3248 = vrot.slane %v219, 6
    %v3249 = vsel %vm3243, %v3247, %v3248
    %v3250 = vrot.slane %v3044, 6
    %v3251 = vrot.slane %v220, 6
    %v3252 = vsel %vm3243, %v3250, %v3251
    %v3253 = vrot.slane %v3045, 6
    %v3254 = vrot.slane %v221, 6
    %v3255 = vsel %vm3243, %v3253, %v3254
    %v3256 = vrot.slane %v3046, 6
    %v3257 = vrot.slane %v222, 6
    %v3258 = vsel %vm3243, %v3256, %v3257
    %v3259 = vrot.slane %v3047, 6
    %v3260 = vrot.slane %v223, 6
    %v3261 = vsel %vm3243, %v3259, %v3260
    %v3262 = vrot.slane %v3048, 6
    %v3263 = vsel %vm3243, %v3245, %v3262
    %v3264 = vrot.slane %v3049, 6
    %v3265 = vsel %vm3243, %v3248, %v3264
    %v3266 = vrot.slane %v3050, 6
    %v3267 = vsel %vm3243, %v3251, %v3266
    %v3268 = vrot.slane %v3051, 6
    %v3269 = vsel %vm3243, %v3254, %v3268
    %v3270 = vrot.slane %v3052, 6
    %v3271 = vsel %vm3243, %v3257, %v3270
    %v3272 = vrot.slane %v3053, 6
    %v3273 = vsel %vm3243, %v3260, %v3272
    %v3284 = vsel %vm84, %v3261, 0
    %v3286 = vsel %vm84, %v3273, 0
    %3288 = vmatprep.subr.mxu0 %v3056
    %3289 = vmatpush1.msra.mxu0 %v3055
    %3290 = vmatprep.subr.mxu0 %v3058
    %3291 = vmatpush1.msra.mxu0 %v3057
    %3292 = vmatprep.subr.mxu0 %v3060
    %3293 = vmatpush1.msra.mxu0 %v3059
    %3294 = vmatprep.subr.mxu0 %v3062
    %3295 = vmatpush1.msra.mxu0 %v3061
    %3296 = vmatprep.subr.mxu0 %v3064
    %3297 = vmatpush1.msra.mxu0 %v3063
    %3298 = vmatprep.subr.mxu0 %v3066
    %3299 = vmatpush1.msra.mxu0 %v3065
    %3300 = vmatprep.subr.mxu0 %v3068
    %3301 = vmatpush1.msra.mxu0 %v3067
    %3302 = vmatprep.subr.mxu0 %v3070
    %3303 = vmatpush1.msra.mxu0 %v3069
    %3304 = vmatprep.subr.mxu0 %v3072
    %3305 = vmatpush1.msra.mxu0 %v3071
    %3306 = vmatprep.subr.mxu0 %v3074
    %3307 = vmatpush1.msra.mxu0 %v3073
    %3308 = vmatprep.subr.mxu0 %v3076
    %3309 = vmatpush1.msra.mxu0 %v3075
    %3310 = vmatprep.subr.mxu0 %v3078
    %3311 = vmatpush1.msra.mxu0 %v3077
    %3312 = vmatprep.subr.mxu0 %v3080
    %3313 = vmatpush1.msra.mxu0 %v3079
    %3314 = vmatprep.subr.mxu0 %v3082
    %3315 = vmatpush1.msra.mxu0 %v3081
    %3316 = vmatprep.subr.mxu0 %v3084
    %3317 = vmatpush1.msra.mxu0 %v3083
    %3318 = vmatprep.subr.mxu0 %v3086
    %3319 = vmatpush1.msra.mxu0 %v3085
    %3320 = vmatprep.subr.mxu0 %v3088
    %3321 = vmatpush1.msra.mxu0 %v3087
    %3322 = vmatprep.subr.mxu0 %v3090
    %3323 = vmatpush1.msra.mxu0 %v3089
    %3324 = vmatprep.subr.mxu0 %v3092
    %3325 = vmatpush1.msra.mxu0 %v3091
    %3326 = vmatprep.subr.mxu0 %v3094
    %3327 = vmatpush1.msra.mxu0 %v3093
    %3328 = vmatprep.subr.mxu0 %v3096
    %3329 = vmatpush1.msra.mxu0 %v3095
    %3330 = vmatprep.subr.mxu0 %v3098
    %3331 = vmatpush1.msra.mxu0 %v3097
    %3332 = vmatprep.subr.mxu0 %v3100
    %3333 = vmatpush1.msra.mxu0 %v3099
    %3334 = vmatprep.subr.mxu0 %v3102
    %3335 = vmatpush1.msra.mxu0 %v3101
    %3336 = vmatprep.subr.mxu0 %v3104
    %3337 = vmatpush1.msra.mxu0 %v3103
    %3338 = vmatprep.subr.mxu0 %v3106
    %3339 = vmatpush1.msra.mxu0 %v3105
    %3340 = vmatprep.subr.mxu0 %v3108
    %3341 = vmatpush1.msra.mxu0 %v3107
    %3342 = vmatprep.subr.mxu0 %v3110
    %3343 = vmatpush1.msra.mxu0 %v3109
    %3344 = vmatprep.subr.mxu0 %v3112
    %3345 = vmatpush1.msra.mxu0 %v3111
    %3346 = vmatprep.subr.mxu0 %v3114
    %3347 = vmatpush1.msra.mxu0 %v3113
    %3348 = vmatprep.subr.mxu0 %v3116
    %3349 = vmatpush1.msra.mxu0 %v3115
    %3350 = vmatprep.subr.mxu0 %v3118
    %3351 = vmatpush1.msra.mxu0 %v3117
    %3352 = vmatprep.mubr.f32.mxu0 %v3249
    %3353 = vmatmul.mubr.f32.gmra.mrb[0].mxu0 %v3246
    %v3354 = vpop.f32.mrb[0].mxu0
    %v3355 = vadd.f32 0.0, %v3354
    %v3356 = vpop.f32.mrb[0].mxu0
    %v3357 = vadd.f32 0.0, %v3356
    %3358 = vmatprep.mubr.f32.mxu0 %v3265
    %3359 = vmatmul.mubr.f32.gmra.mrb[0].mxu0 %v3263
    %v3360 = vpop.f32.mrb[0].mxu0
    %v3361 = vadd.f32 0.0, %v3360
    %v3362 = vpop.f32.mrb[0].mxu0
    %v3363 = vadd.f32 0.0, %v3362
    %3364 = vdwg.mxu0
    %3365 = vmatprep.subr.mxu0 %v3120
    %3366 = vmatpush1.msra.mxu0 %v3119
    %3367 = vmatprep.subr.mxu0 %v3122
    %3368 = vmatpush1.msra.mxu0 %v3121
    %3369 = vmatprep.subr.mxu0 %v3124
    %3370 = vmatpush1.msra.mxu0 %v3123
    %3371 = vmatprep.subr.mxu0 %v3126
    %3372 = vmatpush1.msra.mxu0 %v3125
    %3373 = vmatprep.subr.mxu0 %v3128
    %3374 = vmatpush1.msra.mxu0 %v3127
    %3375 = vmatprep.subr.mxu0 %v3130
    %3376 = vmatpush1.msra.mxu0 %v3129
    %3377 = vmatprep.subr.mxu0 %v3132
    %3378 = vmatpush1.msra.mxu0 %v3131
    %3379 = vmatprep.subr.mxu0 %v3134
    %3380 = vmatpush1.msra.mxu0 %v3133
    %3381 = vmatprep.subr.mxu0 %v3136
    %3382 = vmatpush1.msra.mxu0 %v3135
    %3383 = vmatprep.subr.mxu0 %v3138
    %3384 = vmatpush1.msra.mxu0 %v3137
    %3385 = vmatprep.subr.mxu0 %v3140
    %3386 = vmatpush1.msra.mxu0 %v3139
    %3387 = vmatprep.subr.mxu0 %v3142
    %3388 = vmatpush1.msra.mxu0 %v3141
    %3389 = vmatprep.subr.mxu0 %v3144
    %3390 = vmatpush1.msra.mxu0 %v3143
    %3391 = vmatprep.subr.mxu0 %v3146
    %3392 = vmatpush1.msra.mxu0 %v3145
    %3393 = vmatprep.subr.mxu0 %v3148
    %3394 = vmatpush1.msra.mxu0 %v3147
    %3395 = vmatprep.subr.mxu0 %v3150
    %3396 = vmatpush1.msra.mxu0 %v3149
    %3397 = vmatprep.subr.mxu0 %v3152
    %3398 = vmatpush1.msra.mxu0 %v3151
    %3399 = vmatprep.subr.mxu0 %v3154
    %3400 = vmatpush1.msra.mxu0 %v3153
    %3401 = vmatprep.subr.mxu0 %v3156
    %3402 = vmatpush1.msra.mxu0 %v3155
    %3403 = vmatprep.subr.mxu0 %v3158
    %3404 = vmatpush1.msra.mxu0 %v3157
    %3405 = vmatprep.subr.mxu0 %v3160
    %3406 = vmatpush1.msra.mxu0 %v3159
    %3407 = vmatprep.subr.mxu0 %v3162
    %3408 = vmatpush1.msra.mxu0 %v3161
    %3409 = vmatprep.subr.mxu0 %v3164
    %3410 = vmatpush1.msra.mxu0 %v3163
    %3411 = vmatprep.subr.mxu0 %v3166
    %3412 = vmatpush1.msra.mxu0 %v3165
    %3413 = vmatprep.subr.mxu0 %v3168
    %3414 = vmatpush1.msra.mxu0 %v3167
    %3415 = vmatprep.subr.mxu0 %v3170
    %3416 = vmatpush1.msra.mxu0 %v3169
    %3417 = vmatprep.subr.mxu0 %v3172
    %3418 = vmatpush1.msra.mxu0 %v3171
    %3419 = vmatprep.subr.mxu0 %v3174
    %3420 = vmatpush1.msra.mxu0 %v3173
    %3421 = vmatprep.subr.mxu0 %v3176
    %3422 = vmatpush1.msra.mxu0 %v3175
    %3423 = vmatprep.subr.mxu0 %v3178
    %3424 = vmatpush1.msra.mxu0 %v3177
    %3425 = vmatprep.subr.mxu0 %v3180
    %3426 = vmatpush1.msra.mxu0 %v3179
    %3427 = vmatprep.subr.mxu0 %v3182
    %3428 = vmatpush1.msra.mxu0 %v3181
    %3429 = vmatprep.mubr.f32.mxu0 %v3255
    %3430 = vmatmul.mubr.f32.gmra.mrb[0].mxu0 %v3252
    %v3431 = vpop.f32.mrb[0].mxu0
    %v3432 = vadd.f32 %v3355, %v3431
    %v3433 = vpop.f32.mrb[0].mxu0
    %v3434 = vadd.f32 %v3357, %v3433
    %3435 = vmatprep.mubr.f32.mxu0 %v3269
    %3436 = vmatmul.mubr.f32.gmra.mrb[0].mxu0 %v3267
    %v3437 = vpop.f32.mrb[0].mxu0
    %v3438 = vadd.f32 %v3361, %v3437
    %v3439 = vpop.f32.mrb[0].mxu0
    %v3440 = vadd.f32 %v3363, %v3439
    %3441 = vdwg.mxu0
    %3442 = vmatprep.subr.mxu0 %v3184
    %3443 = vmatpush1.msra.mxu0 %v3183
    %3444 = vmatprep.subr.mxu0 %v3186
    %3445 = vmatpush1.msra.mxu0 %v3185
    %3446 = vmatprep.subr.mxu0 %v3188
    %3447 = vmatpush1.msra.mxu0 %v3187
    %3448 = vmatprep.subr.mxu0 %v3190
    %3449 = vmatpush1.msra.mxu0 %v3189
    %3450 = vmatprep.subr.mxu0 %v3192
    %3451 = vmatpush1.msra.mxu0 %v3191
    %3452 = vmatprep.subr.mxu0 %v3194
    %3453 = vmatpush1.msra.mxu0 %v3193
    %3454 = vmatprep.subr.mxu0 %v3196
    %3455 = vmatpush1.msra.mxu0 %v3195
    %3456 = vmatprep.subr.mxu0 %v3198
    %3457 = vmatpush1.msra.mxu0 %v3197
    %3458 = vmatprep.subr.mxu0 %v3200
    %3459 = vmatpush1.msra.mxu0 %v3199
    %3460 = vmatprep.subr.mxu0 %v3202
    %3461 = vmatpush1.msra.mxu0 %v3201
    %3462 = vmatprep.subr.mxu0 %v3204
    %3463 = vmatpush1.msra.mxu0 %v3203
    %3464 = vmatprep.subr.mxu0 %v3206
    %3465 = vmatpush1.msra.mxu0 %v3205
    %3466 = vmatprep.subr.mxu0 %v3208
    %3467 = vmatpush1.msra.mxu0 %v3207
    %3468 = vmatprep.subr.mxu0 %v3210
    %3469 = vmatpush1.msra.mxu0 %v3209
    %3470 = vmatprep.subr.mxu0 %v3212
    %3471 = vmatpush1.msra.mxu0 %v3211
    %3472 = vmatprep.subr.mxu0 %v3214
    %3473 = vmatpush1.msra.mxu0 %v3213
    %3474 = vmatprep.subr.mxu0 %v3216
    %3475 = vmatpush1.msra.mxu0 %v3215
    %3476 = vmatprep.subr.mxu0 %v3218
    %3477 = vmatpush1.msra.mxu0 %v3217
    %3478 = vmatprep.subr.mxu0 %v3220
    %3479 = vmatpush1.msra.mxu0 %v3219
    %3480 = vmatprep.subr.mxu0 %v3222
    %3481 = vmatpush1.msra.mxu0 %v3221
    %3482 = vmatprep.subr.mxu0 %v3224
    %3483 = vmatpush1.msra.mxu0 %v3223
    %3484 = vmatprep.subr.mxu0 %v3226
    %3485 = vmatpush1.msra.mxu0 %v3225
    %3486 = vmatprep.subr.mxu0 %v3228
    %3487 = vmatpush1.msra.mxu0 %v3227
    %3488 = vmatprep.subr.mxu0 %v3230
    %3489 = vmatpush1.msra.mxu0 %v3229
    %3490 = vmatprep.subr.mxu0 0.0
    %3491 = vmatpush1.msra.mxu0 0.0
    %3492 = vmatprep.subr.mxu0 0.0
    %3493 = vmatpush1.msra.mxu0 0.0
    %3494 = vmatprep.subr.mxu0 0.0
    %3495 = vmatpush1.msra.mxu0 0.0
    %3496 = vmatprep.subr.mxu0 0.0
    %3497 = vmatpush1.msra.mxu0 0.0
    %3498 = vmatprep.subr.mxu0 0.0
    %3499 = vmatpush1.msra.mxu0 0.0
    %3500 = vmatprep.subr.mxu0 0.0
    %3501 = vmatpush1.msra.mxu0 0.0
    %3502 = vmatprep.subr.mxu0 0.0
    %3503 = vmatpush1.msra.mxu0 0.0
    %3504 = vmatprep.subr.mxu0 0.0
    %3505 = vmatpush1.msra.mxu0 0.0
    %3506 = vmatprep.mubr.f32.mxu0 %v3284
    %3507 = vmatmul.mubr.f32.gmra.mrb[0].mxu0 %v3258
    %v3508 = vpop.f32.mrb[0].mxu0
    %v3509 = vadd.f32 %v3432, %v3508
    %v3510 = vpop.f32.mrb[0].mxu0
    %v3511 = vadd.f32 %v3434, %v3510
    %3512 = vmatprep.mubr.f32.mxu0 %v3286
    %3513 = vmatmul.mubr.f32.gmra.mrb[0].mxu0 %v3271
    %v3514 = vpop.f32.mrb[0].mxu0
    %v3515 = vadd.f32 %v3438, %v3514
    %v3516 = vpop.f32.mrb[0].mxu0
    %v3517 = vadd.f32 %v3440, %v3516
    %3518 = vdwg.mxu0
    %v3519 = vadd.f32 %v3038, %v3509
    %v3520 = vadd.f32 %v3039, %v3511
    %v3521 = vadd.f32 %v3040, %v3515
    %v3522 = vadd.f32 %v3041, %v3517
    %v3524 = vlaneseq
    %v3525 = vshrl.u32 %v3524, 7
    %v3526 = vsub.s32 0, %v3525
    %v3527 = vrot.slane %v110, %v3526
    %v3528 = vlaneseq
    %v3529 = vshrl.u32 %v3528, 7
    %v3530 = vsub.s32 4, %v3529
    %v3531 = vrot.slane %v110, %v3530
    %v3534 = vlaneseq
    %v3535 = vshrl.u32 %v3534, 7
    %v3536 = vsub.s32 0, %v3535
    %v3537 = vrot.slane %v3527, %v3536
    %v3538 = vlaneseq
    %v3539 = vshrl.u32 %v3538, 7
    %v3540 = vsub.s32 0, %v3539
    %v3541 = vrot.slane %v3531, %v3540
    %v3542 = vadd.f32 %v3519, %v3537
    %v3543 = vadd.f32 %v3520, %v3541
    %v3544 = vadd.f32 %v3521, %v3537
    %v3545 = vadd.f32 %v3522, %v3541
    %v3546 = vmax.f32 %v3542, 0.0
    %v3547 = vmax.f32 %v3543, 0.0
    %v3548 = vmax.f32 %v3544, 0.0
    %v3549 = vmax.f32 %v3545, 0.0
    %v3554 = vrot.slane %v3546, 5
    %v3555 = vrot.slane %v3547, 5
    %v3556 = vrot.slane %v3548, 5
    %v3557 = vsel %vm131, %v3554, %v3556
    %v3558 = vrot.slane %v3549, 5
    %v3559 = vsel %vm131, %v3555, %v3558
    %3560 = vrot.lane.b32.xlu0 %v3554, 48
    %v3561 = vpop.permute.xlu0 %3560
    %3562 = vrot.lane.b32.xlu0 %v3555, 48
    %v3563 = vpop.permute.xlu0 %3562
    %3564 = vrot.lane.b32.xlu0 %v3557, 48
    %v3565 = vpop.permute.xlu0 %3564
    %3566 = vrot.lane.b32.xlu0 %v3559, 48
    %v3567 = vpop.permute.xlu0 %3566
    %3568 = vrot.lane.b32.xlu0 %v3556, 48
    %v3569 = vpop.permute.xlu0 %3568
    %3570 = vrot.lane.b32.xlu0 %v3558, 48
    %v3571 = vpop.permute.xlu0 %3570
    %vm3572 = vcmask 392192
    %v3573 = vsel %vm3572, %v3561, %v3563
    %v3574 = vsel %vm3572, %v3565, %v3567
    %v3575 = vsel %vm3572, %v3569, %v3571
    %vm3585 = vcmask 1047939
    %3586 = vst.msk [vmem:[#allocation3] sm:$0xf8] %vm3585, %v3561
    %3587 = vst [vmem:[#allocation3 + $0x8] sm:$0xf8] %v3573
    %vm3588 = vcmask 392195
    %3589 = vst.msk [vmem:[#allocation3 + $0x10] sm:$0xf8] %vm3588, %v3563
    %vm3590 = vcmask 1047936
    %3591 = vst.msk [vmem:[#allocation3 + $0x18] sm:$0xff] %vm3590, %v3565
    %3592 = vst [vmem:[#allocation3 + $0x20] sm:$0xff] %v3574
    %3593 = vst.msk [vmem:[#allocation3 + $0x28] sm:$0xff] %vm3572, %v3567
    %vm3594 = vcmask 1042816
    %3595 = vst.msk [vmem:[#allocation3 + $0x30] sm:$0x7] %vm3594, %v3569
    %3596 = vst [vmem:[#allocation3 + $0x38] sm:$0x7] %v3575
    %vm3597 = vcmask 387072
    %3598 = vst.msk [vmem:[#allocation3 + $0x40] sm:$0x7] %vm3597, %v3571
    %v3599 = vld [vmem:[#allocation3] sm:$0xff]
    %v3600 = vld [vmem:[#allocation3 + $0x8] sm:$0xff]
    %v3601 = vld [vmem:[#allocation3 + $0x10] sm:$0xff]
    %v3602 = vld [vmem:[#allocation3 + $0x18] sm:$0xff]
    %v3603 = vld [vmem:[#allocation3 + $0x20] sm:$0xff]
    %v3604 = vld [vmem:[#allocation3 + $0x28] sm:$0xff]
    %v3605 = vld [vmem:[#allocation6] sm:$0xff]
    %v3606 = vld [vmem:[#allocation6 + $0x8] sm:$0xff]
    %v3607 = vld [vmem:[#allocation6 + $0x10] sm:$0xff]
    %v3608 = vld [vmem:[#allocation6 + $0x18] sm:$0xff]
    %v3609 = vld [vmem:[#allocation6 + $0x20] sm:$0xff]
    %v3610 = vld [vmem:[#allocation6 + $0x28] sm:$0xff]
    %v3611 = vld [vmem:[#allocation6 + $0x30] sm:$0xff]
    %v3612 = vld [vmem:[#allocation6 + $0x38] sm:$0xff]
    %v3613 = vld [vmem:[#allocation6 + $0x40] sm:$0xff]
    %v3614 = vld [vmem:[#allocation6 + $0x48] sm:$0xff]
    %v3615 = vld [vmem:[#allocation6 + $0x50] sm:$0xff]
    %v3616 = vld [vmem:[#allocation6 + $0x58] sm:$0xff]
    %v3617 = vld [vmem:[#allocation6 + $0x60] sm:$0xff]
    %v3618 = vld [vmem:[#allocation6 + $0x68] sm:$0xff]
    %v3619 = vld [vmem:[#allocation6 + $0x70] sm:$0xff]
    %v3620 = vld [vmem:[#allocation6 + $0x78] sm:$0xff]
    %v3621 = vld [vmem:[#allocation6 + $0x80] sm:$0xff]
    %v3622 = vld [vmem:[#allocation6 + $0x88] sm:$0xff]
    %v3623 = vld [vmem:[#allocation6 + $0x90] sm:$0xff]
    %v3624 = vld [vmem:[#allocation6 + $0x98] sm:$0xff]
    %v3625 = vld [vmem:[#allocation6 + $0xa0] sm:$0xff]
    %v3626 = vld [vmem:[#allocation6 + $0xa8] sm:$0xff]
    %v3627 = vld [vmem:[#allocation6 + $0xb0] sm:$0xff]
    %v3628 = vld [vmem:[#allocation6 + $0xb8] sm:$0xff]
    %v3629 = vld [vmem:[#allocation6 + $0xc0] sm:$0xff]
    %v3630 = vld [vmem:[#allocation6 + $0xc8] sm:$0xff]
    %v3631 = vld [vmem:[#allocation6 + $0xd0] sm:$0xff]
    %v3632 = vld [vmem:[#allocation6 + $0xd8] sm:$0xff]
    %v3633 = vld [vmem:[#allocation6 + $0xe0] sm:$0xff]
    %v3634 = vld [vmem:[#allocation6 + $0xe8] sm:$0xff]
    %v3635 = vld [vmem:[#allocation6 + $0xf0] sm:$0xff]
    %v3636 = vld [vmem:[#allocation6 + $0xf8] sm:$0xff]
    %v3637 = vld [vmem:[#allocation6 + $0x100] sm:$0xff]
    %v3638 = vld [vmem:[#allocation6 + $0x108] sm:$0xff]
    %v3639 = vld [vmem:[#allocation6 + $0x110] sm:$0xff]
    %v3640 = vld [vmem:[#allocation6 + $0x118] sm:$0xff]
    %v3641 = vld [vmem:[#allocation6 + $0x120] sm:$0xff]
    %v3642 = vld [vmem:[#allocation6 + $0x128] sm:$0xff]
    %v3643 = vld [vmem:[#allocation6 + $0x130] sm:$0xff]
    %v3644 = vld [vmem:[#allocation6 + $0x138] sm:$0xff]
    %v3645 = vld [vmem:[#allocation6 + $0x140] sm:$0xff]
    %v3646 = vld [vmem:[#allocation6 + $0x148] sm:$0xff]
    %v3647 = vld [vmem:[#allocation6 + $0x150] sm:$0xff]
    %v3648 = vld [vmem:[#allocation6 + $0x158] sm:$0xff]
    %v3649 = vld [vmem:[#allocation6 + $0x160] sm:$0xff]
    %v3650 = vld [vmem:[#allocation6 + $0x168] sm:$0xff]
    %v3651 = vld [vmem:[#allocation6 + $0x170] sm:$0xff]
    %v3652 = vld [vmem:[#allocation6 + $0x178] sm:$0xff]
    %v3653 = vld [vmem:[#allocation6 + $0x180] sm:$0xff]
    %v3654 = vld [vmem:[#allocation6 + $0x188] sm:$0xff]
    %v3655 = vld [vmem:[#allocation6 + $0x190] sm:$0xff]
    %v3656 = vld [vmem:[#allocation6 + $0x198] sm:$0xff]
    %v3657 = vld [vmem:[#allocation6 + $0x1a0] sm:$0xff]
    %v3658 = vld [vmem:[#allocation6 + $0x1a8] sm:$0xff]
    %v3659 = vld [vmem:[#allocation6 + $0x1b0] sm:$0xff]
    %v3660 = vld [vmem:[#allocation6 + $0x1b8] sm:$0xff]
    %v3661 = vld [vmem:[#allocation6 + $0x1c0] sm:$0xff]
    %v3662 = vld [vmem:[#allocation6 + $0x1c8] sm:$0xff]
    %v3663 = vld [vmem:[#allocation6 + $0x1d0] sm:$0xff]
    %v3664 = vld [vmem:[#allocation6 + $0x1d8] sm:$0xff]
    %v3665 = vld [vmem:[#allocation6 + $0x1e0] sm:$0xff]
    %v3666 = vld [vmem:[#allocation6 + $0x1e8] sm:$0xff]
    %v3667 = vld [vmem:[#allocation6 + $0x1f0] sm:$0xff]
    %v3668 = vld [vmem:[#allocation6 + $0x1f8] sm:$0xff]
    %v3669 = vld [vmem:[#allocation6 + $0x200] sm:$0xff]
    %v3670 = vld [vmem:[#allocation6 + $0x208] sm:$0xff]
    %v3671 = vld [vmem:[#allocation6 + $0x210] sm:$0xff]
    %v3672 = vld [vmem:[#allocation6 + $0x218] sm:$0xff]
    %v3673 = vld [vmem:[#allocation6 + $0x220] sm:$0xff]
    %v3674 = vld [vmem:[#allocation6 + $0x228] sm:$0xff]
    %v3675 = vld [vmem:[#allocation6 + $0x230] sm:$0xff]
    %v3676 = vld [vmem:[#allocation6 + $0x238] sm:$0xff]
    %v3677 = vld [vmem:[#allocation6 + $0x240] sm:$0xff]
    %v3678 = vld [vmem:[#allocation6 + $0x248] sm:$0xff]
    %v3679 = vld [vmem:[#allocation6 + $0x250] sm:$0xff]
    %v3680 = vld [vmem:[#allocation6 + $0x258] sm:$0xff]
    %v3681 = vld [vmem:[#allocation6 + $0x260] sm:$0xff]
    %v3682 = vld [vmem:[#allocation6 + $0x268] sm:$0xff]
    %v3683 = vld [vmem:[#allocation6 + $0x270] sm:$0xff]
    %v3684 = vld [vmem:[#allocation6 + $0x278] sm:$0xff]
    %v3685 = vld [vmem:[#allocation6 + $0x280] sm:$0xff]
    %v3686 = vld [vmem:[#allocation6 + $0x288] sm:$0xff]
    %v3687 = vld [vmem:[#allocation6 + $0x290] sm:$0xff]
    %v3688 = vld [vmem:[#allocation6 + $0x298] sm:$0xff]
    %v3689 = vld [vmem:[#allocation6 + $0x2a0] sm:$0xff]
    %v3690 = vld [vmem:[#allocation6 + $0x2a8] sm:$0xff]
    %v3691 = vld [vmem:[#allocation6 + $0x2b0] sm:$0xff]
    %v3692 = vld [vmem:[#allocation6 + $0x2b8] sm:$0xff]
    %v3693 = vld [vmem:[#allocation3] sm:$0xfe]
    %v3694 = vld [vmem:[#allocation3 + $0x8] sm:$0xfe]
    %v3695 = vld [vmem:[#allocation3 + $0x10] sm:$0xfe]
    %v3696 = vld [vmem:[#allocation3 + $0x30] sm:$0x1]
    %v3697 = vld [vmem:[#allocation3 + $0x38] sm:$0x1]
    %v3698 = vld [vmem:[#allocation3 + $0x40] sm:$0x1]
    %s3699 = scalar_lea.vmem [#allocation6], 704
    %v3700 = vld [vmem:[%s3699] sm:$0xff]
    %v3701 = vld [vmem:[%s3699 + $0x8] sm:$0xff]
    %v3702 = vld [vmem:[%s3699 + $0x10] sm:$0xff]
    %v3703 = vld [vmem:[%s3699 + $0x18] sm:$0xff]
    %v3704 = vld [vmem:[%s3699 + $0x20] sm:$0xff]
    %v3705 = vld [vmem:[%s3699 + $0x28] sm:$0xff]
    %v3706 = vld [vmem:[%s3699 + $0x30] sm:$0xff]
    %v3707 = vld [vmem:[%s3699 + $0x38] sm:$0xff]
    %v3708 = vld [vmem:[%s3699 + $0x40] sm:$0xff]
    %v3709 = vld [vmem:[%s3699 + $0x48] sm:$0xff]
    %v3710 = vld [vmem:[%s3699 + $0x50] sm:$0xff]
    %v3711 = vld [vmem:[%s3699 + $0x58] sm:$0xff]
    %v3712 = vld [vmem:[%s3699 + $0x60] sm:$0xff]
    %v3713 = vld [vmem:[%s3699 + $0x68] sm:$0xff]
    %v3714 = vld [vmem:[%s3699 + $0x70] sm:$0xff]
    %v3715 = vld [vmem:[%s3699 + $0x78] sm:$0xff]
    %v3716 = vld [vmem:[%s3699 + $0x80] sm:$0xff]
    %v3717 = vld [vmem:[%s3699 + $0x88] sm:$0xff]
    %v3718 = vld [vmem:[%s3699 + $0x90] sm:$0xff]
    %v3719 = vld [vmem:[%s3699 + $0x98] sm:$0xff]
    %v3720 = vld [vmem:[%s3699 + $0xa0] sm:$0xff]
    %v3721 = vld [vmem:[%s3699 + $0xa8] sm:$0xff]
    %v3722 = vld [vmem:[%s3699 + $0xb0] sm:$0xff]
    %v3723 = vld [vmem:[%s3699 + $0xb8] sm:$0xff]
    %v3724 = vld [vmem:[%s3699 + $0xc0] sm:$0xff]
    %v3725 = vld [vmem:[%s3699 + $0xc8] sm:$0xff]
    %v3726 = vld [vmem:[%s3699 + $0xd0] sm:$0xff]
    %v3727 = vld [vmem:[%s3699 + $0xd8] sm:$0xff]
    %v3728 = vld [vmem:[%s3699 + $0xe0] sm:$0xff]
    %v3729 = vld [vmem:[%s3699 + $0xe8] sm:$0xff]
    %v3730 = vld [vmem:[%s3699 + $0xf0] sm:$0xff]
    %v3731 = vld [vmem:[%s3699 + $0xf8] sm:$0xff]
    %v3732 = vld [vmem:[%s3699 + $0x100] sm:$0xff]
    %v3733 = vld [vmem:[%s3699 + $0x108] sm:$0xff]
    %v3734 = vld [vmem:[%s3699 + $0x110] sm:$0xff]
    %v3735 = vld [vmem:[%s3699 + $0x118] sm:$0xff]
    %v3736 = vld [vmem:[%s3699 + $0x120] sm:$0xff]
    %v3737 = vld [vmem:[%s3699 + $0x128] sm:$0xff]
    %v3738 = vld [vmem:[%s3699 + $0x130] sm:$0xff]
    %v3739 = vld [vmem:[%s3699 + $0x138] sm:$0xff]
    %v3740 = vld [vmem:[%s3699 + $0x140] sm:$0xff]
    %v3741 = vld [vmem:[%s3699 + $0x148] sm:$0xff]
    %v3742 = vld [vmem:[%s3699 + $0x150] sm:$0xff]
    %v3743 = vld [vmem:[%s3699 + $0x158] sm:$0xff]
    %v3744 = vld [vmem:[%s3699 + $0x160] sm:$0xff]
    %v3745 = vld [vmem:[%s3699 + $0x168] sm:$0xff]
    %v3746 = vld [vmem:[%s3699 + $0x170] sm:$0xff]
    %v3747 = vld [vmem:[%s3699 + $0x178] sm:$0xff]
    %v3748 = vld [vmem:[%s3699 + $0x180] sm:$0xff]
    %v3749 = vld [vmem:[%s3699 + $0x188] sm:$0xff]
    %v3750 = vld [vmem:[%s3699 + $0x190] sm:$0xff]
    %v3751 = vld [vmem:[%s3699 + $0x198] sm:$0xff]
    %v3752 = vld [vmem:[%s3699 + $0x1a0] sm:$0xff]
    %v3753 = vld [vmem:[%s3699 + $0x1a8] sm:$0xff]
    %v3754 = vld [vmem:[%s3699 + $0x1b0] sm:$0xff]
    %v3755 = vld [vmem:[%s3699 + $0x1b8] sm:$0xff]
    %v3756 = vld [vmem:[%s3699 + $0x1c0] sm:$0xff]
    %v3757 = vld [vmem:[%s3699 + $0x1c8] sm:$0xff]
    %v3758 = vld [vmem:[%s3699 + $0x1d0] sm:$0xff]
    %v3759 = vld [vmem:[%s3699 + $0x1d8] sm:$0xff]
    %v3760 = vld [vmem:[%s3699 + $0x1e0] sm:$0xff]
    %v3761 = vld [vmem:[%s3699 + $0x1e8] sm:$0xff]
    %v3762 = vld [vmem:[%s3699 + $0x1f0] sm:$0xff]
    %v3763 = vld [vmem:[%s3699 + $0x1f8] sm:$0xff]
    %v3764 = vld [vmem:[%s3699 + $0x200] sm:$0xff]
    %v3765 = vld [vmem:[%s3699 + $0x208] sm:$0xff]
    %v3766 = vld [vmem:[%s3699 + $0x210] sm:$0xff]
    %v3767 = vld [vmem:[%s3699 + $0x218] sm:$0xff]
    %v3768 = vld [vmem:[%s3699 + $0x220] sm:$0xff]
    %v3769 = vld [vmem:[%s3699 + $0x228] sm:$0xff]
    %v3770 = vld [vmem:[%s3699 + $0x230] sm:$0xff]
    %v3771 = vld [vmem:[%s3699 + $0x238] sm:$0xff]
    %v3772 = vld [vmem:[%s3699 + $0x240] sm:$0xff]
    %v3773 = vld [vmem:[%s3699 + $0x248] sm:$0xff]
    %v3774 = vld [vmem:[%s3699 + $0x250] sm:$0xff]
    %v3775 = vld [vmem:[%s3699 + $0x258] sm:$0xff]
    %v3776 = vld [vmem:[%s3699 + $0x260] sm:$0xff]
    %v3777 = vld [vmem:[%s3699 + $0x268] sm:$0xff]
    %v3778 = vld [vmem:[%s3699 + $0x270] sm:$0xff]
    %v3779 = vld [vmem:[%s3699 + $0x278] sm:$0xff]
    %v3780 = vld [vmem:[%s3699 + $0x280] sm:$0xff]
    %v3781 = vld [vmem:[%s3699 + $0x288] sm:$0xff]
    %v3782 = vld [vmem:[%s3699 + $0x290] sm:$0xff]
    %v3783 = vld [vmem:[%s3699 + $0x298] sm:$0xff]
    %v3784 = vld [vmem:[%s3699 + $0x2a0] sm:$0xff]
    %v3785 = vld [vmem:[%s3699 + $0x2a8] sm:$0xff]
    %v3786 = vld [vmem:[%s3699 + $0x2b0] sm:$0xff]
    %v3787 = vld [vmem:[%s3699 + $0x2b8] sm:$0xff]
    %v3797 = vrot.slane %v3693, 1
    %v3798 = vrot.slane %v3602, 1
    %v3799 = vsel %vm607, %v3797, %v3798
    %v3800 = vrot.slane %v3694, 1
    %v3801 = vrot.slane %v3603, 1
    %v3802 = vsel %vm607, %v3800, %v3801
    %v3803 = vrot.slane %v3695, 1
    %v3804 = vrot.slane %v3604, 1
    %v3805 = vsel %vm607, %v3803, %v3804
    %v3806 = vrot.slane %v3696, 1
    %v3807 = vsel %vm607, %v3798, %v3806
    %v3808 = vrot.slane %v3697, 1
    %v3809 = vsel %vm607, %v3801, %v3808
    %v3810 = vrot.slane %v3698, 1
    %v3811 = vsel %vm607, %v3804, %v3810
    %v3816 = vsel %vm101, %v3805, 0
    %v3818 = vsel %vm101, %v3811, 0
    %3820 = vmatprep.subr.mxu0 %v3701
    %3821 = vmatpush1.msra.mxu0 %v3700
    %3822 = vmatprep.subr.mxu0 %v3703
    %3823 = vmatpush1.msra.mxu0 %v3702
    %3824 = vmatprep.subr.mxu0 %v3705
    %3825 = vmatpush1.msra.mxu0 %v3704
    %3826 = vmatprep.subr.mxu0 %v3707
    %3827 = vmatpush1.msra.mxu0 %v3706
    %3828 = vmatprep.subr.mxu0 %v3709
    %3829 = vmatpush1.msra.mxu0 %v3708
    %3830 = vmatprep.subr.mxu0 %v3711
    %3831 = vmatpush1.msra.mxu0 %v3710
    %3832 = vmatprep.subr.mxu0 %v3713
    %3833 = vmatpush1.msra.mxu0 %v3712
    %3834 = vmatprep.subr.mxu0 %v3715
    %3835 = vmatpush1.msra.mxu0 %v3714
    %3836 = vmatprep.subr.mxu0 %v3717
    %3837 = vmatpush1.msra.mxu0 %v3716
    %3838 = vmatprep.subr.mxu0 %v3719
    %3839 = vmatpush1.msra.mxu0 %v3718
    %3840 = vmatprep.subr.mxu0 %v3721
    %3841 = vmatpush1.msra.mxu0 %v3720
    %3842 = vmatprep.subr.mxu0 %v3723
    %3843 = vmatpush1.msra.mxu0 %v3722
    %3844 = vmatprep.subr.mxu0 %v3725
    %3845 = vmatpush1.msra.mxu0 %v3724
    %3846 = vmatprep.subr.mxu0 %v3727
    %3847 = vmatpush1.msra.mxu0 %v3726
    %3848 = vmatprep.subr.mxu0 %v3729
    %3849 = vmatpush1.msra.mxu0 %v3728
    %3850 = vmatprep.subr.mxu0 %v3731
    %3851 = vmatpush1.msra.mxu0 %v3730
    %3852 = vmatprep.subr.mxu0 %v3733
    %3853 = vmatpush1.msra.mxu0 %v3732
    %3854 = vmatprep.subr.mxu0 %v3735
    %3855 = vmatpush1.msra.mxu0 %v3734
    %3856 = vmatprep.subr.mxu0 %v3737
    %3857 = vmatpush1.msra.mxu0 %v3736
    %3858 = vmatprep.subr.mxu0 %v3739
    %3859 = vmatpush1.msra.mxu0 %v3738
    %3860 = vmatprep.subr.mxu0 %v3741
    %3861 = vmatpush1.msra.mxu0 %v3740
    %3862 = vmatprep.subr.mxu0 %v3743
    %3863 = vmatpush1.msra.mxu0 %v3742
    %3864 = vmatprep.subr.mxu0 %v3745
    %3865 = vmatpush1.msra.mxu0 %v3744
    %3866 = vmatprep.subr.mxu0 %v3747
    %3867 = vmatpush1.msra.mxu0 %v3746
    %3868 = vmatprep.subr.mxu0 %v3749
    %3869 = vmatpush1.msra.mxu0 %v3748
    %3870 = vmatprep.subr.mxu0 %v3751
    %3871 = vmatpush1.msra.mxu0 %v3750
    %3872 = vmatprep.subr.mxu0 %v3753
    %3873 = vmatpush1.msra.mxu0 %v3752
    %3874 = vmatprep.subr.mxu0 %v3755
    %3875 = vmatpush1.msra.mxu0 %v3754
    %3876 = vmatprep.subr.mxu0 %v3757
    %3877 = vmatpush1.msra.mxu0 %v3756
    %3878 = vmatprep.subr.mxu0 %v3759
    %3879 = vmatpush1.msra.mxu0 %v3758
    %3880 = vmatprep.subr.mxu0 %v3761
    %3881 = vmatpush1.msra.mxu0 %v3760
    %3882 = vmatprep.subr.mxu0 %v3763
    %3883 = vmatpush1.msra.mxu0 %v3762
    %3884 = vmatprep.mubr.f32.mxu0 %v3802
    %3885 = vmatmul.mubr.f32.gmra.mrb[0].mxu0 %v3799
    %v3886 = vpop.f32.mrb[0].mxu0
    %v3887 = vadd.f32 0.0, %v3886
    %v3888 = vpop.f32.mrb[0].mxu0
    %v3889 = vadd.f32 0.0, %v3888
    %3890 = vmatprep.mubr.f32.mxu0 %v3809
    %3891 = vmatmul.mubr.f32.gmra.mrb[0].mxu0 %v3807
    %v3892 = vpop.f32.mrb[0].mxu0
    %v3893 = vadd.f32 0.0, %v3892
    %v3894 = vpop.f32.mrb[0].mxu0
    %v3895 = vadd.f32 0.0, %v3894
    %3896 = vdwg.mxu0
    %3897 = vmatprep.subr.mxu0 %v3765
    %3898 = vmatpush1.msra.mxu0 %v3764
    %3899 = vmatprep.subr.mxu0 %v3767
    %3900 = vmatpush1.msra.mxu0 %v3766
    %3901 = vmatprep.subr.mxu0 %v3769
    %3902 = vmatpush1.msra.mxu0 %v3768
    %3903 = vmatprep.subr.mxu0 %v3771
    %3904 = vmatpush1.msra.mxu0 %v3770
    %3905 = vmatprep.subr.mxu0 %v3773
    %3906 = vmatpush1.msra.mxu0 %v3772
    %3907 = vmatprep.subr.mxu0 %v3775
    %3908 = vmatpush1.msra.mxu0 %v3774
    %3909 = vmatprep.subr.mxu0 %v3777
    %3910 = vmatpush1.msra.mxu0 %v3776
    %3911 = vmatprep.subr.mxu0 %v3779
    %3912 = vmatpush1.msra.mxu0 %v3778
    %3913 = vmatprep.subr.mxu0 %v3781
    %3914 = vmatpush1.msra.mxu0 %v3780
    %3915 = vmatprep.subr.mxu0 %v3783
    %3916 = vmatpush1.msra.mxu0 %v3782
    %3917 = vmatprep.subr.mxu0 %v3785
    %3918 = vmatpush1.msra.mxu0 %v3784
    %3919 = vmatprep.subr.mxu0 %v3787
    %3920 = vmatpush1.msra.mxu0 %v3786
    %3921 = vmatprep.subr.mxu0 0.0
    %3922 = vmatpush1.msra.mxu0 0.0
    %3923 = vmatprep.subr.mxu0 0.0
    %3924 = vmatpush1.msra.mxu0 0.0
    %3925 = vmatprep.subr.mxu0 0.0
    %3926 = vmatpush1.msra.mxu0 0.0
    %3927 = vmatprep.subr.mxu0 0.0
    %3928 = vmatpush1.msra.mxu0 0.0
    %3929 = vmatprep.subr.mxu0 0.0
    %3930 = vmatpush1.msra.mxu0 0.0
    %3931 = vmatprep.subr.mxu0 0.0
    %3932 = vmatpush1.msra.mxu0 0.0
    %3933 = vmatprep.subr.mxu0 0.0
    %3934 = vmatpush1.msra.mxu0 0.0
    %3935 = vmatprep.subr.mxu0 0.0
    %3936 = vmatpush1.msra.mxu0 0.0
    %3937 = vmatprep.subr.mxu0 0.0
    %3938 = vmatpush1.msra.mxu0 0.0
    %3939 = vmatprep.subr.mxu0 0.0
    %3940 = vmatpush1.msra.mxu0 0.0
    %3941 = vmatprep.subr.mxu0 0.0
    %3942 = vmatpush1.msra.mxu0 0.0
    %3943 = vmatprep.subr.mxu0 0.0
    %3944 = vmatpush1.msra.mxu0 0.0
    %3945 = vmatprep.subr.mxu0 0.0
    %3946 = vmatpush1.msra.mxu0 0.0
    %3947 = vmatprep.subr.mxu0 0.0
    %3948 = vmatpush1.msra.mxu0 0.0
    %3949 = vmatprep.subr.mxu0 0.0
    %3950 = vmatpush1.msra.mxu0 0.0
    %3951 = vmatprep.subr.mxu0 0.0
    %3952 = vmatpush1.msra.mxu0 0.0
    %3953 = vmatprep.subr.mxu0 0.0
    %3954 = vmatpush1.msra.mxu0 0.0
    %3955 = vmatprep.subr.mxu0 0.0
    %3956 = vmatpush1.msra.mxu0 0.0
    %3957 = vmatprep.subr.mxu0 0.0
    %3958 = vmatpush1.msra.mxu0 0.0
    %3959 = vmatprep.subr.mxu0 0.0
    %3960 = vmatpush1.msra.mxu0 0.0
    %3961 = vmatprep.mubr.f32.mxu0 0.0
    %3962 = vmatmul.mubr.f32.gmra.mrb[0].mxu0 %v3816
    %v3963 = vpop.f32.mrb[0].mxu0
    %v3964 = vadd.f32 %v3887, %v3963
    %v3965 = vpop.f32.mrb[0].mxu0
    %v3966 = vadd.f32 %v3889, %v3965
    %3967 = vmatprep.mubr.f32.mxu0 0.0
    %3968 = vmatmul.mubr.f32.gmra.mrb[0].mxu0 %v3818
    %v3969 = vpop.f32.mrb[0].mxu0
    %v3970 = vadd.f32 %v3893, %v3969
    %v3971 = vpop.f32.mrb[0].mxu0
    %v3972 = vadd.f32 %v3895, %v3971
    %3973 = vdwg.mxu0
    %v3975 = vsel %vm101, %v3601, 0
    %v3977 = vsel %vm101, %v3604, 0
    %3979 = vmatprep.subr.mxu0 %v3606
    %3980 = vmatpush1.msra.mxu0 %v3605
    %3981 = vmatprep.subr.mxu0 %v3608
    %3982 = vmatpush1.msra.mxu0 %v3607
    %3983 = vmatprep.subr.mxu0 %v3610
    %3984 = vmatpush1.msra.mxu0 %v3609
    %3985 = vmatprep.subr.mxu0 %v3612
    %3986 = vmatpush1.msra.mxu0 %v3611
    %3987 = vmatprep.subr.mxu0 %v3614
    %3988 = vmatpush1.msra.mxu0 %v3613
    %3989 = vmatprep.subr.mxu0 %v3616
    %3990 = vmatpush1.msra.mxu0 %v3615
    %3991 = vmatprep.subr.mxu0 %v3618
    %3992 = vmatpush1.msra.mxu0 %v3617
    %3993 = vmatprep.subr.mxu0 %v3620
    %3994 = vmatpush1.msra.mxu0 %v3619
    %3995 = vmatprep.subr.mxu0 %v3622
    %3996 = vmatpush1.msra.mxu0 %v3621
    %3997 = vmatprep.subr.mxu0 %v3624
    %3998 = vmatpush1.msra.mxu0 %v3623
    %3999 = vmatprep.subr.mxu0 %v3626
    %4000 = vmatpush1.msra.mxu0 %v3625
    %4001 = vmatprep.subr.mxu0 %v3628
    %4002 = vmatpush1.msra.mxu0 %v3627
    %4003 = vmatprep.subr.mxu0 %v3630
    %4004 = vmatpush1.msra.mxu0 %v3629
    %4005 = vmatprep.subr.mxu0 %v3632
    %4006 = vmatpush1.msra.mxu0 %v3631
    %4007 = vmatprep.subr.mxu0 %v3634
    %4008 = vmatpush1.msra.mxu0 %v3633
    %4009 = vmatprep.subr.mxu0 %v3636
    %4010 = vmatpush1.msra.mxu0 %v3635
    %4011 = vmatprep.subr.mxu0 %v3638
    %4012 = vmatpush1.msra.mxu0 %v3637
    %4013 = vmatprep.subr.mxu0 %v3640
    %4014 = vmatpush1.msra.mxu0 %v3639
    %4015 = vmatprep.subr.mxu0 %v3642
    %4016 = vmatpush1.msra.mxu0 %v3641
    %4017 = vmatprep.subr.mxu0 %v3644
    %4018 = vmatpush1.msra.mxu0 %v3643
    %4019 = vmatprep.subr.mxu0 %v3646
    %4020 = vmatpush1.msra.mxu0 %v3645
    %4021 = vmatprep.subr.mxu0 %v3648
    %4022 = vmatpush1.msra.mxu0 %v3647
    %4023 = vmatprep.subr.mxu0 %v3650
    %4024 = vmatpush1.msra.mxu0 %v3649
    %4025 = vmatprep.subr.mxu0 %v3652
    %4026 = vmatpush1.msra.mxu0 %v3651
    %4027 = vmatprep.subr.mxu0 %v3654
    %4028 = vmatpush1.msra.mxu0 %v3653
    %4029 = vmatprep.subr.mxu0 %v3656
    %4030 = vmatpush1.msra.mxu0 %v3655
    %4031 = vmatprep.subr.mxu0 %v3658
    %4032 = vmatpush1.msra.mxu0 %v3657
    %4033 = vmatprep.subr.mxu0 %v3660
    %4034 = vmatpush1.msra.mxu0 %v3659
    %4035 = vmatprep.subr.mxu0 %v3662
    %4036 = vmatpush1.msra.mxu0 %v3661
    %4037 = vmatprep.subr.mxu0 %v3664
    %4038 = vmatpush1.msra.mxu0 %v3663
    %4039 = vmatprep.subr.mxu0 %v3666
    %4040 = vmatpush1.msra.mxu0 %v3665
    %4041 = vmatprep.subr.mxu0 %v3668
    %4042 = vmatpush1.msra.mxu0 %v3667
    %4043 = vmatprep.mubr.f32.mxu0 %v3600
    %4044 = vmatmul.mubr.f32.gmra.mrb[0].mxu0 %v3599
    %v4045 = vpop.f32.mrb[0].mxu0
    %v4046 = vadd.f32 %v3964, %v4045
    %v4047 = vpop.f32.mrb[0].mxu0
    %v4048 = vadd.f32 %v3966, %v4047
    %4049 = vmatprep.mubr.f32.mxu0 %v3603
    %4050 = vmatmul.mubr.f32.gmra.mrb[0].mxu0 %v3602
    %v4051 = vpop.f32.mrb[0].mxu0
    %v4052 = vadd.f32 %v3970, %v4051
    %v4053 = vpop.f32.mrb[0].mxu0
    %v4054 = vadd.f32 %v3972, %v4053
    %4055 = vdwg.mxu0
    %4056 = vmatprep.subr.mxu0 %v3670
    %4057 = vmatpush1.msra.mxu0 %v3669
    %4058 = vmatprep.subr.mxu0 %v3672
    %4059 = vmatpush1.msra.mxu0 %v3671
    %4060 = vmatprep.subr.mxu0 %v3674
    %4061 = vmatpush1.msra.mxu0 %v3673
    %4062 = vmatprep.subr.mxu0 %v3676
    %4063 = vmatpush1.msra.mxu0 %v3675
    %4064 = vmatprep.subr.mxu0 %v3678
    %4065 = vmatpush1.msra.mxu0 %v3677
    %4066 = vmatprep.subr.mxu0 %v3680
    %4067 = vmatpush1.msra.mxu0 %v3679
    %4068 = vmatprep.subr.mxu0 %v3682
    %4069 = vmatpush1.msra.mxu0 %v3681
    %4070 = vmatprep.subr.mxu0 %v3684
    %4071 = vmatpush1.msra.mxu0 %v3683
    %4072 = vmatprep.subr.mxu0 %v3686
    %4073 = vmatpush1.msra.mxu0 %v3685
    %4074 = vmatprep.subr.mxu0 %v3688
    %4075 = vmatpush1.msra.mxu0 %v3687
    %4076 = vmatprep.subr.mxu0 %v3690
    %4077 = vmatpush1.msra.mxu0 %v3689
    %4078 = vmatprep.subr.mxu0 %v3692
    %4079 = vmatpush1.msra.mxu0 %v3691
    %4080 = vmatprep.subr.mxu0 0.0
    %4081 = vmatpush1.msra.mxu0 0.0
    %4082 = vmatprep.subr.mxu0 0.0
    %4083 = vmatpush1.msra.mxu0 0.0
    %4084 = vmatprep.subr.mxu0 0.0
    %4085 = vmatpush1.msra.mxu0 0.0
    %4086 = vmatprep.subr.mxu0 0.0
    %4087 = vmatpush1.msra.mxu0 0.0
    %4088 = vmatprep.subr.mxu0 0.0
    %4089 = vmatpush1.msra.mxu0 0.0
    %4090 = vmatprep.subr.mxu0 0.0
    %4091 = vmatpush1.msra.mxu0 0.0
    %4092 = vmatprep.subr.mxu0 0.0
    %4093 = vmatpush1.msra.mxu0 0.0
    %4094 = vmatprep.subr.mxu0 0.0
    %4095 = vmatpush1.msra.mxu0 0.0
    %4096 = vmatprep.subr.mxu0 0.0
    %4097 = vmatpush1.msra.mxu0 0.0
    %4098 = vmatprep.subr.mxu0 0.0
    %4099 = vmatpush1.msra.mxu0 0.0
    %4100 = vmatprep.subr.mxu0 0.0
    %4101 = vmatpush1.msra.mxu0 0.0
    %4102 = vmatprep.subr.mxu0 0.0
    %4103 = vmatpush1.msra.mxu0 0.0
    %4104 = vmatprep.subr.mxu0 0.0
    %4105 = vmatpush1.msra.mxu0 0.0
    %4106 = vmatprep.subr.mxu0 0.0
    %4107 = vmatpush1.msra.mxu0 0.0
    %4108 = vmatprep.subr.mxu0 0.0
    %4109 = vmatpush1.msra.mxu0 0.0
    %4110 = vmatprep.subr.mxu0 0.0
    %4111 = vmatpush1.msra.mxu0 0.0
    %4112 = vmatprep.subr.mxu0 0.0
    %4113 = vmatpush1.msra.mxu0 0.0
    %4114 = vmatprep.subr.mxu0 0.0
    %4115 = vmatpush1.msra.mxu0 0.0
    %4116 = vmatprep.subr.mxu0 0.0
    %4117 = vmatpush1.msra.mxu0 0.0
    %4118 = vmatprep.subr.mxu0 0.0
    %4119 = vmatpush1.msra.mxu0 0.0
    %4120 = vmatprep.mubr.f32.mxu0 0.0
    %4121 = vmatmul.mubr.f32.gmra.mrb[0].mxu0 %v3975
    %v4122 = vpop.f32.mrb[0].mxu0
    %v4123 = vadd.f32 %v4046, %v4122
    %v4124 = vpop.f32.mrb[0].mxu0
    %v4125 = vadd.f32 %v4048, %v4124
    %4126 = vmatprep.mubr.f32.mxu0 0.0
    %4127 = vmatmul.mubr.f32.gmra.mrb[0].mxu0 %v3977
    %v4128 = vpop.f32.mrb[0].mxu0
    %v4129 = vadd.f32 %v4052, %v4128
    %v4130 = vpop.f32.mrb[0].mxu0
    %v4131 = vadd.f32 %v4054, %v4130
    %4132 = vdwg.mxu0
    %v4133 = vld [vmem:[#allocation3] sm:$0xfc]
    %v4134 = vld [vmem:[#allocation3 + $0x8] sm:$0xfc]
    %v4135 = vld [vmem:[#allocation3 + $0x10] sm:$0xfc]
    %v4136 = vld [vmem:[#allocation3 + $0x30] sm:$0x3]
    %v4137 = vld [vmem:[#allocation3 + $0x38] sm:$0x3]
    %v4138 = vld [vmem:[#allocation3 + $0x40] sm:$0x3]
    %s4139 = scalar_lea.vmem [#allocation6], 1408
    %v4140 = vld [vmem:[%s4139] sm:$0xff]
    %v4141 = vld [vmem:[%s4139 + $0x8] sm:$0xff]
    %v4142 = vld [vmem:[%s4139 + $0x10] sm:$0xff]
    %v4143 = vld [vmem:[%s4139 + $0x18] sm:$0xff]
    %v4144 = vld [vmem:[%s4139 + $0x20] sm:$0xff]
    %v4145 = vld [vmem:[%s4139 + $0x28] sm:$0xff]
    %v4146 = vld [vmem:[%s4139 + $0x30] sm:$0xff]
    %v4147 = vld [vmem:[%s4139 + $0x38] sm:$0xff]
    %v4148 = vld [vmem:[%s4139 + $0x40] sm:$0xff]
    %v4149 = vld [vmem:[%s4139 + $0x48] sm:$0xff]
    %v4150 = vld [vmem:[%s4139 + $0x50] sm:$0xff]
    %v4151 = vld [vmem:[%s4139 + $0x58] sm:$0xff]
    %v4152 = vld [vmem:[%s4139 + $0x60] sm:$0xff]
    %v4153 = vld [vmem:[%s4139 + $0x68] sm:$0xff]
    %v4154 = vld [vmem:[%s4139 + $0x70] sm:$0xff]
    %v4155 = vld [vmem:[%s4139 + $0x78] sm:$0xff]
    %v4156 = vld [vmem:[%s4139 + $0x80] sm:$0xff]
    %v4157 = vld [vmem:[%s4139 + $0x88] sm:$0xff]
    %v4158 = vld [vmem:[%s4139 + $0x90] sm:$0xff]
    %v4159 = vld [vmem:[%s4139 + $0x98] sm:$0xff]
    %v4160 = vld [vmem:[%s4139 + $0xa0] sm:$0xff]
    %v4161 = vld [vmem:[%s4139 + $0xa8] sm:$0xff]
    %v4162 = vld [vmem:[%s4139 + $0xb0] sm:$0xff]
    %v4163 = vld [vmem:[%s4139 + $0xb8] sm:$0xff]
    %v4164 = vld [vmem:[%s4139 + $0xc0] sm:$0xff]
    %v4165 = vld [vmem:[%s4139 + $0xc8] sm:$0xff]
    %v4166 = vld [vmem:[%s4139 + $0xd0] sm:$0xff]
    %v4167 = vld [vmem:[%s4139 + $0xd8] sm:$0xff]
    %v4168 = vld [vmem:[%s4139 + $0xe0] sm:$0xff]
    %v4169 = vld [vmem:[%s4139 + $0xe8] sm:$0xff]
    %v4170 = vld [vmem:[%s4139 + $0xf0] sm:$0xff]
    %v4171 = vld [vmem:[%s4139 + $0xf8] sm:$0xff]
    %v4172 = vld [vmem:[%s4139 + $0x100] sm:$0xff]
    %v4173 = vld [vmem:[%s4139 + $0x108] sm:$0xff]
    %v4174 = vld [vmem:[%s4139 + $0x110] sm:$0xff]
    %v4175 = vld [vmem:[%s4139 + $0x118] sm:$0xff]
    %v4176 = vld [vmem:[%s4139 + $0x120] sm:$0xff]
    %v4177 = vld [vmem:[%s4139 + $0x128] sm:$0xff]
    %v4178 = vld [vmem:[%s4139 + $0x130] sm:$0xff]
    %v4179 = vld [vmem:[%s4139 + $0x138] sm:$0xff]
    %v4180 = vld [vmem:[%s4139 + $0x140] sm:$0xff]
    %v4181 = vld [vmem:[%s4139 + $0x148] sm:$0xff]
    %v4182 = vld [vmem:[%s4139 + $0x150] sm:$0xff]
    %v4183 = vld [vmem:[%s4139 + $0x158] sm:$0xff]
    %v4184 = vld [vmem:[%s4139 + $0x160] sm:$0xff]
    %v4185 = vld [vmem:[%s4139 + $0x168] sm:$0xff]
    %v4186 = vld [vmem:[%s4139 + $0x170] sm:$0xff]
    %v4187 = vld [vmem:[%s4139 + $0x178] sm:$0xff]
    %v4188 = vld [vmem:[%s4139 + $0x180] sm:$0xff]
    %v4189 = vld [vmem:[%s4139 + $0x188] sm:$0xff]
    %v4190 = vld [vmem:[%s4139 + $0x190] sm:$0xff]
    %v4191 = vld [vmem:[%s4139 + $0x198] sm:$0xff]
    %v4192 = vld [vmem:[%s4139 + $0x1a0] sm:$0xff]
    %v4193 = vld [vmem:[%s4139 + $0x1a8] sm:$0xff]
    %v4194 = vld [vmem:[%s4139 + $0x1b0] sm:$0xff]
    %v4195 = vld [vmem:[%s4139 + $0x1b8] sm:$0xff]
    %v4196 = vld [vmem:[%s4139 + $0x1c0] sm:$0xff]
    %v4197 = vld [vmem:[%s4139 + $0x1c8] sm:$0xff]
    %v4198 = vld [vmem:[%s4139 + $0x1d0] sm:$0xff]
    %v4199 = vld [vmem:[%s4139 + $0x1d8] sm:$0xff]
    %v4200 = vld [vmem:[%s4139 + $0x1e0] sm:$0xff]
    %v4201 = vld [vmem:[%s4139 + $0x1e8] sm:$0xff]
    %v4202 = vld [vmem:[%s4139 + $0x1f0] sm:$0xff]
    %v4203 = vld [vmem:[%s4139 + $0x1f8] sm:$0xff]
    %v4204 = vld [vmem:[%s4139 + $0x200] sm:$0xff]
    %v4205 = vld [vmem:[%s4139 + $0x208] sm:$0xff]
    %v4206 = vld [vmem:[%s4139 + $0x210] sm:$0xff]
    %v4207 = vld [vmem:[%s4139 + $0x218] sm:$0xff]
    %v4208 = vld [vmem:[%s4139 + $0x220] sm:$0xff]
    %v4209 = vld [vmem:[%s4139 + $0x228] sm:$0xff]
    %v4210 = vld [vmem:[%s4139 + $0x230] sm:$0xff]
    %v4211 = vld [vmem:[%s4139 + $0x238] sm:$0xff]
    %v4212 = vld [vmem:[%s4139 + $0x240] sm:$0xff]
    %v4213 = vld [vmem:[%s4139 + $0x248] sm:$0xff]
    %v4214 = vld [vmem:[%s4139 + $0x250] sm:$0xff]
    %v4215 = vld [vmem:[%s4139 + $0x258] sm:$0xff]
    %v4216 = vld [vmem:[%s4139 + $0x260] sm:$0xff]
    %v4217 = vld [vmem:[%s4139 + $0x268] sm:$0xff]
    %v4218 = vld [vmem:[%s4139 + $0x270] sm:$0xff]
    %v4219 = vld [vmem:[%s4139 + $0x278] sm:$0xff]
    %v4220 = vld [vmem:[%s4139 + $0x280] sm:$0xff]
    %v4221 = vld [vmem:[%s4139 + $0x288] sm:$0xff]
    %v4222 = vld [vmem:[%s4139 + $0x290] sm:$0xff]
    %v4223 = vld [vmem:[%s4139 + $0x298] sm:$0xff]
    %v4224 = vld [vmem:[%s4139 + $0x2a0] sm:$0xff]
    %v4225 = vld [vmem:[%s4139 + $0x2a8] sm:$0xff]
    %v4226 = vld [vmem:[%s4139 + $0x2b0] sm:$0xff]
    %v4227 = vld [vmem:[%s4139 + $0x2b8] sm:$0xff]
    %v4234 = vrot.slane %v4133, 2
    %v4235 = vrot.slane %v3602, 2
    %v4236 = vsel %vm1320, %v4234, %v4235
    %v4237 = vrot.slane %v4134, 2
    %v4238 = vrot.slane %v3603, 2
    %v4239 = vsel %vm1320, %v4237, %v4238
    %v4240 = vrot.slane %v4135, 2
    %v4241 = vrot.slane %v3604, 2
    %v4242 = vsel %vm1320, %v4240, %v4241
    %v4243 = vrot.slane %v4136, 2
    %v4244 = vsel %vm1320, %v4235, %v4243
    %v4245 = vrot.slane %v4137, 2
    %v4246 = vsel %vm1320, %v4238, %v4245
    %v4247 = vrot.slane %v4138, 2
    %v4248 = vsel %vm1320, %v4241, %v4247
    %v4253 = vsel %vm101, %v4242, 0
    %v4255 = vsel %vm101, %v4248, 0
    %4257 = vmatprep.subr.mxu0 %v4141
    %4258 = vmatpush1.msra.mxu0 %v4140
    %4259 = vmatprep.subr.mxu0 %v4143
    %4260 = vmatpush1.msra.mxu0 %v4142
    %4261 = vmatprep.subr.mxu0 %v4145
    %4262 = vmatpush1.msra.mxu0 %v4144
    %4263 = vmatprep.subr.mxu0 %v4147
    %4264 = vmatpush1.msra.mxu0 %v4146
    %4265 = vmatprep.subr.mxu0 %v4149
    %4266 = vmatpush1.msra.mxu0 %v4148
    %4267 = vmatprep.subr.mxu0 %v4151
    %4268 = vmatpush1.msra.mxu0 %v4150
    %4269 = vmatprep.subr.mxu0 %v4153
    %4270 = vmatpush1.msra.mxu0 %v4152
    %4271 = vmatprep.subr.mxu0 %v4155
    %4272 = vmatpush1.msra.mxu0 %v4154
    %4273 = vmatprep.subr.mxu0 %v4157
    %4274 = vmatpush1.msra.mxu0 %v4156
    %4275 = vmatprep.subr.mxu0 %v4159
    %4276 = vmatpush1.msra.mxu0 %v4158
    %4277 = vmatprep.subr.mxu0 %v4161
    %4278 = vmatpush1.msra.mxu0 %v4160
    %4279 = vmatprep.subr.mxu0 %v4163
    %4280 = vmatpush1.msra.mxu0 %v4162
    %4281 = vmatprep.subr.mxu0 %v4165
    %4282 = vmatpush1.msra.mxu0 %v4164
    %4283 = vmatprep.subr.mxu0 %v4167
    %4284 = vmatpush1.msra.mxu0 %v4166
    %4285 = vmatprep.subr.mxu0 %v4169
    %4286 = vmatpush1.msra.mxu0 %v4168
    %4287 = vmatprep.subr.mxu0 %v4171
    %4288 = vmatpush1.msra.mxu0 %v4170
    %4289 = vmatprep.subr.mxu0 %v4173
    %4290 = vmatpush1.msra.mxu0 %v4172
    %4291 = vmatprep.subr.mxu0 %v4175
    %4292 = vmatpush1.msra.mxu0 %v4174
    %4293 = vmatprep.subr.mxu0 %v4177
    %4294 = vmatpush1.msra.mxu0 %v4176
    %4295 = vmatprep.subr.mxu0 %v4179
    %4296 = vmatpush1.msra.mxu0 %v4178
    %4297 = vmatprep.subr.mxu0 %v4181
    %4298 = vmatpush1.msra.mxu0 %v4180
    %4299 = vmatprep.subr.mxu0 %v4183
    %4300 = vmatpush1.msra.mxu0 %v4182
    %4301 = vmatprep.subr.mxu0 %v4185
    %4302 = vmatpush1.msra.mxu0 %v4184
    %4303 = vmatprep.subr.mxu0 %v4187
    %4304 = vmatpush1.msra.mxu0 %v4186
    %4305 = vmatprep.subr.mxu0 %v4189
    %4306 = vmatpush1.msra.mxu0 %v4188
    %4307 = vmatprep.subr.mxu0 %v4191
    %4308 = vmatpush1.msra.mxu0 %v4190
    %4309 = vmatprep.subr.mxu0 %v4193
    %4310 = vmatpush1.msra.mxu0 %v4192
    %4311 = vmatprep.subr.mxu0 %v4195
    %4312 = vmatpush1.msra.mxu0 %v4194
    %4313 = vmatprep.subr.mxu0 %v4197
    %4314 = vmatpush1.msra.mxu0 %v4196
    %4315 = vmatprep.subr.mxu0 %v4199
    %4316 = vmatpush1.msra.mxu0 %v4198
    %4317 = vmatprep.subr.mxu0 %v4201
    %4318 = vmatpush1.msra.mxu0 %v4200
    %4319 = vmatprep.subr.mxu0 %v4203
    %4320 = vmatpush1.msra.mxu0 %v4202
    %4321 = vmatprep.mubr.f32.mxu0 %v4239
    %4322 = vmatmul.mubr.f32.gmra.mrb[0].mxu0 %v4236
    %v4323 = vpop.f32.mrb[0].mxu0
    %v4324 = vadd.f32 0.0, %v4323
    %v4325 = vpop.f32.mrb[0].mxu0
    %v4326 = vadd.f32 0.0, %v4325
    %4327 = vmatprep.mubr.f32.mxu0 %v4246
    %4328 = vmatmul.mubr.f32.gmra.mrb[0].mxu0 %v4244
    %v4329 = vpop.f32.mrb[0].mxu0
    %v4330 = vadd.f32 0.0, %v4329
    %v4331 = vpop.f32.mrb[0].mxu0
    %v4332 = vadd.f32 0.0, %v4331
    %4333 = vdwg.mxu0
    %4334 = vmatprep.subr.mxu0 %v4205
    %4335 = vmatpush1.msra.mxu0 %v4204
    %4336 = vmatprep.subr.mxu0 %v4207
    %4337 = vmatpush1.msra.mxu0 %v4206
    %4338 = vmatprep.subr.mxu0 %v4209
    %4339 = vmatpush1.msra.mxu0 %v4208
    %4340 = vmatprep.subr.mxu0 %v4211
    %4341 = vmatpush1.msra.mxu0 %v4210
    %4342 = vmatprep.subr.mxu0 %v4213
    %4343 = vmatpush1.msra.mxu0 %v4212
    %4344 = vmatprep.subr.mxu0 %v4215
    %4345 = vmatpush1.msra.mxu0 %v4214
    %4346 = vmatprep.subr.mxu0 %v4217
    %4347 = vmatpush1.msra.mxu0 %v4216
    %4348 = vmatprep.subr.mxu0 %v4219
    %4349 = vmatpush1.msra.mxu0 %v4218
    %4350 = vmatprep.subr.mxu0 %v4221
    %4351 = vmatpush1.msra.mxu0 %v4220
    %4352 = vmatprep.subr.mxu0 %v4223
    %4353 = vmatpush1.msra.mxu0 %v4222
    %4354 = vmatprep.subr.mxu0 %v4225
    %4355 = vmatpush1.msra.mxu0 %v4224
    %4356 = vmatprep.subr.mxu0 %v4227
    %4357 = vmatpush1.msra.mxu0 %v4226
    %4358 = vmatprep.subr.mxu0 0.0
    %4359 = vmatpush1.msra.mxu0 0.0
    %4360 = vmatprep.subr.mxu0 0.0
    %4361 = vmatpush1.msra.mxu0 0.0
    %4362 = vmatprep.subr.mxu0 0.0
    %4363 = vmatpush1.msra.mxu0 0.0
    %4364 = vmatprep.subr.mxu0 0.0
    %4365 = vmatpush1.msra.mxu0 0.0
    %4366 = vmatprep.subr.mxu0 0.0
    %4367 = vmatpush1.msra.mxu0 0.0
    %4368 = vmatprep.subr.mxu0 0.0
    %4369 = vmatpush1.msra.mxu0 0.0
    %4370 = vmatprep.subr.mxu0 0.0
    %4371 = vmatpush1.msra.mxu0 0.0
    %4372 = vmatprep.subr.mxu0 0.0
    %4373 = vmatpush1.msra.mxu0 0.0
    %4374 = vmatprep.subr.mxu0 0.0
    %4375 = vmatpush1.msra.mxu0 0.0
    %4376 = vmatprep.subr.mxu0 0.0
    %4377 = vmatpush1.msra.mxu0 0.0
    %4378 = vmatprep.subr.mxu0 0.0
    %4379 = vmatpush1.msra.mxu0 0.0
    %4380 = vmatprep.subr.mxu0 0.0
    %4381 = vmatpush1.msra.mxu0 0.0
    %4382 = vmatprep.subr.mxu0 0.0
    %4383 = vmatpush1.msra.mxu0 0.0
    %4384 = vmatprep.subr.mxu0 0.0
    %4385 = vmatpush1.msra.mxu0 0.0
    %4386 = vmatprep.subr.mxu0 0.0
    %4387 = vmatpush1.msra.mxu0 0.0
    %4388 = vmatprep.subr.mxu0 0.0
    %4389 = vmatpush1.msra.mxu0 0.0
    %4390 = vmatprep.subr.mxu0 0.0
    %4391 = vmatpush1.msra.mxu0 0.0
    %4392 = vmatprep.subr.mxu0 0.0
    %4393 = vmatpush1.msra.mxu0 0.0
    %4394 = vmatprep.subr.mxu0 0.0
    %4395 = vmatpush1.msra.mxu0 0.0
    %4396 = vmatprep.subr.mxu0 0.0
    %4397 = vmatpush1.msra.mxu0 0.0
    %4398 = vmatprep.mubr.f32.mxu0 0.0
    %4399 = vmatmul.mubr.f32.gmra.mrb[0].mxu0 %v4253
    %v4400 = vpop.f32.mrb[0].mxu0
    %v4401 = vadd.f32 %v4324, %v4400
    %v4402 = vpop.f32.mrb[0].mxu0
    %v4403 = vadd.f32 %v4326, %v4402
    %4404 = vmatprep.mubr.f32.mxu0 0.0
    %4405 = vmatmul.mubr.f32.gmra.mrb[0].mxu0 %v4255
    %v4406 = vpop.f32.mrb[0].mxu0
    %v4407 = vadd.f32 %v4330, %v4406
    %v4408 = vpop.f32.mrb[0].mxu0
    %v4409 = vadd.f32 %v4332, %v4408
    %4410 = vdwg.mxu0
    %v4411 = vadd.f32 %v4123, %v4401
    %v4412 = vadd.f32 %v4125, %v4403
    %v4413 = vadd.f32 %v4129, %v4407
    %v4414 = vadd.f32 %v4131, %v4409
    %v4415 = vld [vmem:[#allocation3] sm:$0xf8]
    %v4416 = vld [vmem:[#allocation3 + $0x8] sm:$0xf8]
    %v4417 = vld [vmem:[#allocation3 + $0x10] sm:$0xf8]
    %v4418 = vld [vmem:[#allocation3 + $0x30] sm:$0x7]
    %v4419 = vld [vmem:[#allocation3 + $0x38] sm:$0x7]
    %v4420 = vld [vmem:[#allocation3 + $0x40] sm:$0x7]
    %s4421 = scalar_lea.vmem [#allocation6], 2112
    %v4422 = vld [vmem:[%s4421] sm:$0xff]
    %v4423 = vld [vmem:[%s4421 + $0x8] sm:$0xff]
    %v4424 = vld [vmem:[%s4421 + $0x10] sm:$0xff]
    %v4425 = vld [vmem:[%s4421 + $0x18] sm:$0xff]
    %v4426 = vld [vmem:[%s4421 + $0x20] sm:$0xff]
    %v4427 = vld [vmem:[%s4421 + $0x28] sm:$0xff]
    %v4428 = vld [vmem:[%s4421 + $0x30] sm:$0xff]
    %v4429 = vld [vmem:[%s4421 + $0x38] sm:$0xff]
    %v4430 = vld [vmem:[%s4421 + $0x40] sm:$0xff]
    %v4431 = vld [vmem:[%s4421 + $0x48] sm:$0xff]
    %v4432 = vld [vmem:[%s4421 + $0x50] sm:$0xff]
    %v4433 = vld [vmem:[%s4421 + $0x58] sm:$0xff]
    %v4434 = vld [vmem:[%s4421 + $0x60] sm:$0xff]
    %v4435 = vld [vmem:[%s4421 + $0x68] sm:$0xff]
    %v4436 = vld [vmem:[%s4421 + $0x70] sm:$0xff]
    %v4437 = vld [vmem:[%s4421 + $0x78] sm:$0xff]
    %v4438 = vld [vmem:[%s4421 + $0x80] sm:$0xff]
    %v4439 = vld [vmem:[%s4421 + $0x88] sm:$0xff]
    %v4440 = vld [vmem:[%s4421 + $0x90] sm:$0xff]
    %v4441 = vld [vmem:[%s4421 + $0x98] sm:$0xff]
    %v4442 = vld [vmem:[%s4421 + $0xa0] sm:$0xff]
    %v4443 = vld [vmem:[%s4421 + $0xa8] sm:$0xff]
    %v4444 = vld [vmem:[%s4421 + $0xb0] sm:$0xff]
    %v4445 = vld [vmem:[%s4421 + $0xb8] sm:$0xff]
    %v4446 = vld [vmem:[%s4421 + $0xc0] sm:$0xff]
    %v4447 = vld [vmem:[%s4421 + $0xc8] sm:$0xff]
    %v4448 = vld [vmem:[%s4421 + $0xd0] sm:$0xff]
    %v4449 = vld [vmem:[%s4421 + $0xd8] sm:$0xff]
    %v4450 = vld [vmem:[%s4421 + $0xe0] sm:$0xff]
    %v4451 = vld [vmem:[%s4421 + $0xe8] sm:$0xff]
    %v4452 = vld [vmem:[%s4421 + $0xf0] sm:$0xff]
    %v4453 = vld [vmem:[%s4421 + $0xf8] sm:$0xff]
    %v4454 = vld [vmem:[%s4421 + $0x100] sm:$0xff]
    %v4455 = vld [vmem:[%s4421 + $0x108] sm:$0xff]
    %v4456 = vld [vmem:[%s4421 + $0x110] sm:$0xff]
    %v4457 = vld [vmem:[%s4421 + $0x118] sm:$0xff]
    %v4458 = vld [vmem:[%s4421 + $0x120] sm:$0xff]
    %v4459 = vld [vmem:[%s4421 + $0x128] sm:$0xff]
    %v4460 = vld [vmem:[%s4421 + $0x130] sm:$0xff]
    %v4461 = vld [vmem:[%s4421 + $0x138] sm:$0xff]
    %v4462 = vld [vmem:[%s4421 + $0x140] sm:$0xff]
    %v4463 = vld [vmem:[%s4421 + $0x148] sm:$0xff]
    %v4464 = vld [vmem:[%s4421 + $0x150] sm:$0xff]
    %v4465 = vld [vmem:[%s4421 + $0x158] sm:$0xff]
    %v4466 = vld [vmem:[%s4421 + $0x160] sm:$0xff]
    %v4467 = vld [vmem:[%s4421 + $0x168] sm:$0xff]
    %v4468 = vld [vmem:[%s4421 + $0x170] sm:$0xff]
    %v4469 = vld [vmem:[%s4421 + $0x178] sm:$0xff]
    %v4470 = vld [vmem:[%s4421 + $0x180] sm:$0xff]
    %v4471 = vld [vmem:[%s4421 + $0x188] sm:$0xff]
    %v4472 = vld [vmem:[%s4421 + $0x190] sm:$0xff]
    %v4473 = vld [vmem:[%s4421 + $0x198] sm:$0xff]
    %v4474 = vld [vmem:[%s4421 + $0x1a0] sm:$0xff]
    %v4475 = vld [vmem:[%s4421 + $0x1a8] sm:$0xff]
    %v4476 = vld [vmem:[%s4421 + $0x1b0] sm:$0xff]
    %v4477 = vld [vmem:[%s4421 + $0x1b8] sm:$0xff]
    %v4478 = vld [vmem:[%s4421 + $0x1c0] sm:$0xff]
    %v4479 = vld [vmem:[%s4421 + $0x1c8] sm:$0xff]
    %v4480 = vld [vmem:[%s4421 + $0x1d0] sm:$0xff]
    %v4481 = vld [vmem:[%s4421 + $0x1d8] sm:$0xff]
    %v4482 = vld [vmem:[%s4421 + $0x1e0] sm:$0xff]
    %v4483 = vld [vmem:[%s4421 + $0x1e8] sm:$0xff]
    %v4484 = vld [vmem:[%s4421 + $0x1f0] sm:$0xff]
    %v4485 = vld [vmem:[%s4421 + $0x1f8] sm:$0xff]
    %v4486 = vld [vmem:[%s4421 + $0x200] sm:$0xff]
    %v4487 = vld [vmem:[%s4421 + $0x208] sm:$0xff]
    %v4488 = vld [vmem:[%s4421 + $0x210] sm:$0xff]
    %v4489 = vld [vmem:[%s4421 + $0x218] sm:$0xff]
    %v4490 = vld [vmem:[%s4421 + $0x220] sm:$0xff]
    %v4491 = vld [vmem:[%s4421 + $0x228] sm:$0xff]
    %v4492 = vld [vmem:[%s4421 + $0x230] sm:$0xff]
    %v4493 = vld [vmem:[%s4421 + $0x238] sm:$0xff]
    %v4494 = vld [vmem:[%s4421 + $0x240] sm:$0xff]
    %v4495 = vld [vmem:[%s4421 + $0x248] sm:$0xff]
    %v4496 = vld [vmem:[%s4421 + $0x250] sm:$0xff]
    %v4497 = vld [vmem:[%s4421 + $0x258] sm:$0xff]
    %v4498 = vld [vmem:[%s4421 + $0x260] sm:$0xff]
    %v4499 = vld [vmem:[%s4421 + $0x268] sm:$0xff]
    %v4500 = vld [vmem:[%s4421 + $0x270] sm:$0xff]
    %v4501 = vld [vmem:[%s4421 + $0x278] sm:$0xff]
    %v4502 = vld [vmem:[%s4421 + $0x280] sm:$0xff]
    %v4503 = vld [vmem:[%s4421 + $0x288] sm:$0xff]
    %v4504 = vld [vmem:[%s4421 + $0x290] sm:$0xff]
    %v4505 = vld [vmem:[%s4421 + $0x298] sm:$0xff]
    %v4506 = vld [vmem:[%s4421 + $0x2a0] sm:$0xff]
    %v4507 = vld [vmem:[%s4421 + $0x2a8] sm:$0xff]
    %v4508 = vld [vmem:[%s4421 + $0x2b0] sm:$0xff]
    %v4509 = vld [vmem:[%s4421 + $0x2b8] sm:$0xff]
    %v4516 = vrot.slane %v4415, 3
    %v4517 = vrot.slane %v3602, 3
    %v4518 = vsel %vm1801, %v4516, %v4517
    %v4519 = vrot.slane %v4416, 3
    %v4520 = vrot.slane %v3603, 3
    %v4521 = vsel %vm1801, %v4519, %v4520
    %v4522 = vrot.slane %v4417, 3
    %v4523 = vrot.slane %v3604, 3
    %v4524 = vsel %vm1801, %v4522, %v4523
    %v4525 = vrot.slane %v4418, 3
    %v4526 = vsel %vm1801, %v4517, %v4525
    %v4527 = vrot.slane %v4419, 3
    %v4528 = vsel %vm1801, %v4520, %v4527
    %v4529 = vrot.slane %v4420, 3
    %v4530 = vsel %vm1801, %v4523, %v4529
    %v4535 = vsel %vm101, %v4524, 0
    %v4537 = vsel %vm101, %v4530, 0
    %4539 = vmatprep.subr.mxu0 %v4423
    %4540 = vmatpush1.msra.mxu0 %v4422
    %4541 = vmatprep.subr.mxu0 %v4425
    %4542 = vmatpush1.msra.mxu0 %v4424
    %4543 = vmatprep.subr.mxu0 %v4427
    %4544 = vmatpush1.msra.mxu0 %v4426
    %4545 = vmatprep.subr.mxu0 %v4429
    %4546 = vmatpush1.msra.mxu0 %v4428
    %4547 = vmatprep.subr.mxu0 %v4431
    %4548 = vmatpush1.msra.mxu0 %v4430
    %4549 = vmatprep.subr.mxu0 %v4433
    %4550 = vmatpush1.msra.mxu0 %v4432
    %4551 = vmatprep.subr.mxu0 %v4435
    %4552 = vmatpush1.msra.mxu0 %v4434
    %4553 = vmatprep.subr.mxu0 %v4437
    %4554 = vmatpush1.msra.mxu0 %v4436
    %4555 = vmatprep.subr.mxu0 %v4439
    %4556 = vmatpush1.msra.mxu0 %v4438
    %4557 = vmatprep.subr.mxu0 %v4441
    %4558 = vmatpush1.msra.mxu0 %v4440
    %4559 = vmatprep.subr.mxu0 %v4443
    %4560 = vmatpush1.msra.mxu0 %v4442
    %4561 = vmatprep.subr.mxu0 %v4445
    %4562 = vmatpush1.msra.mxu0 %v4444
    %4563 = vmatprep.subr.mxu0 %v4447
    %4564 = vmatpush1.msra.mxu0 %v4446
    %4565 = vmatprep.subr.mxu0 %v4449
    %4566 = vmatpush1.msra.mxu0 %v4448
    %4567 = vmatprep.subr.mxu0 %v4451
    %4568 = vmatpush1.msra.mxu0 %v4450
    %4569 = vmatprep.subr.mxu0 %v4453
    %4570 = vmatpush1.msra.mxu0 %v4452
    %4571 = vmatprep.subr.mxu0 %v4455
    %4572 = vmatpush1.msra.mxu0 %v4454
    %4573 = vmatprep.subr.mxu0 %v4457
    %4574 = vmatpush1.msra.mxu0 %v4456
    %4575 = vmatprep.subr.mxu0 %v4459
    %4576 = vmatpush1.msra.mxu0 %v4458
    %4577 = vmatprep.subr.mxu0 %v4461
    %4578 = vmatpush1.msra.mxu0 %v4460
    %4579 = vmatprep.subr.mxu0 %v4463
    %4580 = vmatpush1.msra.mxu0 %v4462
    %4581 = vmatprep.subr.mxu0 %v4465
    %4582 = vmatpush1.msra.mxu0 %v4464
    %4583 = vmatprep.subr.mxu0 %v4467
    %4584 = vmatpush1.msra.mxu0 %v4466
    %4585 = vmatprep.subr.mxu0 %v4469
    %4586 = vmatpush1.msra.mxu0 %v4468
    %4587 = vmatprep.subr.mxu0 %v4471
    %4588 = vmatpush1.msra.mxu0 %v4470
    %4589 = vmatprep.subr.mxu0 %v4473
    %4590 = vmatpush1.msra.mxu0 %v4472
    %4591 = vmatprep.subr.mxu0 %v4475
    %4592 = vmatpush1.msra.mxu0 %v4474
    %4593 = vmatprep.subr.mxu0 %v4477
    %4594 = vmatpush1.msra.mxu0 %v4476
    %4595 = vmatprep.subr.mxu0 %v4479
    %4596 = vmatpush1.msra.mxu0 %v4478
    %4597 = vmatprep.subr.mxu0 %v4481
    %4598 = vmatpush1.msra.mxu0 %v4480
    %4599 = vmatprep.subr.mxu0 %v4483
    %4600 = vmatpush1.msra.mxu0 %v4482
    %4601 = vmatprep.subr.mxu0 %v4485
    %4602 = vmatpush1.msra.mxu0 %v4484
    %4603 = vmatprep.mubr.f32.mxu0 %v4521
    %4604 = vmatmul.mubr.f32.gmra.mrb[0].mxu0 %v4518
    %v4605 = vpop.f32.mrb[0].mxu0
    %v4606 = vadd.f32 0.0, %v4605
    %v4607 = vpop.f32.mrb[0].mxu0
    %v4608 = vadd.f32 0.0, %v4607
    %4609 = vmatprep.mubr.f32.mxu0 %v4528
    %4610 = vmatmul.mubr.f32.gmra.mrb[0].mxu0 %v4526
    %v4611 = vpop.f32.mrb[0].mxu0
    %v4612 = vadd.f32 0.0, %v4611
    %v4613 = vpop.f32.mrb[0].mxu0
    %v4614 = vadd.f32 0.0, %v4613
    %4615 = vdwg.mxu0
    %4616 = vmatprep.subr.mxu0 %v4487
    %4617 = vmatpush1.msra.mxu0 %v4486
    %4618 = vmatprep.subr.mxu0 %v4489
    %4619 = vmatpush1.msra.mxu0 %v4488
    %4620 = vmatprep.subr.mxu0 %v4491
    %4621 = vmatpush1.msra.mxu0 %v4490
    %4622 = vmatprep.subr.mxu0 %v4493
    %4623 = vmatpush1.msra.mxu0 %v4492
    %4624 = vmatprep.subr.mxu0 %v4495
    %4625 = vmatpush1.msra.mxu0 %v4494
    %4626 = vmatprep.subr.mxu0 %v4497
    %4627 = vmatpush1.msra.mxu0 %v4496
    %4628 = vmatprep.subr.mxu0 %v4499
    %4629 = vmatpush1.msra.mxu0 %v4498
    %4630 = vmatprep.subr.mxu0 %v4501
    %4631 = vmatpush1.msra.mxu0 %v4500
    %4632 = vmatprep.subr.mxu0 %v4503
    %4633 = vmatpush1.msra.mxu0 %v4502
    %4634 = vmatprep.subr.mxu0 %v4505
    %4635 = vmatpush1.msra.mxu0 %v4504
    %4636 = vmatprep.subr.mxu0 %v4507
    %4637 = vmatpush1.msra.mxu0 %v4506
    %4638 = vmatprep.subr.mxu0 %v4509
    %4639 = vmatpush1.msra.mxu0 %v4508
    %4640 = vmatprep.subr.mxu0 0.0
    %4641 = vmatpush1.msra.mxu0 0.0
    %4642 = vmatprep.subr.mxu0 0.0
    %4643 = vmatpush1.msra.mxu0 0.0
    %4644 = vmatprep.subr.mxu0 0.0
    %4645 = vmatpush1.msra.mxu0 0.0
    %4646 = vmatprep.subr.mxu0 0.0
    %4647 = vmatpush1.msra.mxu0 0.0
    %4648 = vmatprep.subr.mxu0 0.0
    %4649 = vmatpush1.msra.mxu0 0.0
    %4650 = vmatprep.subr.mxu0 0.0
    %4651 = vmatpush1.msra.mxu0 0.0
    %4652 = vmatprep.subr.mxu0 0.0
    %4653 = vmatpush1.msra.mxu0 0.0
    %4654 = vmatprep.subr.mxu0 0.0
    %4655 = vmatpush1.msra.mxu0 0.0
    %4656 = vmatprep.subr.mxu0 0.0
    %4657 = vmatpush1.msra.mxu0 0.0
    %4658 = vmatprep.subr.mxu0 0.0
    %4659 = vmatpush1.msra.mxu0 0.0
    %4660 = vmatprep.subr.mxu0 0.0
    %4661 = vmatpush1.msra.mxu0 0.0
    %4662 = vmatprep.subr.mxu0 0.0
    %4663 = vmatpush1.msra.mxu0 0.0
    %4664 = vmatprep.subr.mxu0 0.0
    %4665 = vmatpush1.msra.mxu0 0.0
    %4666 = vmatprep.subr.mxu0 0.0
    %4667 = vmatpush1.msra.mxu0 0.0
    %4668 = vmatprep.subr.mxu0 0.0
    %4669 = vmatpush1.msra.mxu0 0.0
    %4670 = vmatprep.subr.mxu0 0.0
    %4671 = vmatpush1.msra.mxu0 0.0
    %4672 = vmatprep.subr.mxu0 0.0
    %4673 = vmatpush1.msra.mxu0 0.0
    %4674 = vmatprep.subr.mxu0 0.0
    %4675 = vmatpush1.msra.mxu0 0.0
    %4676 = vmatprep.subr.mxu0 0.0
    %4677 = vmatpush1.msra.mxu0 0.0
    %4678 = vmatprep.subr.mxu0 0.0
    %4679 = vmatpush1.msra.mxu0 0.0
    %4680 = vmatprep.mubr.f32.mxu0 0.0
    %4681 = vmatmul.mubr.f32.gmra.mrb[0].mxu0 %v4535
    %v4682 = vpop.f32.mrb[0].mxu0
    %v4683 = vadd.f32 %v4606, %v4682
    %v4684 = vpop.f32.mrb[0].mxu0
    %v4685 = vadd.f32 %v4608, %v4684
    %4686 = vmatprep.mubr.f32.mxu0 0.0
    %4687 = vmatmul.mubr.f32.gmra.mrb[0].mxu0 %v4537
    %v4688 = vpop.f32.mrb[0].mxu0
    %v4689 = vadd.f32 %v4612, %v4688
    %v4690 = vpop.f32.mrb[0].mxu0
    %v4691 = vadd.f32 %v4614, %v4690
    %4692 = vdwg.mxu0
    %v4693 = vadd.f32 %v4411, %v4683
    %v4694 = vadd.f32 %v4412, %v4685
    %v4695 = vadd.f32 %v4413, %v4689
    %v4696 = vadd.f32 %v4414, %v4691
    %v4697 = vld [vmem:[#allocation3] sm:$0xf0]
    %v4698 = vld [vmem:[#allocation3 + $0x8] sm:$0xf0]
    %v4699 = vld [vmem:[#allocation3 + $0x10] sm:$0xf0]
    %v4700 = vld [vmem:[#allocation3 + $0x30] sm:$0xf]
    %v4701 = vld [vmem:[#allocation3 + $0x38] sm:$0xf]
    %v4702 = vld [vmem:[#allocation3 + $0x40] sm:$0xf]
    %s4703 = scalar_lea.vmem [#allocation6], 2816
    %v4704 = vld [vmem:[%s4703] sm:$0xff]
    %v4705 = vld [vmem:[%s4703 + $0x8] sm:$0xff]
    %v4706 = vld [vmem:[%s4703 + $0x10] sm:$0xff]
    %v4707 = vld [vmem:[%s4703 + $0x18] sm:$0xff]
    %v4708 = vld [vmem:[%s4703 + $0x20] sm:$0xff]
    %v4709 = vld [vmem:[%s4703 + $0x28] sm:$0xff]
    %v4710 = vld [vmem:[%s4703 + $0x30] sm:$0xff]
    %v4711 = vld [vmem:[%s4703 + $0x38] sm:$0xff]
    %v4712 = vld [vmem:[%s4703 + $0x40] sm:$0xff]
    %v4713 = vld [vmem:[%s4703 + $0x48] sm:$0xff]
    %v4714 = vld [vmem:[%s4703 + $0x50] sm:$0xff]
    %v4715 = vld [vmem:[%s4703 + $0x58] sm:$0xff]
    %v4716 = vld [vmem:[%s4703 + $0x60] sm:$0xff]
    %v4717 = vld [vmem:[%s4703 + $0x68] sm:$0xff]
    %v4718 = vld [vmem:[%s4703 + $0x70] sm:$0xff]
    %v4719 = vld [vmem:[%s4703 + $0x78] sm:$0xff]
    %v4720 = vld [vmem:[%s4703 + $0x80] sm:$0xff]
    %v4721 = vld [vmem:[%s4703 + $0x88] sm:$0xff]
    %v4722 = vld [vmem:[%s4703 + $0x90] sm:$0xff]
    %v4723 = vld [vmem:[%s4703 + $0x98] sm:$0xff]
    %v4724 = vld [vmem:[%s4703 + $0xa0] sm:$0xff]
    %v4725 = vld [vmem:[%s4703 + $0xa8] sm:$0xff]
    %v4726 = vld [vmem:[%s4703 + $0xb0] sm:$0xff]
    %v4727 = vld [vmem:[%s4703 + $0xb8] sm:$0xff]
    %v4728 = vld [vmem:[%s4703 + $0xc0] sm:$0xff]
    %v4729 = vld [vmem:[%s4703 + $0xc8] sm:$0xff]
    %v4730 = vld [vmem:[%s4703 + $0xd0] sm:$0xff]
    %v4731 = vld [vmem:[%s4703 + $0xd8] sm:$0xff]
    %v4732 = vld [vmem:[%s4703 + $0xe0] sm:$0xff]
    %v4733 = vld [vmem:[%s4703 + $0xe8] sm:$0xff]
    %v4734 = vld [vmem:[%s4703 + $0xf0] sm:$0xff]
    %v4735 = vld [vmem:[%s4703 + $0xf8] sm:$0xff]
    %v4736 = vld [vmem:[%s4703 + $0x100] sm:$0xff]
    %v4737 = vld [vmem:[%s4703 + $0x108] sm:$0xff]
    %v4738 = vld [vmem:[%s4703 + $0x110] sm:$0xff]
    %v4739 = vld [vmem:[%s4703 + $0x118] sm:$0xff]
    %v4740 = vld [vmem:[%s4703 + $0x120] sm:$0xff]
    %v4741 = vld [vmem:[%s4703 + $0x128] sm:$0xff]
    %v4742 = vld [vmem:[%s4703 + $0x130] sm:$0xff]
    %v4743 = vld [vmem:[%s4703 + $0x138] sm:$0xff]
    %v4744 = vld [vmem:[%s4703 + $0x140] sm:$0xff]
    %v4745 = vld [vmem:[%s4703 + $0x148] sm:$0xff]
    %v4746 = vld [vmem:[%s4703 + $0x150] sm:$0xff]
    %v4747 = vld [vmem:[%s4703 + $0x158] sm:$0xff]
    %v4748 = vld [vmem:[%s4703 + $0x160] sm:$0xff]
    %v4749 = vld [vmem:[%s4703 + $0x168] sm:$0xff]
    %v4750 = vld [vmem:[%s4703 + $0x170] sm:$0xff]
    %v4751 = vld [vmem:[%s4703 + $0x178] sm:$0xff]
    %v4752 = vld [vmem:[%s4703 + $0x180] sm:$0xff]
    %v4753 = vld [vmem:[%s4703 + $0x188] sm:$0xff]
    %v4754 = vld [vmem:[%s4703 + $0x190] sm:$0xff]
    %v4755 = vld [vmem:[%s4703 + $0x198] sm:$0xff]
    %v4756 = vld [vmem:[%s4703 + $0x1a0] sm:$0xff]
    %v4757 = vld [vmem:[%s4703 + $0x1a8] sm:$0xff]
    %v4758 = vld [vmem:[%s4703 + $0x1b0] sm:$0xff]
    %v4759 = vld [vmem:[%s4703 + $0x1b8] sm:$0xff]
    %v4760 = vld [vmem:[%s4703 + $0x1c0] sm:$0xff]
    %v4761 = vld [vmem:[%s4703 + $0x1c8] sm:$0xff]
    %v4762 = vld [vmem:[%s4703 + $0x1d0] sm:$0xff]
    %v4763 = vld [vmem:[%s4703 + $0x1d8] sm:$0xff]
    %v4764 = vld [vmem:[%s4703 + $0x1e0] sm:$0xff]
    %v4765 = vld [vmem:[%s4703 + $0x1e8] sm:$0xff]
    %v4766 = vld [vmem:[%s4703 + $0x1f0] sm:$0xff]
    %v4767 = vld [vmem:[%s4703 + $0x1f8] sm:$0xff]
    %v4768 = vld [vmem:[%s4703 + $0x200] sm:$0xff]
    %v4769 = vld [vmem:[%s4703 + $0x208] sm:$0xff]
    %v4770 = vld [vmem:[%s4703 + $0x210] sm:$0xff]
    %v4771 = vld [vmem:[%s4703 + $0x218] sm:$0xff]
    %v4772 = vld [vmem:[%s4703 + $0x220] sm:$0xff]
    %v4773 = vld [vmem:[%s4703 + $0x228] sm:$0xff]
    %v4774 = vld [vmem:[%s4703 + $0x230] sm:$0xff]
    %v4775 = vld [vmem:[%s4703 + $0x238] sm:$0xff]
    %v4776 = vld [vmem:[%s4703 + $0x240] sm:$0xff]
    %v4777 = vld [vmem:[%s4703 + $0x248] sm:$0xff]
    %v4778 = vld [vmem:[%s4703 + $0x250] sm:$0xff]
    %v4779 = vld [vmem:[%s4703 + $0x258] sm:$0xff]
    %v4780 = vld [vmem:[%s4703 + $0x260] sm:$0xff]
    %v4781 = vld [vmem:[%s4703 + $0x268] sm:$0xff]
    %v4782 = vld [vmem:[%s4703 + $0x270] sm:$0xff]
    %v4783 = vld [vmem:[%s4703 + $0x278] sm:$0xff]
    %v4784 = vld [vmem:[%s4703 + $0x280] sm:$0xff]
    %v4785 = vld [vmem:[%s4703 + $0x288] sm:$0xff]
    %v4786 = vld [vmem:[%s4703 + $0x290] sm:$0xff]
    %v4787 = vld [vmem:[%s4703 + $0x298] sm:$0xff]
    %v4788 = vld [vmem:[%s4703 + $0x2a0] sm:$0xff]
    %v4789 = vld [vmem:[%s4703 + $0x2a8] sm:$0xff]
    %v4790 = vld [vmem:[%s4703 + $0x2b0] sm:$0xff]
    %v4791 = vld [vmem:[%s4703 + $0x2b8] sm:$0xff]
    %v4798 = vrot.slane %v4697, 4
    %v4799 = vrot.slane %v3602, 4
    %v4800 = vsel %vm2282, %v4798, %v4799
    %v4801 = vrot.slane %v4698, 4
    %v4802 = vrot.slane %v3603, 4
    %v4803 = vsel %vm2282, %v4801, %v4802
    %v4804 = vrot.slane %v4699, 4
    %v4805 = vrot.slane %v3604, 4
    %v4806 = vsel %vm2282, %v4804, %v4805
    %v4807 = vrot.slane %v4700, 4
    %v4808 = vsel %vm2282, %v4799, %v4807
    %v4809 = vrot.slane %v4701, 4
    %v4810 = vsel %vm2282, %v4802, %v4809
    %v4811 = vrot.slane %v4702, 4
    %v4812 = vsel %vm2282, %v4805, %v4811
    %v4817 = vsel %vm101, %v4806, 0
    %v4819 = vsel %vm101, %v4812, 0
    %4821 = vmatprep.subr.mxu0 %v4705
    %4822 = vmatpush1.msra.mxu0 %v4704
    %4823 = vmatprep.subr.mxu0 %v4707
    %4824 = vmatpush1.msra.mxu0 %v4706
    %4825 = vmatprep.subr.mxu0 %v4709
    %4826 = vmatpush1.msra.mxu0 %v4708
    %4827 = vmatprep.subr.mxu0 %v4711
    %4828 = vmatpush1.msra.mxu0 %v4710
    %4829 = vmatprep.subr.mxu0 %v4713
    %4830 = vmatpush1.msra.mxu0 %v4712
    %4831 = vmatprep.subr.mxu0 %v4715
    %4832 = vmatpush1.msra.mxu0 %v4714
    %4833 = vmatprep.subr.mxu0 %v4717
    %4834 = vmatpush1.msra.mxu0 %v4716
    %4835 = vmatprep.subr.mxu0 %v4719
    %4836 = vmatpush1.msra.mxu0 %v4718
    %4837 = vmatprep.subr.mxu0 %v4721
    %4838 = vmatpush1.msra.mxu0 %v4720
    %4839 = vmatprep.subr.mxu0 %v4723
    %4840 = vmatpush1.msra.mxu0 %v4722
    %4841 = vmatprep.subr.mxu0 %v4725
    %4842 = vmatpush1.msra.mxu0 %v4724
    %4843 = vmatprep.subr.mxu0 %v4727
    %4844 = vmatpush1.msra.mxu0 %v4726
    %4845 = vmatprep.subr.mxu0 %v4729
    %4846 = vmatpush1.msra.mxu0 %v4728
    %4847 = vmatprep.subr.mxu0 %v4731
    %4848 = vmatpush1.msra.mxu0 %v4730
    %4849 = vmatprep.subr.mxu0 %v4733
    %4850 = vmatpush1.msra.mxu0 %v4732
    %4851 = vmatprep.subr.mxu0 %v4735
    %4852 = vmatpush1.msra.mxu0 %v4734
    %4853 = vmatprep.subr.mxu0 %v4737
    %4854 = vmatpush1.msra.mxu0 %v4736
    %4855 = vmatprep.subr.mxu0 %v4739
    %4856 = vmatpush1.msra.mxu0 %v4738
    %4857 = vmatprep.subr.mxu0 %v4741
    %4858 = vmatpush1.msra.mxu0 %v4740
    %4859 = vmatprep.subr.mxu0 %v4743
    %4860 = vmatpush1.msra.mxu0 %v4742
    %4861 = vmatprep.subr.mxu0 %v4745
    %4862 = vmatpush1.msra.mxu0 %v4744
    %4863 = vmatprep.subr.mxu0 %v4747
    %4864 = vmatpush1.msra.mxu0 %v4746
    %4865 = vmatprep.subr.mxu0 %v4749
    %4866 = vmatpush1.msra.mxu0 %v4748
    %4867 = vmatprep.subr.mxu0 %v4751
    %4868 = vmatpush1.msra.mxu0 %v4750
    %4869 = vmatprep.subr.mxu0 %v4753
    %4870 = vmatpush1.msra.mxu0 %v4752
    %4871 = vmatprep.subr.mxu0 %v4755
    %4872 = vmatpush1.msra.mxu0 %v4754
    %4873 = vmatprep.subr.mxu0 %v4757
    %4874 = vmatpush1.msra.mxu0 %v4756
    %4875 = vmatprep.subr.mxu0 %v4759
    %4876 = vmatpush1.msra.mxu0 %v4758
    %4877 = vmatprep.subr.mxu0 %v4761
    %4878 = vmatpush1.msra.mxu0 %v4760
    %4879 = vmatprep.subr.mxu0 %v4763
    %4880 = vmatpush1.msra.mxu0 %v4762
    %4881 = vmatprep.subr.mxu0 %v4765
    %4882 = vmatpush1.msra.mxu0 %v4764
    %4883 = vmatprep.subr.mxu0 %v4767
    %4884 = vmatpush1.msra.mxu0 %v4766
    %4885 = vmatprep.mubr.f32.mxu0 %v4803
    %4886 = vmatmul.mubr.f32.gmra.mrb[0].mxu0 %v4800
    %v4887 = vpop.f32.mrb[0].mxu0
    %v4888 = vadd.f32 0.0, %v4887
    %v4889 = vpop.f32.mrb[0].mxu0
    %v4890 = vadd.f32 0.0, %v4889
    %4891 = vmatprep.mubr.f32.mxu0 %v4810
    %4892 = vmatmul.mubr.f32.gmra.mrb[0].mxu0 %v4808
    %v4893 = vpop.f32.mrb[0].mxu0
    %v4894 = vadd.f32 0.0, %v4893
    %v4895 = vpop.f32.mrb[0].mxu0
    %v4896 = vadd.f32 0.0, %v4895
    %4897 = vdwg.mxu0
    %4898 = vmatprep.subr.mxu0 %v4769
    %4899 = vmatpush1.msra.mxu0 %v4768
    %4900 = vmatprep.subr.mxu0 %v4771
    %4901 = vmatpush1.msra.mxu0 %v4770
    %4902 = vmatprep.subr.mxu0 %v4773
    %4903 = vmatpush1.msra.mxu0 %v4772
    %4904 = vmatprep.subr.mxu0 %v4775
    %4905 = vmatpush1.msra.mxu0 %v4774
    %4906 = vmatprep.subr.mxu0 %v4777
    %4907 = vmatpush1.msra.mxu0 %v4776
    %4908 = vmatprep.subr.mxu0 %v4779
    %4909 = vmatpush1.msra.mxu0 %v4778
    %4910 = vmatprep.subr.mxu0 %v4781
    %4911 = vmatpush1.msra.mxu0 %v4780
    %4912 = vmatprep.subr.mxu0 %v4783
    %4913 = vmatpush1.msra.mxu0 %v4782
    %4914 = vmatprep.subr.mxu0 %v4785
    %4915 = vmatpush1.msra.mxu0 %v4784
    %4916 = vmatprep.subr.mxu0 %v4787
    %4917 = vmatpush1.msra.mxu0 %v4786
    %4918 = vmatprep.subr.mxu0 %v4789
    %4919 = vmatpush1.msra.mxu0 %v4788
    %4920 = vmatprep.subr.mxu0 %v4791
    %4921 = vmatpush1.msra.mxu0 %v4790
    %4922 = vmatprep.subr.mxu0 0.0
    %4923 = vmatpush1.msra.mxu0 0.0
    %4924 = vmatprep.subr.mxu0 0.0
    %4925 = vmatpush1.msra.mxu0 0.0
    %4926 = vmatprep.subr.mxu0 0.0
    %4927 = vmatpush1.msra.mxu0 0.0
    %4928 = vmatprep.subr.mxu0 0.0
    %4929 = vmatpush1.msra.mxu0 0.0
    %4930 = vmatprep.subr.mxu0 0.0
    %4931 = vmatpush1.msra.mxu0 0.0
    %4932 = vmatprep.subr.mxu0 0.0
    %4933 = vmatpush1.msra.mxu0 0.0
    %4934 = vmatprep.subr.mxu0 0.0
    %4935 = vmatpush1.msra.mxu0 0.0
    %4936 = vmatprep.subr.mxu0 0.0
    %4937 = vmatpush1.msra.mxu0 0.0
    %4938 = vmatprep.subr.mxu0 0.0
    %4939 = vmatpush1.msra.mxu0 0.0
    %4940 = vmatprep.subr.mxu0 0.0
    %4941 = vmatpush1.msra.mxu0 0.0
    %4942 = vmatprep.subr.mxu0 0.0
    %4943 = vmatpush1.msra.mxu0 0.0
    %4944 = vmatprep.subr.mxu0 0.0
    %4945 = vmatpush1.msra.mxu0 0.0
    %4946 = vmatprep.subr.mxu0 0.0
    %4947 = vmatpush1.msra.mxu0 0.0
    %4948 = vmatprep.subr.mxu0 0.0
    %4949 = vmatpush1.msra.mxu0 0.0
    %4950 = vmatprep.subr.mxu0 0.0
    %4951 = vmatpush1.msra.mxu0 0.0
    %4952 = vmatprep.subr.mxu0 0.0
    %4953 = vmatpush1.msra.mxu0 0.0
    %4954 = vmatprep.subr.mxu0 0.0
    %4955 = vmatpush1.msra.mxu0 0.0
    %4956 = vmatprep.subr.mxu0 0.0
    %4957 = vmatpush1.msra.mxu0 0.0
    %4958 = vmatprep.subr.mxu0 0.0
    %4959 = vmatpush1.msra.mxu0 0.0
    %4960 = vmatprep.subr.mxu0 0.0
    %4961 = vmatpush1.msra.mxu0 0.0
    %4962 = vmatprep.mubr.f32.mxu0 0.0
    %4963 = vmatmul.mubr.f32.gmra.mrb[0].mxu0 %v4817
    %v4964 = vpop.f32.mrb[0].mxu0
    %v4965 = vadd.f32 %v4888, %v4964
    %v4966 = vpop.f32.mrb[0].mxu0
    %v4967 = vadd.f32 %v4890, %v4966
    %4968 = vmatprep.mubr.f32.mxu0 0.0
    %4969 = vmatmul.mubr.f32.gmra.mrb[0].mxu0 %v4819
    %v4970 = vpop.f32.mrb[0].mxu0
    %v4971 = vadd.f32 %v4894, %v4970
    %v4972 = vpop.f32.mrb[0].mxu0
    %v4973 = vadd.f32 %v4896, %v4972
    %4974 = vdwg.mxu0
    %v4975 = vadd.f32 %v4693, %v4965
    %v4976 = vadd.f32 %v4694, %v4967
    %v4977 = vadd.f32 %v4695, %v4971
    %v4978 = vadd.f32 %v4696, %v4973
    %v4979 = vld [vmem:[#allocation3] sm:$0xe0]
    %v4980 = vld [vmem:[#allocation3 + $0x8] sm:$0xe0]
    %v4981 = vld [vmem:[#allocation3 + $0x10] sm:$0xe0]
    %v4982 = vld [vmem:[#allocation3 + $0x30] sm:$0x1f]
    %v4983 = vld [vmem:[#allocation3 + $0x38] sm:$0x1f]
    %v4984 = vld [vmem:[#allocation3 + $0x40] sm:$0x1f]
    %s4985 = scalar_lea.vmem [#allocation6], 3520
    %v4986 = vld [vmem:[%s4985] sm:$0xff]
    %v4987 = vld [vmem:[%s4985 + $0x8] sm:$0xff]
    %v4988 = vld [vmem:[%s4985 + $0x10] sm:$0xff]
    %v4989 = vld [vmem:[%s4985 + $0x18] sm:$0xff]
    %v4990 = vld [vmem:[%s4985 + $0x20] sm:$0xff]
    %v4991 = vld [vmem:[%s4985 + $0x28] sm:$0xff]
    %v4992 = vld [vmem:[%s4985 + $0x30] sm:$0xff]
    %v4993 = vld [vmem:[%s4985 + $0x38] sm:$0xff]
    %v4994 = vld [vmem:[%s4985 + $0x40] sm:$0xff]
    %v4995 = vld [vmem:[%s4985 + $0x48] sm:$0xff]
    %v4996 = vld [vmem:[%s4985 + $0x50] sm:$0xff]
    %v4997 = vld [vmem:[%s4985 + $0x58] sm:$0xff]
    %v4998 = vld [vmem:[%s4985 + $0x60] sm:$0xff]
    %v4999 = vld [vmem:[%s4985 + $0x68] sm:$0xff]
    %v5000 = vld [vmem:[%s4985 + $0x70] sm:$0xff]
    %v5001 = vld [vmem:[%s4985 + $0x78] sm:$0xff]
    %v5002 = vld [vmem:[%s4985 + $0x80] sm:$0xff]
    %v5003 = vld [vmem:[%s4985 + $0x88] sm:$0xff]
    %v5004 = vld [vmem:[%s4985 + $0x90] sm:$0xff]
    %v5005 = vld [vmem:[%s4985 + $0x98] sm:$0xff]
    %v5006 = vld [vmem:[%s4985 + $0xa0] sm:$0xff]
    %v5007 = vld [vmem:[%s4985 + $0xa8] sm:$0xff]
    %v5008 = vld [vmem:[%s4985 + $0xb0] sm:$0xff]
    %v5009 = vld [vmem:[%s4985 + $0xb8] sm:$0xff]
    %v5010 = vld [vmem:[%s4985 + $0xc0] sm:$0xff]
    %v5011 = vld [vmem:[%s4985 + $0xc8] sm:$0xff]
    %v5012 = vld [vmem:[%s4985 + $0xd0] sm:$0xff]
    %v5013 = vld [vmem:[%s4985 + $0xd8] sm:$0xff]
    %v5014 = vld [vmem:[%s4985 + $0xe0] sm:$0xff]
    %v5015 = vld [vmem:[%s4985 + $0xe8] sm:$0xff]
    %v5016 = vld [vmem:[%s4985 + $0xf0] sm:$0xff]
    %v5017 = vld [vmem:[%s4985 + $0xf8] sm:$0xff]
    %v5018 = vld [vmem:[%s4985 + $0x100] sm:$0xff]
    %v5019 = vld [vmem:[%s4985 + $0x108] sm:$0xff]
    %v5020 = vld [vmem:[%s4985 + $0x110] sm:$0xff]
    %v5021 = vld [vmem:[%s4985 + $0x118] sm:$0xff]
    %v5022 = vld [vmem:[%s4985 + $0x120] sm:$0xff]
    %v5023 = vld [vmem:[%s4985 + $0x128] sm:$0xff]
    %v5024 = vld [vmem:[%s4985 + $0x130] sm:$0xff]
    %v5025 = vld [vmem:[%s4985 + $0x138] sm:$0xff]
    %v5026 = vld [vmem:[%s4985 + $0x140] sm:$0xff]
    %v5027 = vld [vmem:[%s4985 + $0x148] sm:$0xff]
    %v5028 = vld [vmem:[%s4985 + $0x150] sm:$0xff]
    %v5029 = vld [vmem:[%s4985 + $0x158] sm:$0xff]
    %v5030 = vld [vmem:[%s4985 + $0x160] sm:$0xff]
    %v5031 = vld [vmem:[%s4985 + $0x168] sm:$0xff]
    %v5032 = vld [vmem:[%s4985 + $0x170] sm:$0xff]
    %v5033 = vld [vmem:[%s4985 + $0x178] sm:$0xff]
    %v5034 = vld [vmem:[%s4985 + $0x180] sm:$0xff]
    %v5035 = vld [vmem:[%s4985 + $0x188] sm:$0xff]
    %v5036 = vld [vmem:[%s4985 + $0x190] sm:$0xff]
    %v5037 = vld [vmem:[%s4985 + $0x198] sm:$0xff]
    %v5038 = vld [vmem:[%s4985 + $0x1a0] sm:$0xff]
    %v5039 = vld [vmem:[%s4985 + $0x1a8] sm:$0xff]
    %v5040 = vld [vmem:[%s4985 + $0x1b0] sm:$0xff]
    %v5041 = vld [vmem:[%s4985 + $0x1b8] sm:$0xff]
    %v5042 = vld [vmem:[%s4985 + $0x1c0] sm:$0xff]
    %v5043 = vld [vmem:[%s4985 + $0x1c8] sm:$0xff]
    %v5044 = vld [vmem:[%s4985 + $0x1d0] sm:$0xff]
    %v5045 = vld [vmem:[%s4985 + $0x1d8] sm:$0xff]
    %v5046 = vld [vmem:[%s4985 + $0x1e0] sm:$0xff]
    %v5047 = vld [vmem:[%s4985 + $0x1e8] sm:$0xff]
    %v5048 = vld [vmem:[%s4985 + $0x1f0] sm:$0xff]
    %v5049 = vld [vmem:[%s4985 + $0x1f8] sm:$0xff]
    %v5050 = vld [vmem:[%s4985 + $0x200] sm:$0xff]
    %v5051 = vld [vmem:[%s4985 + $0x208] sm:$0xff]
    %v5052 = vld [vmem:[%s4985 + $0x210] sm:$0xff]
    %v5053 = vld [vmem:[%s4985 + $0x218] sm:$0xff]
    %v5054 = vld [vmem:[%s4985 + $0x220] sm:$0xff]
    %v5055 = vld [vmem:[%s4985 + $0x228] sm:$0xff]
    %v5056 = vld [vmem:[%s4985 + $0x230] sm:$0xff]
    %v5057 = vld [vmem:[%s4985 + $0x238] sm:$0xff]
    %v5058 = vld [vmem:[%s4985 + $0x240] sm:$0xff]
    %v5059 = vld [vmem:[%s4985 + $0x248] sm:$0xff]
    %v5060 = vld [vmem:[%s4985 + $0x250] sm:$0xff]
    %v5061 = vld [vmem:[%s4985 + $0x258] sm:$0xff]
    %v5062 = vld [vmem:[%s4985 + $0x260] sm:$0xff]
    %v5063 = vld [vmem:[%s4985 + $0x268] sm:$0xff]
    %v5064 = vld [vmem:[%s4985 + $0x270] sm:$0xff]
    %v5065 = vld [vmem:[%s4985 + $0x278] sm:$0xff]
    %v5066 = vld [vmem:[%s4985 + $0x280] sm:$0xff]
    %v5067 = vld [vmem:[%s4985 + $0x288] sm:$0xff]
    %v5068 = vld [vmem:[%s4985 + $0x290] sm:$0xff]
    %v5069 = vld [vmem:[%s4985 + $0x298] sm:$0xff]
    %v5070 = vld [vmem:[%s4985 + $0x2a0] sm:$0xff]
    %v5071 = vld [vmem:[%s4985 + $0x2a8] sm:$0xff]
    %v5072 = vld [vmem:[%s4985 + $0x2b0] sm:$0xff]
    %v5073 = vld [vmem:[%s4985 + $0x2b8] sm:$0xff]
    %v5080 = vrot.slane %v4979, 5
    %v5081 = vrot.slane %v3602, 5
    %v5082 = vsel %vm131, %v5080, %v5081
    %v5083 = vrot.slane %v4980, 5
    %v5084 = vrot.slane %v3603, 5
    %v5085 = vsel %vm131, %v5083, %v5084
    %v5086 = vrot.slane %v4981, 5
    %v5087 = vrot.slane %v3604, 5
    %v5088 = vsel %vm131, %v5086, %v5087
    %v5089 = vrot.slane %v4982, 5
    %v5090 = vsel %vm131, %v5081, %v5089
    %v5091 = vrot.slane %v4983, 5
    %v5092 = vsel %vm131, %v5084, %v5091
    %v5093 = vrot.slane %v4984, 5
    %v5094 = vsel %vm131, %v5087, %v5093
    %v5099 = vsel %vm101, %v5088, 0
    %v5101 = vsel %vm101, %v5094, 0
    %5103 = vmatprep.subr.mxu0 %v4987
    %5104 = vmatpush1.msra.mxu0 %v4986
    %5105 = vmatprep.subr.mxu0 %v4989
    %5106 = vmatpush1.msra.mxu0 %v4988
    %5107 = vmatprep.subr.mxu0 %v4991
    %5108 = vmatpush1.msra.mxu0 %v4990
    %5109 = vmatprep.subr.mxu0 %v4993
    %5110 = vmatpush1.msra.mxu0 %v4992
    %5111 = vmatprep.subr.mxu0 %v4995
    %5112 = vmatpush1.msra.mxu0 %v4994
    %5113 = vmatprep.subr.mxu0 %v4997
    %5114 = vmatpush1.msra.mxu0 %v4996
    %5115 = vmatprep.subr.mxu0 %v4999
    %5116 = vmatpush1.msra.mxu0 %v4998
    %5117 = vmatprep.subr.mxu0 %v5001
    %5118 = vmatpush1.msra.mxu0 %v5000
    %5119 = vmatprep.subr.mxu0 %v5003
    %5120 = vmatpush1.msra.mxu0 %v5002
    %5121 = vmatprep.subr.mxu0 %v5005
    %5122 = vmatpush1.msra.mxu0 %v5004
    %5123 = vmatprep.subr.mxu0 %v5007
    %5124 = vmatpush1.msra.mxu0 %v5006
    %5125 = vmatprep.subr.mxu0 %v5009
    %5126 = vmatpush1.msra.mxu0 %v5008
    %5127 = vmatprep.subr.mxu0 %v5011
    %5128 = vmatpush1.msra.mxu0 %v5010
    %5129 = vmatprep.subr.mxu0 %v5013
    %5130 = vmatpush1.msra.mxu0 %v5012
    %5131 = vmatprep.subr.mxu0 %v5015
    %5132 = vmatpush1.msra.mxu0 %v5014
    %5133 = vmatprep.subr.mxu0 %v5017
    %5134 = vmatpush1.msra.mxu0 %v5016
    %5135 = vmatprep.subr.mxu0 %v5019
    %5136 = vmatpush1.msra.mxu0 %v5018
    %5137 = vmatprep.subr.mxu0 %v5021
    %5138 = vmatpush1.msra.mxu0 %v5020
    %5139 = vmatprep.subr.mxu0 %v5023
    %5140 = vmatpush1.msra.mxu0 %v5022
    %5141 = vmatprep.subr.mxu0 %v5025
    %5142 = vmatpush1.msra.mxu0 %v5024
    %5143 = vmatprep.subr.mxu0 %v5027
    %5144 = vmatpush1.msra.mxu0 %v5026
    %5145 = vmatprep.subr.mxu0 %v5029
    %5146 = vmatpush1.msra.mxu0 %v5028
    %5147 = vmatprep.subr.mxu0 %v5031
    %5148 = vmatpush1.msra.mxu0 %v5030
    %5149 = vmatprep.subr.mxu0 %v5033
    %5150 = vmatpush1.msra.mxu0 %v5032
    %5151 = vmatprep.subr.mxu0 %v5035
    %5152 = vmatpush1.msra.mxu0 %v5034
    %5153 = vmatprep.subr.mxu0 %v5037
    %5154 = vmatpush1.msra.mxu0 %v5036
    %5155 = vmatprep.subr.mxu0 %v5039
    %5156 = vmatpush1.msra.mxu0 %v5038
    %5157 = vmatprep.subr.mxu0 %v5041
    %5158 = vmatpush1.msra.mxu0 %v5040
    %5159 = vmatprep.subr.mxu0 %v5043
    %5160 = vmatpush1.msra.mxu0 %v5042
    %5161 = vmatprep.subr.mxu0 %v5045
    %5162 = vmatpush1.msra.mxu0 %v5044
    %5163 = vmatprep.subr.mxu0 %v5047
    %5164 = vmatpush1.msra.mxu0 %v5046
    %5165 = vmatprep.subr.mxu0 %v5049
    %5166 = vmatpush1.msra.mxu0 %v5048
    %5167 = vmatprep.mubr.f32.mxu0 %v5085
    %5168 = vmatmul.mubr.f32.gmra.mrb[0].mxu0 %v5082
    %v5169 = vpop.f32.mrb[0].mxu0
    %v5170 = vadd.f32 0.0, %v5169
    %v5171 = vpop.f32.mrb[0].mxu0
    %v5172 = vadd.f32 0.0, %v5171
    %5173 = vmatprep.mubr.f32.mxu0 %v5092
    %5174 = vmatmul.mubr.f32.gmra.mrb[0].mxu0 %v5090
    %v5175 = vpop.f32.mrb[0].mxu0
    %v5176 = vadd.f32 0.0, %v5175
    %v5177 = vpop.f32.mrb[0].mxu0
    %v5178 = vadd.f32 0.0, %v5177
    %5179 = vdwg.mxu0
    %5180 = vmatprep.subr.mxu0 %v5051
    %5181 = vmatpush1.msra.mxu0 %v5050
    %5182 = vmatprep.subr.mxu0 %v5053
    %5183 = vmatpush1.msra.mxu0 %v5052
    %5184 = vmatprep.subr.mxu0 %v5055
    %5185 = vmatpush1.msra.mxu0 %v5054
    %5186 = vmatprep.subr.mxu0 %v5057
    %5187 = vmatpush1.msra.mxu0 %v5056
    %5188 = vmatprep.subr.mxu0 %v5059
    %5189 = vmatpush1.msra.mxu0 %v5058
    %5190 = vmatprep.subr.mxu0 %v5061
    %5191 = vmatpush1.msra.mxu0 %v5060
    %5192 = vmatprep.subr.mxu0 %v5063
    %5193 = vmatpush1.msra.mxu0 %v5062
    %5194 = vmatprep.subr.mxu0 %v5065
    %5195 = vmatpush1.msra.mxu0 %v5064
    %5196 = vmatprep.subr.mxu0 %v5067
    %5197 = vmatpush1.msra.mxu0 %v5066
    %5198 = vmatprep.subr.mxu0 %v5069
    %5199 = vmatpush1.msra.mxu0 %v5068
    %5200 = vmatprep.subr.mxu0 %v5071
    %5201 = vmatpush1.msra.mxu0 %v5070
    %5202 = vmatprep.subr.mxu0 %v5073
    %5203 = vmatpush1.msra.mxu0 %v5072
    %5204 = vmatprep.subr.mxu0 0.0
    %5205 = vmatpush1.msra.mxu0 0.0
    %5206 = vmatprep.subr.mxu0 0.0
    %5207 = vmatpush1.msra.mxu0 0.0
    %5208 = vmatprep.subr.mxu0 0.0
    %5209 = vmatpush1.msra.mxu0 0.0
    %5210 = vmatprep.subr.mxu0 0.0
    %5211 = vmatpush1.msra.mxu0 0.0
    %5212 = vmatprep.subr.mxu0 0.0
    %5213 = vmatpush1.msra.mxu0 0.0
    %5214 = vmatprep.subr.mxu0 0.0
    %5215 = vmatpush1.msra.mxu0 0.0
    %5216 = vmatprep.subr.mxu0 0.0
    %5217 = vmatpush1.msra.mxu0 0.0
    %5218 = vmatprep.subr.mxu0 0.0
    %5219 = vmatpush1.msra.mxu0 0.0
    %5220 = vmatprep.subr.mxu0 0.0
    %5221 = vmatpush1.msra.mxu0 0.0
    %5222 = vmatprep.subr.mxu0 0.0
    %5223 = vmatpush1.msra.mxu0 0.0
    %5224 = vmatprep.subr.mxu0 0.0
    %5225 = vmatpush1.msra.mxu0 0.0
    %5226 = vmatprep.subr.mxu0 0.0
    %5227 = vmatpush1.msra.mxu0 0.0
    %5228 = vmatprep.subr.mxu0 0.0
    %5229 = vmatpush1.msra.mxu0 0.0
    %5230 = vmatprep.subr.mxu0 0.0
    %5231 = vmatpush1.msra.mxu0 0.0
    %5232 = vmatprep.subr.mxu0 0.0
    %5233 = vmatpush1.msra.mxu0 0.0
    %5234 = vmatprep.subr.mxu0 0.0
    %5235 = vmatpush1.msra.mxu0 0.0
    %5236 = vmatprep.subr.mxu0 0.0
    %5237 = vmatpush1.msra.mxu0 0.0
    %5238 = vmatprep.subr.mxu0 0.0
    %5239 = vmatpush1.msra.mxu0 0.0
    %5240 = vmatprep.subr.mxu0 0.0
    %5241 = vmatpush1.msra.mxu0 0.0
    %5242 = vmatprep.subr.mxu0 0.0
    %5243 = vmatpush1.msra.mxu0 0.0
    %5244 = vmatprep.mubr.f32.mxu0 0.0
    %5245 = vmatmul.mubr.f32.gmra.mrb[0].mxu0 %v5099
    %v5246 = vpop.f32.mrb[0].mxu0
    %v5247 = vadd.f32 %v5170, %v5246
    %v5248 = vpop.f32.mrb[0].mxu0
    %v5249 = vadd.f32 %v5172, %v5248
    %5250 = vmatprep.mubr.f32.mxu0 0.0
    %5251 = vmatmul.mubr.f32.gmra.mrb[0].mxu0 %v5101
    %v5252 = vpop.f32.mrb[0].mxu0
    %v5253 = vadd.f32 %v5176, %v5252
    %v5254 = vpop.f32.mrb[0].mxu0
    %v5255 = vadd.f32 %v5178, %v5254
    %5256 = vdwg.mxu0
    %v5257 = vadd.f32 %v4975, %v5247
    %v5258 = vadd.f32 %v4976, %v5249
    %v5259 = vadd.f32 %v4977, %v5253
    %v5260 = vadd.f32 %v4978, %v5255
    %v5261 = vld [vmem:[#allocation3] sm:$0xc0]
    %v5262 = vld [vmem:[#allocation3 + $0x8] sm:$0xc0]
    %v5263 = vld [vmem:[#allocation3 + $0x10] sm:$0xc0]
    %v5264 = vld [vmem:[#allocation3 + $0x30] sm:$0x3f]
    %v5265 = vld [vmem:[#allocation3 + $0x38] sm:$0x3f]
    %v5266 = vld [vmem:[#allocation3 + $0x40] sm:$0x3f]
    %s5267 = scalar_lea.vmem [#allocation6], 4224
    %v5268 = vld [vmem:[%s5267] sm:$0xff]
    %v5269 = vld [vmem:[%s5267 + $0x8] sm:$0xff]
    %v5270 = vld [vmem:[%s5267 + $0x10] sm:$0xff]
    %v5271 = vld [vmem:[%s5267 + $0x18] sm:$0xff]
    %v5272 = vld [vmem:[%s5267 + $0x20] sm:$0xff]
    %v5273 = vld [vmem:[%s5267 + $0x28] sm:$0xff]
    %v5274 = vld [vmem:[%s5267 + $0x30] sm:$0xff]
    %v5275 = vld [vmem:[%s5267 + $0x38] sm:$0xff]
    %v5276 = vld [vmem:[%s5267 + $0x40] sm:$0xff]
    %v5277 = vld [vmem:[%s5267 + $0x48] sm:$0xff]
    %v5278 = vld [vmem:[%s5267 + $0x50] sm:$0xff]
    %v5279 = vld [vmem:[%s5267 + $0x58] sm:$0xff]
    %v5280 = vld [vmem:[%s5267 + $0x60] sm:$0xff]
    %v5281 = vld [vmem:[%s5267 + $0x68] sm:$0xff]
    %v5282 = vld [vmem:[%s5267 + $0x70] sm:$0xff]
    %v5283 = vld [vmem:[%s5267 + $0x78] sm:$0xff]
    %v5284 = vld [vmem:[%s5267 + $0x80] sm:$0xff]
    %v5285 = vld [vmem:[%s5267 + $0x88] sm:$0xff]
    %v5286 = vld [vmem:[%s5267 + $0x90] sm:$0xff]
    %v5287 = vld [vmem:[%s5267 + $0x98] sm:$0xff]
    %v5288 = vld [vmem:[%s5267 + $0xa0] sm:$0xff]
    %v5289 = vld [vmem:[%s5267 + $0xa8] sm:$0xff]
    %v5290 = vld [vmem:[%s5267 + $0xb0] sm:$0xff]
    %v5291 = vld [vmem:[%s5267 + $0xb8] sm:$0xff]
    %v5292 = vld [vmem:[%s5267 + $0xc0] sm:$0xff]
    %v5293 = vld [vmem:[%s5267 + $0xc8] sm:$0xff]
    %v5294 = vld [vmem:[%s5267 + $0xd0] sm:$0xff]
    %v5295 = vld [vmem:[%s5267 + $0xd8] sm:$0xff]
    %v5296 = vld [vmem:[%s5267 + $0xe0] sm:$0xff]
    %v5297 = vld [vmem:[%s5267 + $0xe8] sm:$0xff]
    %v5298 = vld [vmem:[%s5267 + $0xf0] sm:$0xff]
    %v5299 = vld [vmem:[%s5267 + $0xf8] sm:$0xff]
    %v5300 = vld [vmem:[%s5267 + $0x100] sm:$0xff]
    %v5301 = vld [vmem:[%s5267 + $0x108] sm:$0xff]
    %v5302 = vld [vmem:[%s5267 + $0x110] sm:$0xff]
    %v5303 = vld [vmem:[%s5267 + $0x118] sm:$0xff]
    %v5304 = vld [vmem:[%s5267 + $0x120] sm:$0xff]
    %v5305 = vld [vmem:[%s5267 + $0x128] sm:$0xff]
    %v5306 = vld [vmem:[%s5267 + $0x130] sm:$0xff]
    %v5307 = vld [vmem:[%s5267 + $0x138] sm:$0xff]
    %v5308 = vld [vmem:[%s5267 + $0x140] sm:$0xff]
    %v5309 = vld [vmem:[%s5267 + $0x148] sm:$0xff]
    %v5310 = vld [vmem:[%s5267 + $0x150] sm:$0xff]
    %v5311 = vld [vmem:[%s5267 + $0x158] sm:$0xff]
    %v5312 = vld [vmem:[%s5267 + $0x160] sm:$0xff]
    %v5313 = vld [vmem:[%s5267 + $0x168] sm:$0xff]
    %v5314 = vld [vmem:[%s5267 + $0x170] sm:$0xff]
    %v5315 = vld [vmem:[%s5267 + $0x178] sm:$0xff]
    %v5316 = vld [vmem:[%s5267 + $0x180] sm:$0xff]
    %v5317 = vld [vmem:[%s5267 + $0x188] sm:$0xff]
    %v5318 = vld [vmem:[%s5267 + $0x190] sm:$0xff]
    %v5319 = vld [vmem:[%s5267 + $0x198] sm:$0xff]
    %v5320 = vld [vmem:[%s5267 + $0x1a0] sm:$0xff]
    %v5321 = vld [vmem:[%s5267 + $0x1a8] sm:$0xff]
    %v5322 = vld [vmem:[%s5267 + $0x1b0] sm:$0xff]
    %v5323 = vld [vmem:[%s5267 + $0x1b8] sm:$0xff]
    %v5324 = vld [vmem:[%s5267 + $0x1c0] sm:$0xff]
    %v5325 = vld [vmem:[%s5267 + $0x1c8] sm:$0xff]
    %v5326 = vld [vmem:[%s5267 + $0x1d0] sm:$0xff]
    %v5327 = vld [vmem:[%s5267 + $0x1d8] sm:$0xff]
    %v5328 = vld [vmem:[%s5267 + $0x1e0] sm:$0xff]
    %v5329 = vld [vmem:[%s5267 + $0x1e8] sm:$0xff]
    %v5330 = vld [vmem:[%s5267 + $0x1f0] sm:$0xff]
    %v5331 = vld [vmem:[%s5267 + $0x1f8] sm:$0xff]
    %v5332 = vld [vmem:[%s5267 + $0x200] sm:$0xff]
    %v5333 = vld [vmem:[%s5267 + $0x208] sm:$0xff]
    %v5334 = vld [vmem:[%s5267 + $0x210] sm:$0xff]
    %v5335 = vld [vmem:[%s5267 + $0x218] sm:$0xff]
    %v5336 = vld [vmem:[%s5267 + $0x220] sm:$0xff]
    %v5337 = vld [vmem:[%s5267 + $0x228] sm:$0xff]
    %v5338 = vld [vmem:[%s5267 + $0x230] sm:$0xff]
    %v5339 = vld [vmem:[%s5267 + $0x238] sm:$0xff]
    %v5340 = vld [vmem:[%s5267 + $0x240] sm:$0xff]
    %v5341 = vld [vmem:[%s5267 + $0x248] sm:$0xff]
    %v5342 = vld [vmem:[%s5267 + $0x250] sm:$0xff]
    %v5343 = vld [vmem:[%s5267 + $0x258] sm:$0xff]
    %v5344 = vld [vmem:[%s5267 + $0x260] sm:$0xff]
    %v5345 = vld [vmem:[%s5267 + $0x268] sm:$0xff]
    %v5346 = vld [vmem:[%s5267 + $0x270] sm:$0xff]
    %v5347 = vld [vmem:[%s5267 + $0x278] sm:$0xff]
    %v5348 = vld [vmem:[%s5267 + $0x280] sm:$0xff]
    %v5349 = vld [vmem:[%s5267 + $0x288] sm:$0xff]
    %v5350 = vld [vmem:[%s5267 + $0x290] sm:$0xff]
    %v5351 = vld [vmem:[%s5267 + $0x298] sm:$0xff]
    %v5352 = vld [vmem:[%s5267 + $0x2a0] sm:$0xff]
    %v5353 = vld [vmem:[%s5267 + $0x2a8] sm:$0xff]
    %v5354 = vld [vmem:[%s5267 + $0x2b0] sm:$0xff]
    %v5355 = vld [vmem:[%s5267 + $0x2b8] sm:$0xff]
    %v5362 = vrot.slane %v5261, 6
    %v5363 = vrot.slane %v3602, 6
    %v5364 = vsel %vm3243, %v5362, %v5363
    %v5365 = vrot.slane %v5262, 6
    %v5366 = vrot.slane %v3603, 6
    %v5367 = vsel %vm3243, %v5365, %v5366
    %v5368 = vrot.slane %v5263, 6
    %v5369 = vrot.slane %v3604, 6
    %v5370 = vsel %vm3243, %v5368, %v5369
    %v5371 = vrot.slane %v5264, 6
    %v5372 = vsel %vm3243, %v5363, %v5371
    %v5373 = vrot.slane %v5265, 6
    %v5374 = vsel %vm3243, %v5366, %v5373
    %v5375 = vrot.slane %v5266, 6
    %v5376 = vsel %vm3243, %v5369, %v5375
    %v5381 = vsel %vm101, %v5370, 0
    %v5383 = vsel %vm101, %v5376, 0
    %5385 = vmatprep.subr.mxu0 %v5269
    %5386 = vmatpush1.msra.mxu0 %v5268
    %5387 = vmatprep.subr.mxu0 %v5271
    %5388 = vmatpush1.msra.mxu0 %v5270
    %5389 = vmatprep.subr.mxu0 %v5273
    %5390 = vmatpush1.msra.mxu0 %v5272
    %5391 = vmatprep.subr.mxu0 %v5275
    %5392 = vmatpush1.msra.mxu0 %v5274
    %5393 = vmatprep.subr.mxu0 %v5277
    %5394 = vmatpush1.msra.mxu0 %v5276
    %5395 = vmatprep.subr.mxu0 %v5279
    %5396 = vmatpush1.msra.mxu0 %v5278
    %5397 = vmatprep.subr.mxu0 %v5281
    %5398 = vmatpush1.msra.mxu0 %v5280
    %5399 = vmatprep.subr.mxu0 %v5283
    %5400 = vmatpush1.msra.mxu0 %v5282
    %5401 = vmatprep.subr.mxu0 %v5285
    %5402 = vmatpush1.msra.mxu0 %v5284
    %5403 = vmatprep.subr.mxu0 %v5287
    %5404 = vmatpush1.msra.mxu0 %v5286
    %5405 = vmatprep.subr.mxu0 %v5289
    %5406 = vmatpush1.msra.mxu0 %v5288
    %5407 = vmatprep.subr.mxu0 %v5291
    %5408 = vmatpush1.msra.mxu0 %v5290
    %5409 = vmatprep.subr.mxu0 %v5293
    %5410 = vmatpush1.msra.mxu0 %v5292
    %5411 = vmatprep.subr.mxu0 %v5295
    %5412 = vmatpush1.msra.mxu0 %v5294
    %5413 = vmatprep.subr.mxu0 %v5297
    %5414 = vmatpush1.msra.mxu0 %v5296
    %5415 = vmatprep.subr.mxu0 %v5299
    %5416 = vmatpush1.msra.mxu0 %v5298
    %5417 = vmatprep.subr.mxu0 %v5301
    %5418 = vmatpush1.msra.mxu0 %v5300
    %5419 = vmatprep.subr.mxu0 %v5303
    %5420 = vmatpush1.msra.mxu0 %v5302
    %5421 = vmatprep.subr.mxu0 %v5305
    %5422 = vmatpush1.msra.mxu0 %v5304
    %5423 = vmatprep.subr.mxu0 %v5307
    %5424 = vmatpush1.msra.mxu0 %v5306
    %5425 = vmatprep.subr.mxu0 %v5309
    %5426 = vmatpush1.msra.mxu0 %v5308
    %5427 = vmatprep.subr.mxu0 %v5311
    %5428 = vmatpush1.msra.mxu0 %v5310
    %5429 = vmatprep.subr.mxu0 %v5313
    %5430 = vmatpush1.msra.mxu0 %v5312
    %5431 = vmatprep.subr.mxu0 %v5315
    %5432 = vmatpush1.msra.mxu0 %v5314
    %5433 = vmatprep.subr.mxu0 %v5317
    %5434 = vmatpush1.msra.mxu0 %v5316
    %5435 = vmatprep.subr.mxu0 %v5319
    %5436 = vmatpush1.msra.mxu0 %v5318
    %5437 = vmatprep.subr.mxu0 %v5321
    %5438 = vmatpush1.msra.mxu0 %v5320
    %5439 = vmatprep.subr.mxu0 %v5323
    %5440 = vmatpush1.msra.mxu0 %v5322
    %5441 = vmatprep.subr.mxu0 %v5325
    %5442 = vmatpush1.msra.mxu0 %v5324
    %5443 = vmatprep.subr.mxu0 %v5327
    %5444 = vmatpush1.msra.mxu0 %v5326
    %5445 = vmatprep.subr.mxu0 %v5329
    %5446 = vmatpush1.msra.mxu0 %v5328
    %5447 = vmatprep.subr.mxu0 %v5331
    %5448 = vmatpush1.msra.mxu0 %v5330
    %5449 = vmatprep.mubr.f32.mxu0 %v5367
    %5450 = vmatmul.mubr.f32.gmra.mrb[0].mxu0 %v5364
    %v5451 = vpop.f32.mrb[0].mxu0
    %v5452 = vadd.f32 0.0, %v5451
    %v5453 = vpop.f32.mrb[0].mxu0
    %v5454 = vadd.f32 0.0, %v5453
    %5455 = vmatprep.mubr.f32.mxu0 %v5374
    %5456 = vmatmul.mubr.f32.gmra.mrb[0].mxu0 %v5372
    %v5457 = vpop.f32.mrb[0].mxu0
    %v5458 = vadd.f32 0.0, %v5457
    %v5459 = vpop.f32.mrb[0].mxu0
    %v5460 = vadd.f32 0.0, %v5459
    %5461 = vdwg.mxu0
    %5462 = vmatprep.subr.mxu0 %v5333
    %5463 = vmatpush1.msra.mxu0 %v5332
    %5464 = vmatprep.subr.mxu0 %v5335
    %5465 = vmatpush1.msra.mxu0 %v5334
    %5466 = vmatprep.subr.mxu0 %v5337
    %5467 = vmatpush1.msra.mxu0 %v5336
    %5468 = vmatprep.subr.mxu0 %v5339
    %5469 = vmatpush1.msra.mxu0 %v5338
    %5470 = vmatprep.subr.mxu0 %v5341
    %5471 = vmatpush1.msra.mxu0 %v5340
    %5472 = vmatprep.subr.mxu0 %v5343
    %5473 = vmatpush1.msra.mxu0 %v5342
    %5474 = vmatprep.subr.mxu0 %v5345
    %5475 = vmatpush1.msra.mxu0 %v5344
    %5476 = vmatprep.subr.mxu0 %v5347
    %5477 = vmatpush1.msra.mxu0 %v5346
    %5478 = vmatprep.subr.mxu0 %v5349
    %5479 = vmatpush1.msra.mxu0 %v5348
    %5480 = vmatprep.subr.mxu0 %v5351
    %5481 = vmatpush1.msra.mxu0 %v5350
    %5482 = vmatprep.subr.mxu0 %v5353
    %5483 = vmatpush1.msra.mxu0 %v5352
    %5484 = vmatprep.subr.mxu0 %v5355
    %5485 = vmatpush1.msra.mxu0 %v5354
    %5486 = vmatprep.subr.mxu0 0.0
    %5487 = vmatpush1.msra.mxu0 0.0
    %5488 = vmatprep.subr.mxu0 0.0
    %5489 = vmatpush1.msra.mxu0 0.0
    %5490 = vmatprep.subr.mxu0 0.0
    %5491 = vmatpush1.msra.mxu0 0.0
    %5492 = vmatprep.subr.mxu0 0.0
    %5493 = vmatpush1.msra.mxu0 0.0
    %5494 = vmatprep.subr.mxu0 0.0
    %5495 = vmatpush1.msra.mxu0 0.0
    %5496 = vmatprep.subr.mxu0 0.0
    %5497 = vmatpush1.msra.mxu0 0.0
    %5498 = vmatprep.subr.mxu0 0.0
    %5499 = vmatpush1.msra.mxu0 0.0
    %5500 = vmatprep.subr.mxu0 0.0
    %5501 = vmatpush1.msra.mxu0 0.0
    %5502 = vmatprep.subr.mxu0 0.0
    %5503 = vmatpush1.msra.mxu0 0.0
    %5504 = vmatprep.subr.mxu0 0.0
    %5505 = vmatpush1.msra.mxu0 0.0
    %5506 = vmatprep.subr.mxu0 0.0
    %5507 = vmatpush1.msra.mxu0 0.0
    %5508 = vmatprep.subr.mxu0 0.0
    %5509 = vmatpush1.msra.mxu0 0.0
    %5510 = vmatprep.subr.mxu0 0.0
    %5511 = vmatpush1.msra.mxu0 0.0
    %5512 = vmatprep.subr.mxu0 0.0
    %5513 = vmatpush1.msra.mxu0 0.0
    %5514 = vmatprep.subr.mxu0 0.0
    %5515 = vmatpush1.msra.mxu0 0.0
    %5516 = vmatprep.subr.mxu0 0.0
    %5517 = vmatpush1.msra.mxu0 0.0
    %5518 = vmatprep.subr.mxu0 0.0
    %5519 = vmatpush1.msra.mxu0 0.0
    %5520 = vmatprep.subr.mxu0 0.0
    %5521 = vmatpush1.msra.mxu0 0.0
    %5522 = vmatprep.subr.mxu0 0.0
    %5523 = vmatpush1.msra.mxu0 0.0
    %5524 = vmatprep.subr.mxu0 0.0
    %5525 = vmatpush1.msra.mxu0 0.0
    %5526 = vmatprep.mubr.f32.mxu0 0.0
    %5527 = vmatmul.mubr.f32.gmra.mrb[0].mxu0 %v5381
    %v5528 = vpop.f32.mrb[0].mxu0
    %v5529 = vadd.f32 %v5452, %v5528
    %v5530 = vpop.f32.mrb[0].mxu0
    %v5531 = vadd.f32 %v5454, %v5530
    %5532 = vmatprep.mubr.f32.mxu0 0.0
    %5533 = vmatmul.mubr.f32.gmra.mrb[0].mxu0 %v5383
    %v5534 = vpop.f32.mrb[0].mxu0
    %v5535 = vadd.f32 %v5458, %v5534
    %v5536 = vpop.f32.mrb[0].mxu0
    %v5537 = vadd.f32 %v5460, %v5536
    %5538 = vdwg.mxu0
    %v5539 = vadd.f32 %v5257, %v5529
    %v5540 = vadd.f32 %v5258, %v5531
    %v5541 = vadd.f32 %v5259, %v5535
    %v5542 = vadd.f32 %v5260, %v5537
    %v5543 = vlaneseq
    %v5544 = vshrl.u32 %v5543, 7
    %v5545 = vsub.s32 1, %v5544
    %v5546 = vrot.slane %v110, %v5545
    %v5547 = vlaneseq
    %v5548 = vshrl.u32 %v5547, 7
    %v5549 = vsub.s32 5, %v5548
    %v5550 = vrot.slane %v110, %v5549
    %v5553 = vlaneseq
    %v5554 = vshrl.u32 %v5553, 7
    %v5555 = vsub.s32 1, %v5554
    %v5556 = vrot.slane %v5546, %v5555
    %v5557 = vlaneseq
    %v5558 = vshrl.u32 %v5557, 7
    %v5559 = vsub.s32 1, %v5558
    %v5560 = vrot.slane %v5550, %v5559
    %v5561 = vadd.f32 %v5539, %v5556
    %v5562 = vadd.f32 %v5540, %v5560
    %v5563 = vadd.f32 %v5541, %v5556
    %v5564 = vadd.f32 %v5542, %v5560
    %v5565 = vadd.f32 %v5561, %v119
    %v5566 = vadd.f32 %v5562, %v120
    %v5567 = vadd.f32 %v5563, %v121
    %v5568 = vadd.f32 %v5564, %v122
    %v5569 = vmax.f32 %v5565, 0.0
    %v5570 = vmax.f32 %v5566, 0.0
    %v5571 = vmax.f32 %v5567, 0.0
    %v5572 = vmax.f32 %v5568, 0.0
    %v5577 = vrot.slane %v5569, 5
    %v5578 = vrot.slane %v5570, 5
    %v5579 = vrot.slane %v5571, 5
    %v5580 = vsel %vm131, %v5577, %v5579
    %v5581 = vrot.slane %v5572, 5
    %v5582 = vsel %vm131, %v5578, %v5581
    %5583 = vrot.lane.b32.xlu0 %v5577, 48
    %v5584 = vpop.permute.xlu0 %5583
    %5585 = vrot.lane.b32.xlu0 %v5578, 48
    %v5586 = vpop.permute.xlu0 %5585
    %5587 = vrot.lane.b32.xlu0 %v5580, 48
    %v5588 = vpop.permute.xlu0 %5587
    %5589 = vrot.lane.b32.xlu0 %v5582, 48
    %v5590 = vpop.permute.xlu0 %5589
    %5591 = vrot.lane.b32.xlu0 %v5579, 48
    %v5592 = vpop.permute.xlu0 %5591
    %5593 = vrot.lane.b32.xlu0 %v5581, 48
    %v5594 = vpop.permute.xlu0 %5593
    %v5595 = vsel %vm3572, %v5584, %v5586
    %v5596 = vsel %vm3572, %v5588, %v5590
    %v5597 = vsel %vm3572, %v5592, %v5594
    %5607 = vst.msk [vmem:[#allocation3] sm:$0xf8] %vm3585, %v5584
    %5608 = vst [vmem:[#allocation3 + $0x8] sm:$0xf8] %v5595
    %5609 = vst.msk [vmem:[#allocation3 + $0x10] sm:$0xf8] %vm3588, %v5586
    %5610 = vst.msk [vmem:[#allocation3 + $0x18] sm:$0xff] %vm3590, %v5588
    %5611 = vst [vmem:[#allocation3 + $0x20] sm:$0xff] %v5596
    %5612 = vst.msk [vmem:[#allocation3 + $0x28] sm:$0xff] %vm3572, %v5590
    %5613 = vst.msk [vmem:[#allocation3 + $0x30] sm:$0x7] %vm3594, %v5592
    %5614 = vst [vmem:[#allocation3 + $0x38] sm:$0x7] %v5597
    %5615 = vst.msk [vmem:[#allocation3 + $0x40] sm:$0x7] %vm3597, %v5594
    %v5616 = vld [vmem:[#allocation3] sm:$0xff]
    %v5617 = vld [vmem:[#allocation3 + $0x8] sm:$0xff]
    %v5618 = vld [vmem:[#allocation3 + $0x10] sm:$0xff]
    %v5619 = vld [vmem:[#allocation3 + $0x18] sm:$0xff]
    %v5620 = vld [vmem:[#allocation3 + $0x20] sm:$0xff]
    %v5621 = vld [vmem:[#allocation3 + $0x28] sm:$0xff]
    %v5622 = vld [vmem:[#allocation8] sm:$0xff]
    %v5623 = vld [vmem:[#allocation8 + $0x8] sm:$0xff]
    %v5624 = vld [vmem:[#allocation8 + $0x10] sm:$0xff]
    %v5625 = vld [vmem:[#allocation8 + $0x18] sm:$0xff]
    %v5626 = vld [vmem:[#allocation8 + $0x20] sm:$0xff]
    %v5627 = vld [vmem:[#allocation8 + $0x28] sm:$0xff]
    %v5628 = vld [vmem:[#allocation8 + $0x30] sm:$0xff]
    %v5629 = vld [vmem:[#allocation8 + $0x38] sm:$0xff]
    %v5630 = vld [vmem:[#allocation8 + $0x40] sm:$0xff]
    %v5631 = vld [vmem:[#allocation8 + $0x48] sm:$0xff]
    %v5632 = vld [vmem:[#allocation8 + $0x50] sm:$0xff]
    %v5633 = vld [vmem:[#allocation8 + $0x58] sm:$0xff]
    %v5634 = vld [vmem:[#allocation8 + $0x60] sm:$0xff]
    %v5635 = vld [vmem:[#allocation8 + $0x68] sm:$0xff]
    %v5636 = vld [vmem:[#allocation8 + $0x70] sm:$0xff]
    %v5637 = vld [vmem:[#allocation8 + $0x78] sm:$0xff]
    %v5638 = vld [vmem:[#allocation8 + $0x80] sm:$0xff]
    %v5639 = vld [vmem:[#allocation8 + $0x88] sm:$0xff]
    %v5640 = vld [vmem:[#allocation8 + $0x90] sm:$0xff]
    %v5641 = vld [vmem:[#allocation8 + $0x98] sm:$0xff]
    %v5642 = vld [vmem:[#allocation8 + $0xa0] sm:$0xff]
    %v5643 = vld [vmem:[#allocation8 + $0xa8] sm:$0xff]
    %v5644 = vld [vmem:[#allocation8 + $0xb0] sm:$0xff]
    %v5645 = vld [vmem:[#allocation8 + $0xb8] sm:$0xff]
    %v5646 = vld [vmem:[#allocation8 + $0xc0] sm:$0xff]
    %v5647 = vld [vmem:[#allocation8 + $0xc8] sm:$0xff]
    %v5648 = vld [vmem:[#allocation8 + $0xd0] sm:$0xff]
    %v5649 = vld [vmem:[#allocation8 + $0xd8] sm:$0xff]
    %v5650 = vld [vmem:[#allocation8 + $0xe0] sm:$0xff]
    %v5651 = vld [vmem:[#allocation8 + $0xe8] sm:$0xff]
    %v5652 = vld [vmem:[#allocation8 + $0xf0] sm:$0xff]
    %v5653 = vld [vmem:[#allocation8 + $0xf8] sm:$0xff]
    %v5654 = vld [vmem:[#allocation8 + $0x100] sm:$0xff]
    %v5655 = vld [vmem:[#allocation8 + $0x108] sm:$0xff]
    %v5656 = vld [vmem:[#allocation8 + $0x110] sm:$0xff]
    %v5657 = vld [vmem:[#allocation8 + $0x118] sm:$0xff]
    %v5658 = vld [vmem:[#allocation8 + $0x120] sm:$0xff]
    %v5659 = vld [vmem:[#allocation8 + $0x128] sm:$0xff]
    %v5660 = vld [vmem:[#allocation8 + $0x130] sm:$0xff]
    %v5661 = vld [vmem:[#allocation8 + $0x138] sm:$0xff]
    %v5662 = vld [vmem:[#allocation8 + $0x140] sm:$0xff]
    %v5663 = vld [vmem:[#allocation8 + $0x148] sm:$0xff]
    %v5664 = vld [vmem:[#allocation8 + $0x150] sm:$0xff]
    %v5665 = vld [vmem:[#allocation8 + $0x158] sm:$0xff]
    %v5666 = vld [vmem:[#allocation8 + $0x160] sm:$0xff]
    %v5667 = vld [vmem:[#allocation8 + $0x168] sm:$0xff]
    %v5668 = vld [vmem:[#allocation8 + $0x170] sm:$0xff]
    %v5669 = vld [vmem:[#allocation8 + $0x178] sm:$0xff]
    %v5670 = vld [vmem:[#allocation8 + $0x180] sm:$0xff]
    %v5671 = vld [vmem:[#allocation8 + $0x188] sm:$0xff]
    %v5672 = vld [vmem:[#allocation8 + $0x190] sm:$0xff]
    %v5673 = vld [vmem:[#allocation8 + $0x198] sm:$0xff]
    %v5674 = vld [vmem:[#allocation8 + $0x1a0] sm:$0xff]
    %v5675 = vld [vmem:[#allocation8 + $0x1a8] sm:$0xff]
    %v5676 = vld [vmem:[#allocation8 + $0x1b0] sm:$0xff]
    %v5677 = vld [vmem:[#allocation8 + $0x1b8] sm:$0xff]
    %v5678 = vld [vmem:[#allocation8 + $0x1c0] sm:$0xff]
    %v5679 = vld [vmem:[#allocation8 + $0x1c8] sm:$0xff]
    %v5680 = vld [vmem:[#allocation8 + $0x1d0] sm:$0xff]
    %v5681 = vld [vmem:[#allocation8 + $0x1d8] sm:$0xff]
    %v5682 = vld [vmem:[#allocation8 + $0x1e0] sm:$0xff]
    %v5683 = vld [vmem:[#allocation8 + $0x1e8] sm:$0xff]
    %v5684 = vld [vmem:[#allocation8 + $0x1f0] sm:$0xff]
    %v5685 = vld [vmem:[#allocation8 + $0x1f8] sm:$0xff]
    %v5686 = vld [vmem:[#allocation8 + $0x200] sm:$0xff]
    %v5687 = vld [vmem:[#allocation8 + $0x208] sm:$0xff]
    %v5688 = vld [vmem:[#allocation8 + $0x210] sm:$0xff]
    %v5689 = vld [vmem:[#allocation8 + $0x218] sm:$0xff]
    %v5690 = vld [vmem:[#allocation8 + $0x220] sm:$0xff]
    %v5691 = vld [vmem:[#allocation8 + $0x228] sm:$0xff]
    %v5692 = vld [vmem:[#allocation8 + $0x230] sm:$0xff]
    %v5693 = vld [vmem:[#allocation8 + $0x238] sm:$0xff]
    %v5694 = vld [vmem:[#allocation8 + $0x240] sm:$0xff]
    %v5695 = vld [vmem:[#allocation8 + $0x248] sm:$0xff]
    %v5696 = vld [vmem:[#allocation8 + $0x250] sm:$0xff]
    %v5697 = vld [vmem:[#allocation8 + $0x258] sm:$0xff]
    %v5698 = vld [vmem:[#allocation8 + $0x260] sm:$0xff]
    %v5699 = vld [vmem:[#allocation8 + $0x268] sm:$0xff]
    %v5700 = vld [vmem:[#allocation8 + $0x270] sm:$0xff]
    %v5701 = vld [vmem:[#allocation8 + $0x278] sm:$0xff]
    %v5702 = vld [vmem:[#allocation8 + $0x280] sm:$0xff]
    %v5703 = vld [vmem:[#allocation8 + $0x288] sm:$0xff]
    %v5704 = vld [vmem:[#allocation8 + $0x290] sm:$0xff]
    %v5705 = vld [vmem:[#allocation8 + $0x298] sm:$0xff]
    %v5706 = vld [vmem:[#allocation8 + $0x2a0] sm:$0xff]
    %v5707 = vld [vmem:[#allocation8 + $0x2a8] sm:$0xff]
    %v5708 = vld [vmem:[#allocation8 + $0x2b0] sm:$0xff]
    %v5709 = vld [vmem:[#allocation8 + $0x2b8] sm:$0xff]
    %v5710 = vld [vmem:[#allocation3] sm:$0xfe]
    %v5711 = vld [vmem:[#allocation3 + $0x8] sm:$0xfe]
    %v5712 = vld [vmem:[#allocation3 + $0x10] sm:$0xfe]
    %v5713 = vld [vmem:[#allocation3 + $0x30] sm:$0x1]
    %v5714 = vld [vmem:[#allocation3 + $0x38] sm:$0x1]
    %v5715 = vld [vmem:[#allocation3 + $0x40] sm:$0x1]
    %s5716 = scalar_lea.vmem [#allocation8], 704
    %v5717 = vld [vmem:[%s5716] sm:$0xff]
    %v5718 = vld [vmem:[%s5716 + $0x8] sm:$0xff]
    %v5719 = vld [vmem:[%s5716 + $0x10] sm:$0xff]
    %v5720 = vld [vmem:[%s5716 + $0x18] sm:$0xff]
    %v5721 = vld [vmem:[%s5716 + $0x20] sm:$0xff]
    %v5722 = vld [vmem:[%s5716 + $0x28] sm:$0xff]
    %v5723 = vld [vmem:[%s5716 + $0x30] sm:$0xff]
    %v5724 = vld [vmem:[%s5716 + $0x38] sm:$0xff]
    %v5725 = vld [vmem:[%s5716 + $0x40] sm:$0xff]
    %v5726 = vld [vmem:[%s5716 + $0x48] sm:$0xff]
    %v5727 = vld [vmem:[%s5716 + $0x50] sm:$0xff]
    %v5728 = vld [vmem:[%s5716 + $0x58] sm:$0xff]
    %v5729 = vld [vmem:[%s5716 + $0x60] sm:$0xff]
    %v5730 = vld [vmem:[%s5716 + $0x68] sm:$0xff]
    %v5731 = vld [vmem:[%s5716 + $0x70] sm:$0xff]
    %v5732 = vld [vmem:[%s5716 + $0x78] sm:$0xff]
    %v5733 = vld [vmem:[%s5716 + $0x80] sm:$0xff]
    %v5734 = vld [vmem:[%s5716 + $0x88] sm:$0xff]
    %v5735 = vld [vmem:[%s5716 + $0x90] sm:$0xff]
    %v5736 = vld [vmem:[%s5716 + $0x98] sm:$0xff]
    %v5737 = vld [vmem:[%s5716 + $0xa0] sm:$0xff]
    %v5738 = vld [vmem:[%s5716 + $0xa8] sm:$0xff]
    %v5739 = vld [vmem:[%s5716 + $0xb0] sm:$0xff]
    %v5740 = vld [vmem:[%s5716 + $0xb8] sm:$0xff]
    %v5741 = vld [vmem:[%s5716 + $0xc0] sm:$0xff]
    %v5742 = vld [vmem:[%s5716 + $0xc8] sm:$0xff]
    %v5743 = vld [vmem:[%s5716 + $0xd0] sm:$0xff]
    %v5744 = vld [vmem:[%s5716 + $0xd8] sm:$0xff]
    %v5745 = vld [vmem:[%s5716 + $0xe0] sm:$0xff]
    %v5746 = vld [vmem:[%s5716 + $0xe8] sm:$0xff]
    %v5747 = vld [vmem:[%s5716 + $0xf0] sm:$0xff]
    %v5748 = vld [vmem:[%s5716 + $0xf8] sm:$0xff]
    %v5749 = vld [vmem:[%s5716 + $0x100] sm:$0xff]
    %v5750 = vld [vmem:[%s5716 + $0x108] sm:$0xff]
    %v5751 = vld [vmem:[%s5716 + $0x110] sm:$0xff]
    %v5752 = vld [vmem:[%s5716 + $0x118] sm:$0xff]
    %v5753 = vld [vmem:[%s5716 + $0x120] sm:$0xff]
    %v5754 = vld [vmem:[%s5716 + $0x128] sm:$0xff]
    %v5755 = vld [vmem:[%s5716 + $0x130] sm:$0xff]
    %v5756 = vld [vmem:[%s5716 + $0x138] sm:$0xff]
    %v5757 = vld [vmem:[%s5716 + $0x140] sm:$0xff]
    %v5758 = vld [vmem:[%s5716 + $0x148] sm:$0xff]
    %v5759 = vld [vmem:[%s5716 + $0x150] sm:$0xff]
    %v5760 = vld [vmem:[%s5716 + $0x158] sm:$0xff]
    %v5761 = vld [vmem:[%s5716 + $0x160] sm:$0xff]
    %v5762 = vld [vmem:[%s5716 + $0x168] sm:$0xff]
    %v5763 = vld [vmem:[%s5716 + $0x170] sm:$0xff]
    %v5764 = vld [vmem:[%s5716 + $0x178] sm:$0xff]
    %v5765 = vld [vmem:[%s5716 + $0x180] sm:$0xff]
    %v5766 = vld [vmem:[%s5716 + $0x188] sm:$0xff]
    %v5767 = vld [vmem:[%s5716 + $0x190] sm:$0xff]
    %v5768 = vld [vmem:[%s5716 + $0x198] sm:$0xff]
    %v5769 = vld [vmem:[%s5716 + $0x1a0] sm:$0xff]
    %v5770 = vld [vmem:[%s5716 + $0x1a8] sm:$0xff]
    %v5771 = vld [vmem:[%s5716 + $0x1b0] sm:$0xff]
    %v5772 = vld [vmem:[%s5716 + $0x1b8] sm:$0xff]
    %v5773 = vld [vmem:[%s5716 + $0x1c0] sm:$0xff]
    %v5774 = vld [vmem:[%s5716 + $0x1c8] sm:$0xff]
    %v5775 = vld [vmem:[%s5716 + $0x1d0] sm:$0xff]
    %v5776 = vld [vmem:[%s5716 + $0x1d8] sm:$0xff]
    %v5777 = vld [vmem:[%s5716 + $0x1e0] sm:$0xff]
    %v5778 = vld [vmem:[%s5716 + $0x1e8] sm:$0xff]
    %v5779 = vld [vmem:[%s5716 + $0x1f0] sm:$0xff]
    %v5780 = vld [vmem:[%s5716 + $0x1f8] sm:$0xff]
    %v5781 = vld [vmem:[%s5716 + $0x200] sm:$0xff]
    %v5782 = vld [vmem:[%s5716 + $0x208] sm:$0xff]
    %v5783 = vld [vmem:[%s5716 + $0x210] sm:$0xff]
    %v5784 = vld [vmem:[%s5716 + $0x218] sm:$0xff]
    %v5785 = vld [vmem:[%s5716 + $0x220] sm:$0xff]
    %v5786 = vld [vmem:[%s5716 + $0x228] sm:$0xff]
    %v5787 = vld [vmem:[%s5716 + $0x230] sm:$0xff]
    %v5788 = vld [vmem:[%s5716 + $0x238] sm:$0xff]
    %v5789 = vld [vmem:[%s5716 + $0x240] sm:$0xff]
    %v5790 = vld [vmem:[%s5716 + $0x248] sm:$0xff]
    %v5791 = vld [vmem:[%s5716 + $0x250] sm:$0xff]
    %v5792 = vld [vmem:[%s5716 + $0x258] sm:$0xff]
    %v5793 = vld [vmem:[%s5716 + $0x260] sm:$0xff]
    %v5794 = vld [vmem:[%s5716 + $0x268] sm:$0xff]
    %v5795 = vld [vmem:[%s5716 + $0x270] sm:$0xff]
    %v5796 = vld [vmem:[%s5716 + $0x278] sm:$0xff]
    %v5797 = vld [vmem:[%s5716 + $0x280] sm:$0xff]
    %v5798 = vld [vmem:[%s5716 + $0x288] sm:$0xff]
    %v5799 = vld [vmem:[%s5716 + $0x290] sm:$0xff]
    %v5800 = vld [vmem:[%s5716 + $0x298] sm:$0xff]
    %v5801 = vld [vmem:[%s5716 + $0x2a0] sm:$0xff]
    %v5802 = vld [vmem:[%s5716 + $0x2a8] sm:$0xff]
    %v5803 = vld [vmem:[%s5716 + $0x2b0] sm:$0xff]
    %v5804 = vld [vmem:[%s5716 + $0x2b8] sm:$0xff]
    %v5814 = vrot.slane %v5710, 1
    %v5815 = vrot.slane %v5619, 1
    %v5816 = vsel %vm607, %v5814, %v5815
    %v5817 = vrot.slane %v5711, 1
    %v5818 = vrot.slane %v5620, 1
    %v5819 = vsel %vm607, %v5817, %v5818
    %v5820 = vrot.slane %v5712, 1
    %v5821 = vrot.slane %v5621, 1
    %v5822 = vsel %vm607, %v5820, %v5821
    %v5823 = vrot.slane %v5713, 1
    %v5824 = vsel %vm607, %v5815, %v5823
    %v5825 = vrot.slane %v5714, 1
    %v5826 = vsel %vm607, %v5818, %v5825
    %v5827 = vrot.slane %v5715, 1
    %v5828 = vsel %vm607, %v5821, %v5827
    %v5833 = vsel %vm101, %v5822, 0
    %v5835 = vsel %vm101, %v5828, 0
    %5837 = vmatprep.subr.mxu0 %v5718
    %5838 = vmatpush1.msra.mxu0 %v5717
    %5839 = vmatprep.subr.mxu0 %v5720
    %5840 = vmatpush1.msra.mxu0 %v5719
    %5841 = vmatprep.subr.mxu0 %v5722
    %5842 = vmatpush1.msra.mxu0 %v5721
    %5843 = vmatprep.subr.mxu0 %v5724
    %5844 = vmatpush1.msra.mxu0 %v5723
    %5845 = vmatprep.subr.mxu0 %v5726
    %5846 = vmatpush1.msra.mxu0 %v5725
    %5847 = vmatprep.subr.mxu0 %v5728
    %5848 = vmatpush1.msra.mxu0 %v5727
    %5849 = vmatprep.subr.mxu0 %v5730
    %5850 = vmatpush1.msra.mxu0 %v5729
    %5851 = vmatprep.subr.mxu0 %v5732
    %5852 = vmatpush1.msra.mxu0 %v5731
    %5853 = vmatprep.subr.mxu0 %v5734
    %5854 = vmatpush1.msra.mxu0 %v5733
    %5855 = vmatprep.subr.mxu0 %v5736
    %5856 = vmatpush1.msra.mxu0 %v5735
    %5857 = vmatprep.subr.mxu0 %v5738
    %5858 = vmatpush1.msra.mxu0 %v5737
    %5859 = vmatprep.subr.mxu0 %v5740
    %5860 = vmatpush1.msra.mxu0 %v5739
    %5861 = vmatprep.subr.mxu0 %v5742
    %5862 = vmatpush1.msra.mxu0 %v5741
    %5863 = vmatprep.subr.mxu0 %v5744
    %5864 = vmatpush1.msra.mxu0 %v5743
    %5865 = vmatprep.subr.mxu0 %v5746
    %5866 = vmatpush1.msra.mxu0 %v5745
    %5867 = vmatprep.subr.mxu0 %v5748
    %5868 = vmatpush1.msra.mxu0 %v5747
    %5869 = vmatprep.subr.mxu0 %v5750
    %5870 = vmatpush1.msra.mxu0 %v5749
    %5871 = vmatprep.subr.mxu0 %v5752
    %5872 = vmatpush1.msra.mxu0 %v5751
    %5873 = vmatprep.subr.mxu0 %v5754
    %5874 = vmatpush1.msra.mxu0 %v5753
    %5875 = vmatprep.subr.mxu0 %v5756
    %5876 = vmatpush1.msra.mxu0 %v5755
    %5877 = vmatprep.subr.mxu0 %v5758
    %5878 = vmatpush1.msra.mxu0 %v5757
    %5879 = vmatprep.subr.mxu0 %v5760
    %5880 = vmatpush1.msra.mxu0 %v5759
    %5881 = vmatprep.subr.mxu0 %v5762
    %5882 = vmatpush1.msra.mxu0 %v5761
    %5883 = vmatprep.subr.mxu0 %v5764
    %5884 = vmatpush1.msra.mxu0 %v5763
    %5885 = vmatprep.subr.mxu0 %v5766
    %5886 = vmatpush1.msra.mxu0 %v5765
    %5887 = vmatprep.subr.mxu0 %v5768
    %5888 = vmatpush1.msra.mxu0 %v5767
    %5889 = vmatprep.subr.mxu0 %v5770
    %5890 = vmatpush1.msra.mxu0 %v5769
    %5891 = vmatprep.subr.mxu0 %v5772
    %5892 = vmatpush1.msra.mxu0 %v5771
    %5893 = vmatprep.subr.mxu0 %v5774
    %5894 = vmatpush1.msra.mxu0 %v5773
    %5895 = vmatprep.subr.mxu0 %v5776
    %5896 = vmatpush1.msra.mxu0 %v5775
    %5897 = vmatprep.subr.mxu0 %v5778
    %5898 = vmatpush1.msra.mxu0 %v5777
    %5899 = vmatprep.subr.mxu0 %v5780
    %5900 = vmatpush1.msra.mxu0 %v5779
    %5901 = vmatprep.mubr.f32.mxu0 %v5819
    %5902 = vmatmul.mubr.f32.gmra.mrb[0].mxu0 %v5816
    %v5903 = vpop.f32.mrb[0].mxu0
    %v5904 = vadd.f32 0.0, %v5903
    %v5905 = vpop.f32.mrb[0].mxu0
    %v5906 = vadd.f32 0.0, %v5905
    %5907 = vmatprep.mubr.f32.mxu0 %v5826
    %5908 = vmatmul.mubr.f32.gmra.mrb[0].mxu0 %v5824
    %v5909 = vpop.f32.mrb[0].mxu0
    %v5910 = vadd.f32 0.0, %v5909
    %v5911 = vpop.f32.mrb[0].mxu0
    %v5912 = vadd.f32 0.0, %v5911
    %5913 = vdwg.mxu0
    %5914 = vmatprep.subr.mxu0 %v5782
    %5915 = vmatpush1.msra.mxu0 %v5781
    %5916 = vmatprep.subr.mxu0 %v5784
    %5917 = vmatpush1.msra.mxu0 %v5783
    %5918 = vmatprep.subr.mxu0 %v5786
    %5919 = vmatpush1.msra.mxu0 %v5785
    %5920 = vmatprep.subr.mxu0 %v5788
    %5921 = vmatpush1.msra.mxu0 %v5787
    %5922 = vmatprep.subr.mxu0 %v5790
    %5923 = vmatpush1.msra.mxu0 %v5789
    %5924 = vmatprep.subr.mxu0 %v5792
    %5925 = vmatpush1.msra.mxu0 %v5791
    %5926 = vmatprep.subr.mxu0 %v5794
    %5927 = vmatpush1.msra.mxu0 %v5793
    %5928 = vmatprep.subr.mxu0 %v5796
    %5929 = vmatpush1.msra.mxu0 %v5795
    %5930 = vmatprep.subr.mxu0 %v5798
    %5931 = vmatpush1.msra.mxu0 %v5797
    %5932 = vmatprep.subr.mxu0 %v5800
    %5933 = vmatpush1.msra.mxu0 %v5799
    %5934 = vmatprep.subr.mxu0 %v5802
    %5935 = vmatpush1.msra.mxu0 %v5801
    %5936 = vmatprep.subr.mxu0 %v5804
    %5937 = vmatpush1.msra.mxu0 %v5803
    %5938 = vmatprep.subr.mxu0 0.0
    %5939 = vmatpush1.msra.mxu0 0.0
    %5940 = vmatprep.subr.mxu0 0.0
    %5941 = vmatpush1.msra.mxu0 0.0
    %5942 = vmatprep.subr.mxu0 0.0
    %5943 = vmatpush1.msra.mxu0 0.0
    %5944 = vmatprep.subr.mxu0 0.0
    %5945 = vmatpush1.msra.mxu0 0.0
    %5946 = vmatprep.subr.mxu0 0.0
    %5947 = vmatpush1.msra.mxu0 0.0
    %5948 = vmatprep.subr.mxu0 0.0
    %5949 = vmatpush1.msra.mxu0 0.0
    %5950 = vmatprep.subr.mxu0 0.0
    %5951 = vmatpush1.msra.mxu0 0.0
    %5952 = vmatprep.subr.mxu0 0.0
    %5953 = vmatpush1.msra.mxu0 0.0
    %5954 = vmatprep.subr.mxu0 0.0
    %5955 = vmatpush1.msra.mxu0 0.0
    %5956 = vmatprep.subr.mxu0 0.0
    %5957 = vmatpush1.msra.mxu0 0.0
    %5958 = vmatprep.subr.mxu0 0.0
    %5959 = vmatpush1.msra.mxu0 0.0
    %5960 = vmatprep.subr.mxu0 0.0
    %5961 = vmatpush1.msra.mxu0 0.0
    %5962 = vmatprep.subr.mxu0 0.0
    %5963 = vmatpush1.msra.mxu0 0.0
    %5964 = vmatprep.subr.mxu0 0.0
    %5965 = vmatpush1.msra.mxu0 0.0
    %5966 = vmatprep.subr.mxu0 0.0
    %5967 = vmatpush1.msra.mxu0 0.0
    %5968 = vmatprep.subr.mxu0 0.0
    %5969 = vmatpush1.msra.mxu0 0.0
    %5970 = vmatprep.subr.mxu0 0.0
    %5971 = vmatpush1.msra.mxu0 0.0
    %5972 = vmatprep.subr.mxu0 0.0
    %5973 = vmatpush1.msra.mxu0 0.0
    %5974 = vmatprep.subr.mxu0 0.0
    %5975 = vmatpush1.msra.mxu0 0.0
    %5976 = vmatprep.subr.mxu0 0.0
    %5977 = vmatpush1.msra.mxu0 0.0
    %5978 = vmatprep.mubr.f32.mxu0 0.0
    %5979 = vmatmul.mubr.f32.gmra.mrb[0].mxu0 %v5833
    %v5980 = vpop.f32.mrb[0].mxu0
    %v5981 = vadd.f32 %v5904, %v5980
    %v5982 = vpop.f32.mrb[0].mxu0
    %v5983 = vadd.f32 %v5906, %v5982
    %5984 = vmatprep.mubr.f32.mxu0 0.0
    %5985 = vmatmul.mubr.f32.gmra.mrb[0].mxu0 %v5835
    %v5986 = vpop.f32.mrb[0].mxu0
    %v5987 = vadd.f32 %v5910, %v5986
    %v5988 = vpop.f32.mrb[0].mxu0
    %v5989 = vadd.f32 %v5912, %v5988
    %5990 = vdwg.mxu0
    %v5992 = vsel %vm101, %v5618, 0
    %v5994 = vsel %vm101, %v5621, 0
    %5996 = vmatprep.subr.mxu0 %v5623
    %5997 = vmatpush1.msra.mxu0 %v5622
    %5998 = vmatprep.subr.mxu0 %v5625
    %5999 = vmatpush1.msra.mxu0 %v5624
    %6000 = vmatprep.subr.mxu0 %v5627
    %6001 = vmatpush1.msra.mxu0 %v5626
    %6002 = vmatprep.subr.mxu0 %v5629
    %6003 = vmatpush1.msra.mxu0 %v5628
    %6004 = vmatprep.subr.mxu0 %v5631
    %6005 = vmatpush1.msra.mxu0 %v5630
    %6006 = vmatprep.subr.mxu0 %v5633
    %6007 = vmatpush1.msra.mxu0 %v5632
    %6008 = vmatprep.subr.mxu0 %v5635
    %6009 = vmatpush1.msra.mxu0 %v5634
    %6010 = vmatprep.subr.mxu0 %v5637
    %6011 = vmatpush1.msra.mxu0 %v5636
    %6012 = vmatprep.subr.mxu0 %v5639
    %6013 = vmatpush1.msra.mxu0 %v5638
    %6014 = vmatprep.subr.mxu0 %v5641
    %6015 = vmatpush1.msra.mxu0 %v5640
    %6016 = vmatprep.subr.mxu0 %v5643
    %6017 = vmatpush1.msra.mxu0 %v5642
    %6018 = vmatprep.subr.mxu0 %v5645
    %6019 = vmatpush1.msra.mxu0 %v5644
    %6020 = vmatprep.subr.mxu0 %v5647
    %6021 = vmatpush1.msra.mxu0 %v5646
    %6022 = vmatprep.subr.mxu0 %v5649
    %6023 = vmatpush1.msra.mxu0 %v5648
    %6024 = vmatprep.subr.mxu0 %v5651
    %6025 = vmatpush1.msra.mxu0 %v5650
    %6026 = vmatprep.subr.mxu0 %v5653
    %6027 = vmatpush1.msra.mxu0 %v5652
    %6028 = vmatprep.subr.mxu0 %v5655
    %6029 = vmatpush1.msra.mxu0 %v5654
    %6030 = vmatprep.subr.mxu0 %v5657
    %6031 = vmatpush1.msra.mxu0 %v5656
    %6032 = vmatprep.subr.mxu0 %v5659
    %6033 = vmatpush1.msra.mxu0 %v5658
    %6034 = vmatprep.subr.mxu0 %v5661
    %6035 = vmatpush1.msra.mxu0 %v5660
    %6036 = vmatprep.subr.mxu0 %v5663
    %6037 = vmatpush1.msra.mxu0 %v5662
    %6038 = vmatprep.subr.mxu0 %v5665
    %6039 = vmatpush1.msra.mxu0 %v5664
    %6040 = vmatprep.subr.mxu0 %v5667
    %6041 = vmatpush1.msra.mxu0 %v5666
    %6042 = vmatprep.subr.mxu0 %v5669
    %6043 = vmatpush1.msra.mxu0 %v5668
    %6044 = vmatprep.subr.mxu0 %v5671
    %6045 = vmatpush1.msra.mxu0 %v5670
    %6046 = vmatprep.subr.mxu0 %v5673
    %6047 = vmatpush1.msra.mxu0 %v5672
    %6048 = vmatprep.subr.mxu0 %v5675
    %6049 = vmatpush1.msra.mxu0 %v5674
    %6050 = vmatprep.subr.mxu0 %v5677
    %6051 = vmatpush1.msra.mxu0 %v5676
    %6052 = vmatprep.subr.mxu0 %v5679
    %6053 = vmatpush1.msra.mxu0 %v5678
    %6054 = vmatprep.subr.mxu0 %v5681
    %6055 = vmatpush1.msra.mxu0 %v5680
    %6056 = vmatprep.subr.mxu0 %v5683
    %6057 = vmatpush1.msra.mxu0 %v5682
    %6058 = vmatprep.subr.mxu0 %v5685
    %6059 = vmatpush1.msra.mxu0 %v5684
    %6060 = vmatprep.mubr.f32.mxu0 %v5617
    %6061 = vmatmul.mubr.f32.gmra.mrb[0].mxu0 %v5616
    %v6062 = vpop.f32.mrb[0].mxu0
    %v6063 = vadd.f32 %v5981, %v6062
    %v6064 = vpop.f32.mrb[0].mxu0
    %v6065 = vadd.f32 %v5983, %v6064
    %6066 = vmatprep.mubr.f32.mxu0 %v5620
    %6067 = vmatmul.mubr.f32.gmra.mrb[0].mxu0 %v5619
    %v6068 = vpop.f32.mrb[0].mxu0
    %v6069 = vadd.f32 %v5987, %v6068
    %v6070 = vpop.f32.mrb[0].mxu0
    %v6071 = vadd.f32 %v5989, %v6070
    %6072 = vdwg.mxu0
    %6073 = vmatprep.subr.mxu0 %v5687
    %6074 = vmatpush1.msra.mxu0 %v5686
    %6075 = vmatprep.subr.mxu0 %v5689
    %6076 = vmatpush1.msra.mxu0 %v5688
    %6077 = vmatprep.subr.mxu0 %v5691
    %6078 = vmatpush1.msra.mxu0 %v5690
    %6079 = vmatprep.subr.mxu0 %v5693
    %6080 = vmatpush1.msra.mxu0 %v5692
    %6081 = vmatprep.subr.mxu0 %v5695
    %6082 = vmatpush1.msra.mxu0 %v5694
    %6083 = vmatprep.subr.mxu0 %v5697
    %6084 = vmatpush1.msra.mxu0 %v5696
    %6085 = vmatprep.subr.mxu0 %v5699
    %6086 = vmatpush1.msra.mxu0 %v5698
    %6087 = vmatprep.subr.mxu0 %v5701
    %6088 = vmatpush1.msra.mxu0 %v5700
    %6089 = vmatprep.subr.mxu0 %v5703
    %6090 = vmatpush1.msra.mxu0 %v5702
    %6091 = vmatprep.subr.mxu0 %v5705
    %6092 = vmatpush1.msra.mxu0 %v5704
    %6093 = vmatprep.subr.mxu0 %v5707
    %6094 = vmatpush1.msra.mxu0 %v5706
    %6095 = vmatprep.subr.mxu0 %v5709
    %6096 = vmatpush1.msra.mxu0 %v5708
    %6097 = vmatprep.subr.mxu0 0.0
    %6098 = vmatpush1.msra.mxu0 0.0
    %6099 = vmatprep.subr.mxu0 0.0
    %6100 = vmatpush1.msra.mxu0 0.0
    %6101 = vmatprep.subr.mxu0 0.0
    %6102 = vmatpush1.msra.mxu0 0.0
    %6103 = vmatprep.subr.mxu0 0.0
    %6104 = vmatpush1.msra.mxu0 0.0
    %6105 = vmatprep.subr.mxu0 0.0
    %6106 = vmatpush1.msra.mxu0 0.0
    %6107 = vmatprep.subr.mxu0 0.0
    %6108 = vmatpush1.msra.mxu0 0.0
    %6109 = vmatprep.subr.mxu0 0.0
    %6110 = vmatpush1.msra.mxu0 0.0
    %6111 = vmatprep.subr.mxu0 0.0
    %6112 = vmatpush1.msra.mxu0 0.0
    %6113 = vmatprep.subr.mxu0 0.0
    %6114 = vmatpush1.msra.mxu0 0.0
    %6115 = vmatprep.subr.mxu0 0.0
    %6116 = vmatpush1.msra.mxu0 0.0
    %6117 = vmatprep.subr.mxu0 0.0
    %6118 = vmatpush1.msra.mxu0 0.0
    %6119 = vmatprep.subr.mxu0 0.0
    %6120 = vmatpush1.msra.mxu0 0.0
    %6121 = vmatprep.subr.mxu0 0.0
    %6122 = vmatpush1.msra.mxu0 0.0
    %6123 = vmatprep.subr.mxu0 0.0
    %6124 = vmatpush1.msra.mxu0 0.0
    %6125 = vmatprep.subr.mxu0 0.0
    %6126 = vmatpush1.msra.mxu0 0.0
    %6127 = vmatprep.subr.mxu0 0.0
    %6128 = vmatpush1.msra.mxu0 0.0
    %6129 = vmatprep.subr.mxu0 0.0
    %6130 = vmatpush1.msra.mxu0 0.0
    %6131 = vmatprep.subr.mxu0 0.0
    %6132 = vmatpush1.msra.mxu0 0.0
    %6133 = vmatprep.subr.mxu0 0.0
    %6134 = vmatpush1.msra.mxu0 0.0
    %6135 = vmatprep.subr.mxu0 0.0
    %6136 = vmatpush1.msra.mxu0 0.0
    %6137 = vmatprep.mubr.f32.mxu0 0.0
    %6138 = vmatmul.mubr.f32.gmra.mrb[0].mxu0 %v5992
    %v6139 = vpop.f32.mrb[0].mxu0
    %v6140 = vadd.f32 %v6063, %v6139
    %v6141 = vpop.f32.mrb[0].mxu0
    %v6142 = vadd.f32 %v6065, %v6141
    %6143 = vmatprep.mubr.f32.mxu0 0.0
    %6144 = vmatmul.mubr.f32.gmra.mrb[0].mxu0 %v5994
    %v6145 = vpop.f32.mrb[0].mxu0
    %v6146 = vadd.f32 %v6069, %v6145
    %v6147 = vpop.f32.mrb[0].mxu0
    %v6148 = vadd.f32 %v6071, %v6147
    %6149 = vdwg.mxu0
    %v6150 = vld [vmem:[#allocation3] sm:$0xfc]
    %v6151 = vld [vmem:[#allocation3 + $0x8] sm:$0xfc]
    %v6152 = vld [vmem:[#allocation3 + $0x10] sm:$0xfc]
    %v6153 = vld [vmem:[#allocation3 + $0x30] sm:$0x3]
    %v6154 = vld [vmem:[#allocation3 + $0x38] sm:$0x3]
    %v6155 = vld [vmem:[#allocation3 + $0x40] sm:$0x3]
    %s6156 = scalar_lea.vmem [#allocation8], 1408
    %v6157 = vld [vmem:[%s6156] sm:$0xff]
    %v6158 = vld [vmem:[%s6156 + $0x8] sm:$0xff]
    %v6159 = vld [vmem:[%s6156 + $0x10] sm:$0xff]
    %v6160 = vld [vmem:[%s6156 + $0x18] sm:$0xff]
    %v6161 = vld [vmem:[%s6156 + $0x20] sm:$0xff]
    %v6162 = vld [vmem:[%s6156 + $0x28] sm:$0xff]
    %v6163 = vld [vmem:[%s6156 + $0x30] sm:$0xff]
    %v6164 = vld [vmem:[%s6156 + $0x38] sm:$0xff]
    %v6165 = vld [vmem:[%s6156 + $0x40] sm:$0xff]
    %v6166 = vld [vmem:[%s6156 + $0x48] sm:$0xff]
    %v6167 = vld [vmem:[%s6156 + $0x50] sm:$0xff]
    %v6168 = vld [vmem:[%s6156 + $0x58] sm:$0xff]
    %v6169 = vld [vmem:[%s6156 + $0x60] sm:$0xff]
    %v6170 = vld [vmem:[%s6156 + $0x68] sm:$0xff]
    %v6171 = vld [vmem:[%s6156 + $0x70] sm:$0xff]
    %v6172 = vld [vmem:[%s6156 + $0x78] sm:$0xff]
    %v6173 = vld [vmem:[%s6156 + $0x80] sm:$0xff]
    %v6174 = vld [vmem:[%s6156 + $0x88] sm:$0xff]
    %v6175 = vld [vmem:[%s6156 + $0x90] sm:$0xff]
    %v6176 = vld [vmem:[%s6156 + $0x98] sm:$0xff]
    %v6177 = vld [vmem:[%s6156 + $0xa0] sm:$0xff]
    %v6178 = vld [vmem:[%s6156 + $0xa8] sm:$0xff]
    %v6179 = vld [vmem:[%s6156 + $0xb0] sm:$0xff]
    %v6180 = vld [vmem:[%s6156 + $0xb8] sm:$0xff]
    %v6181 = vld [vmem:[%s6156 + $0xc0] sm:$0xff]
    %v6182 = vld [vmem:[%s6156 + $0xc8] sm:$0xff]
    %v6183 = vld [vmem:[%s6156 + $0xd0] sm:$0xff]
    %v6184 = vld [vmem:[%s6156 + $0xd8] sm:$0xff]
    %v6185 = vld [vmem:[%s6156 + $0xe0] sm:$0xff]
    %v6186 = vld [vmem:[%s6156 + $0xe8] sm:$0xff]
    %v6187 = vld [vmem:[%s6156 + $0xf0] sm:$0xff]
    %v6188 = vld [vmem:[%s6156 + $0xf8] sm:$0xff]
    %v6189 = vld [vmem:[%s6156 + $0x100] sm:$0xff]
    %v6190 = vld [vmem:[%s6156 + $0x108] sm:$0xff]
    %v6191 = vld [vmem:[%s6156 + $0x110] sm:$0xff]
    %v6192 = vld [vmem:[%s6156 + $0x118] sm:$0xff]
    %v6193 = vld [vmem:[%s6156 + $0x120] sm:$0xff]
    %v6194 = vld [vmem:[%s6156 + $0x128] sm:$0xff]
    %v6195 = vld [vmem:[%s6156 + $0x130] sm:$0xff]
    %v6196 = vld [vmem:[%s6156 + $0x138] sm:$0xff]
    %v6197 = vld [vmem:[%s6156 + $0x140] sm:$0xff]
    %v6198 = vld [vmem:[%s6156 + $0x148] sm:$0xff]
    %v6199 = vld [vmem:[%s6156 + $0x150] sm:$0xff]
    %v6200 = vld [vmem:[%s6156 + $0x158] sm:$0xff]
    %v6201 = vld [vmem:[%s6156 + $0x160] sm:$0xff]
    %v6202 = vld [vmem:[%s6156 + $0x168] sm:$0xff]
    %v6203 = vld [vmem:[%s6156 + $0x170] sm:$0xff]
    %v6204 = vld [vmem:[%s6156 + $0x178] sm:$0xff]
    %v6205 = vld [vmem:[%s6156 + $0x180] sm:$0xff]
    %v6206 = vld [vmem:[%s6156 + $0x188] sm:$0xff]
    %v6207 = vld [vmem:[%s6156 + $0x190] sm:$0xff]
    %v6208 = vld [vmem:[%s6156 + $0x198] sm:$0xff]
    %v6209 = vld [vmem:[%s6156 + $0x1a0] sm:$0xff]
    %v6210 = vld [vmem:[%s6156 + $0x1a8] sm:$0xff]
    %v6211 = vld [vmem:[%s6156 + $0x1b0] sm:$0xff]
    %v6212 = vld [vmem:[%s6156 + $0x1b8] sm:$0xff]
    %v6213 = vld [vmem:[%s6156 + $0x1c0] sm:$0xff]
    %v6214 = vld [vmem:[%s6156 + $0x1c8] sm:$0xff]
    %v6215 = vld [vmem:[%s6156 + $0x1d0] sm:$0xff]
    %v6216 = vld [vmem:[%s6156 + $0x1d8] sm:$0xff]
    %v6217 = vld [vmem:[%s6156 + $0x1e0] sm:$0xff]
    %v6218 = vld [vmem:[%s6156 + $0x1e8] sm:$0xff]
    %v6219 = vld [vmem:[%s6156 + $0x1f0] sm:$0xff]
    %v6220 = vld [vmem:[%s6156 + $0x1f8] sm:$0xff]
    %v6221 = vld [vmem:[%s6156 + $0x200] sm:$0xff]
    %v6222 = vld [vmem:[%s6156 + $0x208] sm:$0xff]
    %v6223 = vld [vmem:[%s6156 + $0x210] sm:$0xff]
    %v6224 = vld [vmem:[%s6156 + $0x218] sm:$0xff]
    %v6225 = vld [vmem:[%s6156 + $0x220] sm:$0xff]
    %v6226 = vld [vmem:[%s6156 + $0x228] sm:$0xff]
    %v6227 = vld [vmem:[%s6156 + $0x230] sm:$0xff]
    %v6228 = vld [vmem:[%s6156 + $0x238] sm:$0xff]
    %v6229 = vld [vmem:[%s6156 + $0x240] sm:$0xff]
    %v6230 = vld [vmem:[%s6156 + $0x248] sm:$0xff]
    %v6231 = vld [vmem:[%s6156 + $0x250] sm:$0xff]
    %v6232 = vld [vmem:[%s6156 + $0x258] sm:$0xff]
    %v6233 = vld [vmem:[%s6156 + $0x260] sm:$0xff]
    %v6234 = vld [vmem:[%s6156 + $0x268] sm:$0xff]
    %v6235 = vld [vmem:[%s6156 + $0x270] sm:$0xff]
    %v6236 = vld [vmem:[%s6156 + $0x278] sm:$0xff]
    %v6237 = vld [vmem:[%s6156 + $0x280] sm:$0xff]
    %v6238 = vld [vmem:[%s6156 + $0x288] sm:$0xff]
    %v6239 = vld [vmem:[%s6156 + $0x290] sm:$0xff]
    %v6240 = vld [vmem:[%s6156 + $0x298] sm:$0xff]
    %v6241 = vld [vmem:[%s6156 + $0x2a0] sm:$0xff]
    %v6242 = vld [vmem:[%s6156 + $0x2a8] sm:$0xff]
    %v6243 = vld [vmem:[%s6156 + $0x2b0] sm:$0xff]
    %v6244 = vld [vmem:[%s6156 + $0x2b8] sm:$0xff]
    %v6251 = vrot.slane %v6150, 2
    %v6252 = vrot.slane %v5619, 2
    %v6253 = vsel %vm1320, %v6251, %v6252
    %v6254 = vrot.slane %v6151, 2
    %v6255 = vrot.slane %v5620, 2
    %v6256 = vsel %vm1320, %v6254, %v6255
    %v6257 = vrot.slane %v6152, 2
    %v6258 = vrot.slane %v5621, 2
    %v6259 = vsel %vm1320, %v6257, %v6258
    %v6260 = vrot.slane %v6153, 2
    %v6261 = vsel %vm1320, %v6252, %v6260
    %v6262 = vrot.slane %v6154, 2
    %v6263 = vsel %vm1320, %v6255, %v6262
    %v6264 = vrot.slane %v6155, 2
    %v6265 = vsel %vm1320, %v6258, %v6264
    %v6270 = vsel %vm101, %v6259, 0
    %v6272 = vsel %vm101, %v6265, 0
    %6274 = vmatprep.subr.mxu0 %v6158
    %6275 = vmatpush1.msra.mxu0 %v6157
    %6276 = vmatprep.subr.mxu0 %v6160
    %6277 = vmatpush1.msra.mxu0 %v6159
    %6278 = vmatprep.subr.mxu0 %v6162
    %6279 = vmatpush1.msra.mxu0 %v6161
    %6280 = vmatprep.subr.mxu0 %v6164
    %6281 = vmatpush1.msra.mxu0 %v6163
    %6282 = vmatprep.subr.mxu0 %v6166
    %6283 = vmatpush1.msra.mxu0 %v6165
    %6284 = vmatprep.subr.mxu0 %v6168
    %6285 = vmatpush1.msra.mxu0 %v6167
    %6286 = vmatprep.subr.mxu0 %v6170
    %6287 = vmatpush1.msra.mxu0 %v6169
    %6288 = vmatprep.subr.mxu0 %v6172
    %6289 = vmatpush1.msra.mxu0 %v6171
    %6290 = vmatprep.subr.mxu0 %v6174
    %6291 = vmatpush1.msra.mxu0 %v6173
    %6292 = vmatprep.subr.mxu0 %v6176
    %6293 = vmatpush1.msra.mxu0 %v6175
    %6294 = vmatprep.subr.mxu0 %v6178
    %6295 = vmatpush1.msra.mxu0 %v6177
    %6296 = vmatprep.subr.mxu0 %v6180
    %6297 = vmatpush1.msra.mxu0 %v6179
    %6298 = vmatprep.subr.mxu0 %v6182
    %6299 = vmatpush1.msra.mxu0 %v6181
    %6300 = vmatprep.subr.mxu0 %v6184
    %6301 = vmatpush1.msra.mxu0 %v6183
    %6302 = vmatprep.subr.mxu0 %v6186
    %6303 = vmatpush1.msra.mxu0 %v6185
    %6304 = vmatprep.subr.mxu0 %v6188
    %6305 = vmatpush1.msra.mxu0 %v6187
    %6306 = vmatprep.subr.mxu0 %v6190
    %6307 = vmatpush1.msra.mxu0 %v6189
    %6308 = vmatprep.subr.mxu0 %v6192
    %6309 = vmatpush1.msra.mxu0 %v6191
    %6310 = vmatprep.subr.mxu0 %v6194
    %6311 = vmatpush1.msra.mxu0 %v6193
    %6312 = vmatprep.subr.mxu0 %v6196
    %6313 = vmatpush1.msra.mxu0 %v6195
    %6314 = vmatprep.subr.mxu0 %v6198
    %6315 = vmatpush1.msra.mxu0 %v6197
    %6316 = vmatprep.subr.mxu0 %v6200
    %6317 = vmatpush1.msra.mxu0 %v6199
    %6318 = vmatprep.subr.mxu0 %v6202
    %6319 = vmatpush1.msra.mxu0 %v6201
    %6320 = vmatprep.subr.mxu0 %v6204
    %6321 = vmatpush1.msra.mxu0 %v6203
    %6322 = vmatprep.subr.mxu0 %v6206
    %6323 = vmatpush1.msra.mxu0 %v6205
    %6324 = vmatprep.subr.mxu0 %v6208
    %6325 = vmatpush1.msra.mxu0 %v6207
    %6326 = vmatprep.subr.mxu0 %v6210
    %6327 = vmatpush1.msra.mxu0 %v6209
    %6328 = vmatprep.subr.mxu0 %v6212
    %6329 = vmatpush1.msra.mxu0 %v6211
    %6330 = vmatprep.subr.mxu0 %v6214
    %6331 = vmatpush1.msra.mxu0 %v6213
    %6332 = vmatprep.subr.mxu0 %v6216
    %6333 = vmatpush1.msra.mxu0 %v6215
    %6334 = vmatprep.subr.mxu0 %v6218
    %6335 = vmatpush1.msra.mxu0 %v6217
    %6336 = vmatprep.subr.mxu0 %v6220
    %6337 = vmatpush1.msra.mxu0 %v6219
    %6338 = vmatprep.mubr.f32.mxu0 %v6256
    %6339 = vmatmul.mubr.f32.gmra.mrb[0].mxu0 %v6253
    %v6340 = vpop.f32.mrb[0].mxu0
    %v6341 = vadd.f32 0.0, %v6340
    %v6342 = vpop.f32.mrb[0].mxu0
    %v6343 = vadd.f32 0.0, %v6342
    %6344 = vmatprep.mubr.f32.mxu0 %v6263
    %6345 = vmatmul.mubr.f32.gmra.mrb[0].mxu0 %v6261
    %v6346 = vpop.f32.mrb[0].mxu0
    %v6347 = vadd.f32 0.0, %v6346
    %v6348 = vpop.f32.mrb[0].mxu0
    %v6349 = vadd.f32 0.0, %v6348
    %6350 = vdwg.mxu0
    %6351 = vmatprep.subr.mxu0 %v6222
    %6352 = vmatpush1.msra.mxu0 %v6221
    %6353 = vmatprep.subr.mxu0 %v6224
    %6354 = vmatpush1.msra.mxu0 %v6223
    %6355 = vmatprep.subr.mxu0 %v6226
    %6356 = vmatpush1.msra.mxu0 %v6225
    %6357 = vmatprep.subr.mxu0 %v6228
    %6358 = vmatpush1.msra.mxu0 %v6227
    %6359 = vmatprep.subr.mxu0 %v6230
    %6360 = vmatpush1.msra.mxu0 %v6229
    %6361 = vmatprep.subr.mxu0 %v6232
    %6362 = vmatpush1.msra.mxu0 %v6231
    %6363 = vmatprep.subr.mxu0 %v6234
    %6364 = vmatpush1.msra.mxu0 %v6233
    %6365 = vmatprep.subr.mxu0 %v6236
    %6366 = vmatpush1.msra.mxu0 %v6235
    %6367 = vmatprep.subr.mxu0 %v6238
    %6368 = vmatpush1.msra.mxu0 %v6237
    %6369 = vmatprep.subr.mxu0 %v6240
    %6370 = vmatpush1.msra.mxu0 %v6239
    %6371 = vmatprep.subr.mxu0 %v6242
    %6372 = vmatpush1.msra.mxu0 %v6241
    %6373 = vmatprep.subr.mxu0 %v6244
    %6374 = vmatpush1.msra.mxu0 %v6243
    %6375 = vmatprep.subr.mxu0 0.0
    %6376 = vmatpush1.msra.mxu0 0.0
    %6377 = vmatprep.subr.mxu0 0.0
    %6378 = vmatpush1.msra.mxu0 0.0
    %6379 = vmatprep.subr.mxu0 0.0
    %6380 = vmatpush1.msra.mxu0 0.0
    %6381 = vmatprep.subr.mxu0 0.0
    %6382 = vmatpush1.msra.mxu0 0.0
    %6383 = vmatprep.subr.mxu0 0.0
    %6384 = vmatpush1.msra.mxu0 0.0
    %6385 = vmatprep.subr.mxu0 0.0
    %6386 = vmatpush1.msra.mxu0 0.0
    %6387 = vmatprep.subr.mxu0 0.0
    %6388 = vmatpush1.msra.mxu0 0.0
    %6389 = vmatprep.subr.mxu0 0.0
    %6390 = vmatpush1.msra.mxu0 0.0
    %6391 = vmatprep.subr.mxu0 0.0
    %6392 = vmatpush1.msra.mxu0 0.0
    %6393 = vmatprep.subr.mxu0 0.0
    %6394 = vmatpush1.msra.mxu0 0.0
    %6395 = vmatprep.subr.mxu0 0.0
    %6396 = vmatpush1.msra.mxu0 0.0
    %6397 = vmatprep.subr.mxu0 0.0
    %6398 = vmatpush1.msra.mxu0 0.0
    %6399 = vmatprep.subr.mxu0 0.0
    %6400 = vmatpush1.msra.mxu0 0.0
    %6401 = vmatprep.subr.mxu0 0.0
    %6402 = vmatpush1.msra.mxu0 0.0
    %6403 = vmatprep.subr.mxu0 0.0
    %6404 = vmatpush1.msra.mxu0 0.0
    %6405 = vmatprep.subr.mxu0 0.0
    %6406 = vmatpush1.msra.mxu0 0.0
    %6407 = vmatprep.subr.mxu0 0.0
    %6408 = vmatpush1.msra.mxu0 0.0
    %6409 = vmatprep.subr.mxu0 0.0
    %6410 = vmatpush1.msra.mxu0 0.0
    %6411 = vmatprep.subr.mxu0 0.0
    %6412 = vmatpush1.msra.mxu0 0.0
    %6413 = vmatprep.subr.mxu0 0.0
    %6414 = vmatpush1.msra.mxu0 0.0
    %6415 = vmatprep.mubr.f32.mxu0 0.0
    %6416 = vmatmul.mubr.f32.gmra.mrb[0].mxu0 %v6270
    %v6417 = vpop.f32.mrb[0].mxu0
    %v6418 = vadd.f32 %v6341, %v6417
    %v6419 = vpop.f32.mrb[0].mxu0
    %v6420 = vadd.f32 %v6343, %v6419
    %6421 = vmatprep.mubr.f32.mxu0 0.0
    %6422 = vmatmul.mubr.f32.gmra.mrb[0].mxu0 %v6272
    %v6423 = vpop.f32.mrb[0].mxu0
    %v6424 = vadd.f32 %v6347, %v6423
    %v6425 = vpop.f32.mrb[0].mxu0
    %v6426 = vadd.f32 %v6349, %v6425
    %6427 = vdwg.mxu0
    %v6428 = vadd.f32 %v6140, %v6418
    %v6429 = vadd.f32 %v6142, %v6420
    %v6430 = vadd.f32 %v6146, %v6424
    %v6431 = vadd.f32 %v6148, %v6426
    %v6432 = vld [vmem:[#allocation3] sm:$0xf8]
    %v6433 = vld [vmem:[#allocation3 + $0x8] sm:$0xf8]
    %v6434 = vld [vmem:[#allocation3 + $0x10] sm:$0xf8]
    %v6435 = vld [vmem:[#allocation3 + $0x30] sm:$0x7]
    %v6436 = vld [vmem:[#allocation3 + $0x38] sm:$0x7]
    %v6437 = vld [vmem:[#allocation3 + $0x40] sm:$0x7]
    %s6438 = scalar_lea.vmem [#allocation8], 2112
    %v6439 = vld [vmem:[%s6438] sm:$0xff]
    %v6440 = vld [vmem:[%s6438 + $0x8] sm:$0xff]
    %v6441 = vld [vmem:[%s6438 + $0x10] sm:$0xff]
    %v6442 = vld [vmem:[%s6438 + $0x18] sm:$0xff]
    %v6443 = vld [vmem:[%s6438 + $0x20] sm:$0xff]
    %v6444 = vld [vmem:[%s6438 + $0x28] sm:$0xff]
    %v6445 = vld [vmem:[%s6438 + $0x30] sm:$0xff]
    %v6446 = vld [vmem:[%s6438 + $0x38] sm:$0xff]
    %v6447 = vld [vmem:[%s6438 + $0x40] sm:$0xff]
    %v6448 = vld [vmem:[%s6438 + $0x48] sm:$0xff]
    %v6449 = vld [vmem:[%s6438 + $0x50] sm:$0xff]
    %v6450 = vld [vmem:[%s6438 + $0x58] sm:$0xff]
    %v6451 = vld [vmem:[%s6438 + $0x60] sm:$0xff]
    %v6452 = vld [vmem:[%s6438 + $0x68] sm:$0xff]
    %v6453 = vld [vmem:[%s6438 + $0x70] sm:$0xff]
    %v6454 = vld [vmem:[%s6438 + $0x78] sm:$0xff]
    %v6455 = vld [vmem:[%s6438 + $0x80] sm:$0xff]
    %v6456 = vld [vmem:[%s6438 + $0x88] sm:$0xff]
    %v6457 = vld [vmem:[%s6438 + $0x90] sm:$0xff]
    %v6458 = vld [vmem:[%s6438 + $0x98] sm:$0xff]
    %v6459 = vld [vmem:[%s6438 + $0xa0] sm:$0xff]
    %v6460 = vld [vmem:[%s6438 + $0xa8] sm:$0xff]
    %v6461 = vld [vmem:[%s6438 + $0xb0] sm:$0xff]
    %v6462 = vld [vmem:[%s6438 + $0xb8] sm:$0xff]
    %v6463 = vld [vmem:[%s6438 + $0xc0] sm:$0xff]
    %v6464 = vld [vmem:[%s6438 + $0xc8] sm:$0xff]
    %v6465 = vld [vmem:[%s6438 + $0xd0] sm:$0xff]
    %v6466 = vld [vmem:[%s6438 + $0xd8] sm:$0xff]
    %v6467 = vld [vmem:[%s6438 + $0xe0] sm:$0xff]
    %v6468 = vld [vmem:[%s6438 + $0xe8] sm:$0xff]
    %v6469 = vld [vmem:[%s6438 + $0xf0] sm:$0xff]
    %v6470 = vld [vmem:[%s6438 + $0xf8] sm:$0xff]
    %v6471 = vld [vmem:[%s6438 + $0x100] sm:$0xff]
    %v6472 = vld [vmem:[%s6438 + $0x108] sm:$0xff]
    %v6473 = vld [vmem:[%s6438 + $0x110] sm:$0xff]
    %v6474 = vld [vmem:[%s6438 + $0x118] sm:$0xff]
    %v6475 = vld [vmem:[%s6438 + $0x120] sm:$0xff]
    %v6476 = vld [vmem:[%s6438 + $0x128] sm:$0xff]
    %v6477 = vld [vmem:[%s6438 + $0x130] sm:$0xff]
    %v6478 = vld [vmem:[%s6438 + $0x138] sm:$0xff]
    %v6479 = vld [vmem:[%s6438 + $0x140] sm:$0xff]
    %v6480 = vld [vmem:[%s6438 + $0x148] sm:$0xff]
    %v6481 = vld [vmem:[%s6438 + $0x150] sm:$0xff]
    %v6482 = vld [vmem:[%s6438 + $0x158] sm:$0xff]
    %v6483 = vld [vmem:[%s6438 + $0x160] sm:$0xff]
    %v6484 = vld [vmem:[%s6438 + $0x168] sm:$0xff]
    %v6485 = vld [vmem:[%s6438 + $0x170] sm:$0xff]
    %v6486 = vld [vmem:[%s6438 + $0x178] sm:$0xff]
    %v6487 = vld [vmem:[%s6438 + $0x180] sm:$0xff]
    %v6488 = vld [vmem:[%s6438 + $0x188] sm:$0xff]
    %v6489 = vld [vmem:[%s6438 + $0x190] sm:$0xff]
    %v6490 = vld [vmem:[%s6438 + $0x198] sm:$0xff]
    %v6491 = vld [vmem:[%s6438 + $0x1a0] sm:$0xff]
    %v6492 = vld [vmem:[%s6438 + $0x1a8] sm:$0xff]
    %v6493 = vld [vmem:[%s6438 + $0x1b0] sm:$0xff]
    %v6494 = vld [vmem:[%s6438 + $0x1b8] sm:$0xff]
    %v6495 = vld [vmem:[%s6438 + $0x1c0] sm:$0xff]
    %v6496 = vld [vmem:[%s6438 + $0x1c8] sm:$0xff]
    %v6497 = vld [vmem:[%s6438 + $0x1d0] sm:$0xff]
    %v6498 = vld [vmem:[%s6438 + $0x1d8] sm:$0xff]
    %v6499 = vld [vmem:[%s6438 + $0x1e0] sm:$0xff]
    %v6500 = vld [vmem:[%s6438 + $0x1e8] sm:$0xff]
    %v6501 = vld [vmem:[%s6438 + $0x1f0] sm:$0xff]
    %v6502 = vld [vmem:[%s6438 + $0x1f8] sm:$0xff]
    %v6503 = vld [vmem:[%s6438 + $0x200] sm:$0xff]
    %v6504 = vld [vmem:[%s6438 + $0x208] sm:$0xff]
    %v6505 = vld [vmem:[%s6438 + $0x210] sm:$0xff]
    %v6506 = vld [vmem:[%s6438 + $0x218] sm:$0xff]
    %v6507 = vld [vmem:[%s6438 + $0x220] sm:$0xff]
    %v6508 = vld [vmem:[%s6438 + $0x228] sm:$0xff]
    %v6509 = vld [vmem:[%s6438 + $0x230] sm:$0xff]
    %v6510 = vld [vmem:[%s6438 + $0x238] sm:$0xff]
    %v6511 = vld [vmem:[%s6438 + $0x240] sm:$0xff]
    %v6512 = vld [vmem:[%s6438 + $0x248] sm:$0xff]
    %v6513 = vld [vmem:[%s6438 + $0x250] sm:$0xff]
    %v6514 = vld [vmem:[%s6438 + $0x258] sm:$0xff]
    %v6515 = vld [vmem:[%s6438 + $0x260] sm:$0xff]
    %v6516 = vld [vmem:[%s6438 + $0x268] sm:$0xff]
    %v6517 = vld [vmem:[%s6438 + $0x270] sm:$0xff]
    %v6518 = vld [vmem:[%s6438 + $0x278] sm:$0xff]
    %v6519 = vld [vmem:[%s6438 + $0x280] sm:$0xff]
    %v6520 = vld [vmem:[%s6438 + $0x288] sm:$0xff]
    %v6521 = vld [vmem:[%s6438 + $0x290] sm:$0xff]
    %v6522 = vld [vmem:[%s6438 + $0x298] sm:$0xff]
    %v6523 = vld [vmem:[%s6438 + $0x2a0] sm:$0xff]
    %v6524 = vld [vmem:[%s6438 + $0x2a8] sm:$0xff]
    %v6525 = vld [vmem:[%s6438 + $0x2b0] sm:$0xff]
    %v6526 = vld [vmem:[%s6438 + $0x2b8] sm:$0xff]
    %v6533 = vrot.slane %v6432, 3
    %v6534 = vrot.slane %v5619, 3
    %v6535 = vsel %vm1801, %v6533, %v6534
    %v6536 = vrot.slane %v6433, 3
    %v6537 = vrot.slane %v5620, 3
    %v6538 = vsel %vm1801, %v6536, %v6537
    %v6539 = vrot.slane %v6434, 3
    %v6540 = vrot.slane %v5621, 3
    %v6541 = vsel %vm1801, %v6539, %v6540
    %v6542 = vrot.slane %v6435, 3
    %v6543 = vsel %vm1801, %v6534, %v6542
    %v6544 = vrot.slane %v6436, 3
    %v6545 = vsel %vm1801, %v6537, %v6544
    %v6546 = vrot.slane %v6437, 3
    %v6547 = vsel %vm1801, %v6540, %v6546
    %v6552 = vsel %vm101, %v6541, 0
    %v6554 = vsel %vm101, %v6547, 0
    %6556 = vmatprep.subr.mxu0 %v6440
    %6557 = vmatpush1.msra.mxu0 %v6439
    %6558 = vmatprep.subr.mxu0 %v6442
    %6559 = vmatpush1.msra.mxu0 %v6441
    %6560 = vmatprep.subr.mxu0 %v6444
    %6561 = vmatpush1.msra.mxu0 %v6443
    %6562 = vmatprep.subr.mxu0 %v6446
    %6563 = vmatpush1.msra.mxu0 %v6445
    %6564 = vmatprep.subr.mxu0 %v6448
    %6565 = vmatpush1.msra.mxu0 %v6447
    %6566 = vmatprep.subr.mxu0 %v6450
    %6567 = vmatpush1.msra.mxu0 %v6449
    %6568 = vmatprep.subr.mxu0 %v6452
    %6569 = vmatpush1.msra.mxu0 %v6451
    %6570 = vmatprep.subr.mxu0 %v6454
    %6571 = vmatpush1.msra.mxu0 %v6453
    %6572 = vmatprep.subr.mxu0 %v6456
    %6573 = vmatpush1.msra.mxu0 %v6455
    %6574 = vmatprep.subr.mxu0 %v6458
    %6575 = vmatpush1.msra.mxu0 %v6457
    %6576 = vmatprep.subr.mxu0 %v6460
    %6577 = vmatpush1.msra.mxu0 %v6459
    %6578 = vmatprep.subr.mxu0 %v6462
    %6579 = vmatpush1.msra.mxu0 %v6461
    %6580 = vmatprep.subr.mxu0 %v6464
    %6581 = vmatpush1.msra.mxu0 %v6463
    %6582 = vmatprep.subr.mxu0 %v6466
    %6583 = vmatpush1.msra.mxu0 %v6465
    %6584 = vmatprep.subr.mxu0 %v6468
    %6585 = vmatpush1.msra.mxu0 %v6467
    %6586 = vmatprep.subr.mxu0 %v6470
    %6587 = vmatpush1.msra.mxu0 %v6469
    %6588 = vmatprep.subr.mxu0 %v6472
    %6589 = vmatpush1.msra.mxu0 %v6471
    %6590 = vmatprep.subr.mxu0 %v6474
    %6591 = vmatpush1.msra.mxu0 %v6473
    %6592 = vmatprep.subr.mxu0 %v6476
    %6593 = vmatpush1.msra.mxu0 %v6475
    %6594 = vmatprep.subr.mxu0 %v6478
    %6595 = vmatpush1.msra.mxu0 %v6477
    %6596 = vmatprep.subr.mxu0 %v6480
    %6597 = vmatpush1.msra.mxu0 %v6479
    %6598 = vmatprep.subr.mxu0 %v6482
    %6599 = vmatpush1.msra.mxu0 %v6481
    %6600 = vmatprep.subr.mxu0 %v6484
    %6601 = vmatpush1.msra.mxu0 %v6483
    %6602 = vmatprep.subr.mxu0 %v6486
    %6603 = vmatpush1.msra.mxu0 %v6485
    %6604 = vmatprep.subr.mxu0 %v6488
    %6605 = vmatpush1.msra.mxu0 %v6487
    %6606 = vmatprep.subr.mxu0 %v6490
    %6607 = vmatpush1.msra.mxu0 %v6489
    %6608 = vmatprep.subr.mxu0 %v6492
    %6609 = vmatpush1.msra.mxu0 %v6491
    %6610 = vmatprep.subr.mxu0 %v6494
    %6611 = vmatpush1.msra.mxu0 %v6493
    %6612 = vmatprep.subr.mxu0 %v6496
    %6613 = vmatpush1.msra.mxu0 %v6495
    %6614 = vmatprep.subr.mxu0 %v6498
    %6615 = vmatpush1.msra.mxu0 %v6497
    %6616 = vmatprep.subr.mxu0 %v6500
    %6617 = vmatpush1.msra.mxu0 %v6499
    %6618 = vmatprep.subr.mxu0 %v6502
    %6619 = vmatpush1.msra.mxu0 %v6501
    %6620 = vmatprep.mubr.f32.mxu0 %v6538
    %6621 = vmatmul.mubr.f32.gmra.mrb[0].mxu0 %v6535
    %v6622 = vpop.f32.mrb[0].mxu0
    %v6623 = vadd.f32 0.0, %v6622
    %v6624 = vpop.f32.mrb[0].mxu0
    %v6625 = vadd.f32 0.0, %v6624
    %6626 = vmatprep.mubr.f32.mxu0 %v6545
    %6627 = vmatmul.mubr.f32.gmra.mrb[0].mxu0 %v6543
    %v6628 = vpop.f32.mrb[0].mxu0
    %v6629 = vadd.f32 0.0, %v6628
    %v6630 = vpop.f32.mrb[0].mxu0
    %v6631 = vadd.f32 0.0, %v6630
    %6632 = vdwg.mxu0
    %6633 = vmatprep.subr.mxu0 %v6504
    %6634 = vmatpush1.msra.mxu0 %v6503
    %6635 = vmatprep.subr.mxu0 %v6506
    %6636 = vmatpush1.msra.mxu0 %v6505
    %6637 = vmatprep.subr.mxu0 %v6508
    %6638 = vmatpush1.msra.mxu0 %v6507
    %6639 = vmatprep.subr.mxu0 %v6510
    %6640 = vmatpush1.msra.mxu0 %v6509
    %6641 = vmatprep.subr.mxu0 %v6512
    %6642 = vmatpush1.msra.mxu0 %v6511
    %6643 = vmatprep.subr.mxu0 %v6514
    %6644 = vmatpush1.msra.mxu0 %v6513
    %6645 = vmatprep.subr.mxu0 %v6516
    %6646 = vmatpush1.msra.mxu0 %v6515
    %6647 = vmatprep.subr.mxu0 %v6518
    %6648 = vmatpush1.msra.mxu0 %v6517
    %6649 = vmatprep.subr.mxu0 %v6520
    %6650 = vmatpush1.msra.mxu0 %v6519
    %6651 = vmatprep.subr.mxu0 %v6522
    %6652 = vmatpush1.msra.mxu0 %v6521
    %6653 = vmatprep.subr.mxu0 %v6524
    %6654 = vmatpush1.msra.mxu0 %v6523
    %6655 = vmatprep.subr.mxu0 %v6526
    %6656 = vmatpush1.msra.mxu0 %v6525
    %6657 = vmatprep.subr.mxu0 0.0
    %6658 = vmatpush1.msra.mxu0 0.0
    %6659 = vmatprep.subr.mxu0 0.0
    %6660 = vmatpush1.msra.mxu0 0.0
    %6661 = vmatprep.subr.mxu0 0.0
    %6662 = vmatpush1.msra.mxu0 0.0
    %6663 = vmatprep.subr.mxu0 0.0
    %6664 = vmatpush1.msra.mxu0 0.0
    %6665 = vmatprep.subr.mxu0 0.0
    %6666 = vmatpush1.msra.mxu0 0.0
    %6667 = vmatprep.subr.mxu0 0.0
    %6668 = vmatpush1.msra.mxu0 0.0
    %6669 = vmatprep.subr.mxu0 0.0
    %6670 = vmatpush1.msra.mxu0 0.0
    %6671 = vmatprep.subr.mxu0 0.0
    %6672 = vmatpush1.msra.mxu0 0.0
    %6673 = vmatprep.subr.mxu0 0.0
    %6674 = vmatpush1.msra.mxu0 0.0
    %6675 = vmatprep.subr.mxu0 0.0
    %6676 = vmatpush1.msra.mxu0 0.0
    %6677 = vmatprep.subr.mxu0 0.0
    %6678 = vmatpush1.msra.mxu0 0.0
    %6679 = vmatprep.subr.mxu0 0.0
    %6680 = vmatpush1.msra.mxu0 0.0
    %6681 = vmatprep.subr.mxu0 0.0
    %6682 = vmatpush1.msra.mxu0 0.0
    %6683 = vmatprep.subr.mxu0 0.0
    %6684 = vmatpush1.msra.mxu0 0.0
    %6685 = vmatprep.subr.mxu0 0.0
    %6686 = vmatpush1.msra.mxu0 0.0
    %6687 = vmatprep.subr.mxu0 0.0
    %6688 = vmatpush1.msra.mxu0 0.0
    %6689 = vmatprep.subr.mxu0 0.0
    %6690 = vmatpush1.msra.mxu0 0.0
    %6691 = vmatprep.subr.mxu0 0.0
    %6692 = vmatpush1.msra.mxu0 0.0
    %6693 = vmatprep.subr.mxu0 0.0
    %6694 = vmatpush1.msra.mxu0 0.0
    %6695 = vmatprep.subr.mxu0 0.0
    %6696 = vmatpush1.msra.mxu0 0.0
    %6697 = vmatprep.mubr.f32.mxu0 0.0
    %6698 = vmatmul.mubr.f32.gmra.mrb[0].mxu0 %v6552
    %v6699 = vpop.f32.mrb[0].mxu0
    %v6700 = vadd.f32 %v6623, %v6699
    %v6701 = vpop.f32.mrb[0].mxu0
    %v6702 = vadd.f32 %v6625, %v6701
    %6703 = vmatprep.mubr.f32.mxu0 0.0
    %6704 = vmatmul.mubr.f32.gmra.mrb[0].mxu0 %v6554
    %v6705 = vpop.f32.mrb[0].mxu0
    %v6706 = vadd.f32 %v6629, %v6705
    %v6707 = vpop.f32.mrb[0].mxu0
    %v6708 = vadd.f32 %v6631, %v6707
    %6709 = vdwg.mxu0
    %v6710 = vadd.f32 %v6428, %v6700
    %v6711 = vadd.f32 %v6429, %v6702
    %v6712 = vadd.f32 %v6430, %v6706
    %v6713 = vadd.f32 %v6431, %v6708
    %v6714 = vld [vmem:[#allocation3] sm:$0xf0]
    %v6715 = vld [vmem:[#allocation3 + $0x8] sm:$0xf0]
    %v6716 = vld [vmem:[#allocation3 + $0x10] sm:$0xf0]
    %v6717 = vld [vmem:[#allocation3 + $0x30] sm:$0xf]
    %v6718 = vld [vmem:[#allocation3 + $0x38] sm:$0xf]
    %v6719 = vld [vmem:[#allocation3 + $0x40] sm:$0xf]
    %s6720 = scalar_lea.vmem [#allocation8], 2816
    %v6721 = vld [vmem:[%s6720] sm:$0xff]
    %v6722 = vld [vmem:[%s6720 + $0x8] sm:$0xff]
    %v6723 = vld [vmem:[%s6720 + $0x10] sm:$0xff]
    %v6724 = vld [vmem:[%s6720 + $0x18] sm:$0xff]
    %v6725 = vld [vmem:[%s6720 + $0x20] sm:$0xff]
    %v6726 = vld [vmem:[%s6720 + $0x28] sm:$0xff]
    %v6727 = vld [vmem:[%s6720 + $0x30] sm:$0xff]
    %v6728 = vld [vmem:[%s6720 + $0x38] sm:$0xff]
    %v6729 = vld [vmem:[%s6720 + $0x40] sm:$0xff]
    %v6730 = vld [vmem:[%s6720 + $0x48] sm:$0xff]
    %v6731 = vld [vmem:[%s6720 + $0x50] sm:$0xff]
    %v6732 = vld [vmem:[%s6720 + $0x58] sm:$0xff]
    %v6733 = vld [vmem:[%s6720 + $0x60] sm:$0xff]
    %v6734 = vld [vmem:[%s6720 + $0x68] sm:$0xff]
    %v6735 = vld [vmem:[%s6720 + $0x70] sm:$0xff]
    %v6736 = vld [vmem:[%s6720 + $0x78] sm:$0xff]
    %v6737 = vld [vmem:[%s6720 + $0x80] sm:$0xff]
    %v6738 = vld [vmem:[%s6720 + $0x88] sm:$0xff]
    %v6739 = vld [vmem:[%s6720 + $0x90] sm:$0xff]
    %v6740 = vld [vmem:[%s6720 + $0x98] sm:$0xff]
    %v6741 = vld [vmem:[%s6720 + $0xa0] sm:$0xff]
    %v6742 = vld [vmem:[%s6720 + $0xa8] sm:$0xff]
    %v6743 = vld [vmem:[%s6720 + $0xb0] sm:$0xff]
    %v6744 = vld [vmem:[%s6720 + $0xb8] sm:$0xff]
    %v6745 = vld [vmem:[%s6720 + $0xc0] sm:$0xff]
    %v6746 = vld [vmem:[%s6720 + $0xc8] sm:$0xff]
    %v6747 = vld [vmem:[%s6720 + $0xd0] sm:$0xff]
    %v6748 = vld [vmem:[%s6720 + $0xd8] sm:$0xff]
    %v6749 = vld [vmem:[%s6720 + $0xe0] sm:$0xff]
    %v6750 = vld [vmem:[%s6720 + $0xe8] sm:$0xff]
    %v6751 = vld [vmem:[%s6720 + $0xf0] sm:$0xff]
    %v6752 = vld [vmem:[%s6720 + $0xf8] sm:$0xff]
    %v6753 = vld [vmem:[%s6720 + $0x100] sm:$0xff]
    %v6754 = vld [vmem:[%s6720 + $0x108] sm:$0xff]
    %v6755 = vld [vmem:[%s6720 + $0x110] sm:$0xff]
    %v6756 = vld [vmem:[%s6720 + $0x118] sm:$0xff]
    %v6757 = vld [vmem:[%s6720 + $0x120] sm:$0xff]
    %v6758 = vld [vmem:[%s6720 + $0x128] sm:$0xff]
    %v6759 = vld [vmem:[%s6720 + $0x130] sm:$0xff]
    %v6760 = vld [vmem:[%s6720 + $0x138] sm:$0xff]
    %v6761 = vld [vmem:[%s6720 + $0x140] sm:$0xff]
    %v6762 = vld [vmem:[%s6720 + $0x148] sm:$0xff]
    %v6763 = vld [vmem:[%s6720 + $0x150] sm:$0xff]
    %v6764 = vld [vmem:[%s6720 + $0x158] sm:$0xff]
    %v6765 = vld [vmem:[%s6720 + $0x160] sm:$0xff]
    %v6766 = vld [vmem:[%s6720 + $0x168] sm:$0xff]
    %v6767 = vld [vmem:[%s6720 + $0x170] sm:$0xff]
    %v6768 = vld [vmem:[%s6720 + $0x178] sm:$0xff]
    %v6769 = vld [vmem:[%s6720 + $0x180] sm:$0xff]
    %v6770 = vld [vmem:[%s6720 + $0x188] sm:$0xff]
    %v6771 = vld [vmem:[%s6720 + $0x190] sm:$0xff]
    %v6772 = vld [vmem:[%s6720 + $0x198] sm:$0xff]
    %v6773 = vld [vmem:[%s6720 + $0x1a0] sm:$0xff]
    %v6774 = vld [vmem:[%s6720 + $0x1a8] sm:$0xff]
    %v6775 = vld [vmem:[%s6720 + $0x1b0] sm:$0xff]
    %v6776 = vld [vmem:[%s6720 + $0x1b8] sm:$0xff]
    %v6777 = vld [vmem:[%s6720 + $0x1c0] sm:$0xff]
    %v6778 = vld [vmem:[%s6720 + $0x1c8] sm:$0xff]
    %v6779 = vld [vmem:[%s6720 + $0x1d0] sm:$0xff]
    %v6780 = vld [vmem:[%s6720 + $0x1d8] sm:$0xff]
    %v6781 = vld [vmem:[%s6720 + $0x1e0] sm:$0xff]
    %v6782 = vld [vmem:[%s6720 + $0x1e8] sm:$0xff]
    %v6783 = vld [vmem:[%s6720 + $0x1f0] sm:$0xff]
    %v6784 = vld [vmem:[%s6720 + $0x1f8] sm:$0xff]
    %v6785 = vld [vmem:[%s6720 + $0x200] sm:$0xff]
    %v6786 = vld [vmem:[%s6720 + $0x208] sm:$0xff]
    %v6787 = vld [vmem:[%s6720 + $0x210] sm:$0xff]
    %v6788 = vld [vmem:[%s6720 + $0x218] sm:$0xff]
    %v6789 = vld [vmem:[%s6720 + $0x220] sm:$0xff]
    %v6790 = vld [vmem:[%s6720 + $0x228] sm:$0xff]
    %v6791 = vld [vmem:[%s6720 + $0x230] sm:$0xff]
    %v6792 = vld [vmem:[%s6720 + $0x238] sm:$0xff]
    %v6793 = vld [vmem:[%s6720 + $0x240] sm:$0xff]
    %v6794 = vld [vmem:[%s6720 + $0x248] sm:$0xff]
    %v6795 = vld [vmem:[%s6720 + $0x250] sm:$0xff]
    %v6796 = vld [vmem:[%s6720 + $0x258] sm:$0xff]
    %v6797 = vld [vmem:[%s6720 + $0x260] sm:$0xff]
    %v6798 = vld [vmem:[%s6720 + $0x268] sm:$0xff]
    %v6799 = vld [vmem:[%s6720 + $0x270] sm:$0xff]
    %v6800 = vld [vmem:[%s6720 + $0x278] sm:$0xff]
    %v6801 = vld [vmem:[%s6720 + $0x280] sm:$0xff]
    %v6802 = vld [vmem:[%s6720 + $0x288] sm:$0xff]
    %v6803 = vld [vmem:[%s6720 + $0x290] sm:$0xff]
    %v6804 = vld [vmem:[%s6720 + $0x298] sm:$0xff]
    %v6805 = vld [vmem:[%s6720 + $0x2a0] sm:$0xff]
    %v6806 = vld [vmem:[%s6720 + $0x2a8] sm:$0xff]
    %v6807 = vld [vmem:[%s6720 + $0x2b0] sm:$0xff]
    %v6808 = vld [vmem:[%s6720 + $0x2b8] sm:$0xff]
    %v6815 = vrot.slane %v6714, 4
    %v6816 = vrot.slane %v5619, 4
    %v6817 = vsel %vm2282, %v6815, %v6816
    %v6818 = vrot.slane %v6715, 4
    %v6819 = vrot.slane %v5620, 4
    %v6820 = vsel %vm2282, %v6818, %v6819
    %v6821 = vrot.slane %v6716, 4
    %v6822 = vrot.slane %v5621, 4
    %v6823 = vsel %vm2282, %v6821, %v6822
    %v6824 = vrot.slane %v6717, 4
    %v6825 = vsel %vm2282, %v6816, %v6824
    %v6826 = vrot.slane %v6718, 4
    %v6827 = vsel %vm2282, %v6819, %v6826
    %v6828 = vrot.slane %v6719, 4
    %v6829 = vsel %vm2282, %v6822, %v6828
    %v6834 = vsel %vm101, %v6823, 0
    %v6836 = vsel %vm101, %v6829, 0
    %6838 = vmatprep.subr.mxu0 %v6722
    %6839 = vmatpush1.msra.mxu0 %v6721
    %6840 = vmatprep.subr.mxu0 %v6724
    %6841 = vmatpush1.msra.mxu0 %v6723
    %6842 = vmatprep.subr.mxu0 %v6726
    %6843 = vmatpush1.msra.mxu0 %v6725
    %6844 = vmatprep.subr.mxu0 %v6728
    %6845 = vmatpush1.msra.mxu0 %v6727
    %6846 = vmatprep.subr.mxu0 %v6730
    %6847 = vmatpush1.msra.mxu0 %v6729
    %6848 = vmatprep.subr.mxu0 %v6732
    %6849 = vmatpush1.msra.mxu0 %v6731
    %6850 = vmatprep.subr.mxu0 %v6734
    %6851 = vmatpush1.msra.mxu0 %v6733
    %6852 = vmatprep.subr.mxu0 %v6736
    %6853 = vmatpush1.msra.mxu0 %v6735
    %6854 = vmatprep.subr.mxu0 %v6738
    %6855 = vmatpush1.msra.mxu0 %v6737
    %6856 = vmatprep.subr.mxu0 %v6740
    %6857 = vmatpush1.msra.mxu0 %v6739
    %6858 = vmatprep.subr.mxu0 %v6742
    %6859 = vmatpush1.msra.mxu0 %v6741
    %6860 = vmatprep.subr.mxu0 %v6744
    %6861 = vmatpush1.msra.mxu0 %v6743
    %6862 = vmatprep.subr.mxu0 %v6746
    %6863 = vmatpush1.msra.mxu0 %v6745
    %6864 = vmatprep.subr.mxu0 %v6748
    %6865 = vmatpush1.msra.mxu0 %v6747
    %6866 = vmatprep.subr.mxu0 %v6750
    %6867 = vmatpush1.msra.mxu0 %v6749
    %6868 = vmatprep.subr.mxu0 %v6752
    %6869 = vmatpush1.msra.mxu0 %v6751
    %6870 = vmatprep.subr.mxu0 %v6754
    %6871 = vmatpush1.msra.mxu0 %v6753
    %6872 = vmatprep.subr.mxu0 %v6756
    %6873 = vmatpush1.msra.mxu0 %v6755
    %6874 = vmatprep.subr.mxu0 %v6758
    %6875 = vmatpush1.msra.mxu0 %v6757
    %6876 = vmatprep.subr.mxu0 %v6760
    %6877 = vmatpush1.msra.mxu0 %v6759
    %6878 = vmatprep.subr.mxu0 %v6762
    %6879 = vmatpush1.msra.mxu0 %v6761
    %6880 = vmatprep.subr.mxu0 %v6764
    %6881 = vmatpush1.msra.mxu0 %v6763
    %6882 = vmatprep.subr.mxu0 %v6766
    %6883 = vmatpush1.msra.mxu0 %v6765
    %6884 = vmatprep.subr.mxu0 %v6768
    %6885 = vmatpush1.msra.mxu0 %v6767
    %6886 = vmatprep.subr.mxu0 %v6770
    %6887 = vmatpush1.msra.mxu0 %v6769
    %6888 = vmatprep.subr.mxu0 %v6772
    %6889 = vmatpush1.msra.mxu0 %v6771
    %6890 = vmatprep.subr.mxu0 %v6774
    %6891 = vmatpush1.msra.mxu0 %v6773
    %6892 = vmatprep.subr.mxu0 %v6776
    %6893 = vmatpush1.msra.mxu0 %v6775
    %6894 = vmatprep.subr.mxu0 %v6778
    %6895 = vmatpush1.msra.mxu0 %v6777
    %6896 = vmatprep.subr.mxu0 %v6780
    %6897 = vmatpush1.msra.mxu0 %v6779
    %6898 = vmatprep.subr.mxu0 %v6782
    %6899 = vmatpush1.msra.mxu0 %v6781
    %6900 = vmatprep.subr.mxu0 %v6784
    %6901 = vmatpush1.msra.mxu0 %v6783
    %6902 = vmatprep.mubr.f32.mxu0 %v6820
    %6903 = vmatmul.mubr.f32.gmra.mrb[0].mxu0 %v6817
    %v6904 = vpop.f32.mrb[0].mxu0
    %v6905 = vadd.f32 0.0, %v6904
    %v6906 = vpop.f32.mrb[0].mxu0
    %v6907 = vadd.f32 0.0, %v6906
    %6908 = vmatprep.mubr.f32.mxu0 %v6827
    %6909 = vmatmul.mubr.f32.gmra.mrb[0].mxu0 %v6825
    %v6910 = vpop.f32.mrb[0].mxu0
    %v6911 = vadd.f32 0.0, %v6910
    %v6912 = vpop.f32.mrb[0].mxu0
    %v6913 = vadd.f32 0.0, %v6912
    %6914 = vdwg.mxu0
    %6915 = vmatprep.subr.mxu0 %v6786
    %6916 = vmatpush1.msra.mxu0 %v6785
    %6917 = vmatprep.subr.mxu0 %v6788
    %6918 = vmatpush1.msra.mxu0 %v6787
    %6919 = vmatprep.subr.mxu0 %v6790
    %6920 = vmatpush1.msra.mxu0 %v6789
    %6921 = vmatprep.subr.mxu0 %v6792
    %6922 = vmatpush1.msra.mxu0 %v6791
    %6923 = vmatprep.subr.mxu0 %v6794
    %6924 = vmatpush1.msra.mxu0 %v6793
    %6925 = vmatprep.subr.mxu0 %v6796
    %6926 = vmatpush1.msra.mxu0 %v6795
    %6927 = vmatprep.subr.mxu0 %v6798
    %6928 = vmatpush1.msra.mxu0 %v6797
    %6929 = vmatprep.subr.mxu0 %v6800
    %6930 = vmatpush1.msra.mxu0 %v6799
    %6931 = vmatprep.subr.mxu0 %v6802
    %6932 = vmatpush1.msra.mxu0 %v6801
    %6933 = vmatprep.subr.mxu0 %v6804
    %6934 = vmatpush1.msra.mxu0 %v6803
    %6935 = vmatprep.subr.mxu0 %v6806
    %6936 = vmatpush1.msra.mxu0 %v6805
    %6937 = vmatprep.subr.mxu0 %v6808
    %6938 = vmatpush1.msra.mxu0 %v6807
    %6939 = vmatprep.subr.mxu0 0.0
    %6940 = vmatpush1.msra.mxu0 0.0
    %6941 = vmatprep.subr.mxu0 0.0
    %6942 = vmatpush1.msra.mxu0 0.0
    %6943 = vmatprep.subr.mxu0 0.0
    %6944 = vmatpush1.msra.mxu0 0.0
    %6945 = vmatprep.subr.mxu0 0.0
    %6946 = vmatpush1.msra.mxu0 0.0
    %6947 = vmatprep.subr.mxu0 0.0
    %6948 = vmatpush1.msra.mxu0 0.0
    %6949 = vmatprep.subr.mxu0 0.0
    %6950 = vmatpush1.msra.mxu0 0.0
    %6951 = vmatprep.subr.mxu0 0.0
    %6952 = vmatpush1.msra.mxu0 0.0
    %6953 = vmatprep.subr.mxu0 0.0
    %6954 = vmatpush1.msra.mxu0 0.0
    %6955 = vmatprep.subr.mxu0 0.0
    %6956 = vmatpush1.msra.mxu0 0.0
    %6957 = vmatprep.subr.mxu0 0.0
    %6958 = vmatpush1.msra.mxu0 0.0
    %6959 = vmatprep.subr.mxu0 0.0
    %6960 = vmatpush1.msra.mxu0 0.0
    %6961 = vmatprep.subr.mxu0 0.0
    %6962 = vmatpush1.msra.mxu0 0.0
    %6963 = vmatprep.subr.mxu0 0.0
    %6964 = vmatpush1.msra.mxu0 0.0
    %6965 = vmatprep.subr.mxu0 0.0
    %6966 = vmatpush1.msra.mxu0 0.0
    %6967 = vmatprep.subr.mxu0 0.0
    %6968 = vmatpush1.msra.mxu0 0.0
    %6969 = vmatprep.subr.mxu0 0.0
    %6970 = vmatpush1.msra.mxu0 0.0
    %6971 = vmatprep.subr.mxu0 0.0
    %6972 = vmatpush1.msra.mxu0 0.0
    %6973 = vmatprep.subr.mxu0 0.0
    %6974 = vmatpush1.msra.mxu0 0.0
    %6975 = vmatprep.subr.mxu0 0.0
    %6976 = vmatpush1.msra.mxu0 0.0
    %6977 = vmatprep.subr.mxu0 0.0
    %6978 = vmatpush1.msra.mxu0 0.0
    %6979 = vmatprep.mubr.f32.mxu0 0.0
    %6980 = vmatmul.mubr.f32.gmra.mrb[0].mxu0 %v6834
    %v6981 = vpop.f32.mrb[0].mxu0
    %v6982 = vadd.f32 %v6905, %v6981
    %v6983 = vpop.f32.mrb[0].mxu0
    %v6984 = vadd.f32 %v6907, %v6983
    %6985 = vmatprep.mubr.f32.mxu0 0.0
    %6986 = vmatmul.mubr.f32.gmra.mrb[0].mxu0 %v6836
    %v6987 = vpop.f32.mrb[0].mxu0
    %v6988 = vadd.f32 %v6911, %v6987
    %v6989 = vpop.f32.mrb[0].mxu0
    %v6990 = vadd.f32 %v6913, %v6989
    %6991 = vdwg.mxu0
    %v6992 = vadd.f32 %v6710, %v6982
    %v6993 = vadd.f32 %v6711, %v6984
    %v6994 = vadd.f32 %v6712, %v6988
    %v6995 = vadd.f32 %v6713, %v6990
    %v6996 = vld [vmem:[#allocation3] sm:$0xe0]
    %v6997 = vld [vmem:[#allocation3 + $0x8] sm:$0xe0]
    %v6998 = vld [vmem:[#allocation3 + $0x10] sm:$0xe0]
    %v6999 = vld [vmem:[#allocation3 + $0x30] sm:$0x1f]
    %v7000 = vld [vmem:[#allocation3 + $0x38] sm:$0x1f]
    %v7001 = vld [vmem:[#allocation3 + $0x40] sm:$0x1f]
    %s7002 = scalar_lea.vmem [#allocation8], 3520
    %v7003 = vld [vmem:[%s7002] sm:$0xff]
    %v7004 = vld [vmem:[%s7002 + $0x8] sm:$0xff]
    %v7005 = vld [vmem:[%s7002 + $0x10] sm:$0xff]
    %v7006 = vld [vmem:[%s7002 + $0x18] sm:$0xff]
    %v7007 = vld [vmem:[%s7002 + $0x20] sm:$0xff]
    %v7008 = vld [vmem:[%s7002 + $0x28] sm:$0xff]
    %v7009 = vld [vmem:[%s7002 + $0x30] sm:$0xff]
    %v7010 = vld [vmem:[%s7002 + $0x38] sm:$0xff]
    %v7011 = vld [vmem:[%s7002 + $0x40] sm:$0xff]
    %v7012 = vld [vmem:[%s7002 + $0x48] sm:$0xff]
    %v7013 = vld [vmem:[%s7002 + $0x50] sm:$0xff]
    %v7014 = vld [vmem:[%s7002 + $0x58] sm:$0xff]
    %v7015 = vld [vmem:[%s7002 + $0x60] sm:$0xff]
    %v7016 = vld [vmem:[%s7002 + $0x68] sm:$0xff]
    %v7017 = vld [vmem:[%s7002 + $0x70] sm:$0xff]
    %v7018 = vld [vmem:[%s7002 + $0x78] sm:$0xff]
    %v7019 = vld [vmem:[%s7002 + $0x80] sm:$0xff]
    %v7020 = vld [vmem:[%s7002 + $0x88] sm:$0xff]
    %v7021 = vld [vmem:[%s7002 + $0x90] sm:$0xff]
    %v7022 = vld [vmem:[%s7002 + $0x98] sm:$0xff]
    %v7023 = vld [vmem:[%s7002 + $0xa0] sm:$0xff]
    %v7024 = vld [vmem:[%s7002 + $0xa8] sm:$0xff]
    %v7025 = vld [vmem:[%s7002 + $0xb0] sm:$0xff]
    %v7026 = vld [vmem:[%s7002 + $0xb8] sm:$0xff]
    %v7027 = vld [vmem:[%s7002 + $0xc0] sm:$0xff]
    %v7028 = vld [vmem:[%s7002 + $0xc8] sm:$0xff]
    %v7029 = vld [vmem:[%s7002 + $0xd0] sm:$0xff]
    %v7030 = vld [vmem:[%s7002 + $0xd8] sm:$0xff]
    %v7031 = vld [vmem:[%s7002 + $0xe0] sm:$0xff]
    %v7032 = vld [vmem:[%s7002 + $0xe8] sm:$0xff]
    %v7033 = vld [vmem:[%s7002 + $0xf0] sm:$0xff]
    %v7034 = vld [vmem:[%s7002 + $0xf8] sm:$0xff]
    %v7035 = vld [vmem:[%s7002 + $0x100] sm:$0xff]
    %v7036 = vld [vmem:[%s7002 + $0x108] sm:$0xff]
    %v7037 = vld [vmem:[%s7002 + $0x110] sm:$0xff]
    %v7038 = vld [vmem:[%s7002 + $0x118] sm:$0xff]
    %v7039 = vld [vmem:[%s7002 + $0x120] sm:$0xff]
    %v7040 = vld [vmem:[%s7002 + $0x128] sm:$0xff]
    %v7041 = vld [vmem:[%s7002 + $0x130] sm:$0xff]
    %v7042 = vld [vmem:[%s7002 + $0x138] sm:$0xff]
    %v7043 = vld [vmem:[%s7002 + $0x140] sm:$0xff]
    %v7044 = vld [vmem:[%s7002 + $0x148] sm:$0xff]
    %v7045 = vld [vmem:[%s7002 + $0x150] sm:$0xff]
    %v7046 = vld [vmem:[%s7002 + $0x158] sm:$0xff]
    %v7047 = vld [vmem:[%s7002 + $0x160] sm:$0xff]
    %v7048 = vld [vmem:[%s7002 + $0x168] sm:$0xff]
    %v7049 = vld [vmem:[%s7002 + $0x170] sm:$0xff]
    %v7050 = vld [vmem:[%s7002 + $0x178] sm:$0xff]
    %v7051 = vld [vmem:[%s7002 + $0x180] sm:$0xff]
    %v7052 = vld [vmem:[%s7002 + $0x188] sm:$0xff]
    %v7053 = vld [vmem:[%s7002 + $0x190] sm:$0xff]
    %v7054 = vld [vmem:[%s7002 + $0x198] sm:$0xff]
    %v7055 = vld [vmem:[%s7002 + $0x1a0] sm:$0xff]
    %v7056 = vld [vmem:[%s7002 + $0x1a8] sm:$0xff]
    %v7057 = vld [vmem:[%s7002 + $0x1b0] sm:$0xff]
    %v7058 = vld [vmem:[%s7002 + $0x1b8] sm:$0xff]
    %v7059 = vld [vmem:[%s7002 + $0x1c0] sm:$0xff]
    %v7060 = vld [vmem:[%s7002 + $0x1c8] sm:$0xff]
    %v7061 = vld [vmem:[%s7002 + $0x1d0] sm:$0xff]
    %v7062 = vld [vmem:[%s7002 + $0x1d8] sm:$0xff]
    %v7063 = vld [vmem:[%s7002 + $0x1e0] sm:$0xff]
    %v7064 = vld [vmem:[%s7002 + $0x1e8] sm:$0xff]
    %v7065 = vld [vmem:[%s7002 + $0x1f0] sm:$0xff]
    %v7066 = vld [vmem:[%s7002 + $0x1f8] sm:$0xff]
    %v7067 = vld [vmem:[%s7002 + $0x200] sm:$0xff]
    %v7068 = vld [vmem:[%s7002 + $0x208] sm:$0xff]
    %v7069 = vld [vmem:[%s7002 + $0x210] sm:$0xff]
    %v7070 = vld [vmem:[%s7002 + $0x218] sm:$0xff]
    %v7071 = vld [vmem:[%s7002 + $0x220] sm:$0xff]
    %v7072 = vld [vmem:[%s7002 + $0x228] sm:$0xff]
    %v7073 = vld [vmem:[%s7002 + $0x230] sm:$0xff]
    %v7074 = vld [vmem:[%s7002 + $0x238] sm:$0xff]
    %v7075 = vld [vmem:[%s7002 + $0x240] sm:$0xff]
    %v7076 = vld [vmem:[%s7002 + $0x248] sm:$0xff]
    %v7077 = vld [vmem:[%s7002 + $0x250] sm:$0xff]
    %v7078 = vld [vmem:[%s7002 + $0x258] sm:$0xff]
    %v7079 = vld [vmem:[%s7002 + $0x260] sm:$0xff]
    %v7080 = vld [vmem:[%s7002 + $0x268] sm:$0xff]
    %v7081 = vld [vmem:[%s7002 + $0x270] sm:$0xff]
    %v7082 = vld [vmem:[%s7002 + $0x278] sm:$0xff]
    %v7083 = vld [vmem:[%s7002 + $0x280] sm:$0xff]
    %v7084 = vld [vmem:[%s7002 + $0x288] sm:$0xff]
    %v7085 = vld [vmem:[%s7002 + $0x290] sm:$0xff]
    %v7086 = vld [vmem:[%s7002 + $0x298] sm:$0xff]
    %v7087 = vld [vmem:[%s7002 + $0x2a0] sm:$0xff]
    %v7088 = vld [vmem:[%s7002 + $0x2a8] sm:$0xff]
    %v7089 = vld [vmem:[%s7002 + $0x2b0] sm:$0xff]
    %v7090 = vld [vmem:[%s7002 + $0x2b8] sm:$0xff]
    %v7097 = vrot.slane %v6996, 5
    %v7098 = vrot.slane %v5619, 5
    %v7099 = vsel %vm131, %v7097, %v7098
    %v7100 = vrot.slane %v6997, 5
    %v7101 = vrot.slane %v5620, 5
    %v7102 = vsel %vm131, %v7100, %v7101
    %v7103 = vrot.slane %v6998, 5
    %v7104 = vrot.slane %v5621, 5
    %v7105 = vsel %vm131, %v7103, %v7104
    %v7106 = vrot.slane %v6999, 5
    %v7107 = vsel %vm131, %v7098, %v7106
    %v7108 = vrot.slane %v7000, 5
    %v7109 = vsel %vm131, %v7101, %v7108
    %v7110 = vrot.slane %v7001, 5
    %v7111 = vsel %vm131, %v7104, %v7110
    %v7116 = vsel %vm101, %v7105, 0
    %v7118 = vsel %vm101, %v7111, 0
    %7120 = vmatprep.subr.mxu0 %v7004
    %7121 = vmatpush1.msra.mxu0 %v7003
    %7122 = vmatprep.subr.mxu0 %v7006
    %7123 = vmatpush1.msra.mxu0 %v7005
    %7124 = vmatprep.subr.mxu0 %v7008
    %7125 = vmatpush1.msra.mxu0 %v7007
    %7126 = vmatprep.subr.mxu0 %v7010
    %7127 = vmatpush1.msra.mxu0 %v7009
    %7128 = vmatprep.subr.mxu0 %v7012
    %7129 = vmatpush1.msra.mxu0 %v7011
    %7130 = vmatprep.subr.mxu0 %v7014
    %7131 = vmatpush1.msra.mxu0 %v7013
    %7132 = vmatprep.subr.mxu0 %v7016
    %7133 = vmatpush1.msra.mxu0 %v7015
    %7134 = vmatprep.subr.mxu0 %v7018
    %7135 = vmatpush1.msra.mxu0 %v7017
    %7136 = vmatprep.subr.mxu0 %v7020
    %7137 = vmatpush1.msra.mxu0 %v7019
    %7138 = vmatprep.subr.mxu0 %v7022
    %7139 = vmatpush1.msra.mxu0 %v7021
    %7140 = vmatprep.subr.mxu0 %v7024
    %7141 = vmatpush1.msra.mxu0 %v7023
    %7142 = vmatprep.subr.mxu0 %v7026
    %7143 = vmatpush1.msra.mxu0 %v7025
    %7144 = vmatprep.subr.mxu0 %v7028
    %7145 = vmatpush1.msra.mxu0 %v7027
    %7146 = vmatprep.subr.mxu0 %v7030
    %7147 = vmatpush1.msra.mxu0 %v7029
    %7148 = vmatprep.subr.mxu0 %v7032
    %7149 = vmatpush1.msra.mxu0 %v7031
    %7150 = vmatprep.subr.mxu0 %v7034
    %7151 = vmatpush1.msra.mxu0 %v7033
    %7152 = vmatprep.subr.mxu0 %v7036
    %7153 = vmatpush1.msra.mxu0 %v7035
    %7154 = vmatprep.subr.mxu0 %v7038
    %7155 = vmatpush1.msra.mxu0 %v7037
    %7156 = vmatprep.subr.mxu0 %v7040
    %7157 = vmatpush1.msra.mxu0 %v7039
    %7158 = vmatprep.subr.mxu0 %v7042
    %7159 = vmatpush1.msra.mxu0 %v7041
    %7160 = vmatprep.subr.mxu0 %v7044
    %7161 = vmatpush1.msra.mxu0 %v7043
    %7162 = vmatprep.subr.mxu0 %v7046
    %7163 = vmatpush1.msra.mxu0 %v7045
    %7164 = vmatprep.subr.mxu0 %v7048
    %7165 = vmatpush1.msra.mxu0 %v7047
    %7166 = vmatprep.subr.mxu0 %v7050
    %7167 = vmatpush1.msra.mxu0 %v7049
    %7168 = vmatprep.subr.mxu0 %v7052
    %7169 = vmatpush1.msra.mxu0 %v7051
    %7170 = vmatprep.subr.mxu0 %v7054
    %7171 = vmatpush1.msra.mxu0 %v7053
    %7172 = vmatprep.subr.mxu0 %v7056
    %7173 = vmatpush1.msra.mxu0 %v7055
    %7174 = vmatprep.subr.mxu0 %v7058
    %7175 = vmatpush1.msra.mxu0 %v7057
    %7176 = vmatprep.subr.mxu0 %v7060
    %7177 = vmatpush1.msra.mxu0 %v7059
    %7178 = vmatprep.subr.mxu0 %v7062
    %7179 = vmatpush1.msra.mxu0 %v7061
    %7180 = vmatprep.subr.mxu0 %v7064
    %7181 = vmatpush1.msra.mxu0 %v7063
    %7182 = vmatprep.subr.mxu0 %v7066
    %7183 = vmatpush1.msra.mxu0 %v7065
    %7184 = vmatprep.mubr.f32.mxu0 %v7102
    %7185 = vmatmul.mubr.f32.gmra.mrb[0].mxu0 %v7099
    %v7186 = vpop.f32.mrb[0].mxu0
    %v7187 = vadd.f32 0.0, %v7186
    %v7188 = vpop.f32.mrb[0].mxu0
    %v7189 = vadd.f32 0.0, %v7188
    %7190 = vmatprep.mubr.f32.mxu0 %v7109
    %7191 = vmatmul.mubr.f32.gmra.mrb[0].mxu0 %v7107
    %v7192 = vpop.f32.mrb[0].mxu0
    %v7193 = vadd.f32 0.0, %v7192
    %v7194 = vpop.f32.mrb[0].mxu0
    %v7195 = vadd.f32 0.0, %v7194
    %7196 = vdwg.mxu0
    %7197 = vmatprep.subr.mxu0 %v7068
    %7198 = vmatpush1.msra.mxu0 %v7067
    %7199 = vmatprep.subr.mxu0 %v7070
    %7200 = vmatpush1.msra.mxu0 %v7069
    %7201 = vmatprep.subr.mxu0 %v7072
    %7202 = vmatpush1.msra.mxu0 %v7071
    %7203 = vmatprep.subr.mxu0 %v7074
    %7204 = vmatpush1.msra.mxu0 %v7073
    %7205 = vmatprep.subr.mxu0 %v7076
    %7206 = vmatpush1.msra.mxu0 %v7075
    %7207 = vmatprep.subr.mxu0 %v7078
    %7208 = vmatpush1.msra.mxu0 %v7077
    %7209 = vmatprep.subr.mxu0 %v7080
    %7210 = vmatpush1.msra.mxu0 %v7079
    %7211 = vmatprep.subr.mxu0 %v7082
    %7212 = vmatpush1.msra.mxu0 %v7081
    %7213 = vmatprep.subr.mxu0 %v7084
    %7214 = vmatpush1.msra.mxu0 %v7083
    %7215 = vmatprep.subr.mxu0 %v7086
    %7216 = vmatpush1.msra.mxu0 %v7085
    %7217 = vmatprep.subr.mxu0 %v7088
    %7218 = vmatpush1.msra.mxu0 %v7087
    %7219 = vmatprep.subr.mxu0 %v7090
    %7220 = vmatpush1.msra.mxu0 %v7089
    %7221 = vmatprep.subr.mxu0 0.0
    %7222 = vmatpush1.msra.mxu0 0.0
    %7223 = vmatprep.subr.mxu0 0.0
    %7224 = vmatpush1.msra.mxu0 0.0
    %7225 = vmatprep.subr.mxu0 0.0
    %7226 = vmatpush1.msra.mxu0 0.0
    %7227 = vmatprep.subr.mxu0 0.0
    %7228 = vmatpush1.msra.mxu0 0.0
    %7229 = vmatprep.subr.mxu0 0.0
    %7230 = vmatpush1.msra.mxu0 0.0
    %7231 = vmatprep.subr.mxu0 0.0
    %7232 = vmatpush1.msra.mxu0 0.0
    %7233 = vmatprep.subr.mxu0 0.0
    %7234 = vmatpush1.msra.mxu0 0.0
    %7235 = vmatprep.subr.mxu0 0.0
    %7236 = vmatpush1.msra.mxu0 0.0
    %7237 = vmatprep.subr.mxu0 0.0
    %7238 = vmatpush1.msra.mxu0 0.0
    %7239 = vmatprep.subr.mxu0 0.0
    %7240 = vmatpush1.msra.mxu0 0.0
    %7241 = vmatprep.subr.mxu0 0.0
    %7242 = vmatpush1.msra.mxu0 0.0
    %7243 = vmatprep.subr.mxu0 0.0
    %7244 = vmatpush1.msra.mxu0 0.0
    %7245 = vmatprep.subr.mxu0 0.0
    %7246 = vmatpush1.msra.mxu0 0.0
    %7247 = vmatprep.subr.mxu0 0.0
    %7248 = vmatpush1.msra.mxu0 0.0
    %7249 = vmatprep.subr.mxu0 0.0
    %7250 = vmatpush1.msra.mxu0 0.0
    %7251 = vmatprep.subr.mxu0 0.0
    %7252 = vmatpush1.msra.mxu0 0.0
    %7253 = vmatprep.subr.mxu0 0.0
    %7254 = vmatpush1.msra.mxu0 0.0
    %7255 = vmatprep.subr.mxu0 0.0
    %7256 = vmatpush1.msra.mxu0 0.0
    %7257 = vmatprep.subr.mxu0 0.0
    %7258 = vmatpush1.msra.mxu0 0.0
    %7259 = vmatprep.subr.mxu0 0.0
    %7260 = vmatpush1.msra.mxu0 0.0
    %7261 = vmatprep.mubr.f32.mxu0 0.0
    %7262 = vmatmul.mubr.f32.gmra.mrb[0].mxu0 %v7116
    %v7263 = vpop.f32.mrb[0].mxu0
    %v7264 = vadd.f32 %v7187, %v7263
    %v7265 = vpop.f32.mrb[0].mxu0
    %v7266 = vadd.f32 %v7189, %v7265
    %7267 = vmatprep.mubr.f32.mxu0 0.0
    %7268 = vmatmul.mubr.f32.gmra.mrb[0].mxu0 %v7118
    %v7269 = vpop.f32.mrb[0].mxu0
    %v7270 = vadd.f32 %v7193, %v7269
    %v7271 = vpop.f32.mrb[0].mxu0
    %v7272 = vadd.f32 %v7195, %v7271
    %7273 = vdwg.mxu0
    %v7274 = vadd.f32 %v6992, %v7264
    %v7275 = vadd.f32 %v6993, %v7266
    %v7276 = vadd.f32 %v6994, %v7270
    %v7277 = vadd.f32 %v6995, %v7272
    %v7278 = vld [vmem:[#allocation3] sm:$0xc0]
    %v7279 = vld [vmem:[#allocation3 + $0x8] sm:$0xc0]
    %v7280 = vld [vmem:[#allocation3 + $0x10] sm:$0xc0]
    %v7281 = vld [vmem:[#allocation3 + $0x30] sm:$0x3f]
    %v7282 = vld [vmem:[#allocation3 + $0x38] sm:$0x3f]
    %v7283 = vld [vmem:[#allocation3 + $0x40] sm:$0x3f]
    %s7284 = scalar_lea.vmem [#allocation8], 4224
    %v7285 = vld [vmem:[%s7284] sm:$0xff]
    %v7286 = vld [vmem:[%s7284 + $0x8] sm:$0xff]
    %v7287 = vld [vmem:[%s7284 + $0x10] sm:$0xff]
    %v7288 = vld [vmem:[%s7284 + $0x18] sm:$0xff]
    %v7289 = vld [vmem:[%s7284 + $0x20] sm:$0xff]
    %v7290 = vld [vmem:[%s7284 + $0x28] sm:$0xff]
    %v7291 = vld [vmem:[%s7284 + $0x30] sm:$0xff]
    %v7292 = vld [vmem:[%s7284 + $0x38] sm:$0xff]
    %v7293 = vld [vmem:[%s7284 + $0x40] sm:$0xff]
    %v7294 = vld [vmem:[%s7284 + $0x48] sm:$0xff]
    %v7295 = vld [vmem:[%s7284 + $0x50] sm:$0xff]
    %v7296 = vld [vmem:[%s7284 + $0x58] sm:$0xff]
    %v7297 = vld [vmem:[%s7284 + $0x60] sm:$0xff]
    %v7298 = vld [vmem:[%s7284 + $0x68] sm:$0xff]
    %v7299 = vld [vmem:[%s7284 + $0x70] sm:$0xff]
    %v7300 = vld [vmem:[%s7284 + $0x78] sm:$0xff]
    %v7301 = vld [vmem:[%s7284 + $0x80] sm:$0xff]
    %v7302 = vld [vmem:[%s7284 + $0x88] sm:$0xff]
    %v7303 = vld [vmem:[%s7284 + $0x90] sm:$0xff]
    %v7304 = vld [vmem:[%s7284 + $0x98] sm:$0xff]
    %v7305 = vld [vmem:[%s7284 + $0xa0] sm:$0xff]
    %v7306 = vld [vmem:[%s7284 + $0xa8] sm:$0xff]
    %v7307 = vld [vmem:[%s7284 + $0xb0] sm:$0xff]
    %v7308 = vld [vmem:[%s7284 + $0xb8] sm:$0xff]
    %v7309 = vld [vmem:[%s7284 + $0xc0] sm:$0xff]
    %v7310 = vld [vmem:[%s7284 + $0xc8] sm:$0xff]
    %v7311 = vld [vmem:[%s7284 + $0xd0] sm:$0xff]
    %v7312 = vld [vmem:[%s7284 + $0xd8] sm:$0xff]
    %v7313 = vld [vmem:[%s7284 + $0xe0] sm:$0xff]
    %v7314 = vld [vmem:[%s7284 + $0xe8] sm:$0xff]
    %v7315 = vld [vmem:[%s7284 + $0xf0] sm:$0xff]
    %v7316 = vld [vmem:[%s7284 + $0xf8] sm:$0xff]
    %v7317 = vld [vmem:[%s7284 + $0x100] sm:$0xff]
    %v7318 = vld [vmem:[%s7284 + $0x108] sm:$0xff]
    %v7319 = vld [vmem:[%s7284 + $0x110] sm:$0xff]
    %v7320 = vld [vmem:[%s7284 + $0x118] sm:$0xff]
    %v7321 = vld [vmem:[%s7284 + $0x120] sm:$0xff]
    %v7322 = vld [vmem:[%s7284 + $0x128] sm:$0xff]
    %v7323 = vld [vmem:[%s7284 + $0x130] sm:$0xff]
    %v7324 = vld [vmem:[%s7284 + $0x138] sm:$0xff]
    %v7325 = vld [vmem:[%s7284 + $0x140] sm:$0xff]
    %v7326 = vld [vmem:[%s7284 + $0x148] sm:$0xff]
    %v7327 = vld [vmem:[%s7284 + $0x150] sm:$0xff]
    %v7328 = vld [vmem:[%s7284 + $0x158] sm:$0xff]
    %v7329 = vld [vmem:[%s7284 + $0x160] sm:$0xff]
    %v7330 = vld [vmem:[%s7284 + $0x168] sm:$0xff]
    %v7331 = vld [vmem:[%s7284 + $0x170] sm:$0xff]
    %v7332 = vld [vmem:[%s7284 + $0x178] sm:$0xff]
    %v7333 = vld [vmem:[%s7284 + $0x180] sm:$0xff]
    %v7334 = vld [vmem:[%s7284 + $0x188] sm:$0xff]
    %v7335 = vld [vmem:[%s7284 + $0x190] sm:$0xff]
    %v7336 = vld [vmem:[%s7284 + $0x198] sm:$0xff]
    %v7337 = vld [vmem:[%s7284 + $0x1a0] sm:$0xff]
    %v7338 = vld [vmem:[%s7284 + $0x1a8] sm:$0xff]
    %v7339 = vld [vmem:[%s7284 + $0x1b0] sm:$0xff]
    %v7340 = vld [vmem:[%s7284 + $0x1b8] sm:$0xff]
    %v7341 = vld [vmem:[%s7284 + $0x1c0] sm:$0xff]
    %v7342 = vld [vmem:[%s7284 + $0x1c8] sm:$0xff]
    %v7343 = vld [vmem:[%s7284 + $0x1d0] sm:$0xff]
    %v7344 = vld [vmem:[%s7284 + $0x1d8] sm:$0xff]
    %v7345 = vld [vmem:[%s7284 + $0x1e0] sm:$0xff]
    %v7346 = vld [vmem:[%s7284 + $0x1e8] sm:$0xff]
    %v7347 = vld [vmem:[%s7284 + $0x1f0] sm:$0xff]
    %v7348 = vld [vmem:[%s7284 + $0x1f8] sm:$0xff]
    %v7349 = vld [vmem:[%s7284 + $0x200] sm:$0xff]
    %v7350 = vld [vmem:[%s7284 + $0x208] sm:$0xff]
    %v7351 = vld [vmem:[%s7284 + $0x210] sm:$0xff]
    %v7352 = vld [vmem:[%s7284 + $0x218] sm:$0xff]
    %v7353 = vld [vmem:[%s7284 + $0x220] sm:$0xff]
    %v7354 = vld [vmem:[%s7284 + $0x228] sm:$0xff]
    %v7355 = vld [vmem:[%s7284 + $0x230] sm:$0xff]
    %v7356 = vld [vmem:[%s7284 + $0x238] sm:$0xff]
    %v7357 = vld [vmem:[%s7284 + $0x240] sm:$0xff]
    %v7358 = vld [vmem:[%s7284 + $0x248] sm:$0xff]
    %v7359 = vld [vmem:[%s7284 + $0x250] sm:$0xff]
    %v7360 = vld [vmem:[%s7284 + $0x258] sm:$0xff]
    %v7361 = vld [vmem:[%s7284 + $0x260] sm:$0xff]
    %v7362 = vld [vmem:[%s7284 + $0x268] sm:$0xff]
    %v7363 = vld [vmem:[%s7284 + $0x270] sm:$0xff]
    %v7364 = vld [vmem:[%s7284 + $0x278] sm:$0xff]
    %v7365 = vld [vmem:[%s7284 + $0x280] sm:$0xff]
    %v7366 = vld [vmem:[%s7284 + $0x288] sm:$0xff]
    %v7367 = vld [vmem:[%s7284 + $0x290] sm:$0xff]
    %v7368 = vld [vmem:[%s7284 + $0x298] sm:$0xff]
    %v7369 = vld [vmem:[%s7284 + $0x2a0] sm:$0xff]
    %v7370 = vld [vmem:[%s7284 + $0x2a8] sm:$0xff]
    %v7371 = vld [vmem:[%s7284 + $0x2b0] sm:$0xff]
    %v7372 = vld [vmem:[%s7284 + $0x2b8] sm:$0xff]
    %v7379 = vrot.slane %v7278, 6
    %v7380 = vrot.slane %v5619, 6
    %v7381 = vsel %vm3243, %v7379, %v7380
    %v7382 = vrot.slane %v7279, 6
    %v7383 = vrot.slane %v5620, 6
    %v7384 = vsel %vm3243, %v7382, %v7383
    %v7385 = vrot.slane %v7280, 6
    %v7386 = vrot.slane %v5621, 6
    %v7387 = vsel %vm3243, %v7385, %v7386
    %v7388 = vrot.slane %v7281, 6
    %v7389 = vsel %vm3243, %v7380, %v7388
    %v7390 = vrot.slane %v7282, 6
    %v7391 = vsel %vm3243, %v7383, %v7390
    %v7392 = vrot.slane %v7283, 6
    %v7393 = vsel %vm3243, %v7386, %v7392
    %v7398 = vsel %vm101, %v7387, 0
    %v7400 = vsel %vm101, %v7393, 0
    %7402 = vmatprep.subr.mxu0 %v7286
    %7403 = vmatpush1.msra.mxu0 %v7285
    %7404 = vmatprep.subr.mxu0 %v7288
    %7405 = vmatpush1.msra.mxu0 %v7287
    %7406 = vmatprep.subr.mxu0 %v7290
    %7407 = vmatpush1.msra.mxu0 %v7289
    %7408 = vmatprep.subr.mxu0 %v7292
    %7409 = vmatpush1.msra.mxu0 %v7291
    %7410 = vmatprep.subr.mxu0 %v7294
    %7411 = vmatpush1.msra.mxu0 %v7293
    %7412 = vmatprep.subr.mxu0 %v7296
    %7413 = vmatpush1.msra.mxu0 %v7295
    %7414 = vmatprep.subr.mxu0 %v7298
    %7415 = vmatpush1.msra.mxu0 %v7297
    %7416 = vmatprep.subr.mxu0 %v7300
    %7417 = vmatpush1.msra.mxu0 %v7299
    %7418 = vmatprep.subr.mxu0 %v7302
    %7419 = vmatpush1.msra.mxu0 %v7301
    %7420 = vmatprep.subr.mxu0 %v7304
    %7421 = vmatpush1.msra.mxu0 %v7303
    %7422 = vmatprep.subr.mxu0 %v7306
    %7423 = vmatpush1.msra.mxu0 %v7305
    %7424 = vmatprep.subr.mxu0 %v7308
    %7425 = vmatpush1.msra.mxu0 %v7307
    %7426 = vmatprep.subr.mxu0 %v7310
    %7427 = vmatpush1.msra.mxu0 %v7309
    %7428 = vmatprep.subr.mxu0 %v7312
    %7429 = vmatpush1.msra.mxu0 %v7311
    %7430 = vmatprep.subr.mxu0 %v7314
    %7431 = vmatpush1.msra.mxu0 %v7313
    %7432 = vmatprep.subr.mxu0 %v7316
    %7433 = vmatpush1.msra.mxu0 %v7315
    %7434 = vmatprep.subr.mxu0 %v7318
    %7435 = vmatpush1.msra.mxu0 %v7317
    %7436 = vmatprep.subr.mxu0 %v7320
    %7437 = vmatpush1.msra.mxu0 %v7319
    %7438 = vmatprep.subr.mxu0 %v7322
    %7439 = vmatpush1.msra.mxu0 %v7321
    %7440 = vmatprep.subr.mxu0 %v7324
    %7441 = vmatpush1.msra.mxu0 %v7323
    %7442 = vmatprep.subr.mxu0 %v7326
    %7443 = vmatpush1.msra.mxu0 %v7325
    %7444 = vmatprep.subr.mxu0 %v7328
    %7445 = vmatpush1.msra.mxu0 %v7327
    %7446 = vmatprep.subr.mxu0 %v7330
    %7447 = vmatpush1.msra.mxu0 %v7329
    %7448 = vmatprep.subr.mxu0 %v7332
    %7449 = vmatpush1.msra.mxu0 %v7331
    %7450 = vmatprep.subr.mxu0 %v7334
    %7451 = vmatpush1.msra.mxu0 %v7333
    %7452 = vmatprep.subr.mxu0 %v7336
    %7453 = vmatpush1.msra.mxu0 %v7335
    %7454 = vmatprep.subr.mxu0 %v7338
    %7455 = vmatpush1.msra.mxu0 %v7337
    %7456 = vmatprep.subr.mxu0 %v7340
    %7457 = vmatpush1.msra.mxu0 %v7339
    %7458 = vmatprep.subr.mxu0 %v7342
    %7459 = vmatpush1.msra.mxu0 %v7341
    %7460 = vmatprep.subr.mxu0 %v7344
    %7461 = vmatpush1.msra.mxu0 %v7343
    %7462 = vmatprep.subr.mxu0 %v7346
    %7463 = vmatpush1.msra.mxu0 %v7345
    %7464 = vmatprep.subr.mxu0 %v7348
    %7465 = vmatpush1.msra.mxu0 %v7347
    %7466 = vmatprep.mubr.f32.mxu0 %v7384
    %7467 = vmatmul.mubr.f32.gmra.mrb[0].mxu0 %v7381
    %v7468 = vpop.f32.mrb[0].mxu0
    %v7469 = vadd.f32 0.0, %v7468
    %v7470 = vpop.f32.mrb[0].mxu0
    %v7471 = vadd.f32 0.0, %v7470
    %7472 = vmatprep.mubr.f32.mxu0 %v7391
    %7473 = vmatmul.mubr.f32.gmra.mrb[0].mxu0 %v7389
    %v7474 = vpop.f32.mrb[0].mxu0
    %v7475 = vadd.f32 0.0, %v7474
    %v7476 = vpop.f32.mrb[0].mxu0
    %v7477 = vadd.f32 0.0, %v7476
    %7478 = vdwg.mxu0
    %7479 = vmatprep.subr.mxu0 %v7350
    %7480 = vmatpush1.msra.mxu0 %v7349
    %7481 = vmatprep.subr.mxu0 %v7352
    %7482 = vmatpush1.msra.mxu0 %v7351
    %7483 = vmatprep.subr.mxu0 %v7354
    %7484 = vmatpush1.msra.mxu0 %v7353
    %7485 = vmatprep.subr.mxu0 %v7356
    %7486 = vmatpush1.msra.mxu0 %v7355
    %7487 = vmatprep.subr.mxu0 %v7358
    %7488 = vmatpush1.msra.mxu0 %v7357
    %7489 = vmatprep.subr.mxu0 %v7360
    %7490 = vmatpush1.msra.mxu0 %v7359
    %7491 = vmatprep.subr.mxu0 %v7362
    %7492 = vmatpush1.msra.mxu0 %v7361
    %7493 = vmatprep.subr.mxu0 %v7364
    %7494 = vmatpush1.msra.mxu0 %v7363
    %7495 = vmatprep.subr.mxu0 %v7366
    %7496 = vmatpush1.msra.mxu0 %v7365
    %7497 = vmatprep.subr.mxu0 %v7368
    %7498 = vmatpush1.msra.mxu0 %v7367
    %7499 = vmatprep.subr.mxu0 %v7370
    %7500 = vmatpush1.msra.mxu0 %v7369
    %7501 = vmatprep.subr.mxu0 %v7372
    %7502 = vmatpush1.msra.mxu0 %v7371
    %7503 = vmatprep.subr.mxu0 0.0
    %7504 = vmatpush1.msra.mxu0 0.0
    %7505 = vmatprep.subr.mxu0 0.0
    %7506 = vmatpush1.msra.mxu0 0.0
    %7507 = vmatprep.subr.mxu0 0.0
    %7508 = vmatpush1.msra.mxu0 0.0
    %7509 = vmatprep.subr.mxu0 0.0
    %7510 = vmatpush1.msra.mxu0 0.0
    %7511 = vmatprep.subr.mxu0 0.0
    %7512 = vmatpush1.msra.mxu0 0.0
    %7513 = vmatprep.subr.mxu0 0.0
    %7514 = vmatpush1.msra.mxu0 0.0
    %7515 = vmatprep.subr.mxu0 0.0
    %7516 = vmatpush1.msra.mxu0 0.0
    %7517 = vmatprep.subr.mxu0 0.0
    %7518 = vmatpush1.msra.mxu0 0.0
    %7519 = vmatprep.subr.mxu0 0.0
    %7520 = vmatpush1.msra.mxu0 0.0
    %7521 = vmatprep.subr.mxu0 0.0
    %7522 = vmatpush1.msra.mxu0 0.0
    %7523 = vmatprep.subr.mxu0 0.0
    %7524 = vmatpush1.msra.mxu0 0.0
    %7525 = vmatprep.subr.mxu0 0.0
    %7526 = vmatpush1.msra.mxu0 0.0
    %7527 = vmatprep.subr.mxu0 0.0
    %7528 = vmatpush1.msra.mxu0 0.0
    %7529 = vmatprep.subr.mxu0 0.0
    %7530 = vmatpush1.msra.mxu0 0.0
    %7531 = vmatprep.subr.mxu0 0.0
    %7532 = vmatpush1.msra.mxu0 0.0
    %7533 = vmatprep.subr.mxu0 0.0
    %7534 = vmatpush1.msra.mxu0 0.0
    %7535 = vmatprep.subr.mxu0 0.0
    %7536 = vmatpush1.msra.mxu0 0.0
    %7537 = vmatprep.subr.mxu0 0.0
    %7538 = vmatpush1.msra.mxu0 0.0
    %7539 = vmatprep.subr.mxu0 0.0
    %7540 = vmatpush1.msra.mxu0 0.0
    %7541 = vmatprep.subr.mxu0 0.0
    %7542 = vmatpush1.msra.mxu0 0.0
    %7543 = vmatprep.mubr.f32.mxu0 0.0
    %7544 = vmatmul.mubr.f32.gmra.mrb[0].mxu0 %v7398
    %v7545 = vpop.f32.mrb[0].mxu0
    %v7546 = vadd.f32 %v7469, %v7545
    %v7547 = vpop.f32.mrb[0].mxu0
    %v7548 = vadd.f32 %v7471, %v7547
    %7549 = vmatprep.mubr.f32.mxu0 0.0
    %7550 = vmatmul.mubr.f32.gmra.mrb[0].mxu0 %v7400
    %v7551 = vpop.f32.mrb[0].mxu0
    %v7552 = vadd.f32 %v7475, %v7551
    %v7553 = vpop.f32.mrb[0].mxu0
    %v7554 = vadd.f32 %v7477, %v7553
    %7555 = vdwg.mxu0
    %v7556 = vadd.f32 %v7274, %v7546
    %v7557 = vadd.f32 %v7275, %v7548
    %v7558 = vadd.f32 %v7276, %v7552
    %v7559 = vadd.f32 %v7277, %v7554
    %v7560 = vlaneseq
    %v7561 = vshrl.u32 %v7560, 7
    %v7562 = vsub.s32 2, %v7561
    %v7563 = vrot.slane %v110, %v7562
    %v7564 = vlaneseq
    %v7565 = vshrl.u32 %v7564, 7
    %v7566 = vsub.s32 6, %v7565
    %v7567 = vrot.slane %v110, %v7566
    %v7570 = vlaneseq
    %v7571 = vshrl.u32 %v7570, 7
    %v7572 = vsub.s32 2, %v7571
    %v7573 = vrot.slane %v7563, %v7572
    %v7574 = vlaneseq
    %v7575 = vshrl.u32 %v7574, 7
    %v7576 = vsub.s32 2, %v7575
    %v7577 = vrot.slane %v7567, %v7576
    %v7578 = vadd.f32 %v7556, %v7573
    %v7579 = vadd.f32 %v7557, %v7577
    %v7580 = vadd.f32 %v7558, %v7573
    %v7581 = vadd.f32 %v7559, %v7577
    %v7582 = vmax.f32 %v7578, 0.0
    %v7583 = vmax.f32 %v7579, 0.0
    %v7584 = vmax.f32 %v7580, 0.0
    %v7585 = vmax.f32 %v7581, 0.0
    %v7586 = vld [vmem:[%s2] sm:$0xff]
    %v7587 = vld [vmem:[%s2 + $0x8] sm:$0xff]
    %v7588 = vld [vmem:[%s2 + $0x10] sm:$0xff]
    %v7589 = vld [vmem:[%s2 + $0x18] sm:$0xff]
    %v7590 = vadd.f32 %v7582, %v7586
    %v7591 = vadd.f32 %v7583, %v7587
    %v7592 = vadd.f32 %v7584, %v7588
    %v7593 = vadd.f32 %v7585, %v7589
    %7594 = vst [vmem:[%s7] sm:$0xff] %v7590
    %7595 = vst [vmem:[%s7 + $0x8] sm:$0xff] %v7591
    %7596 = vst [vmem:[%s7 + $0x10] sm:$0xff] %v7592
    %7597 = vst [vmem:[%s7 + $0x18] sm:$0xff] %v7593
    // Predicated region
    $region46: #{model_forward.1} parent=1 // pred_check
      _
    $region47: #{model_forward.1} parent=1 // pred_check_branch
      %7599 = sbr.rel (0) target = $region49
    $region48: #{model_forward.1} parent=1 // pred_region
      _
    $region49: #{model_forward.1} parent=1 // pred_fallthru
      _
    // Predicated region
    $region50: #{model_forward.1} parent=1 // pred_check
      _
    $region51: #{model_forward.1} parent=1 // pred_check_branch
      %7601 = sbr.rel (0) target = $region53
    $region52: #{model_forward.1} parent=1 // pred_region
      _
    $region53: #{model_forward.1} parent=1 // pred_fallthru
      _
    %7602 = vsyncpa [#allocation5], 1
    %7603 = vsyncpa [#allocation7], 1
    %7604 = vsyncpa [#allocation10], 1

</llo_original>
